<compile_context>
chip_gen: v5e
topology: v5e:2x2
jax: 0.10.0
libtpu: 0.0.40
codegen_flags: <defaults>
</compile_context>

<pallas_src>
import jax
import jax.numpy as jnp
from jax.experimental import pallas as pl
from jax.experimental.pallas import tpu as pltpu

LAYER_SIZES = [(1, 20), (20, 10), (10, 10), (10, 250), (250, 500), (500, 28 * 28)]
OUT_DIM = 28 * 28          # 784 (true output width; no column padding in the output)
TB_MAX = 1024              # max batch rows per grid step


def _round_up(n, m):
    return (n + m - 1) // m * m


def _cdiv(a, b):
    return (a + b - 1) // b


# ----------------------------------------------------------------------------
# Kernel: one batch tile of the whole MLP.
# ----------------------------------------------------------------------------
def _mlp_kernel(x_ref,
                w1_ref, b1_ref, w2_ref, b2_ref, w3_ref, b3_ref,
                w4_ref, b4_ref, w5_ref, b5_ref, w6_ref, b6_ref,
                o_ref):
    x = x_ref[...]                                            # (TB, 1) f32

    # Layer 1: K=1 -> outer product on the VPU; keeps the MXU slot free.
    h = jnp.maximum(x * w1_ref[...] + b1_ref[...], 0.0)       # (TB, 20) f32
    h = h.astype(jnp.bfloat16)

    def dense_relu(h_bf16, w_ref, b_ref):
        # bf16 operands, f32 MXU accumulation; bias + ReLU in f32, back to bf16.
        y = jnp.dot(h_bf16, w_ref[...],
                    preferred_element_type=jnp.float32) + b_ref[...]
        return jnp.maximum(y, 0.0).astype(jnp.bfloat16)

    h = dense_relu(h, w2_ref, b2_ref)                         # (TB, 10)
    h = dense_relu(h, w3_ref, b3_ref)                         # (TB, 10)
    h = dense_relu(h, w4_ref, b4_ref)                         # (TB, 256)  (250 + pad)
    h = dense_relu(h, w5_ref, b5_ref)                         # (TB, 512)  (500 + pad)

    # Layer 6 + sigmoid. w6 keeps the true 784 output columns -> lane-dense
    # store with only the last 16 lanes masked; no wrapper slice needed.
    logits = jnp.dot(h, w6_ref[...],
                     preferred_element_type=jnp.float32) + b6_ref[...]  # (TB, 784) f32
    # sigmoid = 1 / (1 + exp(-x)): exp and the approx reciprocal both run on
    # the EUP slot, leaving the VALU slots free for the pipelined epilogue.
    sig = pl.reciprocal(1.0 + jnp.exp(-logits), approx=True)
    o_ref[...] = sig.astype(o_ref.dtype)


# ----------------------------------------------------------------------------
# Wrapper
# ----------------------------------------------------------------------------
def label_to_image_net(x, prepared_params, *, tb_max=TB_MAX, out_dtype=jnp.float32):
    """x: (B, 1) float32.  prepared_params: output of prepare_params().
    Returns (B, 784) `out_dtype` (default float32) in [0, 1]."""
    B = x.shape[0]
    x = x.astype(jnp.float32)

    # Batch tiling: largest tile <= tb_max with bounded padding (<~8 rows per
    # grid step); force >=2 steps when there is enough work so the "parallel"
    # batch axis can be split across both v7x TensorCores.
    b8 = _round_up(max(B, 8), 8)
    n_steps = _cdiv(b8, tb_max)
    if b8 >= 512:
        n_steps = max(n_steps, 2)
    tile_b = _round_up(_cdiv(b8, n_steps), 8)
    b_pad = tile_b * n_steps
    if b_pad != B:
        x = jnp.pad(x, ((0, b_pad - B), (0, 0)))

    flat = []
    for w, b in prepared_params:
        flat += [w, b]

    x_spec = pl.BlockSpec((tile_b, 1), lambda i: (i, 0))
    # Weights / biases: full-array, grid-invariant blocks -> DMA'd to VMEM once
    # and resident there while x / out tiles stream through the pipeline.
    param_specs = [pl.BlockSpec(p.shape, lambda i: (0, 0)) for p in flat]
    out_spec = pl.BlockSpec((tile_b, OUT_DIM), lambda i: (i, 0))

    out = pl.pallas_call(
        _mlp_kernel,
        out_shape=jax.ShapeDtypeStruct((b_pad, OUT_DIM), out_dtype),
        grid=(n_steps,),
        in_specs=[x_spec] + param_specs,
        out_specs=out_spec,
        compiler_params=pltpu.CompilerParams(
            dimension_semantics=("parallel",),      # batch tiles are independent
            vmem_limit_bytes=32 * 1024 * 1024,      # TILE_B up to 1024 on v5e
        ),
    )(x, *flat)

    # No 896->784 column slice anymore; at most a tiny (<~8-row) row trim.
    return out if b_pad == B else out[:B]


# ----------------------------------------------------------------------------
# Parameter preparation: PyTorch layout -> kernel layout.
#   W (out,in) -> W^T (in_pad, out_pad); inner dims of the big layers padded
#   to lane multiples of 128 (250->256, 500->512), the FINAL output dim stays
#   at the true 784.  All matmul weights stored bf16 (f32 MXU accumulation in
#   kernel); layer-1 weight and all biases stay f32.
# ----------------------------------------------------------------------------
def prepare_params(params):
    prepped = []
    n = len(params)
    for idx, (w, b) in enumerate(params):
        fan_out, fan_in = w.shape
        wt = jnp.asarray(w).T.astype(jnp.float32)             # (in, out)
        bt = jnp.asarray(b).reshape(1, fan_out).astype(jnp.float32)

        in_pad = _round_up(fan_in, 128) if fan_in >= 128 else fan_in
        if idx == n - 1:
            out_pad = fan_out                                  # keep true 784
        elif fan_out >= 128:
            out_pad = _round_up(fan_out, 128)                  # 250->256, 500->512
        else:
            out_pad = fan_out

        wt = jnp.pad(wt, ((0, in_pad - fan_in), (0, out_pad - fan_out)))
        bt = jnp.pad(bt, ((0, 0), (0, out_pad - fan_out)))

        if idx == 0:
            prepped.append((wt, bt))                           # layer 1: f32 VPU
        else:
            prepped.append((wt.astype(jnp.bfloat16), bt))      # layers 2..6: bf16
    return prepped


# ----------------------------------------------------------------------------
# Deterministic parameter init (same shapes / init scheme as nn.Linear).
# ----------------------------------------------------------------------------
def init_params(key):
    params = []
    for (fan_in, fan_out) in LAYER_SIZES:
        key, kw, kb = jax.random.split(key, 3)
        bound = 1.0 / jnp.sqrt(jnp.float32(fan_in))
        w = jax.random.uniform(kw, (fan_out, fan_in), jnp.float32, -bound, bound)
        b = jax.random.uniform(kb, (fan_out,), jnp.float32, -bound, bound)
        params.append((w, b))
    return params


# ----------------------------------------------------------------------------
# References
# ----------------------------------------------------------------------------
def reference_prepared(x, pp):
    """Mirrors the kernel's dataflow (padding + bf16 casts) exactly."""
    (w1, b1), (w2, b2), (w3, b3), (w4, b4), (w5, b5), (w6, b6) = pp
    h = jnp.maximum(x * w1 + b1, 0.0).astype(jnp.bfloat16)
    for (w, b) in ((w2, b2), (w3, b3), (w4, b4), (w5, b5)):
        h = jnp.maximum(
            jnp.dot(h, w, preferred_element_type=jnp.float32) + b, 0.0
        ).astype(jnp.bfloat16)
    logits = jnp.dot(h, w6, preferred_element_type=jnp.float32) + b6
    return jax.nn.sigmoid(logits)                              # already (B, 784)


def reference_f32(x, params):
    """Pure f32 reference matching the original PyTorch module."""
    h = x
    for i, (w, b) in enumerate(params):
        h = h @ w.T + b
        if i < len(params) - 1:
            h = jnp.maximum(h, 0.0)
    return jax.nn.sigmoid(h)


if __name__ == "__main__":
    key = jax.random.PRNGKey(0)
    kx, kp = jax.random.split(key)

    # B=300 exercises the bounded batch padding (304 rows, only 4 dead) and
    # the masked 16-lane tail of the 784-wide lane-dense output store.
    B = 300
    x = jax.random.randint(kx, (B, 1), 0, 10).astype(jnp.float32)

    params = init_params(kp)            # PyTorch-layout (out,in) weights
    pp = prepare_params(params)         # kernel layout (padded / bf16)

    out = label_to_image_net(x, pp)
    out = jax.block_until_ready(out)
    assert out.shape == (B, OUT_DIM), out.shape

    # Strict check against a reference with identical bf16/padding dataflow
    # (only delta: the kernel's EUP approx-reciprocal sigmoid).
    ref_exact = reference_prepared(x, pp)
    assert jnp.allclose(out, ref_exact, atol=2e-3), "mismatch vs prepared reference"

    # Looser sanity check against the full-f32 original-module semantics
    # (difference is only the intentional bf16 storage of the weights).
    ref_f32 = reference_f32(x, params)
    assert jnp.allclose(out, ref_f32, atol=1e-1), "mismatch vs f32 reference"

    print("KERNEL_OK")
</pallas_src>

<mosaic_0001>
module attributes {stable_mosaic.version = 11 : i64} {
  func.func @_mlp_kernel(%arg0: i32, %arg1: memref<304x1xf32, #tpu.memory_space<vmem>>, %arg2: memref<1x20xf32, #tpu.memory_space<vmem>>, %arg3: memref<1x20xf32, #tpu.memory_space<vmem>>, %arg4: memref<20x10xbf16, #tpu.memory_space<vmem>>, %arg5: memref<1x10xf32, #tpu.memory_space<vmem>>, %arg6: memref<10x10xbf16, #tpu.memory_space<vmem>>, %arg7: memref<1x10xf32, #tpu.memory_space<vmem>>, %arg8: memref<10x256xbf16, #tpu.memory_space<vmem>>, %arg9: memref<1x256xf32, #tpu.memory_space<vmem>>, %arg10: memref<256x512xbf16, #tpu.memory_space<vmem>>, %arg11: memref<1x512xf32, #tpu.memory_space<vmem>>, %arg12: memref<512x784xbf16, #tpu.memory_space<vmem>>, %arg13: memref<1x784xf32, #tpu.memory_space<vmem>>, %arg14: memref<304x784xf32, #tpu.memory_space<vmem>>) attributes {dimension_semantics = [#tpu.dimension_semantics<parallel>], iteration_bounds = array<i64: 1>, scalar_prefetch = 0 : i64, scratch_operands = 0 : i64, tpu.core_type = #tpu.core_type<tc>, window_params = [{transform_indices = @transform_0, window_bounds = array<i64: 304, 1>}, {pipeline_mode = #tpu.pipeline_mode<synchronous>, transform_indices = @transform_1, window_bounds = array<i64: 1, 20>}, {pipeline_mode = #tpu.pipeline_mode<synchronous>, transform_indices = @transform_2, window_bounds = array<i64: 1, 20>}, {pipeline_mode = #tpu.pipeline_mode<synchronous>, transform_indices = @transform_3, window_bounds = array<i64: 20, 10>}, {pipeline_mode = #tpu.pipeline_mode<synchronous>, transform_indices = @transform_4, window_bounds = array<i64: 1, 10>}, {pipeline_mode = #tpu.pipeline_mode<synchronous>, transform_indices = @transform_5, window_bounds = array<i64: 10, 10>}, {pipeline_mode = #tpu.pipeline_mode<synchronous>, transform_indices = @transform_6, window_bounds = array<i64: 1, 10>}, {pipeline_mode = #tpu.pipeline_mode<synchronous>, transform_indices = @transform_7, window_bounds = array<i64: 10, 256>}, {pipeline_mode = #tpu.pipeline_mode<synchronous>, transform_indices = @transform_8, window_bounds = array<i64: 1, 256>}, {pipeline_mode = #tpu.pipeline_mode<synchronous>, transform_indices = @transform_9, window_bounds = array<i64: 256, 512>}, {pipeline_mode = #tpu.pipeline_mode<synchronous>, transform_indices = @transform_10, window_bounds = array<i64: 1, 512>}, {pipeline_mode = #tpu.pipeline_mode<synchronous>, transform_indices = @transform_11, window_bounds = array<i64: 512, 784>}, {pipeline_mode = #tpu.pipeline_mode<synchronous>, transform_indices = @transform_12, window_bounds = array<i64: 1, 784>}, {transform_indices = @transform_13, window_bounds = array<i64: 304, 784>}]} {
    %c0 = arith.constant 0 : index
    %c0_0 = arith.constant 0 : index
    %0 = vector.load %arg1[%c0, %c0_0] : memref<304x1xf32, #tpu.memory_space<vmem>>, vector<304x1xf32>
    %c0_1 = arith.constant 0 : index
    %c0_2 = arith.constant 0 : index
    %1 = vector.load %arg2[%c0_1, %c0_2] : memref<1x20xf32, #tpu.memory_space<vmem>>, vector<1x20xf32>
    %2 = vector.broadcast %0 : vector<304x1xf32> to vector<304x20xf32>
    %3 = vector.broadcast %1 : vector<1x20xf32> to vector<304x20xf32>
    %4 = arith.mulf %2, %3 : vector<304x20xf32>
    %c0_3 = arith.constant 0 : index
    %c0_4 = arith.constant 0 : index
    %5 = vector.load %arg3[%c0_3, %c0_4] : memref<1x20xf32, #tpu.memory_space<vmem>>, vector<1x20xf32>
    %6 = vector.broadcast %5 : vector<1x20xf32> to vector<304x20xf32>
    %7 = arith.addf %4, %6 : vector<304x20xf32>
    %cst = arith.constant 0.000000e+00 : f32
    %8 = vector.broadcast %cst : f32 to vector<304x20xf32>
    %9 = arith.maximumf %7, %8 : vector<304x20xf32>
    %10 = arith.truncf %9 : vector<304x20xf32> to vector<304x20xbf16>
    %c0_5 = arith.constant 0 : index
    %c0_6 = arith.constant 0 : index
    %11 = vector.load %arg4[%c0_5, %c0_6] : memref<20x10xbf16, #tpu.memory_space<vmem>>, vector<20x10xbf16>
    %cst_7 = arith.constant dense<0.000000e+00> : vector<304x10xf32>
    %12 = tpu.matmul %10, %11, %cst_7 {dimension_numbers = #tpu.dot_dimension_numbers<[1], [0], [0], [1], [0, 0, 1, 1], [], []>} : vector<304x20xbf16>, vector<20x10xbf16>, vector<304x10xf32> -> vector<304x10xf32>
    %c0_8 = arith.constant 0 : index
    %c0_9 = arith.constant 0 : index
    %13 = vector.load %arg5[%c0_8, %c0_9] : memref<1x10xf32, #tpu.memory_space<vmem>>, vector<1x10xf32>
    %14 = vector.broadcast %13 : vector<1x10xf32> to vector<304x10xf32>
    %15 = arith.addf %12, %14 : vector<304x10xf32>
    %cst_10 = arith.constant 0.000000e+00 : f32
    %16 = vector.broadcast %cst_10 : f32 to vector<304x10xf32>
    %17 = arith.maximumf %15, %16 : vector<304x10xf32>
    %18 = arith.truncf %17 : vector<304x10xf32> to vector<304x10xbf16>
    %c0_11 = arith.constant 0 : index
    %c0_12 = arith.constant 0 : index
    %19 = vector.load %arg6[%c0_11, %c0_12] : memref<10x10xbf16, #tpu.memory_space<vmem>>, vector<10x10xbf16>
    %cst_13 = arith.constant dense<0.000000e+00> : vector<304x10xf32>
    %20 = tpu.matmul %18, %19, %cst_13 {dimension_numbers = #tpu.dot_dimension_numbers<[1], [0], [0], [1], [0, 0, 1, 1], [], []>} : vector<304x10xbf16>, vector<10x10xbf16>, vector<304x10xf32> -> vector<304x10xf32>
    %c0_14 = arith.constant 0 : index
    %c0_15 = arith.constant 0 : index
    %21 = vector.load %arg7[%c0_14, %c0_15] : memref<1x10xf32, #tpu.memory_space<vmem>>, vector<1x10xf32>
    %22 = vector.broadcast %21 : vector<1x10xf32> to vector<304x10xf32>
    %23 = arith.addf %20, %22 : vector<304x10xf32>
    %cst_16 = arith.constant 0.000000e+00 : f32
    %24 = vector.broadcast %cst_16 : f32 to vector<304x10xf32>
    %25 = arith.maximumf %23, %24 : vector<304x10xf32>
    %26 = arith.truncf %25 : vector<304x10xf32> to vector<304x10xbf16>
    %c0_17 = arith.constant 0 : index
    %c0_18 = arith.constant 0 : index
    %27 = vector.load %arg8[%c0_17, %c0_18] : memref<10x256xbf16, #tpu.memory_space<vmem>>, vector<10x256xbf16>
    %cst_19 = arith.constant dense<0.000000e+00> : vector<304x256xf32>
    %28 = tpu.matmul %26, %27, %cst_19 {dimension_numbers = #tpu.dot_dimension_numbers<[1], [0], [0], [1], [0, 0, 1, 1], [], []>} : vector<304x10xbf16>, vector<10x256xbf16>, vector<304x256xf32> -> vector<304x256xf32>
    %c0_20 = arith.constant 0 : index
    %c0_21 = arith.constant 0 : index
    %29 = vector.load %arg9[%c0_20, %c0_21] : memref<1x256xf32, #tpu.memory_space<vmem>>, vector<1x256xf32>
    %30 = vector.broadcast %29 : vector<1x256xf32> to vector<304x256xf32>
    %31 = arith.addf %28, %30 : vector<304x256xf32>
    %cst_22 = arith.constant 0.000000e+00 : f32
    %32 = vector.broadcast %cst_22 : f32 to vector<304x256xf32>
    %33 = arith.maximumf %31, %32 : vector<304x256xf32>
    %34 = arith.truncf %33 : vector<304x256xf32> to vector<304x256xbf16>
    %c0_23 = arith.constant 0 : index
    %c0_24 = arith.constant 0 : index
    %35 = vector.load %arg10[%c0_23, %c0_24] : memref<256x512xbf16, #tpu.memory_space<vmem>>, vector<256x512xbf16>
    %cst_25 = arith.constant dense<0.000000e+00> : vector<304x512xf32>
    %36 = tpu.matmul %34, %35, %cst_25 {dimension_numbers = #tpu.dot_dimension_numbers<[1], [0], [0], [1], [0, 0, 1, 1], [], []>} : vector<304x256xbf16>, vector<256x512xbf16>, vector<304x512xf32> -> vector<304x512xf32>
    %c0_26 = arith.constant 0 : index
    %c0_27 = arith.constant 0 : index
    %37 = vector.load %arg11[%c0_26, %c0_27] : memref<1x512xf32, #tpu.memory_space<vmem>>, vector<1x512xf32>
    %38 = vector.broadcast %37 : vector<1x512xf32> to vector<304x512xf32>
    %39 = arith.addf %36, %38 : vector<304x512xf32>
    %cst_28 = arith.constant 0.000000e+00 : f32
    %40 = vector.broadcast %cst_28 : f32 to vector<304x512xf32>
    %41 = arith.maximumf %39, %40 : vector<304x512xf32>
    %42 = arith.truncf %41 : vector<304x512xf32> to vector<304x512xbf16>
    %c0_29 = arith.constant 0 : index
    %c0_30 = arith.constant 0 : index
    %43 = vector.load %arg12[%c0_29, %c0_30] : memref<512x784xbf16, #tpu.memory_space<vmem>>, vector<512x784xbf16>
    %cst_31 = arith.constant dense<0.000000e+00> : vector<304x784xf32>
    %44 = tpu.matmul %42, %43, %cst_31 {dimension_numbers = #tpu.dot_dimension_numbers<[1], [0], [0], [1], [0, 0, 1, 1], [], []>} : vector<304x512xbf16>, vector<512x784xbf16>, vector<304x784xf32> -> vector<304x784xf32>
    %c0_32 = arith.constant 0 : index
    %c0_33 = arith.constant 0 : index
    %45 = vector.load %arg13[%c0_32, %c0_33] : memref<1x784xf32, #tpu.memory_space<vmem>>, vector<1x784xf32>
    %46 = vector.broadcast %45 : vector<1x784xf32> to vector<304x784xf32>
    %47 = arith.addf %44, %46 : vector<304x784xf32>
    %cst_34 = arith.constant 0.000000e+00 : f32
    %48 = vector.broadcast %cst_34 : f32 to vector<304x784xf32>
    %49 = arith.subf %48, %47 : vector<304x784xf32>
    %50 = math.exp %49 : vector<304x784xf32>
    %cst_35 = arith.constant 1.000000e+00 : f32
    %51 = vector.broadcast %cst_35 : f32 to vector<304x784xf32>
    %52 = arith.addf %51, %50 : vector<304x784xf32>
    %53 = tpu.reciprocal %52 {approx = true} : vector<304x784xf32> -> vector<304x784xf32>
    %c0_36 = arith.constant 0 : index
    %c0_37 = arith.constant 0 : index
    %54 = vector.load %arg14[%c0_36, %c0_37] : memref<304x784xf32, #tpu.memory_space<vmem>>, vector<304x784xf32>
    tpu.vector_store %arg14[%c0_36, %c0_37], %53 {strides = array<i32>} : memref<304x784xf32, #tpu.memory_space<vmem>>, vector<304x784xf32>,
    return
  }
  func.func @transform_0(%arg0: i32) -> (i32, i32) {
    %c0_i32 = arith.constant 0 : i32
    %c0_i32_0 = arith.constant 0 : i32
    return %arg0, %c0_i32 : i32, i32
  }
  func.func @transform_1(%arg0: i32) -> (i32, i32) {
    %c0_i32 = arith.constant 0 : i32
    %c0_i32_0 = arith.constant 0 : i32
    %c0_i32_1 = arith.constant 0 : i32
    return %c0_i32, %c0_i32_0 : i32, i32
  }
  func.func @transform_2(%arg0: i32) -> (i32, i32) {
    %c0_i32 = arith.constant 0 : i32
    %c0_i32_0 = arith.constant 0 : i32
    %c0_i32_1 = arith.constant 0 : i32
    return %c0_i32, %c0_i32_0 : i32, i32
  }
  func.func @transform_3(%arg0: i32) -> (i32, i32) {
    %c0_i32 = arith.constant 0 : i32
    %c0_i32_0 = arith.constant 0 : i32
    %c0_i32_1 = arith.constant 0 : i32
    return %c0_i32, %c0_i32_0 : i32, i32
  }
  func.func @transform_4(%arg0: i32) -> (i32, i32) {
    %c0_i32 = arith.constant 0 : i32
    %c0_i32_0 = arith.constant 0 : i32
    %c0_i32_1 = arith.constant 0 : i32
    return %c0_i32, %c0_i32_0 : i32, i32
  }
  func.func @transform_5(%arg0: i32) -> (i32, i32) {
    %c0_i32 = arith.constant 0 : i32
    %c0_i32_0 = arith.constant 0 : i32
    %c0_i32_1 = arith.constant 0 : i32
    return %c0_i32, %c0_i32_0 : i32, i32
  }
  func.func @transform_6(%arg0: i32) -> (i32, i32) {
    %c0_i32 = arith.constant 0 : i32
    %c0_i32_0 = arith.constant 0 : i32
    %c0_i32_1 = arith.constant 0 : i32
    return %c0_i32, %c0_i32_0 : i32, i32
  }
  func.func @transform_7(%arg0: i32) -> (i32, i32) {
    %c0_i32 = arith.constant 0 : i32
    %c0_i32_0 = arith.constant 0 : i32
    %c0_i32_1 = arith.constant 0 : i32
    return %c0_i32, %c0_i32_0 : i32, i32
  }
  func.func @transform_8(%arg0: i32) -> (i32, i32) {
    %c0_i32 = arith.constant 0 : i32
    %c0_i32_0 = arith.constant 0 : i32
    %c0_i32_1 = arith.constant 0 : i32
    return %c0_i32, %c0_i32_0 : i32, i32
  }
  func.func @transform_9(%arg0: i32) -> (i32, i32) {
    %c0_i32 = arith.constant 0 : i32
    %c0_i32_0 = arith.constant 0 : i32
    %c0_i32_1 = arith.constant 0 : i32
    return %c0_i32, %c0_i32_0 : i32, i32
  }
  func.func @transform_10(%arg0: i32) -> (i32, i32) {
    %c0_i32 = arith.constant 0 : i32
    %c0_i32_0 = arith.constant 0 : i32
    %c0_i32_1 = arith.constant 0 : i32
    return %c0_i32, %c0_i32_0 : i32, i32
  }
  func.func @transform_11(%arg0: i32) -> (i32, i32) {
    %c0_i32 = arith.constant 0 : i32
    %c0_i32_0 = arith.constant 0 : i32
    %c0_i32_1 = arith.constant 0 : i32
    return %c0_i32, %c0_i32_0 : i32, i32
  }
  func.func @transform_12(%arg0: i32) -> (i32, i32) {
    %c0_i32 = arith.constant 0 : i32
    %c0_i32_0 = arith.constant 0 : i32
    %c0_i32_1 = arith.constant 0 : i32
    return %c0_i32, %c0_i32_0 : i32, i32
  }
  func.func @transform_13(%arg0: i32) -> (i32, i32) {
    %c0_i32 = arith.constant 0 : i32
    %c0_i32_0 = arith.constant 0 : i32
    return %arg0, %c0_i32 : i32, i32
  }
}

</mosaic_0001>

<llo_original>
// kernel: tpu_custom_call.1
$region0: #{tpu_custom_call.1}
  #allocation0 [shape = 'u32[]', space=smem, size = 0x4, offset = 0x4, fixed_abs, tag = 'smem constant byte address 0x4 - core index']
  #allocation1 [shape = 'u32[72,128]{1,0:T(1,128)}', space=vmem, size = 0x9000, scoped, tag = 'internal scratch']
  %s0 = inlined_call_operand.vmem [shape: f32[304,1], index: 0, kind: input, shape index: {}]
  %s1 = inlined_call_operand.vmem [shape: f32[1,20], index: 1, kind: input, shape index: {}]
  %s2 = inlined_call_operand.vmem [shape: f32[1,20], index: 2, kind: input, shape index: {}]
  %s3 = inlined_call_operand.vmem [shape: bf16[20,10], index: 3, kind: input, shape index: {}]
  %s4 = inlined_call_operand.vmem [shape: f32[1,10], index: 4, kind: input, shape index: {}]
  %s5 = inlined_call_operand.vmem [shape: bf16[10,10], index: 5, kind: input, shape index: {}]
  %s6 = inlined_call_operand.vmem [shape: f32[1,10], index: 6, kind: input, shape index: {}]
  %s7 = inlined_call_operand.vmem [shape: bf16[10,256], index: 7, kind: input, shape index: {}]
  %s8 = inlined_call_operand.vmem [shape: f32[1,256], index: 8, kind: input, shape index: {}]
  %s9 = inlined_call_operand.vmem [shape: bf16[256,512], index: 9, kind: input, shape index: {}]
  %s10 = inlined_call_operand.vmem [shape: f32[1,512], index: 10, kind: input, shape index: {}]
  %s11 = inlined_call_operand.vmem [shape: bf16[512,784], index: 11, kind: input, shape index: {}]
  %s12 = inlined_call_operand.vmem [shape: f32[1,784], index: 12, kind: input, shape index: {}]
  %s13 = inlined_call_operand.hbm [shape: f32[304,784], index: 13, kind: output, shape index: {}]
  %s14 = sld [smem:[#allocation0]]
  $region62: #{tpu_custom_call.1} parent=0
    _
  %s16 = ssub.s32 1, %s14
  %s17 = scalar_select 0, %s16, %s14
  $region1: #{tpu_custom_call.1} parent=0
    #allocation2 [shape = 'u8[1089536]{0}', space=vmem, size = 0x10a000, scoped, tag = 'output window, operand 0, single buffered']
    #allocation3 [shape = 's32[1]{0}', space=sflag, size = 0x4, scoped, tag = 'scoped memory for tpu_custom_call.1']
    %18 = vsyncpa [#allocation3], 0
    // Predicated region
    $region2: #{tpu_custom_call.1} parent=1 // pred_check
      _
    $region3: #{tpu_custom_call.1} parent=1 // pred_check_branch
      %20 = sbr.rel (0) target = $region5
    $region4: #{tpu_custom_call.1} parent=1 // pred_region
      _
    $region5: #{tpu_custom_call.1} parent=1 // pred_fallthru
      _
    // Predicated region
    $region6: #{tpu_custom_call.1} parent=1 // pred_check
      _
    $region7: #{tpu_custom_call.1} parent=1 // pred_check_branch
      %22 = sbr.rel (0) target = $region9
    $region8: #{tpu_custom_call.1} parent=1 // pred_region
      _
    $region9: #{tpu_custom_call.1} parent=1 // pred_fallthru
      _
    // Predicated region
    $region10: #{tpu_custom_call.1} parent=1 // pred_check
      _
    $region11: #{tpu_custom_call.1} parent=1 // pred_check_branch
      %24 = sbr.rel (0) target = $region13
    $region12: #{tpu_custom_call.1} parent=1 // pred_region
      _
    $region13: #{tpu_custom_call.1} parent=1 // pred_fallthru
      _
    // Predicated region
    $region14: #{tpu_custom_call.1} parent=1 // pred_check
      _
    $region15: #{tpu_custom_call.1} parent=1 // pred_check_branch
      %26 = sbr.rel (0) target = $region17
    $region16: #{tpu_custom_call.1} parent=1 // pred_region
      _
    $region17: #{tpu_custom_call.1} parent=1 // pred_fallthru
      _
    // Predicated region
    $region18: #{tpu_custom_call.1} parent=1 // pred_check
      _
    $region19: #{tpu_custom_call.1} parent=1 // pred_check_branch
      %28 = sbr.rel (0) target = $region21
    $region20: #{tpu_custom_call.1} parent=1 // pred_region
      _
    $region21: #{tpu_custom_call.1} parent=1 // pred_fallthru
      _
    // Predicated region
    $region22: #{tpu_custom_call.1} parent=1 // pred_check
      _
    $region23: #{tpu_custom_call.1} parent=1 // pred_check_branch
      %30 = sbr.rel (0) target = $region25
    $region24: #{tpu_custom_call.1} parent=1 // pred_region
      _
    $region25: #{tpu_custom_call.1} parent=1 // pred_fallthru
      _
    // Predicated region
    $region26: #{tpu_custom_call.1} parent=1 // pred_check
      _
    $region27: #{tpu_custom_call.1} parent=1 // pred_check_branch
      %32 = sbr.rel (0) target = $region29
    $region28: #{tpu_custom_call.1} parent=1 // pred_region
      _
    $region29: #{tpu_custom_call.1} parent=1 // pred_fallthru
      _
    // Predicated region
    $region30: #{tpu_custom_call.1} parent=1 // pred_check
      _
    $region31: #{tpu_custom_call.1} parent=1 // pred_check_branch
      %34 = sbr.rel (0) target = $region33
    $region32: #{tpu_custom_call.1} parent=1 // pred_region
      _
    $region33: #{tpu_custom_call.1} parent=1 // pred_fallthru
      _
    // Predicated region
    $region34: #{tpu_custom_call.1} parent=1 // pred_check
      _
    $region35: #{tpu_custom_call.1} parent=1 // pred_check_branch
      %36 = sbr.rel (0) target = $region37
    $region36: #{tpu_custom_call.1} parent=1 // pred_region
      _
    $region37: #{tpu_custom_call.1} parent=1 // pred_fallthru
      _
    // Predicated region
    $region38: #{tpu_custom_call.1} parent=1 // pred_check
      _
    $region39: #{tpu_custom_call.1} parent=1 // pred_check_branch
      %38 = sbr.rel (0) target = $region41
    $region40: #{tpu_custom_call.1} parent=1 // pred_region
      _
    $region41: #{tpu_custom_call.1} parent=1 // pred_fallthru
      _
    // Predicated region
    $region42: #{tpu_custom_call.1} parent=1 // pred_check
      _
    $region43: #{tpu_custom_call.1} parent=1 // pred_check_branch
      %40 = sbr.rel (0) target = $region45
    $region44: #{tpu_custom_call.1} parent=1 // pred_region
      _
    $region45: #{tpu_custom_call.1} parent=1 // pred_fallthru
      _
    // Predicated region
    $region46: #{tpu_custom_call.1} parent=1 // pred_check
      _
    $region47: #{tpu_custom_call.1} parent=1 // pred_check_branch
      %42 = sbr.rel (0) target = $region49
    $region48: #{tpu_custom_call.1} parent=1 // pred_region
      _
    $region49: #{tpu_custom_call.1} parent=1 // pred_fallthru
      _
    // Predicated region
    $region50: #{tpu_custom_call.1} parent=1 // pred_check
      _
    $region51: #{tpu_custom_call.1} parent=1 // pred_check_branch
      %44 = sbr.rel (0) target = $region53
    $region52: #{tpu_custom_call.1} parent=1 // pred_region
      _
    $region53: #{tpu_custom_call.1} parent=1 // pred_fallthru
      _
    %v46 = vld [vmem:[%s0] sm:$0xff]
    %v47 = vld [vmem:[%s0 + $0x8] sm:$0xff]
    %v48 = vld [vmem:[%s0 + $0x10] sm:$0xff]
    %v49 = vld [vmem:[%s0 + $0x18] sm:$0xff]
    %v50 = vld [vmem:[%s0 + $0x20] sm:$0xff]
    %v51 = vld [vmem:[%s0 + $0x28] sm:$0xff]
    %v52 = vld [vmem:[%s0 + $0x30] sm:$0xff]
    %v53 = vld [vmem:[%s0 + $0x38] sm:$0xff]
    %v54 = vld [vmem:[%s0 + $0x40] sm:$0xff]
    %v55 = vld [vmem:[%s0 + $0x48] sm:$0xff]
    %v56 = vld [vmem:[%s0 + $0x50] sm:$0xff]
    %v57 = vld [vmem:[%s0 + $0x58] sm:$0xff]
    %v58 = vld [vmem:[%s0 + $0x60] sm:$0xff]
    %v59 = vld [vmem:[%s0 + $0x68] sm:$0xff]
    %v60 = vld [vmem:[%s0 + $0x70] sm:$0xff]
    %v61 = vld [vmem:[%s0 + $0x78] sm:$0xff]
    %v62 = vld [vmem:[%s0 + $0x80] sm:$0xff]
    %v63 = vld [vmem:[%s0 + $0x88] sm:$0xff]
    %v64 = vld [vmem:[%s0 + $0x90] sm:$0xff]
    %v65 = vld [vmem:[%s0 + $0x98] sm:$0xff]
    %v66 = vld [vmem:[%s0 + $0xa0] sm:$0xff]
    %v67 = vld [vmem:[%s0 + $0xa8] sm:$0xff]
    %v68 = vld [vmem:[%s0 + $0xb0] sm:$0xff]
    %v69 = vld [vmem:[%s0 + $0xb8] sm:$0xff]
    %v70 = vld [vmem:[%s0 + $0xc0] sm:$0xff]
    %v71 = vld [vmem:[%s0 + $0xc8] sm:$0xff]
    %v72 = vld [vmem:[%s0 + $0xd0] sm:$0xff]
    %v73 = vld [vmem:[%s0 + $0xd8] sm:$0xff]
    %v74 = vld [vmem:[%s0 + $0xe0] sm:$0xff]
    %v75 = vld [vmem:[%s0 + $0xe8] sm:$0xff]
    %v76 = vld [vmem:[%s0 + $0xf0] sm:$0xff]
    %v77 = vld [vmem:[%s0 + $0xf8] sm:$0xff]
    %v78 = vld [vmem:[%s0 + $0x100] sm:$0xff]
    %v79 = vld [vmem:[%s0 + $0x108] sm:$0xff]
    %v80 = vld [vmem:[%s0 + $0x110] sm:$0xff]
    %v81 = vld [vmem:[%s0 + $0x118] sm:$0xff]
    %v82 = vld [vmem:[%s0 + $0x120] sm:$0xff]
    %v83 = vld [vmem:[%s0 + $0x128] sm:$0xff]
    %v84 = vld [vmem:[%s1] sm:$0x1]
    %86 = vset.pattern.permute.xlu0 0
    %87 = vperm.xlu0 %86, %v46
    %v88 = vpop.permute.xlu0 %87
    %91 = vset.pattern.permute.xlu0 0
    %92 = vperm.xlu0 %91, %v47
    %v93 = vpop.permute.xlu0 %92
    %96 = vset.pattern.permute.xlu0 0
    %97 = vperm.xlu0 %96, %v48
    %v98 = vpop.permute.xlu0 %97
    %101 = vset.pattern.permute.xlu0 0
    %102 = vperm.xlu0 %101, %v49
    %v103 = vpop.permute.xlu0 %102
    %106 = vset.pattern.permute.xlu0 0
    %107 = vperm.xlu0 %106, %v50
    %v108 = vpop.permute.xlu0 %107
    %111 = vset.pattern.permute.xlu0 0
    %112 = vperm.xlu0 %111, %v51
    %v113 = vpop.permute.xlu0 %112
    %116 = vset.pattern.permute.xlu0 0
    %117 = vperm.xlu0 %116, %v52
    %v118 = vpop.permute.xlu0 %117
    %121 = vset.pattern.permute.xlu0 0
    %122 = vperm.xlu0 %121, %v53
    %v123 = vpop.permute.xlu0 %122
    %126 = vset.pattern.permute.xlu0 0
    %127 = vperm.xlu0 %126, %v54
    %v128 = vpop.permute.xlu0 %127
    %131 = vset.pattern.permute.xlu0 0
    %132 = vperm.xlu0 %131, %v55
    %v133 = vpop.permute.xlu0 %132
    %136 = vset.pattern.permute.xlu0 0
    %137 = vperm.xlu0 %136, %v56
    %v138 = vpop.permute.xlu0 %137
    %141 = vset.pattern.permute.xlu0 0
    %142 = vperm.xlu0 %141, %v57
    %v143 = vpop.permute.xlu0 %142
    %146 = vset.pattern.permute.xlu0 0
    %147 = vperm.xlu0 %146, %v58
    %v148 = vpop.permute.xlu0 %147
    %151 = vset.pattern.permute.xlu0 0
    %152 = vperm.xlu0 %151, %v59
    %v153 = vpop.permute.xlu0 %152
    %156 = vset.pattern.permute.xlu0 0
    %157 = vperm.xlu0 %156, %v60
    %v158 = vpop.permute.xlu0 %157
    %161 = vset.pattern.permute.xlu0 0
    %162 = vperm.xlu0 %161, %v61
    %v163 = vpop.permute.xlu0 %162
    %166 = vset.pattern.permute.xlu0 0
    %167 = vperm.xlu0 %166, %v62
    %v168 = vpop.permute.xlu0 %167
    %171 = vset.pattern.permute.xlu0 0
    %172 = vperm.xlu0 %171, %v63
    %v173 = vpop.permute.xlu0 %172
    %176 = vset.pattern.permute.xlu0 0
    %177 = vperm.xlu0 %176, %v64
    %v178 = vpop.permute.xlu0 %177
    %181 = vset.pattern.permute.xlu0 0
    %182 = vperm.xlu0 %181, %v65
    %v183 = vpop.permute.xlu0 %182
    %186 = vset.pattern.permute.xlu0 0
    %187 = vperm.xlu0 %186, %v66
    %v188 = vpop.permute.xlu0 %187
    %191 = vset.pattern.permute.xlu0 0
    %192 = vperm.xlu0 %191, %v67
    %v193 = vpop.permute.xlu0 %192
    %196 = vset.pattern.permute.xlu0 0
    %197 = vperm.xlu0 %196, %v68
    %v198 = vpop.permute.xlu0 %197
    %201 = vset.pattern.permute.xlu0 0
    %202 = vperm.xlu0 %201, %v69
    %v203 = vpop.permute.xlu0 %202
    %206 = vset.pattern.permute.xlu0 0
    %207 = vperm.xlu0 %206, %v70
    %v208 = vpop.permute.xlu0 %207
    %211 = vset.pattern.permute.xlu0 0
    %212 = vperm.xlu0 %211, %v71
    %v213 = vpop.permute.xlu0 %212
    %216 = vset.pattern.permute.xlu0 0
    %217 = vperm.xlu0 %216, %v72
    %v218 = vpop.permute.xlu0 %217
    %221 = vset.pattern.permute.xlu0 0
    %222 = vperm.xlu0 %221, %v73
    %v223 = vpop.permute.xlu0 %222
    %226 = vset.pattern.permute.xlu0 0
    %227 = vperm.xlu0 %226, %v74
    %v228 = vpop.permute.xlu0 %227
    %231 = vset.pattern.permute.xlu0 0
    %232 = vperm.xlu0 %231, %v75
    %v233 = vpop.permute.xlu0 %232
    %236 = vset.pattern.permute.xlu0 0
    %237 = vperm.xlu0 %236, %v76
    %v238 = vpop.permute.xlu0 %237
    %241 = vset.pattern.permute.xlu0 0
    %242 = vperm.xlu0 %241, %v77
    %v243 = vpop.permute.xlu0 %242
    %246 = vset.pattern.permute.xlu0 0
    %247 = vperm.xlu0 %246, %v78
    %v248 = vpop.permute.xlu0 %247
    %251 = vset.pattern.permute.xlu0 0
    %252 = vperm.xlu0 %251, %v79
    %v253 = vpop.permute.xlu0 %252
    %256 = vset.pattern.permute.xlu0 0
    %257 = vperm.xlu0 %256, %v80
    %v258 = vpop.permute.xlu0 %257
    %261 = vset.pattern.permute.xlu0 0
    %262 = vperm.xlu0 %261, %v81
    %v263 = vpop.permute.xlu0 %262
    %266 = vset.pattern.permute.xlu0 0
    %267 = vperm.xlu0 %266, %v82
    %v268 = vpop.permute.xlu0 %267
    %271 = vset.pattern.permute.xlu0 0
    %272 = vperm.xlu0 %271, %v83
    %v273 = vpop.permute.xlu0 %272
    %v276 = vperm.slane %v84, 0
    %v278 = vmul.f32 %v88, %v276
    %v279 = vmul.f32 %v93, %v276
    %v280 = vmul.f32 %v98, %v276
    %v281 = vmul.f32 %v103, %v276
    %v282 = vmul.f32 %v108, %v276
    %v283 = vmul.f32 %v113, %v276
    %v284 = vmul.f32 %v118, %v276
    %v285 = vmul.f32 %v123, %v276
    %v286 = vmul.f32 %v128, %v276
    %v287 = vmul.f32 %v133, %v276
    %v288 = vmul.f32 %v138, %v276
    %v289 = vmul.f32 %v143, %v276
    %v290 = vmul.f32 %v148, %v276
    %v291 = vmul.f32 %v153, %v276
    %v292 = vmul.f32 %v158, %v276
    %v293 = vmul.f32 %v163, %v276
    %v294 = vmul.f32 %v168, %v276
    %v295 = vmul.f32 %v173, %v276
    %v296 = vmul.f32 %v178, %v276
    %v297 = vmul.f32 %v183, %v276
    %v298 = vmul.f32 %v188, %v276
    %v299 = vmul.f32 %v193, %v276
    %v300 = vmul.f32 %v198, %v276
    %v301 = vmul.f32 %v203, %v276
    %v302 = vmul.f32 %v208, %v276
    %v303 = vmul.f32 %v213, %v276
    %v304 = vmul.f32 %v218, %v276
    %v305 = vmul.f32 %v223, %v276
    %v306 = vmul.f32 %v228, %v276
    %v307 = vmul.f32 %v233, %v276
    %v308 = vmul.f32 %v238, %v276
    %v309 = vmul.f32 %v243, %v276
    %v310 = vmul.f32 %v248, %v276
    %v311 = vmul.f32 %v253, %v276
    %v312 = vmul.f32 %v258, %v276
    %v313 = vmul.f32 %v263, %v276
    %v314 = vmul.f32 %v268, %v276
    %v315 = vmul.f32 %v273, %v276
    %v316 = vld [vmem:[%s2] sm:$0x1]
    %v318 = vperm.slane %v316, 0
    %v320 = vadd.f32 %v278, %v318
    %v321 = vadd.f32 %v279, %v318
    %v322 = vadd.f32 %v280, %v318
    %v323 = vadd.f32 %v281, %v318
    %v324 = vadd.f32 %v282, %v318
    %v325 = vadd.f32 %v283, %v318
    %v326 = vadd.f32 %v284, %v318
    %v327 = vadd.f32 %v285, %v318
    %v328 = vadd.f32 %v286, %v318
    %v329 = vadd.f32 %v287, %v318
    %v330 = vadd.f32 %v288, %v318
    %v331 = vadd.f32 %v289, %v318
    %v332 = vadd.f32 %v290, %v318
    %v333 = vadd.f32 %v291, %v318
    %v334 = vadd.f32 %v292, %v318
    %v335 = vadd.f32 %v293, %v318
    %v336 = vadd.f32 %v294, %v318
    %v337 = vadd.f32 %v295, %v318
    %v338 = vadd.f32 %v296, %v318
    %v339 = vadd.f32 %v297, %v318
    %v340 = vadd.f32 %v298, %v318
    %v341 = vadd.f32 %v299, %v318
    %v342 = vadd.f32 %v300, %v318
    %v343 = vadd.f32 %v301, %v318
    %v344 = vadd.f32 %v302, %v318
    %v345 = vadd.f32 %v303, %v318
    %v346 = vadd.f32 %v304, %v318
    %v347 = vadd.f32 %v305, %v318
    %v348 = vadd.f32 %v306, %v318
    %v349 = vadd.f32 %v307, %v318
    %v350 = vadd.f32 %v308, %v318
    %v351 = vadd.f32 %v309, %v318
    %v352 = vadd.f32 %v310, %v318
    %v353 = vadd.f32 %v311, %v318
    %v354 = vadd.f32 %v312, %v318
    %v355 = vadd.f32 %v313, %v318
    %v356 = vadd.f32 %v314, %v318
    %v357 = vadd.f32 %v315, %v318
    %v358 = vmax.f32 %v320, 0.0
    %v359 = vmax.f32 %v321, 0.0
    %v360 = vmax.f32 %v322, 0.0
    %v361 = vmax.f32 %v323, 0.0
    %v362 = vmax.f32 %v324, 0.0
    %v363 = vmax.f32 %v325, 0.0
    %v364 = vmax.f32 %v326, 0.0
    %v365 = vmax.f32 %v327, 0.0
    %v366 = vmax.f32 %v328, 0.0
    %v367 = vmax.f32 %v329, 0.0
    %v368 = vmax.f32 %v330, 0.0
    %v369 = vmax.f32 %v331, 0.0
    %v370 = vmax.f32 %v332, 0.0
    %v371 = vmax.f32 %v333, 0.0
    %v372 = vmax.f32 %v334, 0.0
    %v373 = vmax.f32 %v335, 0.0
    %v374 = vmax.f32 %v336, 0.0
    %v375 = vmax.f32 %v337, 0.0
    %v376 = vmax.f32 %v338, 0.0
    %v377 = vmax.f32 %v339, 0.0
    %v378 = vmax.f32 %v340, 0.0
    %v379 = vmax.f32 %v341, 0.0
    %v380 = vmax.f32 %v342, 0.0
    %v381 = vmax.f32 %v343, 0.0
    %v382 = vmax.f32 %v344, 0.0
    %v383 = vmax.f32 %v345, 0.0
    %v384 = vmax.f32 %v346, 0.0
    %v385 = vmax.f32 %v347, 0.0
    %v386 = vmax.f32 %v348, 0.0
    %v387 = vmax.f32 %v349, 0.0
    %v388 = vmax.f32 %v350, 0.0
    %v389 = vmax.f32 %v351, 0.0
    %v390 = vmax.f32 %v352, 0.0
    %v391 = vmax.f32 %v353, 0.0
    %v392 = vmax.f32 %v354, 0.0
    %v393 = vmax.f32 %v355, 0.0
    %v394 = vmax.f32 %v356, 0.0
    %v395 = vmax.f32 %v357, 0.0
    %v396 = vpack.c.bf16 %v359, %v358
    %v397 = vpack.c.bf16 %v361, %v360
    %v398 = vpack.c.bf16 %v363, %v362
    %v399 = vpack.c.bf16 %v365, %v364
    %v400 = vpack.c.bf16 %v367, %v366
    %v401 = vpack.c.bf16 %v369, %v368
    %v402 = vpack.c.bf16 %v371, %v370
    %v403 = vpack.c.bf16 %v373, %v372
    %v404 = vpack.c.bf16 %v375, %v374
    %v405 = vpack.c.bf16 %v377, %v376
    %v406 = vpack.c.bf16 %v379, %v378
    %v407 = vpack.c.bf16 %v381, %v380
    %v408 = vpack.c.bf16 %v383, %v382
    %v409 = vpack.c.bf16 %v385, %v384
    %v410 = vpack.c.bf16 %v387, %v386
    %v411 = vpack.c.bf16 %v389, %v388
    %v412 = vpack.c.bf16 %v391, %v390
    %v413 = vpack.c.bf16 %v393, %v392
    %v414 = vpack.c.bf16 %v395, %v394
    %v415 = vld [vmem:[%s3] sm:$0xf]
    %v416 = vld [vmem:[%s3 + $0x4] sm:$0xf]
    %v417 = vld [vmem:[%s3 + $0x8] sm:$0x3]
    %v418 = vld [vmem:[%s4] sm:$0x1]
    %v420 = vperm.slane %v418, 0
    %v425 = vunpack.c.l.b16 %v415
    %v426 = vunpack.c.l.b16 %v416
    %v427 = vunpack.c.l.b16 %v417
    %v428 = vpack.c.b16 %v426, %v425
    %v429 = vpack.c.b16 %v427, %v427
    %vm431 = vcmask 162816
    %v433 = vsel %vm431, %v396, 0
    %v436 = vsel %vm431, %v397, 0
    %v439 = vsel %vm431, %v398, 0
    %v442 = vsel %vm431, %v399, 0
    %v445 = vsel %vm431, %v400, 0
    %v448 = vsel %vm431, %v401, 0
    %v451 = vsel %vm431, %v402, 0
    %v454 = vsel %vm431, %v403, 0
    %v457 = vsel %vm431, %v404, 0
    %v460 = vsel %vm431, %v405, 0
    %v463 = vsel %vm431, %v406, 0
    %v466 = vsel %vm431, %v407, 0
    %v469 = vsel %vm431, %v408, 0
    %v472 = vsel %vm431, %v409, 0
    %v475 = vsel %vm431, %v410, 0
    %v478 = vsel %vm431, %v411, 0
    %v481 = vsel %vm431, %v412, 0
    %v484 = vsel %vm431, %v413, 0
    %v487 = vsel %vm431, %v414, 0
    %vm489 = vcmask 1041408
    %v491 = vsel %vm489, %v429, 0
    %493 = vmatpush.bf16.msra.mxu0 0
    %494 = vmatpush.bf16.msra.mxu0 0
    %495 = vmatpush.bf16.msra.mxu0 0
    %496 = vmatpush.bf16.msra.mxu0 0
    %497 = vmatpush.bf16.msra.mxu0 0
    %498 = vmatpush.bf16.msra.mxu0 0
    %499 = vmatpush.bf16.msra.mxu0 %v491
    %500 = vmatpush.bf16.msra.mxu0 %v428
    %501 = vmatmul.bf16.gmra.mxu0 %v433
    %v502 = vpop.f32.mrf.mxu0
    %v503 = vadd.f32 %v420, %v502
    %v504 = vpop.f32.mrf.mxu0
    %v505 = vadd.f32 %v420, %v504
    %506 = vmatmul.bf16.gmra.mxu0 %v436
    %v507 = vpop.f32.mrf.mxu0
    %v508 = vadd.f32 %v420, %v507
    %v509 = vpop.f32.mrf.mxu0
    %v510 = vadd.f32 %v420, %v509
    %511 = vmatmul.bf16.gmra.mxu0 %v439
    %v512 = vpop.f32.mrf.mxu0
    %v513 = vadd.f32 %v420, %v512
    %v514 = vpop.f32.mrf.mxu0
    %v515 = vadd.f32 %v420, %v514
    %516 = vmatmul.bf16.gmra.mxu0 %v442
    %v517 = vpop.f32.mrf.mxu0
    %v518 = vadd.f32 %v420, %v517
    %v519 = vpop.f32.mrf.mxu0
    %v520 = vadd.f32 %v420, %v519
    %521 = vmatmul.bf16.gmra.mxu0 %v445
    %v522 = vpop.f32.mrf.mxu0
    %v523 = vadd.f32 %v420, %v522
    %v524 = vpop.f32.mrf.mxu0
    %v525 = vadd.f32 %v420, %v524
    %526 = vmatmul.bf16.gmra.mxu0 %v448
    %v527 = vpop.f32.mrf.mxu0
    %v528 = vadd.f32 %v420, %v527
    %v529 = vpop.f32.mrf.mxu0
    %v530 = vadd.f32 %v420, %v529
    %531 = vmatmul.bf16.gmra.mxu0 %v451
    %v532 = vpop.f32.mrf.mxu0
    %v533 = vadd.f32 %v420, %v532
    %v534 = vpop.f32.mrf.mxu0
    %v535 = vadd.f32 %v420, %v534
    %536 = vmatmul.bf16.gmra.mxu0 %v454
    %v537 = vpop.f32.mrf.mxu0
    %v538 = vadd.f32 %v420, %v537
    %v539 = vpop.f32.mrf.mxu0
    %v540 = vadd.f32 %v420, %v539
    %541 = vmatmul.bf16.gmra.mxu0 %v457
    %v542 = vpop.f32.mrf.mxu0
    %v543 = vadd.f32 %v420, %v542
    %v544 = vpop.f32.mrf.mxu0
    %v545 = vadd.f32 %v420, %v544
    %546 = vmatmul.bf16.gmra.mxu0 %v460
    %v547 = vpop.f32.mrf.mxu0
    %v548 = vadd.f32 %v420, %v547
    %v549 = vpop.f32.mrf.mxu0
    %v550 = vadd.f32 %v420, %v549
    %551 = vmatmul.bf16.gmra.mxu0 %v463
    %v552 = vpop.f32.mrf.mxu0
    %v553 = vadd.f32 %v420, %v552
    %v554 = vpop.f32.mrf.mxu0
    %v555 = vadd.f32 %v420, %v554
    %556 = vmatmul.bf16.gmra.mxu0 %v466
    %v557 = vpop.f32.mrf.mxu0
    %v558 = vadd.f32 %v420, %v557
    %v559 = vpop.f32.mrf.mxu0
    %v560 = vadd.f32 %v420, %v559
    %561 = vmatmul.bf16.gmra.mxu0 %v469
    %v562 = vpop.f32.mrf.mxu0
    %v563 = vadd.f32 %v420, %v562
    %v564 = vpop.f32.mrf.mxu0
    %v565 = vadd.f32 %v420, %v564
    %566 = vmatmul.bf16.gmra.mxu0 %v472
    %v567 = vpop.f32.mrf.mxu0
    %v568 = vadd.f32 %v420, %v567
    %v569 = vpop.f32.mrf.mxu0
    %v570 = vadd.f32 %v420, %v569
    %571 = vmatmul.bf16.gmra.mxu0 %v475
    %v572 = vpop.f32.mrf.mxu0
    %v573 = vadd.f32 %v420, %v572
    %v574 = vpop.f32.mrf.mxu0
    %v575 = vadd.f32 %v420, %v574
    %576 = vmatmul.bf16.gmra.mxu0 %v478
    %v577 = vpop.f32.mrf.mxu0
    %v578 = vadd.f32 %v420, %v577
    %v579 = vpop.f32.mrf.mxu0
    %v580 = vadd.f32 %v420, %v579
    %581 = vmatmul.bf16.gmra.mxu0 %v481
    %v582 = vpop.f32.mrf.mxu0
    %v583 = vadd.f32 %v420, %v582
    %v584 = vpop.f32.mrf.mxu0
    %v585 = vadd.f32 %v420, %v584
    %586 = vmatmul.bf16.gmra.mxu0 %v484
    %v587 = vpop.f32.mrf.mxu0
    %v588 = vadd.f32 %v420, %v587
    %v589 = vpop.f32.mrf.mxu0
    %v590 = vadd.f32 %v420, %v589
    %591 = vmatmul.bf16.gmra.mxu0 %v487
    %v592 = vpop.f32.mrf.mxu0
    %v593 = vadd.f32 %v420, %v592
    %v594 = vpop.f32.mrf.mxu0
    %v595 = vadd.f32 %v420, %v594
    %596 = vdwg.mxu0
    %v597 = vmax.f32 %v503, 0.0
    %v598 = vmax.f32 %v505, 0.0
    %v599 = vmax.f32 %v508, 0.0
    %v600 = vmax.f32 %v510, 0.0
    %v601 = vmax.f32 %v513, 0.0
    %v602 = vmax.f32 %v515, 0.0
    %v603 = vmax.f32 %v518, 0.0
    %v604 = vmax.f32 %v520, 0.0
    %v605 = vmax.f32 %v523, 0.0
    %v606 = vmax.f32 %v525, 0.0
    %v607 = vmax.f32 %v528, 0.0
    %v608 = vmax.f32 %v530, 0.0
    %v609 = vmax.f32 %v533, 0.0
    %v610 = vmax.f32 %v535, 0.0
    %v611 = vmax.f32 %v538, 0.0
    %v612 = vmax.f32 %v540, 0.0
    %v613 = vmax.f32 %v543, 0.0
    %v614 = vmax.f32 %v545, 0.0
    %v615 = vmax.f32 %v548, 0.0
    %v616 = vmax.f32 %v550, 0.0
    %v617 = vmax.f32 %v553, 0.0
    %v618 = vmax.f32 %v555, 0.0
    %v619 = vmax.f32 %v558, 0.0
    %v620 = vmax.f32 %v560, 0.0
    %v621 = vmax.f32 %v563, 0.0
    %v622 = vmax.f32 %v565, 0.0
    %v623 = vmax.f32 %v568, 0.0
    %v624 = vmax.f32 %v570, 0.0
    %v625 = vmax.f32 %v573, 0.0
    %v626 = vmax.f32 %v575, 0.0
    %v627 = vmax.f32 %v578, 0.0
    %v628 = vmax.f32 %v580, 0.0
    %v629 = vmax.f32 %v583, 0.0
    %v630 = vmax.f32 %v585, 0.0
    %v631 = vmax.f32 %v588, 0.0
    %v632 = vmax.f32 %v590, 0.0
    %v633 = vmax.f32 %v593, 0.0
    %v634 = vmax.f32 %v595, 0.0
    %v635 = vpack.c.bf16 %v598, %v597
    %v636 = vpack.c.bf16 %v600, %v599
    %v637 = vpack.c.bf16 %v602, %v601
    %v638 = vpack.c.bf16 %v604, %v603
    %v639 = vpack.c.bf16 %v606, %v605
    %v640 = vpack.c.bf16 %v608, %v607
    %v641 = vpack.c.bf16 %v610, %v609
    %v642 = vpack.c.bf16 %v612, %v611
    %v643 = vpack.c.bf16 %v614, %v613
    %v644 = vpack.c.bf16 %v616, %v615
    %v645 = vpack.c.bf16 %v618, %v617
    %v646 = vpack.c.bf16 %v620, %v619
    %v647 = vpack.c.bf16 %v622, %v621
    %v648 = vpack.c.bf16 %v624, %v623
    %v649 = vpack.c.bf16 %v626, %v625
    %v650 = vpack.c.bf16 %v628, %v627
    %v651 = vpack.c.bf16 %v630, %v629
    %v652 = vpack.c.bf16 %v632, %v631
    %v653 = vpack.c.bf16 %v634, %v633
    %v654 = vld [vmem:[%s5] sm:$0xf]
    %v655 = vld [vmem:[%s5 + $0x4] sm:$0x1]
    %v656 = vld [vmem:[%s6] sm:$0x1]
    %v658 = vperm.slane %v656, 0
    %v662 = vunpack.c.l.b16 %v654
    %v663 = vunpack.c.l.b16 %v655
    %v664 = vpack.c.b16 %v663, %v662
    %vm665 = vcmask 80896
    %v667 = vsel %vm665, %v635, 0
    %v670 = vsel %vm665, %v636, 0
    %v673 = vsel %vm665, %v637, 0
    %v676 = vsel %vm665, %v638, 0
    %v679 = vsel %vm665, %v639, 0
    %v682 = vsel %vm665, %v640, 0
    %v685 = vsel %vm665, %v641, 0
    %v688 = vsel %vm665, %v642, 0
    %v691 = vsel %vm665, %v643, 0
    %v694 = vsel %vm665, %v644, 0
    %v697 = vsel %vm665, %v645, 0
    %v700 = vsel %vm665, %v646, 0
    %v703 = vsel %vm665, %v647, 0
    %v706 = vsel %vm665, %v648, 0
    %v709 = vsel %vm665, %v649, 0
    %v712 = vsel %vm665, %v650, 0
    %v715 = vsel %vm665, %v651, 0
    %v718 = vsel %vm665, %v652, 0
    %v721 = vsel %vm665, %v653, 0
    %vm723 = vcmask 1044480
    %v725 = vsel %vm723, %v664, 0
    %727 = vmatpush.bf16.msra.mxu0 0
    %728 = vmatpush.bf16.msra.mxu0 0
    %729 = vmatpush.bf16.msra.mxu0 0
    %730 = vmatpush.bf16.msra.mxu0 0
    %731 = vmatpush.bf16.msra.mxu0 0
    %732 = vmatpush.bf16.msra.mxu0 0
    %733 = vmatpush.bf16.msra.mxu0 0
    %734 = vmatpush.bf16.msra.mxu0 %v725
    %735 = vmatmul.bf16.gmra.mxu0 %v667
    %v736 = vpop.f32.mrf.mxu0
    %v737 = vadd.f32 %v658, %v736
    %v738 = vpop.f32.mrf.mxu0
    %v739 = vadd.f32 %v658, %v738
    %740 = vmatmul.bf16.gmra.mxu0 %v670
    %v741 = vpop.f32.mrf.mxu0
    %v742 = vadd.f32 %v658, %v741
    %v743 = vpop.f32.mrf.mxu0
    %v744 = vadd.f32 %v658, %v743
    %745 = vmatmul.bf16.gmra.mxu0 %v673
    %v746 = vpop.f32.mrf.mxu0
    %v747 = vadd.f32 %v658, %v746
    %v748 = vpop.f32.mrf.mxu0
    %v749 = vadd.f32 %v658, %v748
    %750 = vmatmul.bf16.gmra.mxu0 %v676
    %v751 = vpop.f32.mrf.mxu0
    %v752 = vadd.f32 %v658, %v751
    %v753 = vpop.f32.mrf.mxu0
    %v754 = vadd.f32 %v658, %v753
    %755 = vmatmul.bf16.gmra.mxu0 %v679
    %v756 = vpop.f32.mrf.mxu0
    %v757 = vadd.f32 %v658, %v756
    %v758 = vpop.f32.mrf.mxu0
    %v759 = vadd.f32 %v658, %v758
    %760 = vmatmul.bf16.gmra.mxu0 %v682
    %v761 = vpop.f32.mrf.mxu0
    %v762 = vadd.f32 %v658, %v761
    %v763 = vpop.f32.mrf.mxu0
    %v764 = vadd.f32 %v658, %v763
    %765 = vmatmul.bf16.gmra.mxu0 %v685
    %v766 = vpop.f32.mrf.mxu0
    %v767 = vadd.f32 %v658, %v766
    %v768 = vpop.f32.mrf.mxu0
    %v769 = vadd.f32 %v658, %v768
    %770 = vmatmul.bf16.gmra.mxu0 %v688
    %v771 = vpop.f32.mrf.mxu0
    %v772 = vadd.f32 %v658, %v771
    %v773 = vpop.f32.mrf.mxu0
    %v774 = vadd.f32 %v658, %v773
    %775 = vmatmul.bf16.gmra.mxu0 %v691
    %v776 = vpop.f32.mrf.mxu0
    %v777 = vadd.f32 %v658, %v776
    %v778 = vpop.f32.mrf.mxu0
    %v779 = vadd.f32 %v658, %v778
    %780 = vmatmul.bf16.gmra.mxu0 %v694
    %v781 = vpop.f32.mrf.mxu0
    %v782 = vadd.f32 %v658, %v781
    %v783 = vpop.f32.mrf.mxu0
    %v784 = vadd.f32 %v658, %v783
    %785 = vmatmul.bf16.gmra.mxu0 %v697
    %v786 = vpop.f32.mrf.mxu0
    %v787 = vadd.f32 %v658, %v786
    %v788 = vpop.f32.mrf.mxu0
    %v789 = vadd.f32 %v658, %v788
    %790 = vmatmul.bf16.gmra.mxu0 %v700
    %v791 = vpop.f32.mrf.mxu0
    %v792 = vadd.f32 %v658, %v791
    %v793 = vpop.f32.mrf.mxu0
    %v794 = vadd.f32 %v658, %v793
    %795 = vmatmul.bf16.gmra.mxu0 %v703
    %v796 = vpop.f32.mrf.mxu0
    %v797 = vadd.f32 %v658, %v796
    %v798 = vpop.f32.mrf.mxu0
    %v799 = vadd.f32 %v658, %v798
    %800 = vmatmul.bf16.gmra.mxu0 %v706
    %v801 = vpop.f32.mrf.mxu0
    %v802 = vadd.f32 %v658, %v801
    %v803 = vpop.f32.mrf.mxu0
    %v804 = vadd.f32 %v658, %v803
    %805 = vmatmul.bf16.gmra.mxu0 %v709
    %v806 = vpop.f32.mrf.mxu0
    %v807 = vadd.f32 %v658, %v806
    %v808 = vpop.f32.mrf.mxu0
    %v809 = vadd.f32 %v658, %v808
    %810 = vmatmul.bf16.gmra.mxu0 %v712
    %v811 = vpop.f32.mrf.mxu0
    %v812 = vadd.f32 %v658, %v811
    %v813 = vpop.f32.mrf.mxu0
    %v814 = vadd.f32 %v658, %v813
    %815 = vmatmul.bf16.gmra.mxu0 %v715
    %v816 = vpop.f32.mrf.mxu0
    %v817 = vadd.f32 %v658, %v816
    %v818 = vpop.f32.mrf.mxu0
    %v819 = vadd.f32 %v658, %v818
    %820 = vmatmul.bf16.gmra.mxu0 %v718
    %v821 = vpop.f32.mrf.mxu0
    %v822 = vadd.f32 %v658, %v821
    %v823 = vpop.f32.mrf.mxu0
    %v824 = vadd.f32 %v658, %v823
    %825 = vmatmul.bf16.gmra.mxu0 %v721
    %v826 = vpop.f32.mrf.mxu0
    %v827 = vadd.f32 %v658, %v826
    %v828 = vpop.f32.mrf.mxu0
    %v829 = vadd.f32 %v658, %v828
    %830 = vdwg.mxu0
    %v831 = vmax.f32 %v737, 0.0
    %v832 = vmax.f32 %v739, 0.0
    %v833 = vmax.f32 %v742, 0.0
    %v834 = vmax.f32 %v744, 0.0
    %v835 = vmax.f32 %v747, 0.0
    %v836 = vmax.f32 %v749, 0.0
    %v837 = vmax.f32 %v752, 0.0
    %v838 = vmax.f32 %v754, 0.0
    %v839 = vmax.f32 %v757, 0.0
    %v840 = vmax.f32 %v759, 0.0
    %v841 = vmax.f32 %v762, 0.0
    %v842 = vmax.f32 %v764, 0.0
    %v843 = vmax.f32 %v767, 0.0
    %v844 = vmax.f32 %v769, 0.0
    %v845 = vmax.f32 %v772, 0.0
    %v846 = vmax.f32 %v774, 0.0
    %v847 = vmax.f32 %v777, 0.0
    %v848 = vmax.f32 %v779, 0.0
    %v849 = vmax.f32 %v782, 0.0
    %v850 = vmax.f32 %v784, 0.0
    %v851 = vmax.f32 %v787, 0.0
    %v852 = vmax.f32 %v789, 0.0
    %v853 = vmax.f32 %v792, 0.0
    %v854 = vmax.f32 %v794, 0.0
    %v855 = vmax.f32 %v797, 0.0
    %v856 = vmax.f32 %v799, 0.0
    %v857 = vmax.f32 %v802, 0.0
    %v858 = vmax.f32 %v804, 0.0
    %v859 = vmax.f32 %v807, 0.0
    %v860 = vmax.f32 %v809, 0.0
    %v861 = vmax.f32 %v812, 0.0
    %v862 = vmax.f32 %v814, 0.0
    %v863 = vmax.f32 %v817, 0.0
    %v864 = vmax.f32 %v819, 0.0
    %v865 = vmax.f32 %v822, 0.0
    %v866 = vmax.f32 %v824, 0.0
    %v867 = vmax.f32 %v827, 0.0
    %v868 = vmax.f32 %v829, 0.0
    %v869 = vpack.c.bf16 %v832, %v831
    %v870 = vpack.c.bf16 %v834, %v833
    %v871 = vpack.c.bf16 %v836, %v835
    %v872 = vpack.c.bf16 %v838, %v837
    %v873 = vpack.c.bf16 %v840, %v839
    %v874 = vpack.c.bf16 %v842, %v841
    %v875 = vpack.c.bf16 %v844, %v843
    %v876 = vpack.c.bf16 %v846, %v845
    %v877 = vpack.c.bf16 %v848, %v847
    %v878 = vpack.c.bf16 %v850, %v849
    %v879 = vpack.c.bf16 %v852, %v851
    %v880 = vpack.c.bf16 %v854, %v853
    %v881 = vpack.c.bf16 %v856, %v855
    %v882 = vpack.c.bf16 %v858, %v857
    %v883 = vpack.c.bf16 %v860, %v859
    %v884 = vpack.c.bf16 %v862, %v861
    %v885 = vpack.c.bf16 %v864, %v863
    %v886 = vpack.c.bf16 %v866, %v865
    %v887 = vpack.c.bf16 %v868, %v867
    %v888 = vld [vmem:[%s7] sm:$0xff]
    %v889 = vld [vmem:[%s7 + $0x8] sm:$0x11]
    %v890 = vld [vmem:[%s8] sm:$0x3]
    %v892 = vperm.slane %v890, 0
    %v893 = vperm.slane %v890, 1
    %v898 = vunpack.c.l.b16 %v888
    %v899 = vunpack.c.h.b16 %v888
    %v900 = vunpack.c.l.b16 %v889
    %v901 = vunpack.c.h.b16 %v889
    %v902 = vpack.c.b16 %v900, %v898
    %v903 = vpack.c.b16 %v901, %v899
    %v905 = vsel %vm665, %v869, 0
    %v908 = vsel %vm665, %v870, 0
    %v911 = vsel %vm665, %v871, 0
    %v914 = vsel %vm665, %v872, 0
    %v917 = vsel %vm665, %v873, 0
    %v920 = vsel %vm665, %v874, 0
    %v923 = vsel %vm665, %v875, 0
    %v926 = vsel %vm665, %v876, 0
    %v929 = vsel %vm665, %v877, 0
    %v932 = vsel %vm665, %v878, 0
    %v935 = vsel %vm665, %v879, 0
    %v938 = vsel %vm665, %v880, 0
    %v941 = vsel %vm665, %v881, 0
    %v944 = vsel %vm665, %v882, 0
    %v947 = vsel %vm665, %v883, 0
    %v950 = vsel %vm665, %v884, 0
    %v953 = vsel %vm665, %v885, 0
    %v956 = vsel %vm665, %v886, 0
    %v959 = vsel %vm665, %v887, 0
    %v962 = vsel %vm723, %v902, 0
    %v965 = vsel %vm723, %v903, 0
    %967 = vmatpush.bf16.msra.mxu0 0
    %968 = vmatpush.bf16.msra.mxu0 0
    %969 = vmatpush.bf16.msra.mxu0 0
    %970 = vmatpush.bf16.msra.mxu0 0
    %971 = vmatpush.bf16.msra.mxu0 0
    %972 = vmatpush.bf16.msra.mxu0 0
    %973 = vmatpush.bf16.msra.mxu0 0
    %974 = vmatpush.bf16.msra.mxu0 %v962
    %975 = vmatmul.bf16.gmra.mxu0 %v905
    %v976 = vpop.f32.mrf.mxu0
    %v977 = vadd.f32 %v892, %v976
    %v978 = vpop.f32.mrf.mxu0
    %v979 = vadd.f32 %v892, %v978
    %980 = vmatmul.bf16.gmra.mxu0 %v908
    %v981 = vpop.f32.mrf.mxu0
    %v982 = vadd.f32 %v892, %v981
    %v983 = vpop.f32.mrf.mxu0
    %v984 = vadd.f32 %v892, %v983
    %985 = vmatmul.bf16.gmra.mxu0 %v911
    %v986 = vpop.f32.mrf.mxu0
    %v987 = vadd.f32 %v892, %v986
    %v988 = vpop.f32.mrf.mxu0
    %v989 = vadd.f32 %v892, %v988
    %990 = vmatmul.bf16.gmra.mxu0 %v914
    %v991 = vpop.f32.mrf.mxu0
    %v992 = vadd.f32 %v892, %v991
    %v993 = vpop.f32.mrf.mxu0
    %v994 = vadd.f32 %v892, %v993
    %995 = vmatmul.bf16.gmra.mxu0 %v917
    %v996 = vpop.f32.mrf.mxu0
    %v997 = vadd.f32 %v892, %v996
    %v998 = vpop.f32.mrf.mxu0
    %v999 = vadd.f32 %v892, %v998
    %1000 = vmatmul.bf16.gmra.mxu0 %v920
    %v1001 = vpop.f32.mrf.mxu0
    %v1002 = vadd.f32 %v892, %v1001
    %v1003 = vpop.f32.mrf.mxu0
    %v1004 = vadd.f32 %v892, %v1003
    %1005 = vmatmul.bf16.gmra.mxu0 %v923
    %v1006 = vpop.f32.mrf.mxu0
    %v1007 = vadd.f32 %v892, %v1006
    %v1008 = vpop.f32.mrf.mxu0
    %v1009 = vadd.f32 %v892, %v1008
    %1010 = vmatmul.bf16.gmra.mxu0 %v926
    %v1011 = vpop.f32.mrf.mxu0
    %v1012 = vadd.f32 %v892, %v1011
    %v1013 = vpop.f32.mrf.mxu0
    %v1014 = vadd.f32 %v892, %v1013
    %1015 = vmatmul.bf16.gmra.mxu0 %v929
    %v1016 = vpop.f32.mrf.mxu0
    %v1017 = vadd.f32 %v892, %v1016
    %v1018 = vpop.f32.mrf.mxu0
    %v1019 = vadd.f32 %v892, %v1018
    %1020 = vmatmul.bf16.gmra.mxu0 %v932
    %v1021 = vpop.f32.mrf.mxu0
    %v1022 = vadd.f32 %v892, %v1021
    %v1023 = vpop.f32.mrf.mxu0
    %v1024 = vadd.f32 %v892, %v1023
    %1025 = vmatmul.bf16.gmra.mxu0 %v935
    %v1026 = vpop.f32.mrf.mxu0
    %v1027 = vadd.f32 %v892, %v1026
    %v1028 = vpop.f32.mrf.mxu0
    %v1029 = vadd.f32 %v892, %v1028
    %1030 = vmatmul.bf16.gmra.mxu0 %v938
    %v1031 = vpop.f32.mrf.mxu0
    %v1032 = vadd.f32 %v892, %v1031
    %v1033 = vpop.f32.mrf.mxu0
    %v1034 = vadd.f32 %v892, %v1033
    %1035 = vmatmul.bf16.gmra.mxu0 %v941
    %v1036 = vpop.f32.mrf.mxu0
    %v1037 = vadd.f32 %v892, %v1036
    %v1038 = vpop.f32.mrf.mxu0
    %v1039 = vadd.f32 %v892, %v1038
    %1040 = vmatmul.bf16.gmra.mxu0 %v944
    %v1041 = vpop.f32.mrf.mxu0
    %v1042 = vadd.f32 %v892, %v1041
    %v1043 = vpop.f32.mrf.mxu0
    %v1044 = vadd.f32 %v892, %v1043
    %1045 = vmatmul.bf16.gmra.mxu0 %v947
    %v1046 = vpop.f32.mrf.mxu0
    %v1047 = vadd.f32 %v892, %v1046
    %v1048 = vpop.f32.mrf.mxu0
    %v1049 = vadd.f32 %v892, %v1048
    %1050 = vmatmul.bf16.gmra.mxu0 %v950
    %v1051 = vpop.f32.mrf.mxu0
    %v1052 = vadd.f32 %v892, %v1051
    %v1053 = vpop.f32.mrf.mxu0
    %v1054 = vadd.f32 %v892, %v1053
    %1055 = vmatmul.bf16.gmra.mxu0 %v953
    %v1056 = vpop.f32.mrf.mxu0
    %v1057 = vadd.f32 %v892, %v1056
    %v1058 = vpop.f32.mrf.mxu0
    %v1059 = vadd.f32 %v892, %v1058
    %1060 = vmatmul.bf16.gmra.mxu0 %v956
    %v1061 = vpop.f32.mrf.mxu0
    %v1062 = vadd.f32 %v892, %v1061
    %v1063 = vpop.f32.mrf.mxu0
    %v1064 = vadd.f32 %v892, %v1063
    %1065 = vmatmul.bf16.gmra.mxu0 %v959
    %v1066 = vpop.f32.mrf.mxu0
    %v1067 = vadd.f32 %v892, %v1066
    %v1068 = vpop.f32.mrf.mxu0
    %v1069 = vadd.f32 %v892, %v1068
    %1070 = vdwg.mxu0
    %1071 = vmatpush.bf16.msra.mxu0 0
    %1072 = vmatpush.bf16.msra.mxu0 0
    %1073 = vmatpush.bf16.msra.mxu0 0
    %1074 = vmatpush.bf16.msra.mxu0 0
    %1075 = vmatpush.bf16.msra.mxu0 0
    %1076 = vmatpush.bf16.msra.mxu0 0
    %1077 = vmatpush.bf16.msra.mxu0 0
    %1078 = vmatpush.bf16.msra.mxu0 %v965
    %1079 = vmatmul.bf16.gmra.mxu0 %v905
    %v1080 = vpop.f32.mrf.mxu0
    %v1081 = vadd.f32 %v893, %v1080
    %v1082 = vpop.f32.mrf.mxu0
    %v1083 = vadd.f32 %v893, %v1082
    %1084 = vmatmul.bf16.gmra.mxu0 %v908
    %v1085 = vpop.f32.mrf.mxu0
    %v1086 = vadd.f32 %v893, %v1085
    %v1087 = vpop.f32.mrf.mxu0
    %v1088 = vadd.f32 %v893, %v1087
    %1089 = vmatmul.bf16.gmra.mxu0 %v911
    %v1090 = vpop.f32.mrf.mxu0
    %v1091 = vadd.f32 %v893, %v1090
    %v1092 = vpop.f32.mrf.mxu0
    %v1093 = vadd.f32 %v893, %v1092
    %1094 = vmatmul.bf16.gmra.mxu0 %v914
    %v1095 = vpop.f32.mrf.mxu0
    %v1096 = vadd.f32 %v893, %v1095
    %v1097 = vpop.f32.mrf.mxu0
    %v1098 = vadd.f32 %v893, %v1097
    %1099 = vmatmul.bf16.gmra.mxu0 %v917
    %v1100 = vpop.f32.mrf.mxu0
    %v1101 = vadd.f32 %v893, %v1100
    %v1102 = vpop.f32.mrf.mxu0
    %v1103 = vadd.f32 %v893, %v1102
    %1104 = vmatmul.bf16.gmra.mxu0 %v920
    %v1105 = vpop.f32.mrf.mxu0
    %v1106 = vadd.f32 %v893, %v1105
    %v1107 = vpop.f32.mrf.mxu0
    %v1108 = vadd.f32 %v893, %v1107
    %1109 = vmatmul.bf16.gmra.mxu0 %v923
    %v1110 = vpop.f32.mrf.mxu0
    %v1111 = vadd.f32 %v893, %v1110
    %v1112 = vpop.f32.mrf.mxu0
    %v1113 = vadd.f32 %v893, %v1112
    %1114 = vmatmul.bf16.gmra.mxu0 %v926
    %v1115 = vpop.f32.mrf.mxu0
    %v1116 = vadd.f32 %v893, %v1115
    %v1117 = vpop.f32.mrf.mxu0
    %v1118 = vadd.f32 %v893, %v1117
    %1119 = vmatmul.bf16.gmra.mxu0 %v929
    %v1120 = vpop.f32.mrf.mxu0
    %v1121 = vadd.f32 %v893, %v1120
    %v1122 = vpop.f32.mrf.mxu0
    %v1123 = vadd.f32 %v893, %v1122
    %1124 = vmatmul.bf16.gmra.mxu0 %v932
    %v1125 = vpop.f32.mrf.mxu0
    %v1126 = vadd.f32 %v893, %v1125
    %v1127 = vpop.f32.mrf.mxu0
    %v1128 = vadd.f32 %v893, %v1127
    %1129 = vmatmul.bf16.gmra.mxu0 %v935
    %v1130 = vpop.f32.mrf.mxu0
    %v1131 = vadd.f32 %v893, %v1130
    %v1132 = vpop.f32.mrf.mxu0
    %v1133 = vadd.f32 %v893, %v1132
    %1134 = vmatmul.bf16.gmra.mxu0 %v938
    %v1135 = vpop.f32.mrf.mxu0
    %v1136 = vadd.f32 %v893, %v1135
    %v1137 = vpop.f32.mrf.mxu0
    %v1138 = vadd.f32 %v893, %v1137
    %1139 = vmatmul.bf16.gmra.mxu0 %v941
    %v1140 = vpop.f32.mrf.mxu0
    %v1141 = vadd.f32 %v893, %v1140
    %v1142 = vpop.f32.mrf.mxu0
    %v1143 = vadd.f32 %v893, %v1142
    %1144 = vmatmul.bf16.gmra.mxu0 %v944
    %v1145 = vpop.f32.mrf.mxu0
    %v1146 = vadd.f32 %v893, %v1145
    %v1147 = vpop.f32.mrf.mxu0
    %v1148 = vadd.f32 %v893, %v1147
    %1149 = vmatmul.bf16.gmra.mxu0 %v947
    %v1150 = vpop.f32.mrf.mxu0
    %v1151 = vadd.f32 %v893, %v1150
    %v1152 = vpop.f32.mrf.mxu0
    %v1153 = vadd.f32 %v893, %v1152
    %1154 = vmatmul.bf16.gmra.mxu0 %v950
    %v1155 = vpop.f32.mrf.mxu0
    %v1156 = vadd.f32 %v893, %v1155
    %v1157 = vpop.f32.mrf.mxu0
    %v1158 = vadd.f32 %v893, %v1157
    %1159 = vmatmul.bf16.gmra.mxu0 %v953
    %v1160 = vpop.f32.mrf.mxu0
    %v1161 = vadd.f32 %v893, %v1160
    %v1162 = vpop.f32.mrf.mxu0
    %v1163 = vadd.f32 %v893, %v1162
    %1164 = vmatmul.bf16.gmra.mxu0 %v956
    %v1165 = vpop.f32.mrf.mxu0
    %v1166 = vadd.f32 %v893, %v1165
    %v1167 = vpop.f32.mrf.mxu0
    %v1168 = vadd.f32 %v893, %v1167
    %1169 = vmatmul.bf16.gmra.mxu0 %v959
    %v1170 = vpop.f32.mrf.mxu0
    %v1171 = vadd.f32 %v893, %v1170
    %v1172 = vpop.f32.mrf.mxu0
    %v1173 = vadd.f32 %v893, %v1172
    %1174 = vdwg.mxu0
    %v1175 = vmax.f32 %v977, 0.0
    %v1176 = vmax.f32 %v1081, 0.0
    %v1177 = vmax.f32 %v979, 0.0
    %v1178 = vmax.f32 %v1083, 0.0
    %v1179 = vmax.f32 %v982, 0.0
    %v1180 = vmax.f32 %v1086, 0.0
    %v1181 = vmax.f32 %v984, 0.0
    %v1182 = vmax.f32 %v1088, 0.0
    %v1183 = vmax.f32 %v987, 0.0
    %v1184 = vmax.f32 %v1091, 0.0
    %v1185 = vmax.f32 %v989, 0.0
    %v1186 = vmax.f32 %v1093, 0.0
    %v1187 = vmax.f32 %v992, 0.0
    %v1188 = vmax.f32 %v1096, 0.0
    %v1189 = vmax.f32 %v994, 0.0
    %v1190 = vmax.f32 %v1098, 0.0
    %v1191 = vmax.f32 %v997, 0.0
    %v1192 = vmax.f32 %v1101, 0.0
    %v1193 = vmax.f32 %v999, 0.0
    %v1194 = vmax.f32 %v1103, 0.0
    %v1195 = vmax.f32 %v1002, 0.0
    %v1196 = vmax.f32 %v1106, 0.0
    %v1197 = vmax.f32 %v1004, 0.0
    %v1198 = vmax.f32 %v1108, 0.0
    %v1199 = vmax.f32 %v1007, 0.0
    %v1200 = vmax.f32 %v1111, 0.0
    %v1201 = vmax.f32 %v1009, 0.0
    %v1202 = vmax.f32 %v1113, 0.0
    %v1203 = vmax.f32 %v1012, 0.0
    %v1204 = vmax.f32 %v1116, 0.0
    %v1205 = vmax.f32 %v1014, 0.0
    %v1206 = vmax.f32 %v1118, 0.0
    %v1207 = vmax.f32 %v1017, 0.0
    %v1208 = vmax.f32 %v1121, 0.0
    %v1209 = vmax.f32 %v1019, 0.0
    %v1210 = vmax.f32 %v1123, 0.0
    %v1211 = vmax.f32 %v1022, 0.0
    %v1212 = vmax.f32 %v1126, 0.0
    %v1213 = vmax.f32 %v1024, 0.0
    %v1214 = vmax.f32 %v1128, 0.0
    %v1215 = vmax.f32 %v1027, 0.0
    %v1216 = vmax.f32 %v1131, 0.0
    %v1217 = vmax.f32 %v1029, 0.0
    %v1218 = vmax.f32 %v1133, 0.0
    %v1219 = vmax.f32 %v1032, 0.0
    %v1220 = vmax.f32 %v1136, 0.0
    %v1221 = vmax.f32 %v1034, 0.0
    %v1222 = vmax.f32 %v1138, 0.0
    %v1223 = vmax.f32 %v1037, 0.0
    %v1224 = vmax.f32 %v1141, 0.0
    %v1225 = vmax.f32 %v1039, 0.0
    %v1226 = vmax.f32 %v1143, 0.0
    %v1227 = vmax.f32 %v1042, 0.0
    %v1228 = vmax.f32 %v1146, 0.0
    %v1229 = vmax.f32 %v1044, 0.0
    %v1230 = vmax.f32 %v1148, 0.0
    %v1231 = vmax.f32 %v1047, 0.0
    %v1232 = vmax.f32 %v1151, 0.0
    %v1233 = vmax.f32 %v1049, 0.0
    %v1234 = vmax.f32 %v1153, 0.0
    %v1235 = vmax.f32 %v1052, 0.0
    %v1236 = vmax.f32 %v1156, 0.0
    %v1237 = vmax.f32 %v1054, 0.0
    %v1238 = vmax.f32 %v1158, 0.0
    %v1239 = vmax.f32 %v1057, 0.0
    %v1240 = vmax.f32 %v1161, 0.0
    %v1241 = vmax.f32 %v1059, 0.0
    %v1242 = vmax.f32 %v1163, 0.0
    %v1243 = vmax.f32 %v1062, 0.0
    %v1244 = vmax.f32 %v1166, 0.0
    %v1245 = vmax.f32 %v1064, 0.0
    %v1246 = vmax.f32 %v1168, 0.0
    %v1247 = vmax.f32 %v1067, 0.0
    %v1248 = vmax.f32 %v1171, 0.0
    %v1249 = vmax.f32 %v1069, 0.0
    %v1250 = vmax.f32 %v1173, 0.0
    %v1251 = vpack.c.bf16 %v1177, %v1175
    %v1252 = vpack.c.bf16 %v1178, %v1176
    %v1253 = vpack.c.bf16 %v1181, %v1179
    %v1254 = vpack.c.bf16 %v1182, %v1180
    %v1255 = vpack.c.bf16 %v1185, %v1183
    %v1256 = vpack.c.bf16 %v1186, %v1184
    %v1257 = vpack.c.bf16 %v1189, %v1187
    %v1258 = vpack.c.bf16 %v1190, %v1188
    %v1259 = vpack.c.bf16 %v1193, %v1191
    %v1260 = vpack.c.bf16 %v1194, %v1192
    %v1261 = vpack.c.bf16 %v1197, %v1195
    %v1262 = vpack.c.bf16 %v1198, %v1196
    %v1263 = vpack.c.bf16 %v1201, %v1199
    %v1264 = vpack.c.bf16 %v1202, %v1200
    %v1265 = vpack.c.bf16 %v1205, %v1203
    %v1266 = vpack.c.bf16 %v1206, %v1204
    %v1267 = vpack.c.bf16 %v1209, %v1207
    %v1268 = vpack.c.bf16 %v1210, %v1208
    %v1269 = vpack.c.bf16 %v1213, %v1211
    %v1270 = vpack.c.bf16 %v1214, %v1212
    %v1271 = vpack.c.bf16 %v1217, %v1215
    %v1272 = vpack.c.bf16 %v1218, %v1216
    %v1273 = vpack.c.bf16 %v1221, %v1219
    %v1274 = vpack.c.bf16 %v1222, %v1220
    %v1275 = vpack.c.bf16 %v1225, %v1223
    %v1276 = vpack.c.bf16 %v1226, %v1224
    %v1277 = vpack.c.bf16 %v1229, %v1227
    %v1278 = vpack.c.bf16 %v1230, %v1228
    %v1279 = vpack.c.bf16 %v1233, %v1231
    %v1280 = vpack.c.bf16 %v1234, %v1232
    %v1281 = vpack.c.bf16 %v1237, %v1235
    %v1282 = vpack.c.bf16 %v1238, %v1236
    %v1283 = vpack.c.bf16 %v1241, %v1239
    %v1284 = vpack.c.bf16 %v1242, %v1240
    %v1285 = vpack.c.bf16 %v1245, %v1243
    %v1286 = vpack.c.bf16 %v1246, %v1244
    %v1287 = vpack.c.bf16 %v1249, %v1247
    %v1288 = vpack.c.bf16 %v1250, %v1248
    %v1289 = vld [vmem:[%s9] sm:$0xff]
    %v1290 = vld [vmem:[%s9 + $0x8] sm:$0xff]
    %v1291 = vld [vmem:[%s9 + $0x10] sm:$0xff]
    %v1292 = vld [vmem:[%s9 + $0x18] sm:$0xff]
    %v1293 = vld [vmem:[%s9 + $0x20] sm:$0xff]
    %v1294 = vld [vmem:[%s9 + $0x28] sm:$0xff]
    %v1295 = vld [vmem:[%s9 + $0x30] sm:$0xff]
    %v1296 = vld [vmem:[%s9 + $0x38] sm:$0xff]
    %v1297 = vld [vmem:[%s9 + $0x40] sm:$0xff]
    %v1298 = vld [vmem:[%s9 + $0x48] sm:$0xff]
    %v1299 = vld [vmem:[%s9 + $0x50] sm:$0xff]
    %v1300 = vld [vmem:[%s9 + $0x58] sm:$0xff]
    %v1301 = vld [vmem:[%s9 + $0x60] sm:$0xff]
    %v1302 = vld [vmem:[%s9 + $0x68] sm:$0xff]
    %v1303 = vld [vmem:[%s9 + $0x70] sm:$0xff]
    %v1304 = vld [vmem:[%s9 + $0x78] sm:$0xff]
    %v1305 = vld [vmem:[%s9 + $0x80] sm:$0xff]
    %v1306 = vld [vmem:[%s9 + $0x88] sm:$0xff]
    %v1307 = vld [vmem:[%s9 + $0x90] sm:$0xff]
    %v1308 = vld [vmem:[%s9 + $0x98] sm:$0xff]
    %v1309 = vld [vmem:[%s9 + $0xa0] sm:$0xff]
    %v1310 = vld [vmem:[%s9 + $0xa8] sm:$0xff]
    %v1311 = vld [vmem:[%s9 + $0xb0] sm:$0xff]
    %v1312 = vld [vmem:[%s9 + $0xb8] sm:$0xff]
    %v1313 = vld [vmem:[%s9 + $0xc0] sm:$0xff]
    %v1314 = vld [vmem:[%s9 + $0xc8] sm:$0xff]
    %v1315 = vld [vmem:[%s9 + $0xd0] sm:$0xff]
    %v1316 = vld [vmem:[%s9 + $0xd8] sm:$0xff]
    %v1317 = vld [vmem:[%s9 + $0xe0] sm:$0xff]
    %v1318 = vld [vmem:[%s9 + $0xe8] sm:$0xff]
    %v1319 = vld [vmem:[%s9 + $0xf0] sm:$0xff]
    %v1320 = vld [vmem:[%s9 + $0xf8] sm:$0xff]
    %v1321 = vld [vmem:[%s9 + $0x100] sm:$0xff]
    %v1322 = vld [vmem:[%s9 + $0x108] sm:$0xff]
    %v1323 = vld [vmem:[%s9 + $0x110] sm:$0xff]
    %v1324 = vld [vmem:[%s9 + $0x118] sm:$0xff]
    %v1325 = vld [vmem:[%s9 + $0x120] sm:$0xff]
    %v1326 = vld [vmem:[%s9 + $0x128] sm:$0xff]
    %v1327 = vld [vmem:[%s9 + $0x130] sm:$0xff]
    %v1328 = vld [vmem:[%s9 + $0x138] sm:$0xff]
    %v1329 = vld [vmem:[%s9 + $0x140] sm:$0xff]
    %v1330 = vld [vmem:[%s9 + $0x148] sm:$0xff]
    %v1331 = vld [vmem:[%s9 + $0x150] sm:$0xff]
    %v1332 = vld [vmem:[%s9 + $0x158] sm:$0xff]
    %v1333 = vld [vmem:[%s9 + $0x160] sm:$0xff]
    %v1334 = vld [vmem:[%s9 + $0x168] sm:$0xff]
    %v1335 = vld [vmem:[%s9 + $0x170] sm:$0xff]
    %v1336 = vld [vmem:[%s9 + $0x178] sm:$0xff]
    %v1337 = vld [vmem:[%s9 + $0x180] sm:$0xff]
    %v1338 = vld [vmem:[%s9 + $0x188] sm:$0xff]
    %v1339 = vld [vmem:[%s9 + $0x190] sm:$0xff]
    %v1340 = vld [vmem:[%s9 + $0x198] sm:$0xff]
    %v1341 = vld [vmem:[%s9 + $0x1a0] sm:$0xff]
    %v1342 = vld [vmem:[%s9 + $0x1a8] sm:$0xff]
    %v1343 = vld [vmem:[%s9 + $0x1b0] sm:$0xff]
    %v1344 = vld [vmem:[%s9 + $0x1b8] sm:$0xff]
    %v1345 = vld [vmem:[%s9 + $0x1c0] sm:$0xff]
    %v1346 = vld [vmem:[%s9 + $0x1c8] sm:$0xff]
    %v1347 = vld [vmem:[%s9 + $0x1d0] sm:$0xff]
    %v1348 = vld [vmem:[%s9 + $0x1d8] sm:$0xff]
    %v1349 = vld [vmem:[%s9 + $0x1e0] sm:$0xff]
    %v1350 = vld [vmem:[%s9 + $0x1e8] sm:$0xff]
    %v1351 = vld [vmem:[%s9 + $0x1f0] sm:$0xff]
    %v1352 = vld [vmem:[%s9 + $0x1f8] sm:$0xff]
    %v1353 = vld [vmem:[%s10] sm:$0xf]
    %v1355 = vperm.slane %v1353, 0
    %v1356 = vperm.slane %v1353, 1
    %v1357 = vperm.slane %v1353, 2
    %v1358 = vperm.slane %v1353, 3
    %v1427 = vunpack.c.l.b16 %v1289
    %v1428 = vunpack.c.h.b16 %v1289
    %v1429 = vunpack.c.l.b16 %v1290
    %v1430 = vunpack.c.h.b16 %v1290
    %v1431 = vunpack.c.l.b16 %v1291
    %v1432 = vunpack.c.h.b16 %v1291
    %v1433 = vunpack.c.l.b16 %v1292
    %v1434 = vunpack.c.h.b16 %v1292
    %v1435 = vunpack.c.l.b16 %v1293
    %v1436 = vunpack.c.h.b16 %v1293
    %v1437 = vunpack.c.l.b16 %v1294
    %v1438 = vunpack.c.h.b16 %v1294
    %v1439 = vunpack.c.l.b16 %v1295
    %v1440 = vunpack.c.h.b16 %v1295
    %v1441 = vunpack.c.l.b16 %v1296
    %v1442 = vunpack.c.h.b16 %v1296
    %v1443 = vunpack.c.l.b16 %v1297
    %v1444 = vunpack.c.h.b16 %v1297
    %v1445 = vunpack.c.l.b16 %v1298
    %v1446 = vunpack.c.h.b16 %v1298
    %v1447 = vunpack.c.l.b16 %v1299
    %v1448 = vunpack.c.h.b16 %v1299
    %v1449 = vunpack.c.l.b16 %v1300
    %v1450 = vunpack.c.h.b16 %v1300
    %v1451 = vunpack.c.l.b16 %v1301
    %v1452 = vunpack.c.h.b16 %v1301
    %v1453 = vunpack.c.l.b16 %v1302
    %v1454 = vunpack.c.h.b16 %v1302
    %v1455 = vunpack.c.l.b16 %v1303
    %v1456 = vunpack.c.h.b16 %v1303
    %v1457 = vunpack.c.l.b16 %v1304
    %v1458 = vunpack.c.h.b16 %v1304
    %v1459 = vunpack.c.l.b16 %v1305
    %v1460 = vunpack.c.h.b16 %v1305
    %v1461 = vunpack.c.l.b16 %v1306
    %v1462 = vunpack.c.h.b16 %v1306
    %v1463 = vunpack.c.l.b16 %v1307
    %v1464 = vunpack.c.h.b16 %v1307
    %v1465 = vunpack.c.l.b16 %v1308
    %v1466 = vunpack.c.h.b16 %v1308
    %v1467 = vunpack.c.l.b16 %v1309
    %v1468 = vunpack.c.h.b16 %v1309
    %v1469 = vunpack.c.l.b16 %v1310
    %v1470 = vunpack.c.h.b16 %v1310
    %v1471 = vunpack.c.l.b16 %v1311
    %v1472 = vunpack.c.h.b16 %v1311
    %v1473 = vunpack.c.l.b16 %v1312
    %v1474 = vunpack.c.h.b16 %v1312
    %v1475 = vunpack.c.l.b16 %v1313
    %v1476 = vunpack.c.h.b16 %v1313
    %v1477 = vunpack.c.l.b16 %v1314
    %v1478 = vunpack.c.h.b16 %v1314
    %v1479 = vunpack.c.l.b16 %v1315
    %v1480 = vunpack.c.h.b16 %v1315
    %v1481 = vunpack.c.l.b16 %v1316
    %v1482 = vunpack.c.h.b16 %v1316
    %v1483 = vunpack.c.l.b16 %v1317
    %v1484 = vunpack.c.h.b16 %v1317
    %v1485 = vunpack.c.l.b16 %v1318
    %v1486 = vunpack.c.h.b16 %v1318
    %v1487 = vunpack.c.l.b16 %v1319
    %v1488 = vunpack.c.h.b16 %v1319
    %v1489 = vunpack.c.l.b16 %v1320
    %v1490 = vunpack.c.h.b16 %v1320
    %v1491 = vunpack.c.l.b16 %v1321
    %v1492 = vunpack.c.h.b16 %v1321
    %v1493 = vunpack.c.l.b16 %v1322
    %v1494 = vunpack.c.h.b16 %v1322
    %v1495 = vunpack.c.l.b16 %v1323
    %v1496 = vunpack.c.h.b16 %v1323
    %v1497 = vunpack.c.l.b16 %v1324
    %v1498 = vunpack.c.h.b16 %v1324
    %v1499 = vunpack.c.l.b16 %v1325
    %v1500 = vunpack.c.h.b16 %v1325
    %v1501 = vunpack.c.l.b16 %v1326
    %v1502 = vunpack.c.h.b16 %v1326
    %v1503 = vunpack.c.l.b16 %v1327
    %v1504 = vunpack.c.h.b16 %v1327
    %v1505 = vunpack.c.l.b16 %v1328
    %v1506 = vunpack.c.h.b16 %v1328
    %v1507 = vunpack.c.l.b16 %v1329
    %v1508 = vunpack.c.h.b16 %v1329
    %v1509 = vunpack.c.l.b16 %v1330
    %v1510 = vunpack.c.h.b16 %v1330
    %v1511 = vunpack.c.l.b16 %v1331
    %v1512 = vunpack.c.h.b16 %v1331
    %v1513 = vunpack.c.l.b16 %v1332
    %v1514 = vunpack.c.h.b16 %v1332
    %v1515 = vunpack.c.l.b16 %v1333
    %v1516 = vunpack.c.h.b16 %v1333
    %v1517 = vunpack.c.l.b16 %v1334
    %v1518 = vunpack.c.h.b16 %v1334
    %v1519 = vunpack.c.l.b16 %v1335
    %v1520 = vunpack.c.h.b16 %v1335
    %v1521 = vunpack.c.l.b16 %v1336
    %v1522 = vunpack.c.h.b16 %v1336
    %v1523 = vunpack.c.l.b16 %v1337
    %v1524 = vunpack.c.h.b16 %v1337
    %v1525 = vunpack.c.l.b16 %v1338
    %v1526 = vunpack.c.h.b16 %v1338
    %v1527 = vunpack.c.l.b16 %v1339
    %v1528 = vunpack.c.h.b16 %v1339
    %v1529 = vunpack.c.l.b16 %v1340
    %v1530 = vunpack.c.h.b16 %v1340
    %v1531 = vunpack.c.l.b16 %v1341
    %v1532 = vunpack.c.h.b16 %v1341
    %v1533 = vunpack.c.l.b16 %v1342
    %v1534 = vunpack.c.h.b16 %v1342
    %v1535 = vunpack.c.l.b16 %v1343
    %v1536 = vunpack.c.h.b16 %v1343
    %v1537 = vunpack.c.l.b16 %v1344
    %v1538 = vunpack.c.h.b16 %v1344
    %v1539 = vunpack.c.l.b16 %v1345
    %v1540 = vunpack.c.h.b16 %v1345
    %v1541 = vunpack.c.l.b16 %v1346
    %v1542 = vunpack.c.h.b16 %v1346
    %v1543 = vunpack.c.l.b16 %v1347
    %v1544 = vunpack.c.h.b16 %v1347
    %v1545 = vunpack.c.l.b16 %v1348
    %v1546 = vunpack.c.h.b16 %v1348
    %v1547 = vunpack.c.l.b16 %v1349
    %v1548 = vunpack.c.h.b16 %v1349
    %v1549 = vunpack.c.l.b16 %v1350
    %v1550 = vunpack.c.h.b16 %v1350
    %v1551 = vunpack.c.l.b16 %v1351
    %v1552 = vunpack.c.h.b16 %v1351
    %v1553 = vunpack.c.l.b16 %v1352
    %v1554 = vunpack.c.h.b16 %v1352
    %v1555 = vpack.c.b16 %v1431, %v1427
    %v1556 = vpack.c.b16 %v1432, %v1428
    %v1557 = vpack.c.b16 %v1433, %v1429
    %v1558 = vpack.c.b16 %v1434, %v1430
    %v1559 = vpack.c.b16 %v1439, %v1435
    %v1560 = vpack.c.b16 %v1440, %v1436
    %v1561 = vpack.c.b16 %v1441, %v1437
    %v1562 = vpack.c.b16 %v1442, %v1438
    %v1563 = vpack.c.b16 %v1447, %v1443
    %v1564 = vpack.c.b16 %v1448, %v1444
    %v1565 = vpack.c.b16 %v1449, %v1445
    %v1566 = vpack.c.b16 %v1450, %v1446
    %v1567 = vpack.c.b16 %v1455, %v1451
    %v1568 = vpack.c.b16 %v1456, %v1452
    %v1569 = vpack.c.b16 %v1457, %v1453
    %v1570 = vpack.c.b16 %v1458, %v1454
    %v1571 = vpack.c.b16 %v1463, %v1459
    %v1572 = vpack.c.b16 %v1464, %v1460
    %v1573 = vpack.c.b16 %v1465, %v1461
    %v1574 = vpack.c.b16 %v1466, %v1462
    %v1575 = vpack.c.b16 %v1471, %v1467
    %v1576 = vpack.c.b16 %v1472, %v1468
    %v1577 = vpack.c.b16 %v1473, %v1469
    %v1578 = vpack.c.b16 %v1474, %v1470
    %v1579 = vpack.c.b16 %v1479, %v1475
    %v1580 = vpack.c.b16 %v1480, %v1476
    %v1581 = vpack.c.b16 %v1481, %v1477
    %v1582 = vpack.c.b16 %v1482, %v1478
    %v1583 = vpack.c.b16 %v1487, %v1483
    %v1584 = vpack.c.b16 %v1488, %v1484
    %v1585 = vpack.c.b16 %v1489, %v1485
    %v1586 = vpack.c.b16 %v1490, %v1486
    %v1587 = vpack.c.b16 %v1495, %v1491
    %v1588 = vpack.c.b16 %v1496, %v1492
    %v1589 = vpack.c.b16 %v1497, %v1493
    %v1590 = vpack.c.b16 %v1498, %v1494
    %v1591 = vpack.c.b16 %v1503, %v1499
    %v1592 = vpack.c.b16 %v1504, %v1500
    %v1593 = vpack.c.b16 %v1505, %v1501
    %v1594 = vpack.c.b16 %v1506, %v1502
    %v1595 = vpack.c.b16 %v1511, %v1507
    %v1596 = vpack.c.b16 %v1512, %v1508
    %v1597 = vpack.c.b16 %v1513, %v1509
    %v1598 = vpack.c.b16 %v1514, %v1510
    %v1599 = vpack.c.b16 %v1519, %v1515
    %v1600 = vpack.c.b16 %v1520, %v1516
    %v1601 = vpack.c.b16 %v1521, %v1517
    %v1602 = vpack.c.b16 %v1522, %v1518
    %v1603 = vpack.c.b16 %v1527, %v1523
    %v1604 = vpack.c.b16 %v1528, %v1524
    %v1605 = vpack.c.b16 %v1529, %v1525
    %v1606 = vpack.c.b16 %v1530, %v1526
    %v1607 = vpack.c.b16 %v1535, %v1531
    %v1608 = vpack.c.b16 %v1536, %v1532
    %v1609 = vpack.c.b16 %v1537, %v1533
    %v1610 = vpack.c.b16 %v1538, %v1534
    %v1611 = vpack.c.b16 %v1543, %v1539
    %v1612 = vpack.c.b16 %v1544, %v1540
    %v1613 = vpack.c.b16 %v1545, %v1541
    %v1614 = vpack.c.b16 %v1546, %v1542
    %v1615 = vpack.c.b16 %v1551, %v1547
    %v1616 = vpack.c.b16 %v1552, %v1548
    %v1617 = vpack.c.b16 %v1553, %v1549
    %v1618 = vpack.c.b16 %v1554, %v1550
    %1683 = vmatpush.bf16.msra.mxu0 %v1583
    %1684 = vmatpush.bf16.msra.mxu0 %v1579
    %1685 = vmatpush.bf16.msra.mxu0 %v1575
    %1686 = vmatpush.bf16.msra.mxu0 %v1571
    %1687 = vmatpush.bf16.msra.mxu0 %v1567
    %1688 = vmatpush.bf16.msra.mxu0 %v1563
    %1689 = vmatpush.bf16.msra.mxu0 %v1559
    %1690 = vmatpush.bf16.msra.mxu0 %v1555
    %1691 = vmatmul.bf16.gmra.mxu0 %v1251
    %v1692 = vpop.f32.mrf.mxu0
    %v1693 = vadd.f32 %v1355, %v1692
    %v1694 = vpop.f32.mrf.mxu0
    %v1695 = vadd.f32 %v1355, %v1694
    %1696 = vmatmul.bf16.gmra.mxu0 %v1253
    %v1697 = vpop.f32.mrf.mxu0
    %v1698 = vadd.f32 %v1355, %v1697
    %v1699 = vpop.f32.mrf.mxu0
    %v1700 = vadd.f32 %v1355, %v1699
    %1701 = vmatmul.bf16.gmra.mxu0 %v1255
    %v1702 = vpop.f32.mrf.mxu0
    %v1703 = vadd.f32 %v1355, %v1702
    %v1704 = vpop.f32.mrf.mxu0
    %v1705 = vadd.f32 %v1355, %v1704
    %1706 = vmatmul.bf16.gmra.mxu0 %v1257
    %v1707 = vpop.f32.mrf.mxu0
    %v1708 = vadd.f32 %v1355, %v1707
    %v1709 = vpop.f32.mrf.mxu0
    %v1710 = vadd.f32 %v1355, %v1709
    %1711 = vmatmul.bf16.gmra.mxu0 %v1259
    %v1712 = vpop.f32.mrf.mxu0
    %v1713 = vadd.f32 %v1355, %v1712
    %v1714 = vpop.f32.mrf.mxu0
    %v1715 = vadd.f32 %v1355, %v1714
    %1716 = vmatmul.bf16.gmra.mxu0 %v1261
    %v1717 = vpop.f32.mrf.mxu0
    %v1718 = vadd.f32 %v1355, %v1717
    %v1719 = vpop.f32.mrf.mxu0
    %v1720 = vadd.f32 %v1355, %v1719
    %1721 = vmatmul.bf16.gmra.mxu0 %v1263
    %v1722 = vpop.f32.mrf.mxu0
    %v1723 = vadd.f32 %v1355, %v1722
    %v1724 = vpop.f32.mrf.mxu0
    %v1725 = vadd.f32 %v1355, %v1724
    %1726 = vmatmul.bf16.gmra.mxu0 %v1265
    %v1727 = vpop.f32.mrf.mxu0
    %v1728 = vadd.f32 %v1355, %v1727
    %v1729 = vpop.f32.mrf.mxu0
    %v1730 = vadd.f32 %v1355, %v1729
    %1731 = vmatmul.bf16.gmra.mxu0 %v1267
    %v1732 = vpop.f32.mrf.mxu0
    %v1733 = vadd.f32 %v1355, %v1732
    %v1734 = vpop.f32.mrf.mxu0
    %v1735 = vadd.f32 %v1355, %v1734
    %1736 = vmatmul.bf16.gmra.mxu0 %v1269
    %v1737 = vpop.f32.mrf.mxu0
    %v1738 = vadd.f32 %v1355, %v1737
    %v1739 = vpop.f32.mrf.mxu0
    %v1740 = vadd.f32 %v1355, %v1739
    %1741 = vmatmul.bf16.gmra.mxu0 %v1271
    %v1742 = vpop.f32.mrf.mxu0
    %v1743 = vadd.f32 %v1355, %v1742
    %v1744 = vpop.f32.mrf.mxu0
    %v1745 = vadd.f32 %v1355, %v1744
    %1746 = vmatmul.bf16.gmra.mxu0 %v1273
    %v1747 = vpop.f32.mrf.mxu0
    %v1748 = vadd.f32 %v1355, %v1747
    %v1749 = vpop.f32.mrf.mxu0
    %v1750 = vadd.f32 %v1355, %v1749
    %1751 = vmatmul.bf16.gmra.mxu0 %v1275
    %v1752 = vpop.f32.mrf.mxu0
    %v1753 = vadd.f32 %v1355, %v1752
    %v1754 = vpop.f32.mrf.mxu0
    %v1755 = vadd.f32 %v1355, %v1754
    %1756 = vmatmul.bf16.gmra.mxu0 %v1277
    %v1757 = vpop.f32.mrf.mxu0
    %v1758 = vadd.f32 %v1355, %v1757
    %v1759 = vpop.f32.mrf.mxu0
    %v1760 = vadd.f32 %v1355, %v1759
    %1761 = vmatmul.bf16.gmra.mxu0 %v1279
    %v1762 = vpop.f32.mrf.mxu0
    %v1763 = vadd.f32 %v1355, %v1762
    %v1764 = vpop.f32.mrf.mxu0
    %v1765 = vadd.f32 %v1355, %v1764
    %1766 = vmatmul.bf16.gmra.mxu0 %v1281
    %v1767 = vpop.f32.mrf.mxu0
    %v1768 = vadd.f32 %v1355, %v1767
    %v1769 = vpop.f32.mrf.mxu0
    %v1770 = vadd.f32 %v1355, %v1769
    %1771 = vmatmul.bf16.gmra.mxu0 %v1283
    %v1772 = vpop.f32.mrf.mxu0
    %v1773 = vadd.f32 %v1355, %v1772
    %v1774 = vpop.f32.mrf.mxu0
    %v1775 = vadd.f32 %v1355, %v1774
    %1776 = vmatmul.bf16.gmra.mxu0 %v1285
    %v1777 = vpop.f32.mrf.mxu0
    %v1778 = vadd.f32 %v1355, %v1777
    %v1779 = vpop.f32.mrf.mxu0
    %v1780 = vadd.f32 %v1355, %v1779
    %1781 = vmatmul.bf16.gmra.mxu0 %v1287
    %v1782 = vpop.f32.mrf.mxu0
    %v1783 = vadd.f32 %v1355, %v1782
    %v1784 = vpop.f32.mrf.mxu0
    %v1785 = vadd.f32 %v1355, %v1784
    %1786 = vdwg.mxu0
    %1787 = vmatpush.bf16.msra.mxu0 %v1615
    %1788 = vmatpush.bf16.msra.mxu0 %v1611
    %1789 = vmatpush.bf16.msra.mxu0 %v1607
    %1790 = vmatpush.bf16.msra.mxu0 %v1603
    %1791 = vmatpush.bf16.msra.mxu0 %v1599
    %1792 = vmatpush.bf16.msra.mxu0 %v1595
    %1793 = vmatpush.bf16.msra.mxu0 %v1591
    %1794 = vmatpush.bf16.msra.mxu0 %v1587
    %1795 = vmatmul.bf16.gmra.mxu0 %v1252
    %v1796 = vpop.f32.mrf.mxu0
    %v1797 = vadd.f32 %v1693, %v1796
    %v1798 = vpop.f32.mrf.mxu0
    %v1799 = vadd.f32 %v1695, %v1798
    %1800 = vmatmul.bf16.gmra.mxu0 %v1254
    %v1801 = vpop.f32.mrf.mxu0
    %v1802 = vadd.f32 %v1698, %v1801
    %v1803 = vpop.f32.mrf.mxu0
    %v1804 = vadd.f32 %v1700, %v1803
    %1805 = vmatmul.bf16.gmra.mxu0 %v1256
    %v1806 = vpop.f32.mrf.mxu0
    %v1807 = vadd.f32 %v1703, %v1806
    %v1808 = vpop.f32.mrf.mxu0
    %v1809 = vadd.f32 %v1705, %v1808
    %1810 = vmatmul.bf16.gmra.mxu0 %v1258
    %v1811 = vpop.f32.mrf.mxu0
    %v1812 = vadd.f32 %v1708, %v1811
    %v1813 = vpop.f32.mrf.mxu0
    %v1814 = vadd.f32 %v1710, %v1813
    %1815 = vmatmul.bf16.gmra.mxu0 %v1260
    %v1816 = vpop.f32.mrf.mxu0
    %v1817 = vadd.f32 %v1713, %v1816
    %v1818 = vpop.f32.mrf.mxu0
    %v1819 = vadd.f32 %v1715, %v1818
    %1820 = vmatmul.bf16.gmra.mxu0 %v1262
    %v1821 = vpop.f32.mrf.mxu0
    %v1822 = vadd.f32 %v1718, %v1821
    %v1823 = vpop.f32.mrf.mxu0
    %v1824 = vadd.f32 %v1720, %v1823
    %1825 = vmatmul.bf16.gmra.mxu0 %v1264
    %v1826 = vpop.f32.mrf.mxu0
    %v1827 = vadd.f32 %v1723, %v1826
    %v1828 = vpop.f32.mrf.mxu0
    %v1829 = vadd.f32 %v1725, %v1828
    %1830 = vmatmul.bf16.gmra.mxu0 %v1266
    %v1831 = vpop.f32.mrf.mxu0
    %v1832 = vadd.f32 %v1728, %v1831
    %v1833 = vpop.f32.mrf.mxu0
    %v1834 = vadd.f32 %v1730, %v1833
    %1835 = vmatmul.bf16.gmra.mxu0 %v1268
    %v1836 = vpop.f32.mrf.mxu0
    %v1837 = vadd.f32 %v1733, %v1836
    %v1838 = vpop.f32.mrf.mxu0
    %v1839 = vadd.f32 %v1735, %v1838
    %1840 = vmatmul.bf16.gmra.mxu0 %v1270
    %v1841 = vpop.f32.mrf.mxu0
    %v1842 = vadd.f32 %v1738, %v1841
    %v1843 = vpop.f32.mrf.mxu0
    %v1844 = vadd.f32 %v1740, %v1843
    %1845 = vmatmul.bf16.gmra.mxu0 %v1272
    %v1846 = vpop.f32.mrf.mxu0
    %v1847 = vadd.f32 %v1743, %v1846
    %v1848 = vpop.f32.mrf.mxu0
    %v1849 = vadd.f32 %v1745, %v1848
    %1850 = vmatmul.bf16.gmra.mxu0 %v1274
    %v1851 = vpop.f32.mrf.mxu0
    %v1852 = vadd.f32 %v1748, %v1851
    %v1853 = vpop.f32.mrf.mxu0
    %v1854 = vadd.f32 %v1750, %v1853
    %1855 = vmatmul.bf16.gmra.mxu0 %v1276
    %v1856 = vpop.f32.mrf.mxu0
    %v1857 = vadd.f32 %v1753, %v1856
    %v1858 = vpop.f32.mrf.mxu0
    %v1859 = vadd.f32 %v1755, %v1858
    %1860 = vmatmul.bf16.gmra.mxu0 %v1278
    %v1861 = vpop.f32.mrf.mxu0
    %v1862 = vadd.f32 %v1758, %v1861
    %v1863 = vpop.f32.mrf.mxu0
    %v1864 = vadd.f32 %v1760, %v1863
    %1865 = vmatmul.bf16.gmra.mxu0 %v1280
    %v1866 = vpop.f32.mrf.mxu0
    %v1867 = vadd.f32 %v1763, %v1866
    %v1868 = vpop.f32.mrf.mxu0
    %v1869 = vadd.f32 %v1765, %v1868
    %1870 = vmatmul.bf16.gmra.mxu0 %v1282
    %v1871 = vpop.f32.mrf.mxu0
    %v1872 = vadd.f32 %v1768, %v1871
    %v1873 = vpop.f32.mrf.mxu0
    %v1874 = vadd.f32 %v1770, %v1873
    %1875 = vmatmul.bf16.gmra.mxu0 %v1284
    %v1876 = vpop.f32.mrf.mxu0
    %v1877 = vadd.f32 %v1773, %v1876
    %v1878 = vpop.f32.mrf.mxu0
    %v1879 = vadd.f32 %v1775, %v1878
    %1880 = vmatmul.bf16.gmra.mxu0 %v1286
    %v1881 = vpop.f32.mrf.mxu0
    %v1882 = vadd.f32 %v1778, %v1881
    %v1883 = vpop.f32.mrf.mxu0
    %v1884 = vadd.f32 %v1780, %v1883
    %1885 = vmatmul.bf16.gmra.mxu0 %v1288
    %v1886 = vpop.f32.mrf.mxu0
    %v1887 = vadd.f32 %v1783, %v1886
    %v1888 = vpop.f32.mrf.mxu0
    %v1889 = vadd.f32 %v1785, %v1888
    %1890 = vdwg.mxu0
    %1891 = vmatpush.bf16.msra.mxu0 %v1584
    %1892 = vmatpush.bf16.msra.mxu0 %v1580
    %1893 = vmatpush.bf16.msra.mxu0 %v1576
    %1894 = vmatpush.bf16.msra.mxu0 %v1572
    %1895 = vmatpush.bf16.msra.mxu0 %v1568
    %1896 = vmatpush.bf16.msra.mxu0 %v1564
    %1897 = vmatpush.bf16.msra.mxu0 %v1560
    %1898 = vmatpush.bf16.msra.mxu0 %v1556
    %1899 = vmatmul.bf16.gmra.mxu0 %v1251
    %v1900 = vpop.f32.mrf.mxu0
    %v1901 = vadd.f32 %v1356, %v1900
    %v1902 = vpop.f32.mrf.mxu0
    %v1903 = vadd.f32 %v1356, %v1902
    %1904 = vmatmul.bf16.gmra.mxu0 %v1253
    %v1905 = vpop.f32.mrf.mxu0
    %v1906 = vadd.f32 %v1356, %v1905
    %v1907 = vpop.f32.mrf.mxu0
    %v1908 = vadd.f32 %v1356, %v1907
    %1909 = vmatmul.bf16.gmra.mxu0 %v1255
    %v1910 = vpop.f32.mrf.mxu0
    %v1911 = vadd.f32 %v1356, %v1910
    %v1912 = vpop.f32.mrf.mxu0
    %v1913 = vadd.f32 %v1356, %v1912
    %1914 = vmatmul.bf16.gmra.mxu0 %v1257
    %v1915 = vpop.f32.mrf.mxu0
    %v1916 = vadd.f32 %v1356, %v1915
    %v1917 = vpop.f32.mrf.mxu0
    %v1918 = vadd.f32 %v1356, %v1917
    %1919 = vmatmul.bf16.gmra.mxu0 %v1259
    %v1920 = vpop.f32.mrf.mxu0
    %v1921 = vadd.f32 %v1356, %v1920
    %v1922 = vpop.f32.mrf.mxu0
    %v1923 = vadd.f32 %v1356, %v1922
    %1924 = vmatmul.bf16.gmra.mxu0 %v1261
    %v1925 = vpop.f32.mrf.mxu0
    %v1926 = vadd.f32 %v1356, %v1925
    %v1927 = vpop.f32.mrf.mxu0
    %v1928 = vadd.f32 %v1356, %v1927
    %1929 = vmatmul.bf16.gmra.mxu0 %v1263
    %v1930 = vpop.f32.mrf.mxu0
    %v1931 = vadd.f32 %v1356, %v1930
    %v1932 = vpop.f32.mrf.mxu0
    %v1933 = vadd.f32 %v1356, %v1932
    %1934 = vmatmul.bf16.gmra.mxu0 %v1265
    %v1935 = vpop.f32.mrf.mxu0
    %v1936 = vadd.f32 %v1356, %v1935
    %v1937 = vpop.f32.mrf.mxu0
    %v1938 = vadd.f32 %v1356, %v1937
    %1939 = vmatmul.bf16.gmra.mxu0 %v1267
    %v1940 = vpop.f32.mrf.mxu0
    %v1941 = vadd.f32 %v1356, %v1940
    %v1942 = vpop.f32.mrf.mxu0
    %v1943 = vadd.f32 %v1356, %v1942
    %1944 = vmatmul.bf16.gmra.mxu0 %v1269
    %v1945 = vpop.f32.mrf.mxu0
    %v1946 = vadd.f32 %v1356, %v1945
    %v1947 = vpop.f32.mrf.mxu0
    %v1948 = vadd.f32 %v1356, %v1947
    %1949 = vmatmul.bf16.gmra.mxu0 %v1271
    %v1950 = vpop.f32.mrf.mxu0
    %v1951 = vadd.f32 %v1356, %v1950
    %v1952 = vpop.f32.mrf.mxu0
    %v1953 = vadd.f32 %v1356, %v1952
    %1954 = vmatmul.bf16.gmra.mxu0 %v1273
    %v1955 = vpop.f32.mrf.mxu0
    %v1956 = vadd.f32 %v1356, %v1955
    %v1957 = vpop.f32.mrf.mxu0
    %v1958 = vadd.f32 %v1356, %v1957
    %1959 = vmatmul.bf16.gmra.mxu0 %v1275
    %v1960 = vpop.f32.mrf.mxu0
    %v1961 = vadd.f32 %v1356, %v1960
    %v1962 = vpop.f32.mrf.mxu0
    %v1963 = vadd.f32 %v1356, %v1962
    %1964 = vmatmul.bf16.gmra.mxu0 %v1277
    %v1965 = vpop.f32.mrf.mxu0
    %v1966 = vadd.f32 %v1356, %v1965
    %v1967 = vpop.f32.mrf.mxu0
    %v1968 = vadd.f32 %v1356, %v1967
    %1969 = vmatmul.bf16.gmra.mxu0 %v1279
    %v1970 = vpop.f32.mrf.mxu0
    %v1971 = vadd.f32 %v1356, %v1970
    %v1972 = vpop.f32.mrf.mxu0
    %v1973 = vadd.f32 %v1356, %v1972
    %1974 = vmatmul.bf16.gmra.mxu0 %v1281
    %v1975 = vpop.f32.mrf.mxu0
    %v1976 = vadd.f32 %v1356, %v1975
    %v1977 = vpop.f32.mrf.mxu0
    %v1978 = vadd.f32 %v1356, %v1977
    %1979 = vmatmul.bf16.gmra.mxu0 %v1283
    %v1980 = vpop.f32.mrf.mxu0
    %v1981 = vadd.f32 %v1356, %v1980
    %v1982 = vpop.f32.mrf.mxu0
    %v1983 = vadd.f32 %v1356, %v1982
    %1984 = vmatmul.bf16.gmra.mxu0 %v1285
    %v1985 = vpop.f32.mrf.mxu0
    %v1986 = vadd.f32 %v1356, %v1985
    %v1987 = vpop.f32.mrf.mxu0
    %v1988 = vadd.f32 %v1356, %v1987
    %1989 = vmatmul.bf16.gmra.mxu0 %v1287
    %v1990 = vpop.f32.mrf.mxu0
    %v1991 = vadd.f32 %v1356, %v1990
    %v1992 = vpop.f32.mrf.mxu0
    %v1993 = vadd.f32 %v1356, %v1992
    %1994 = vdwg.mxu0
    %1995 = vmatpush.bf16.msra.mxu0 %v1616
    %1996 = vmatpush.bf16.msra.mxu0 %v1612
    %1997 = vmatpush.bf16.msra.mxu0 %v1608
    %1998 = vmatpush.bf16.msra.mxu0 %v1604
    %1999 = vmatpush.bf16.msra.mxu0 %v1600
    %2000 = vmatpush.bf16.msra.mxu0 %v1596
    %2001 = vmatpush.bf16.msra.mxu0 %v1592
    %2002 = vmatpush.bf16.msra.mxu0 %v1588
    %2003 = vmatmul.bf16.gmra.mxu0 %v1252
    %v2004 = vpop.f32.mrf.mxu0
    %v2005 = vadd.f32 %v1901, %v2004
    %v2006 = vpop.f32.mrf.mxu0
    %v2007 = vadd.f32 %v1903, %v2006
    %2008 = vmatmul.bf16.gmra.mxu0 %v1254
    %v2009 = vpop.f32.mrf.mxu0
    %v2010 = vadd.f32 %v1906, %v2009
    %v2011 = vpop.f32.mrf.mxu0
    %v2012 = vadd.f32 %v1908, %v2011
    %2013 = vmatmul.bf16.gmra.mxu0 %v1256
    %v2014 = vpop.f32.mrf.mxu0
    %v2015 = vadd.f32 %v1911, %v2014
    %v2016 = vpop.f32.mrf.mxu0
    %v2017 = vadd.f32 %v1913, %v2016
    %2018 = vmatmul.bf16.gmra.mxu0 %v1258
    %v2019 = vpop.f32.mrf.mxu0
    %v2020 = vadd.f32 %v1916, %v2019
    %v2021 = vpop.f32.mrf.mxu0
    %v2022 = vadd.f32 %v1918, %v2021
    %2023 = vmatmul.bf16.gmra.mxu0 %v1260
    %v2024 = vpop.f32.mrf.mxu0
    %v2025 = vadd.f32 %v1921, %v2024
    %v2026 = vpop.f32.mrf.mxu0
    %v2027 = vadd.f32 %v1923, %v2026
    %2028 = vmatmul.bf16.gmra.mxu0 %v1262
    %v2029 = vpop.f32.mrf.mxu0
    %v2030 = vadd.f32 %v1926, %v2029
    %v2031 = vpop.f32.mrf.mxu0
    %v2032 = vadd.f32 %v1928, %v2031
    %2033 = vmatmul.bf16.gmra.mxu0 %v1264
    %v2034 = vpop.f32.mrf.mxu0
    %v2035 = vadd.f32 %v1931, %v2034
    %v2036 = vpop.f32.mrf.mxu0
    %v2037 = vadd.f32 %v1933, %v2036
    %2038 = vmatmul.bf16.gmra.mxu0 %v1266
    %v2039 = vpop.f32.mrf.mxu0
    %v2040 = vadd.f32 %v1936, %v2039
    %v2041 = vpop.f32.mrf.mxu0
    %v2042 = vadd.f32 %v1938, %v2041
    %2043 = vmatmul.bf16.gmra.mxu0 %v1268
    %v2044 = vpop.f32.mrf.mxu0
    %v2045 = vadd.f32 %v1941, %v2044
    %v2046 = vpop.f32.mrf.mxu0
    %v2047 = vadd.f32 %v1943, %v2046
    %2048 = vmatmul.bf16.gmra.mxu0 %v1270
    %v2049 = vpop.f32.mrf.mxu0
    %v2050 = vadd.f32 %v1946, %v2049
    %v2051 = vpop.f32.mrf.mxu0
    %v2052 = vadd.f32 %v1948, %v2051
    %2053 = vmatmul.bf16.gmra.mxu0 %v1272
    %v2054 = vpop.f32.mrf.mxu0
    %v2055 = vadd.f32 %v1951, %v2054
    %v2056 = vpop.f32.mrf.mxu0
    %v2057 = vadd.f32 %v1953, %v2056
    %2058 = vmatmul.bf16.gmra.mxu0 %v1274
    %v2059 = vpop.f32.mrf.mxu0
    %v2060 = vadd.f32 %v1956, %v2059
    %v2061 = vpop.f32.mrf.mxu0
    %v2062 = vadd.f32 %v1958, %v2061
    %2063 = vmatmul.bf16.gmra.mxu0 %v1276
    %v2064 = vpop.f32.mrf.mxu0
    %v2065 = vadd.f32 %v1961, %v2064
    %v2066 = vpop.f32.mrf.mxu0
    %v2067 = vadd.f32 %v1963, %v2066
    %2068 = vmatmul.bf16.gmra.mxu0 %v1278
    %v2069 = vpop.f32.mrf.mxu0
    %v2070 = vadd.f32 %v1966, %v2069
    %v2071 = vpop.f32.mrf.mxu0
    %v2072 = vadd.f32 %v1968, %v2071
    %2073 = vmatmul.bf16.gmra.mxu0 %v1280
    %v2074 = vpop.f32.mrf.mxu0
    %v2075 = vadd.f32 %v1971, %v2074
    %v2076 = vpop.f32.mrf.mxu0
    %v2077 = vadd.f32 %v1973, %v2076
    %2078 = vmatmul.bf16.gmra.mxu0 %v1282
    %v2079 = vpop.f32.mrf.mxu0
    %v2080 = vadd.f32 %v1976, %v2079
    %v2081 = vpop.f32.mrf.mxu0
    %v2082 = vadd.f32 %v1978, %v2081
    %2083 = vmatmul.bf16.gmra.mxu0 %v1284
    %v2084 = vpop.f32.mrf.mxu0
    %v2085 = vadd.f32 %v1981, %v2084
    %v2086 = vpop.f32.mrf.mxu0
    %v2087 = vadd.f32 %v1983, %v2086
    %2088 = vmatmul.bf16.gmra.mxu0 %v1286
    %v2089 = vpop.f32.mrf.mxu0
    %v2090 = vadd.f32 %v1986, %v2089
    %v2091 = vpop.f32.mrf.mxu0
    %v2092 = vadd.f32 %v1988, %v2091
    %2093 = vmatmul.bf16.gmra.mxu0 %v1288
    %v2094 = vpop.f32.mrf.mxu0
    %v2095 = vadd.f32 %v1991, %v2094
    %v2096 = vpop.f32.mrf.mxu0
    %v2097 = vadd.f32 %v1993, %v2096
    %2098 = vdwg.mxu0
    %2099 = vmatpush.bf16.msra.mxu0 %v1585
    %2100 = vmatpush.bf16.msra.mxu0 %v1581
    %2101 = vmatpush.bf16.msra.mxu0 %v1577
    %2102 = vmatpush.bf16.msra.mxu0 %v1573
    %2103 = vmatpush.bf16.msra.mxu0 %v1569
    %2104 = vmatpush.bf16.msra.mxu0 %v1565
    %2105 = vmatpush.bf16.msra.mxu0 %v1561
    %2106 = vmatpush.bf16.msra.mxu0 %v1557
    %2107 = vmatmul.bf16.gmra.mxu0 %v1251
    %v2108 = vpop.f32.mrf.mxu0
    %v2109 = vadd.f32 %v1357, %v2108
    %v2110 = vpop.f32.mrf.mxu0
    %v2111 = vadd.f32 %v1357, %v2110
    %2112 = vmatmul.bf16.gmra.mxu0 %v1253
    %v2113 = vpop.f32.mrf.mxu0
    %v2114 = vadd.f32 %v1357, %v2113
    %v2115 = vpop.f32.mrf.mxu0
    %v2116 = vadd.f32 %v1357, %v2115
    %2117 = vmatmul.bf16.gmra.mxu0 %v1255
    %v2118 = vpop.f32.mrf.mxu0
    %v2119 = vadd.f32 %v1357, %v2118
    %v2120 = vpop.f32.mrf.mxu0
    %v2121 = vadd.f32 %v1357, %v2120
    %2122 = vmatmul.bf16.gmra.mxu0 %v1257
    %v2123 = vpop.f32.mrf.mxu0
    %v2124 = vadd.f32 %v1357, %v2123
    %v2125 = vpop.f32.mrf.mxu0
    %v2126 = vadd.f32 %v1357, %v2125
    %2127 = vmatmul.bf16.gmra.mxu0 %v1259
    %v2128 = vpop.f32.mrf.mxu0
    %v2129 = vadd.f32 %v1357, %v2128
    %v2130 = vpop.f32.mrf.mxu0
    %v2131 = vadd.f32 %v1357, %v2130
    %2132 = vmatmul.bf16.gmra.mxu0 %v1261
    %v2133 = vpop.f32.mrf.mxu0
    %v2134 = vadd.f32 %v1357, %v2133
    %v2135 = vpop.f32.mrf.mxu0
    %v2136 = vadd.f32 %v1357, %v2135
    %2137 = vmatmul.bf16.gmra.mxu0 %v1263
    %v2138 = vpop.f32.mrf.mxu0
    %v2139 = vadd.f32 %v1357, %v2138
    %v2140 = vpop.f32.mrf.mxu0
    %v2141 = vadd.f32 %v1357, %v2140
    %2142 = vmatmul.bf16.gmra.mxu0 %v1265
    %v2143 = vpop.f32.mrf.mxu0
    %v2144 = vadd.f32 %v1357, %v2143
    %v2145 = vpop.f32.mrf.mxu0
    %v2146 = vadd.f32 %v1357, %v2145
    %2147 = vmatmul.bf16.gmra.mxu0 %v1267
    %v2148 = vpop.f32.mrf.mxu0
    %v2149 = vadd.f32 %v1357, %v2148
    %v2150 = vpop.f32.mrf.mxu0
    %v2151 = vadd.f32 %v1357, %v2150
    %2152 = vmatmul.bf16.gmra.mxu0 %v1269
    %v2153 = vpop.f32.mrf.mxu0
    %v2154 = vadd.f32 %v1357, %v2153
    %v2155 = vpop.f32.mrf.mxu0
    %v2156 = vadd.f32 %v1357, %v2155
    %2157 = vmatmul.bf16.gmra.mxu0 %v1271
    %v2158 = vpop.f32.mrf.mxu0
    %v2159 = vadd.f32 %v1357, %v2158
    %v2160 = vpop.f32.mrf.mxu0
    %v2161 = vadd.f32 %v1357, %v2160
    %2162 = vmatmul.bf16.gmra.mxu0 %v1273
    %v2163 = vpop.f32.mrf.mxu0
    %v2164 = vadd.f32 %v1357, %v2163
    %v2165 = vpop.f32.mrf.mxu0
    %v2166 = vadd.f32 %v1357, %v2165
    %2167 = vmatmul.bf16.gmra.mxu0 %v1275
    %v2168 = vpop.f32.mrf.mxu0
    %v2169 = vadd.f32 %v1357, %v2168
    %v2170 = vpop.f32.mrf.mxu0
    %v2171 = vadd.f32 %v1357, %v2170
    %2172 = vmatmul.bf16.gmra.mxu0 %v1277
    %v2173 = vpop.f32.mrf.mxu0
    %v2174 = vadd.f32 %v1357, %v2173
    %v2175 = vpop.f32.mrf.mxu0
    %v2176 = vadd.f32 %v1357, %v2175
    %2177 = vmatmul.bf16.gmra.mxu0 %v1279
    %v2178 = vpop.f32.mrf.mxu0
    %v2179 = vadd.f32 %v1357, %v2178
    %v2180 = vpop.f32.mrf.mxu0
    %v2181 = vadd.f32 %v1357, %v2180
    %2182 = vmatmul.bf16.gmra.mxu0 %v1281
    %v2183 = vpop.f32.mrf.mxu0
    %v2184 = vadd.f32 %v1357, %v2183
    %v2185 = vpop.f32.mrf.mxu0
    %v2186 = vadd.f32 %v1357, %v2185
    %2187 = vmatmul.bf16.gmra.mxu0 %v1283
    %v2188 = vpop.f32.mrf.mxu0
    %v2189 = vadd.f32 %v1357, %v2188
    %v2190 = vpop.f32.mrf.mxu0
    %v2191 = vadd.f32 %v1357, %v2190
    %2192 = vmatmul.bf16.gmra.mxu0 %v1285
    %v2193 = vpop.f32.mrf.mxu0
    %v2194 = vadd.f32 %v1357, %v2193
    %v2195 = vpop.f32.mrf.mxu0
    %v2196 = vadd.f32 %v1357, %v2195
    %2197 = vmatmul.bf16.gmra.mxu0 %v1287
    %v2198 = vpop.f32.mrf.mxu0
    %v2199 = vadd.f32 %v1357, %v2198
    %v2200 = vpop.f32.mrf.mxu0
    %v2201 = vadd.f32 %v1357, %v2200
    %2202 = vdwg.mxu0
    %2203 = vmatpush.bf16.msra.mxu0 %v1617
    %2204 = vmatpush.bf16.msra.mxu0 %v1613
    %2205 = vmatpush.bf16.msra.mxu0 %v1609
    %2206 = vmatpush.bf16.msra.mxu0 %v1605
    %2207 = vmatpush.bf16.msra.mxu0 %v1601
    %2208 = vmatpush.bf16.msra.mxu0 %v1597
    %2209 = vmatpush.bf16.msra.mxu0 %v1593
    %2210 = vmatpush.bf16.msra.mxu0 %v1589
    %2211 = vmatmul.bf16.gmra.mxu0 %v1252
    %v2212 = vpop.f32.mrf.mxu0
    %v2213 = vadd.f32 %v2109, %v2212
    %v2214 = vpop.f32.mrf.mxu0
    %v2215 = vadd.f32 %v2111, %v2214
    %2216 = vmatmul.bf16.gmra.mxu0 %v1254
    %v2217 = vpop.f32.mrf.mxu0
    %v2218 = vadd.f32 %v2114, %v2217
    %v2219 = vpop.f32.mrf.mxu0
    %v2220 = vadd.f32 %v2116, %v2219
    %2221 = vmatmul.bf16.gmra.mxu0 %v1256
    %v2222 = vpop.f32.mrf.mxu0
    %v2223 = vadd.f32 %v2119, %v2222
    %v2224 = vpop.f32.mrf.mxu0
    %v2225 = vadd.f32 %v2121, %v2224
    %2226 = vmatmul.bf16.gmra.mxu0 %v1258
    %v2227 = vpop.f32.mrf.mxu0
    %v2228 = vadd.f32 %v2124, %v2227
    %v2229 = vpop.f32.mrf.mxu0
    %v2230 = vadd.f32 %v2126, %v2229
    %2231 = vmatmul.bf16.gmra.mxu0 %v1260
    %v2232 = vpop.f32.mrf.mxu0
    %v2233 = vadd.f32 %v2129, %v2232
    %v2234 = vpop.f32.mrf.mxu0
    %v2235 = vadd.f32 %v2131, %v2234
    %2236 = vmatmul.bf16.gmra.mxu0 %v1262
    %v2237 = vpop.f32.mrf.mxu0
    %v2238 = vadd.f32 %v2134, %v2237
    %v2239 = vpop.f32.mrf.mxu0
    %v2240 = vadd.f32 %v2136, %v2239
    %2241 = vmatmul.bf16.gmra.mxu0 %v1264
    %v2242 = vpop.f32.mrf.mxu0
    %v2243 = vadd.f32 %v2139, %v2242
    %v2244 = vpop.f32.mrf.mxu0
    %v2245 = vadd.f32 %v2141, %v2244
    %2246 = vmatmul.bf16.gmra.mxu0 %v1266
    %v2247 = vpop.f32.mrf.mxu0
    %v2248 = vadd.f32 %v2144, %v2247
    %v2249 = vpop.f32.mrf.mxu0
    %v2250 = vadd.f32 %v2146, %v2249
    %2251 = vmatmul.bf16.gmra.mxu0 %v1268
    %v2252 = vpop.f32.mrf.mxu0
    %v2253 = vadd.f32 %v2149, %v2252
    %v2254 = vpop.f32.mrf.mxu0
    %v2255 = vadd.f32 %v2151, %v2254
    %2256 = vmatmul.bf16.gmra.mxu0 %v1270
    %v2257 = vpop.f32.mrf.mxu0
    %v2258 = vadd.f32 %v2154, %v2257
    %v2259 = vpop.f32.mrf.mxu0
    %v2260 = vadd.f32 %v2156, %v2259
    %2261 = vmatmul.bf16.gmra.mxu0 %v1272
    %v2262 = vpop.f32.mrf.mxu0
    %v2263 = vadd.f32 %v2159, %v2262
    %v2264 = vpop.f32.mrf.mxu0
    %v2265 = vadd.f32 %v2161, %v2264
    %2266 = vmatmul.bf16.gmra.mxu0 %v1274
    %v2267 = vpop.f32.mrf.mxu0
    %v2268 = vadd.f32 %v2164, %v2267
    %v2269 = vpop.f32.mrf.mxu0
    %v2270 = vadd.f32 %v2166, %v2269
    %2271 = vmatmul.bf16.gmra.mxu0 %v1276
    %v2272 = vpop.f32.mrf.mxu0
    %v2273 = vadd.f32 %v2169, %v2272
    %v2274 = vpop.f32.mrf.mxu0
    %v2275 = vadd.f32 %v2171, %v2274
    %2276 = vmatmul.bf16.gmra.mxu0 %v1278
    %v2277 = vpop.f32.mrf.mxu0
    %v2278 = vadd.f32 %v2174, %v2277
    %v2279 = vpop.f32.mrf.mxu0
    %v2280 = vadd.f32 %v2176, %v2279
    %2281 = vmatmul.bf16.gmra.mxu0 %v1280
    %v2282 = vpop.f32.mrf.mxu0
    %v2283 = vadd.f32 %v2179, %v2282
    %v2284 = vpop.f32.mrf.mxu0
    %v2285 = vadd.f32 %v2181, %v2284
    %2286 = vmatmul.bf16.gmra.mxu0 %v1282
    %v2287 = vpop.f32.mrf.mxu0
    %v2288 = vadd.f32 %v2184, %v2287
    %v2289 = vpop.f32.mrf.mxu0
    %v2290 = vadd.f32 %v2186, %v2289
    %2291 = vmatmul.bf16.gmra.mxu0 %v1284
    %v2292 = vpop.f32.mrf.mxu0
    %v2293 = vadd.f32 %v2189, %v2292
    %v2294 = vpop.f32.mrf.mxu0
    %v2295 = vadd.f32 %v2191, %v2294
    %2296 = vmatmul.bf16.gmra.mxu0 %v1286
    %v2297 = vpop.f32.mrf.mxu0
    %v2298 = vadd.f32 %v2194, %v2297
    %v2299 = vpop.f32.mrf.mxu0
    %v2300 = vadd.f32 %v2196, %v2299
    %2301 = vmatmul.bf16.gmra.mxu0 %v1288
    %v2302 = vpop.f32.mrf.mxu0
    %v2303 = vadd.f32 %v2199, %v2302
    %v2304 = vpop.f32.mrf.mxu0
    %v2305 = vadd.f32 %v2201, %v2304
    %2306 = vdwg.mxu0
    %2307 = vmatpush.bf16.msra.mxu0 %v1586
    %2308 = vmatpush.bf16.msra.mxu0 %v1582
    %2309 = vmatpush.bf16.msra.mxu0 %v1578
    %2310 = vmatpush.bf16.msra.mxu0 %v1574
    %2311 = vmatpush.bf16.msra.mxu0 %v1570
    %2312 = vmatpush.bf16.msra.mxu0 %v1566
    %2313 = vmatpush.bf16.msra.mxu0 %v1562
    %2314 = vmatpush.bf16.msra.mxu0 %v1558
    %2315 = vmatmul.bf16.gmra.mxu0 %v1251
    %v2316 = vpop.f32.mrf.mxu0
    %v2317 = vadd.f32 %v1358, %v2316
    %v2318 = vpop.f32.mrf.mxu0
    %v2319 = vadd.f32 %v1358, %v2318
    %2320 = vmatmul.bf16.gmra.mxu0 %v1253
    %v2321 = vpop.f32.mrf.mxu0
    %v2322 = vadd.f32 %v1358, %v2321
    %v2323 = vpop.f32.mrf.mxu0
    %v2324 = vadd.f32 %v1358, %v2323
    %2325 = vmatmul.bf16.gmra.mxu0 %v1255
    %v2326 = vpop.f32.mrf.mxu0
    %v2327 = vadd.f32 %v1358, %v2326
    %v2328 = vpop.f32.mrf.mxu0
    %v2329 = vadd.f32 %v1358, %v2328
    %2330 = vmatmul.bf16.gmra.mxu0 %v1257
    %v2331 = vpop.f32.mrf.mxu0
    %v2332 = vadd.f32 %v1358, %v2331
    %v2333 = vpop.f32.mrf.mxu0
    %v2334 = vadd.f32 %v1358, %v2333
    %2335 = vmatmul.bf16.gmra.mxu0 %v1259
    %v2336 = vpop.f32.mrf.mxu0
    %v2337 = vadd.f32 %v1358, %v2336
    %v2338 = vpop.f32.mrf.mxu0
    %v2339 = vadd.f32 %v1358, %v2338
    %2340 = vmatmul.bf16.gmra.mxu0 %v1261
    %v2341 = vpop.f32.mrf.mxu0
    %v2342 = vadd.f32 %v1358, %v2341
    %v2343 = vpop.f32.mrf.mxu0
    %v2344 = vadd.f32 %v1358, %v2343
    %2345 = vmatmul.bf16.gmra.mxu0 %v1263
    %v2346 = vpop.f32.mrf.mxu0
    %v2347 = vadd.f32 %v1358, %v2346
    %v2348 = vpop.f32.mrf.mxu0
    %v2349 = vadd.f32 %v1358, %v2348
    %2350 = vmatmul.bf16.gmra.mxu0 %v1265
    %v2351 = vpop.f32.mrf.mxu0
    %v2352 = vadd.f32 %v1358, %v2351
    %v2353 = vpop.f32.mrf.mxu0
    %v2354 = vadd.f32 %v1358, %v2353
    %2355 = vmatmul.bf16.gmra.mxu0 %v1267
    %v2356 = vpop.f32.mrf.mxu0
    %v2357 = vadd.f32 %v1358, %v2356
    %v2358 = vpop.f32.mrf.mxu0
    %v2359 = vadd.f32 %v1358, %v2358
    %2360 = vmatmul.bf16.gmra.mxu0 %v1269
    %v2361 = vpop.f32.mrf.mxu0
    %v2362 = vadd.f32 %v1358, %v2361
    %v2363 = vpop.f32.mrf.mxu0
    %v2364 = vadd.f32 %v1358, %v2363
    %2365 = vmatmul.bf16.gmra.mxu0 %v1271
    %v2366 = vpop.f32.mrf.mxu0
    %v2367 = vadd.f32 %v1358, %v2366
    %v2368 = vpop.f32.mrf.mxu0
    %v2369 = vadd.f32 %v1358, %v2368
    %2370 = vmatmul.bf16.gmra.mxu0 %v1273
    %v2371 = vpop.f32.mrf.mxu0
    %v2372 = vadd.f32 %v1358, %v2371
    %v2373 = vpop.f32.mrf.mxu0
    %v2374 = vadd.f32 %v1358, %v2373
    %2375 = vmatmul.bf16.gmra.mxu0 %v1275
    %v2376 = vpop.f32.mrf.mxu0
    %v2377 = vadd.f32 %v1358, %v2376
    %v2378 = vpop.f32.mrf.mxu0
    %v2379 = vadd.f32 %v1358, %v2378
    %2380 = vmatmul.bf16.gmra.mxu0 %v1277
    %v2381 = vpop.f32.mrf.mxu0
    %v2382 = vadd.f32 %v1358, %v2381
    %v2383 = vpop.f32.mrf.mxu0
    %v2384 = vadd.f32 %v1358, %v2383
    %2385 = vmatmul.bf16.gmra.mxu0 %v1279
    %v2386 = vpop.f32.mrf.mxu0
    %v2387 = vadd.f32 %v1358, %v2386
    %v2388 = vpop.f32.mrf.mxu0
    %v2389 = vadd.f32 %v1358, %v2388
    %2390 = vmatmul.bf16.gmra.mxu0 %v1281
    %v2391 = vpop.f32.mrf.mxu0
    %v2392 = vadd.f32 %v1358, %v2391
    %v2393 = vpop.f32.mrf.mxu0
    %v2394 = vadd.f32 %v1358, %v2393
    %2395 = vmatmul.bf16.gmra.mxu0 %v1283
    %v2396 = vpop.f32.mrf.mxu0
    %v2397 = vadd.f32 %v1358, %v2396
    %v2398 = vpop.f32.mrf.mxu0
    %v2399 = vadd.f32 %v1358, %v2398
    %2400 = vmatmul.bf16.gmra.mxu0 %v1285
    %v2401 = vpop.f32.mrf.mxu0
    %v2402 = vadd.f32 %v1358, %v2401
    %v2403 = vpop.f32.mrf.mxu0
    %v2404 = vadd.f32 %v1358, %v2403
    %2405 = vmatmul.bf16.gmra.mxu0 %v1287
    %v2406 = vpop.f32.mrf.mxu0
    %v2407 = vadd.f32 %v1358, %v2406
    %v2408 = vpop.f32.mrf.mxu0
    %v2409 = vadd.f32 %v1358, %v2408
    %2410 = vdwg.mxu0
    %2411 = vmatpush.bf16.msra.mxu0 %v1618
    %2412 = vmatpush.bf16.msra.mxu0 %v1614
    %2413 = vmatpush.bf16.msra.mxu0 %v1610
    %2414 = vmatpush.bf16.msra.mxu0 %v1606
    %2415 = vmatpush.bf16.msra.mxu0 %v1602
    %2416 = vmatpush.bf16.msra.mxu0 %v1598
    %2417 = vmatpush.bf16.msra.mxu0 %v1594
    %2418 = vmatpush.bf16.msra.mxu0 %v1590
    %2419 = vmatmul.bf16.gmra.mxu0 %v1252
    %v2420 = vpop.f32.mrf.mxu0
    %v2421 = vadd.f32 %v2317, %v2420
    %v2422 = vpop.f32.mrf.mxu0
    %v2423 = vadd.f32 %v2319, %v2422
    %2424 = vmatmul.bf16.gmra.mxu0 %v1254
    %v2425 = vpop.f32.mrf.mxu0
    %v2426 = vadd.f32 %v2322, %v2425
    %v2427 = vpop.f32.mrf.mxu0
    %v2428 = vadd.f32 %v2324, %v2427
    %2429 = vmatmul.bf16.gmra.mxu0 %v1256
    %v2430 = vpop.f32.mrf.mxu0
    %v2431 = vadd.f32 %v2327, %v2430
    %v2432 = vpop.f32.mrf.mxu0
    %v2433 = vadd.f32 %v2329, %v2432
    %2434 = vmatmul.bf16.gmra.mxu0 %v1258
    %v2435 = vpop.f32.mrf.mxu0
    %v2436 = vadd.f32 %v2332, %v2435
    %v2437 = vpop.f32.mrf.mxu0
    %v2438 = vadd.f32 %v2334, %v2437
    %2439 = vmatmul.bf16.gmra.mxu0 %v1260
    %v2440 = vpop.f32.mrf.mxu0
    %v2441 = vadd.f32 %v2337, %v2440
    %v2442 = vpop.f32.mrf.mxu0
    %v2443 = vadd.f32 %v2339, %v2442
    %2444 = vmatmul.bf16.gmra.mxu0 %v1262
    %v2445 = vpop.f32.mrf.mxu0
    %v2446 = vadd.f32 %v2342, %v2445
    %v2447 = vpop.f32.mrf.mxu0
    %v2448 = vadd.f32 %v2344, %v2447
    %2449 = vmatmul.bf16.gmra.mxu0 %v1264
    %v2450 = vpop.f32.mrf.mxu0
    %v2451 = vadd.f32 %v2347, %v2450
    %v2452 = vpop.f32.mrf.mxu0
    %v2453 = vadd.f32 %v2349, %v2452
    %2454 = vmatmul.bf16.gmra.mxu0 %v1266
    %v2455 = vpop.f32.mrf.mxu0
    %v2456 = vadd.f32 %v2352, %v2455
    %v2457 = vpop.f32.mrf.mxu0
    %v2458 = vadd.f32 %v2354, %v2457
    %2459 = vmatmul.bf16.gmra.mxu0 %v1268
    %v2460 = vpop.f32.mrf.mxu0
    %v2461 = vadd.f32 %v2357, %v2460
    %v2462 = vpop.f32.mrf.mxu0
    %v2463 = vadd.f32 %v2359, %v2462
    %2464 = vmatmul.bf16.gmra.mxu0 %v1270
    %v2465 = vpop.f32.mrf.mxu0
    %v2466 = vadd.f32 %v2362, %v2465
    %v2467 = vpop.f32.mrf.mxu0
    %v2468 = vadd.f32 %v2364, %v2467
    %2469 = vmatmul.bf16.gmra.mxu0 %v1272
    %v2470 = vpop.f32.mrf.mxu0
    %v2471 = vadd.f32 %v2367, %v2470
    %v2472 = vpop.f32.mrf.mxu0
    %v2473 = vadd.f32 %v2369, %v2472
    %2474 = vmatmul.bf16.gmra.mxu0 %v1274
    %v2475 = vpop.f32.mrf.mxu0
    %v2476 = vadd.f32 %v2372, %v2475
    %v2477 = vpop.f32.mrf.mxu0
    %v2478 = vadd.f32 %v2374, %v2477
    %2479 = vmatmul.bf16.gmra.mxu0 %v1276
    %v2480 = vpop.f32.mrf.mxu0
    %v2481 = vadd.f32 %v2377, %v2480
    %v2482 = vpop.f32.mrf.mxu0
    %v2483 = vadd.f32 %v2379, %v2482
    %2484 = vmatmul.bf16.gmra.mxu0 %v1278
    %v2485 = vpop.f32.mrf.mxu0
    %v2486 = vadd.f32 %v2382, %v2485
    %v2487 = vpop.f32.mrf.mxu0
    %v2488 = vadd.f32 %v2384, %v2487
    %2489 = vmatmul.bf16.gmra.mxu0 %v1280
    %v2490 = vpop.f32.mrf.mxu0
    %v2491 = vadd.f32 %v2387, %v2490
    %v2492 = vpop.f32.mrf.mxu0
    %v2493 = vadd.f32 %v2389, %v2492
    %2494 = vmatmul.bf16.gmra.mxu0 %v1282
    %v2495 = vpop.f32.mrf.mxu0
    %v2496 = vadd.f32 %v2392, %v2495
    %v2497 = vpop.f32.mrf.mxu0
    %v2498 = vadd.f32 %v2394, %v2497
    %2499 = vmatmul.bf16.gmra.mxu0 %v1284
    %v2500 = vpop.f32.mrf.mxu0
    %v2501 = vadd.f32 %v2397, %v2500
    %v2502 = vpop.f32.mrf.mxu0
    %v2503 = vadd.f32 %v2399, %v2502
    %2504 = vmatmul.bf16.gmra.mxu0 %v1286
    %v2505 = vpop.f32.mrf.mxu0
    %v2506 = vadd.f32 %v2402, %v2505
    %v2507 = vpop.f32.mrf.mxu0
    %v2508 = vadd.f32 %v2404, %v2507
    %2509 = vmatmul.bf16.gmra.mxu0 %v1288
    %v2510 = vpop.f32.mrf.mxu0
    %v2511 = vadd.f32 %v2407, %v2510
    %v2512 = vpop.f32.mrf.mxu0
    %v2513 = vadd.f32 %v2409, %v2512
    %2514 = vdwg.mxu0
    %v2515 = vmax.f32 %v1797, 0.0
    %v2516 = vmax.f32 %v2005, 0.0
    %v2517 = vmax.f32 %v2213, 0.0
    %v2518 = vmax.f32 %v2421, 0.0
    %v2519 = vmax.f32 %v1799, 0.0
    %v2520 = vmax.f32 %v2007, 0.0
    %v2521 = vmax.f32 %v2215, 0.0
    %v2522 = vmax.f32 %v2423, 0.0
    %v2523 = vmax.f32 %v1802, 0.0
    %v2524 = vmax.f32 %v2010, 0.0
    %v2525 = vmax.f32 %v2218, 0.0
    %v2526 = vmax.f32 %v2426, 0.0
    %v2527 = vmax.f32 %v1804, 0.0
    %v2528 = vmax.f32 %v2012, 0.0
    %v2529 = vmax.f32 %v2220, 0.0
    %v2530 = vmax.f32 %v2428, 0.0
    %v2531 = vmax.f32 %v1807, 0.0
    %v2532 = vmax.f32 %v2015, 0.0
    %v2533 = vmax.f32 %v2223, 0.0
    %v2534 = vmax.f32 %v2431, 0.0
    %v2535 = vmax.f32 %v1809, 0.0
    %v2536 = vmax.f32 %v2017, 0.0
    %v2537 = vmax.f32 %v2225, 0.0
    %v2538 = vmax.f32 %v2433, 0.0
    %v2539 = vmax.f32 %v1812, 0.0
    %v2540 = vmax.f32 %v2020, 0.0
    %v2541 = vmax.f32 %v2228, 0.0
    %v2542 = vmax.f32 %v2436, 0.0
    %v2543 = vmax.f32 %v1814, 0.0
    %v2544 = vmax.f32 %v2022, 0.0
    %v2545 = vmax.f32 %v2230, 0.0
    %v2546 = vmax.f32 %v2438, 0.0
    %v2547 = vmax.f32 %v1817, 0.0
    %v2548 = vmax.f32 %v2025, 0.0
    %v2549 = vmax.f32 %v2233, 0.0
    %v2550 = vmax.f32 %v2441, 0.0
    %v2551 = vmax.f32 %v1819, 0.0
    %v2552 = vmax.f32 %v2027, 0.0
    %v2553 = vmax.f32 %v2235, 0.0
    %v2554 = vmax.f32 %v2443, 0.0
    %v2555 = vmax.f32 %v1822, 0.0
    %v2556 = vmax.f32 %v2030, 0.0
    %v2557 = vmax.f32 %v2238, 0.0
    %v2558 = vmax.f32 %v2446, 0.0
    %v2559 = vmax.f32 %v1824, 0.0
    %v2560 = vmax.f32 %v2032, 0.0
    %v2561 = vmax.f32 %v2240, 0.0
    %v2562 = vmax.f32 %v2448, 0.0
    %v2563 = vmax.f32 %v1827, 0.0
    %v2564 = vmax.f32 %v2035, 0.0
    %v2565 = vmax.f32 %v2243, 0.0
    %v2566 = vmax.f32 %v2451, 0.0
    %v2567 = vmax.f32 %v1829, 0.0
    %v2568 = vmax.f32 %v2037, 0.0
    %v2569 = vmax.f32 %v2245, 0.0
    %v2570 = vmax.f32 %v2453, 0.0
    %v2571 = vmax.f32 %v1832, 0.0
    %v2572 = vmax.f32 %v2040, 0.0
    %v2573 = vmax.f32 %v2248, 0.0
    %v2574 = vmax.f32 %v2456, 0.0
    %v2575 = vmax.f32 %v1834, 0.0
    %v2576 = vmax.f32 %v2042, 0.0
    %v2577 = vmax.f32 %v2250, 0.0
    %v2578 = vmax.f32 %v2458, 0.0
    %v2579 = vmax.f32 %v1837, 0.0
    %v2580 = vmax.f32 %v2045, 0.0
    %v2581 = vmax.f32 %v2253, 0.0
    %v2582 = vmax.f32 %v2461, 0.0
    %v2583 = vmax.f32 %v1839, 0.0
    %v2584 = vmax.f32 %v2047, 0.0
    %v2585 = vmax.f32 %v2255, 0.0
    %v2586 = vmax.f32 %v2463, 0.0
    %v2587 = vmax.f32 %v1842, 0.0
    %v2588 = vmax.f32 %v2050, 0.0
    %v2589 = vmax.f32 %v2258, 0.0
    %v2590 = vmax.f32 %v2466, 0.0
    %v2591 = vmax.f32 %v1844, 0.0
    %v2592 = vmax.f32 %v2052, 0.0
    %v2593 = vmax.f32 %v2260, 0.0
    %v2594 = vmax.f32 %v2468, 0.0
    %v2595 = vmax.f32 %v1847, 0.0
    %v2596 = vmax.f32 %v2055, 0.0
    %v2597 = vmax.f32 %v2263, 0.0
    %v2598 = vmax.f32 %v2471, 0.0
    %v2599 = vmax.f32 %v1849, 0.0
    %v2600 = vmax.f32 %v2057, 0.0
    %v2601 = vmax.f32 %v2265, 0.0
    %v2602 = vmax.f32 %v2473, 0.0
    %v2603 = vmax.f32 %v1852, 0.0
    %v2604 = vmax.f32 %v2060, 0.0
    %v2605 = vmax.f32 %v2268, 0.0
    %v2606 = vmax.f32 %v2476, 0.0
    %v2607 = vmax.f32 %v1854, 0.0
    %v2608 = vmax.f32 %v2062, 0.0
    %v2609 = vmax.f32 %v2270, 0.0
    %v2610 = vmax.f32 %v2478, 0.0
    %v2611 = vmax.f32 %v1857, 0.0
    %v2612 = vmax.f32 %v2065, 0.0
    %v2613 = vmax.f32 %v2273, 0.0
    %v2614 = vmax.f32 %v2481, 0.0
    %v2615 = vmax.f32 %v1859, 0.0
    %v2616 = vmax.f32 %v2067, 0.0
    %v2617 = vmax.f32 %v2275, 0.0
    %v2618 = vmax.f32 %v2483, 0.0
    %v2619 = vmax.f32 %v1862, 0.0
    %v2620 = vmax.f32 %v2070, 0.0
    %v2621 = vmax.f32 %v2278, 0.0
    %v2622 = vmax.f32 %v2486, 0.0
    %v2623 = vmax.f32 %v1864, 0.0
    %v2624 = vmax.f32 %v2072, 0.0
    %v2625 = vmax.f32 %v2280, 0.0
    %v2626 = vmax.f32 %v2488, 0.0
    %v2627 = vmax.f32 %v1867, 0.0
    %v2628 = vmax.f32 %v2075, 0.0
    %v2629 = vmax.f32 %v2283, 0.0
    %v2630 = vmax.f32 %v2491, 0.0
    %v2631 = vmax.f32 %v1869, 0.0
    %v2632 = vmax.f32 %v2077, 0.0
    %v2633 = vmax.f32 %v2285, 0.0
    %v2634 = vmax.f32 %v2493, 0.0
    %v2635 = vmax.f32 %v1872, 0.0
    %v2636 = vmax.f32 %v2080, 0.0
    %v2637 = vmax.f32 %v2288, 0.0
    %v2638 = vmax.f32 %v2496, 0.0
    %v2639 = vmax.f32 %v1874, 0.0
    %v2640 = vmax.f32 %v2082, 0.0
    %v2641 = vmax.f32 %v2290, 0.0
    %v2642 = vmax.f32 %v2498, 0.0
    %v2643 = vmax.f32 %v1877, 0.0
    %v2644 = vmax.f32 %v2085, 0.0
    %v2645 = vmax.f32 %v2293, 0.0
    %v2646 = vmax.f32 %v2501, 0.0
    %v2647 = vmax.f32 %v1879, 0.0
    %v2648 = vmax.f32 %v2087, 0.0
    %v2649 = vmax.f32 %v2295, 0.0
    %v2650 = vmax.f32 %v2503, 0.0
    %v2651 = vmax.f32 %v1882, 0.0
    %v2652 = vmax.f32 %v2090, 0.0
    %v2653 = vmax.f32 %v2298, 0.0
    %v2654 = vmax.f32 %v2506, 0.0
    %v2655 = vmax.f32 %v1884, 0.0
    %v2656 = vmax.f32 %v2092, 0.0
    %v2657 = vmax.f32 %v2300, 0.0
    %v2658 = vmax.f32 %v2508, 0.0
    %v2659 = vmax.f32 %v1887, 0.0
    %v2660 = vmax.f32 %v2095, 0.0
    %v2661 = vmax.f32 %v2303, 0.0
    %v2662 = vmax.f32 %v2511, 0.0
    %v2663 = vmax.f32 %v1889, 0.0
    %v2664 = vmax.f32 %v2097, 0.0
    %v2665 = vmax.f32 %v2305, 0.0
    %v2666 = vmax.f32 %v2513, 0.0
    %v2667 = vpack.c.bf16 %v2519, %v2515
    %v2668 = vpack.c.bf16 %v2520, %v2516
    %v2669 = vpack.c.bf16 %v2521, %v2517
    %v2670 = vpack.c.bf16 %v2522, %v2518
    %v2671 = vpack.c.bf16 %v2527, %v2523
    %v2672 = vpack.c.bf16 %v2528, %v2524
    %v2673 = vpack.c.bf16 %v2529, %v2525
    %v2674 = vpack.c.bf16 %v2530, %v2526
    %v2675 = vpack.c.bf16 %v2535, %v2531
    %v2676 = vpack.c.bf16 %v2536, %v2532
    %v2677 = vpack.c.bf16 %v2537, %v2533
    %v2678 = vpack.c.bf16 %v2538, %v2534
    %v2679 = vpack.c.bf16 %v2543, %v2539
    %v2680 = vpack.c.bf16 %v2544, %v2540
    %v2681 = vpack.c.bf16 %v2545, %v2541
    %v2682 = vpack.c.bf16 %v2546, %v2542
    %v2683 = vpack.c.bf16 %v2551, %v2547
    %v2684 = vpack.c.bf16 %v2552, %v2548
    %v2685 = vpack.c.bf16 %v2553, %v2549
    %v2686 = vpack.c.bf16 %v2554, %v2550
    %v2687 = vpack.c.bf16 %v2559, %v2555
    %v2688 = vpack.c.bf16 %v2560, %v2556
    %v2689 = vpack.c.bf16 %v2561, %v2557
    %v2690 = vpack.c.bf16 %v2562, %v2558
    %v2691 = vpack.c.bf16 %v2567, %v2563
    %v2692 = vpack.c.bf16 %v2568, %v2564
    %v2693 = vpack.c.bf16 %v2569, %v2565
    %v2694 = vpack.c.bf16 %v2570, %v2566
    %v2695 = vpack.c.bf16 %v2575, %v2571
    %v2696 = vpack.c.bf16 %v2576, %v2572
    %v2697 = vpack.c.bf16 %v2577, %v2573
    %v2698 = vpack.c.bf16 %v2578, %v2574
    %v2699 = vpack.c.bf16 %v2583, %v2579
    %v2700 = vpack.c.bf16 %v2584, %v2580
    %v2701 = vpack.c.bf16 %v2585, %v2581
    %v2702 = vpack.c.bf16 %v2586, %v2582
    %v2703 = vpack.c.bf16 %v2591, %v2587
    %v2704 = vpack.c.bf16 %v2592, %v2588
    %v2705 = vpack.c.bf16 %v2593, %v2589
    %v2706 = vpack.c.bf16 %v2594, %v2590
    %v2707 = vpack.c.bf16 %v2599, %v2595
    %v2708 = vpack.c.bf16 %v2600, %v2596
    %v2709 = vpack.c.bf16 %v2601, %v2597
    %v2710 = vpack.c.bf16 %v2602, %v2598
    %v2711 = vpack.c.bf16 %v2607, %v2603
    %v2712 = vpack.c.bf16 %v2608, %v2604
    %v2713 = vpack.c.bf16 %v2609, %v2605
    %v2714 = vpack.c.bf16 %v2610, %v2606
    %v2715 = vpack.c.bf16 %v2615, %v2611
    %v2716 = vpack.c.bf16 %v2616, %v2612
    %v2717 = vpack.c.bf16 %v2617, %v2613
    %v2718 = vpack.c.bf16 %v2618, %v2614
    %v2719 = vpack.c.bf16 %v2623, %v2619
    %v2720 = vpack.c.bf16 %v2624, %v2620
    %v2721 = vpack.c.bf16 %v2625, %v2621
    %v2722 = vpack.c.bf16 %v2626, %v2622
    %v2723 = vpack.c.bf16 %v2631, %v2627
    %v2724 = vpack.c.bf16 %v2632, %v2628
    %v2725 = vpack.c.bf16 %v2633, %v2629
    %v2726 = vpack.c.bf16 %v2634, %v2630
    %v2727 = vpack.c.bf16 %v2639, %v2635
    %v2728 = vpack.c.bf16 %v2640, %v2636
    %v2729 = vpack.c.bf16 %v2641, %v2637
    %v2730 = vpack.c.bf16 %v2642, %v2638
    %v2731 = vpack.c.bf16 %v2647, %v2643
    %v2732 = vpack.c.bf16 %v2648, %v2644
    %v2733 = vpack.c.bf16 %v2649, %v2645
    %v2734 = vpack.c.bf16 %v2650, %v2646
    %v2735 = vpack.c.bf16 %v2655, %v2651
    %v2736 = vpack.c.bf16 %v2656, %v2652
    %v2737 = vpack.c.bf16 %v2657, %v2653
    %v2738 = vpack.c.bf16 %v2658, %v2654
    %v2739 = vpack.c.bf16 %v2663, %v2659
    %v2740 = vpack.c.bf16 %v2664, %v2660
    %v2741 = vpack.c.bf16 %v2665, %v2661
    %v2742 = vpack.c.bf16 %v2666, %v2662
    %v2743 = vld [vmem:[%s11] sm:$0xff]
    %v2744 = vld [vmem:[%s11 + $0x8] sm:$0xff]
    %v2745 = vld [vmem:[%s11 + $0x10] sm:$0xff]
    %v2746 = vld [vmem:[%s11 + $0x18] sm:$0xf]
    %v2747 = vld [vmem:[%s11 + $0x1c] sm:$0xff]
    %v2748 = vld [vmem:[%s11 + $0x24] sm:$0xff]
    %v2749 = vld [vmem:[%s11 + $0x2c] sm:$0xff]
    %v2750 = vld [vmem:[%s11 + $0x34] sm:$0xf]
    %v2751 = vld [vmem:[%s11 + $0x38] sm:$0xff]
    %v2752 = vld [vmem:[%s11 + $0x40] sm:$0xff]
    %v2753 = vld [vmem:[%s11 + $0x48] sm:$0xff]
    %v2754 = vld [vmem:[%s11 + $0x50] sm:$0xf]
    %v2755 = vld [vmem:[%s11 + $0x54] sm:$0xff]
    %v2756 = vld [vmem:[%s11 + $0x5c] sm:$0xff]
    %v2757 = vld [vmem:[%s11 + $0x64] sm:$0xff]
    %v2758 = vld [vmem:[%s11 + $0x6c] sm:$0xf]
    %v2759 = vld [vmem:[%s11 + $0x70] sm:$0xff]
    %v2760 = vld [vmem:[%s11 + $0x78] sm:$0xff]
    %v2761 = vld [vmem:[%s11 + $0x80] sm:$0xff]
    %v2762 = vld [vmem:[%s11 + $0x88] sm:$0xf]
    %v2763 = vld [vmem:[%s11 + $0x8c] sm:$0xff]
    %v2764 = vld [vmem:[%s11 + $0x94] sm:$0xff]
    %v2765 = vld [vmem:[%s11 + $0x9c] sm:$0xff]
    %v2766 = vld [vmem:[%s11 + $0xa4] sm:$0xf]
    %v2767 = vld [vmem:[%s11 + $0xa8] sm:$0xff]
    %v2768 = vld [vmem:[%s11 + $0xb0] sm:$0xff]
    %v2769 = vld [vmem:[%s11 + $0xb8] sm:$0xff]
    %v2770 = vld [vmem:[%s11 + $0xc0] sm:$0xf]
    %v2771 = vld [vmem:[%s11 + $0xc4] sm:$0xff]
    %v2772 = vld [vmem:[%s11 + $0xcc] sm:$0xff]
    %v2773 = vld [vmem:[%s11 + $0xd4] sm:$0xff]
    %v2774 = vld [vmem:[%s11 + $0xdc] sm:$0xf]
    %v2775 = vld [vmem:[%s11 + $0xe0] sm:$0xff]
    %v2776 = vld [vmem:[%s11 + $0xe8] sm:$0xff]
    %v2777 = vld [vmem:[%s11 + $0xf0] sm:$0xff]
    %v2778 = vld [vmem:[%s11 + $0xf8] sm:$0xf]
    %v2779 = vld [vmem:[%s11 + $0xfc] sm:$0xff]
    %v2780 = vld [vmem:[%s11 + $0x104] sm:$0xff]
    %v2781 = vld [vmem:[%s11 + $0x10c] sm:$0xff]
    %v2782 = vld [vmem:[%s11 + $0x114] sm:$0xf]
    %v2783 = vld [vmem:[%s11 + $0x118] sm:$0xff]
    %v2784 = vld [vmem:[%s11 + $0x120] sm:$0xff]
    %v2785 = vld [vmem:[%s11 + $0x128] sm:$0xff]
    %v2786 = vld [vmem:[%s11 + $0x130] sm:$0xf]
    %v2787 = vld [vmem:[%s11 + $0x134] sm:$0xff]
    %v2788 = vld [vmem:[%s11 + $0x13c] sm:$0xff]
    %v2789 = vld [vmem:[%s11 + $0x144] sm:$0xff]
    %v2790 = vld [vmem:[%s11 + $0x14c] sm:$0xf]
    %v2791 = vld [vmem:[%s11 + $0x150] sm:$0xff]
    %v2792 = vld [vmem:[%s11 + $0x158] sm:$0xff]
    %v2793 = vld [vmem:[%s11 + $0x160] sm:$0xff]
    %v2794 = vld [vmem:[%s11 + $0x168] sm:$0xf]
    %v2795 = vld [vmem:[%s11 + $0x16c] sm:$0xff]
    %v2796 = vld [vmem:[%s11 + $0x174] sm:$0xff]
    %v2797 = vld [vmem:[%s11 + $0x17c] sm:$0xff]
    %v2798 = vld [vmem:[%s11 + $0x184] sm:$0xf]
    %v2799 = vld [vmem:[%s11 + $0x188] sm:$0xff]
    %v2800 = vld [vmem:[%s11 + $0x190] sm:$0xff]
    %v2801 = vld [vmem:[%s11 + $0x198] sm:$0xff]
    %v2802 = vld [vmem:[%s11 + $0x1a0] sm:$0xf]
    %v2803 = vld [vmem:[%s11 + $0x1a4] sm:$0xff]
    %v2804 = vld [vmem:[%s11 + $0x1ac] sm:$0xff]
    %v2805 = vld [vmem:[%s11 + $0x1b4] sm:$0xff]
    %v2806 = vld [vmem:[%s11 + $0x1bc] sm:$0xf]
    %v2807 = vld [vmem:[%s11 + $0x1c0] sm:$0xff]
    %v2808 = vld [vmem:[%s11 + $0x1c8] sm:$0xff]
    %v2809 = vld [vmem:[%s11 + $0x1d0] sm:$0xff]
    %v2810 = vld [vmem:[%s11 + $0x1d8] sm:$0xf]
    %v2811 = vld [vmem:[%s11 + $0x1dc] sm:$0xff]
    %v2812 = vld [vmem:[%s11 + $0x1e4] sm:$0xff]
    %v2813 = vld [vmem:[%s11 + $0x1ec] sm:$0xff]
    %v2814 = vld [vmem:[%s11 + $0x1f4] sm:$0xf]
    %v2815 = vld [vmem:[%s11 + $0x1f8] sm:$0xff]
    %v2816 = vld [vmem:[%s11 + $0x200] sm:$0xff]
    %v2817 = vld [vmem:[%s11 + $0x208] sm:$0xff]
    %v2818 = vld [vmem:[%s11 + $0x210] sm:$0xf]
    %v2819 = vld [vmem:[%s11 + $0x214] sm:$0xff]
    %v2820 = vld [vmem:[%s11 + $0x21c] sm:$0xff]
    %v2821 = vld [vmem:[%s11 + $0x224] sm:$0xff]
    %v2822 = vld [vmem:[%s11 + $0x22c] sm:$0xf]
    %v2823 = vld [vmem:[%s11 + $0x230] sm:$0xff]
    %v2824 = vld [vmem:[%s11 + $0x238] sm:$0xff]
    %v2825 = vld [vmem:[%s11 + $0x240] sm:$0xff]
    %v2826 = vld [vmem:[%s11 + $0x248] sm:$0xf]
    %v2827 = vld [vmem:[%s11 + $0x24c] sm:$0xff]
    %v2828 = vld [vmem:[%s11 + $0x254] sm:$0xff]
    %v2829 = vld [vmem:[%s11 + $0x25c] sm:$0xff]
    %v2830 = vld [vmem:[%s11 + $0x264] sm:$0xf]
    %v2831 = vld [vmem:[%s11 + $0x268] sm:$0xff]
    %v2832 = vld [vmem:[%s11 + $0x270] sm:$0xff]
    %v2833 = vld [vmem:[%s11 + $0x278] sm:$0xff]
    %v2834 = vld [vmem:[%s11 + $0x280] sm:$0xf]
    %v2835 = vld [vmem:[%s11 + $0x284] sm:$0xff]
    %v2836 = vld [vmem:[%s11 + $0x28c] sm:$0xff]
    %v2837 = vld [vmem:[%s11 + $0x294] sm:$0xff]
    %v2838 = vld [vmem:[%s11 + $0x29c] sm:$0xf]
    %v2839 = vld [vmem:[%s11 + $0x2a0] sm:$0xff]
    %v2840 = vld [vmem:[%s11 + $0x2a8] sm:$0xff]
    %v2841 = vld [vmem:[%s11 + $0x2b0] sm:$0xff]
    %v2842 = vld [vmem:[%s11 + $0x2b8] sm:$0xf]
    %v2843 = vld [vmem:[%s11 + $0x2bc] sm:$0xff]
    %v2844 = vld [vmem:[%s11 + $0x2c4] sm:$0xff]
    %v2845 = vld [vmem:[%s11 + $0x2cc] sm:$0xff]
    %v2846 = vld [vmem:[%s11 + $0x2d4] sm:$0xf]
    %v2847 = vld [vmem:[%s11 + $0x2d8] sm:$0xff]
    %v2848 = vld [vmem:[%s11 + $0x2e0] sm:$0xff]
    %v2849 = vld [vmem:[%s11 + $0x2e8] sm:$0xff]
    %v2850 = vld [vmem:[%s11 + $0x2f0] sm:$0xf]
    %v2851 = vld [vmem:[%s11 + $0x2f4] sm:$0xff]
    %v2852 = vld [vmem:[%s11 + $0x2fc] sm:$0xff]
    %v2853 = vld [vmem:[%s11 + $0x304] sm:$0xff]
    %v2854 = vld [vmem:[%s11 + $0x30c] sm:$0xf]
    %v2855 = vld [vmem:[%s11 + $0x310] sm:$0xff]
    %v2856 = vld [vmem:[%s11 + $0x318] sm:$0xff]
    %v2857 = vld [vmem:[%s11 + $0x320] sm:$0xff]
    %v2858 = vld [vmem:[%s11 + $0x328] sm:$0xf]
    %v2859 = vld [vmem:[%s11 + $0x32c] sm:$0xff]
    %v2860 = vld [vmem:[%s11 + $0x334] sm:$0xff]
    %v2861 = vld [vmem:[%s11 + $0x33c] sm:$0xff]
    %v2862 = vld [vmem:[%s11 + $0x344] sm:$0xf]
    %v2863 = vld [vmem:[%s11 + $0x348] sm:$0xff]
    %v2864 = vld [vmem:[%s11 + $0x350] sm:$0xff]
    %v2865 = vld [vmem:[%s11 + $0x358] sm:$0xff]
    %v2866 = vld [vmem:[%s11 + $0x360] sm:$0xf]
    %v2867 = vld [vmem:[%s11 + $0x364] sm:$0xff]
    %v2868 = vld [vmem:[%s11 + $0x36c] sm:$0xff]
    %v2869 = vld [vmem:[%s11 + $0x374] sm:$0xff]
    %v2870 = vld [vmem:[%s11 + $0x37c] sm:$0xf]
    %v2871 = vld [vmem:[%s11 + $0x380] sm:$0xff]
    %v2872 = vld [vmem:[%s11 + $0x388] sm:$0xff]
    %v2873 = vld [vmem:[%s11 + $0x390] sm:$0xff]
    %v2874 = vld [vmem:[%s11 + $0x398] sm:$0xf]
    %v2875 = vld [vmem:[%s11 + $0x39c] sm:$0xff]
    %v2876 = vld [vmem:[%s11 + $0x3a4] sm:$0xff]
    %v2877 = vld [vmem:[%s11 + $0x3ac] sm:$0xff]
    %v2878 = vld [vmem:[%s11 + $0x3b4] sm:$0xf]
    %v2879 = vld [vmem:[%s11 + $0x3b8] sm:$0xff]
    %v2880 = vld [vmem:[%s11 + $0x3c0] sm:$0xff]
    %v2881 = vld [vmem:[%s11 + $0x3c8] sm:$0xff]
    %v2882 = vld [vmem:[%s11 + $0x3d0] sm:$0xf]
    %v2883 = vld [vmem:[%s11 + $0x3d4] sm:$0xff]
    %v2884 = vld [vmem:[%s11 + $0x3dc] sm:$0xff]
    %v2885 = vld [vmem:[%s11 + $0x3e4] sm:$0xff]
    %v2886 = vld [vmem:[%s11 + $0x3ec] sm:$0xf]
    %v2887 = vld [vmem:[%s11 + $0x3f0] sm:$0xff]
    %v2888 = vld [vmem:[%s11 + $0x3f8] sm:$0xff]
    %v2889 = vld [vmem:[%s11 + $0x400] sm:$0xff]
    %v2890 = vld [vmem:[%s11 + $0x408] sm:$0xf]
    %v2891 = vld [vmem:[%s11 + $0x40c] sm:$0xff]
    %v2892 = vld [vmem:[%s11 + $0x414] sm:$0xff]
    %v2893 = vld [vmem:[%s11 + $0x41c] sm:$0xff]
    %v2894 = vld [vmem:[%s11 + $0x424] sm:$0xf]
    %v2895 = vld [vmem:[%s11 + $0x428] sm:$0xff]
    %v2896 = vld [vmem:[%s11 + $0x430] sm:$0xff]
    %v2897 = vld [vmem:[%s11 + $0x438] sm:$0xff]
    %v2898 = vld [vmem:[%s11 + $0x440] sm:$0xf]
    %v2899 = vld [vmem:[%s11 + $0x444] sm:$0xff]
    %v2900 = vld [vmem:[%s11 + $0x44c] sm:$0xff]
    %v2901 = vld [vmem:[%s11 + $0x454] sm:$0xff]
    %v2902 = vld [vmem:[%s11 + $0x45c] sm:$0xf]
    %v2903 = vld [vmem:[%s11 + $0x460] sm:$0xff]
    %v2904 = vld [vmem:[%s11 + $0x468] sm:$0xff]
    %v2905 = vld [vmem:[%s11 + $0x470] sm:$0xff]
    %v2906 = vld [vmem:[%s11 + $0x478] sm:$0xf]
    %v2907 = vld [vmem:[%s11 + $0x47c] sm:$0xff]
    %v2908 = vld [vmem:[%s11 + $0x484] sm:$0xff]
    %v2909 = vld [vmem:[%s11 + $0x48c] sm:$0xff]
    %v2910 = vld [vmem:[%s11 + $0x494] sm:$0xf]
    %v2911 = vld [vmem:[%s11 + $0x498] sm:$0xff]
    %v2912 = vld [vmem:[%s11 + $0x4a0] sm:$0xff]
    %v2913 = vld [vmem:[%s11 + $0x4a8] sm:$0xff]
    %v2914 = vld [vmem:[%s11 + $0x4b0] sm:$0xf]
    %v2915 = vld [vmem:[%s11 + $0x4b4] sm:$0xff]
    %v2916 = vld [vmem:[%s11 + $0x4bc] sm:$0xff]
    %v2917 = vld [vmem:[%s11 + $0x4c4] sm:$0xff]
    %v2918 = vld [vmem:[%s11 + $0x4cc] sm:$0xf]
    %v2919 = vld [vmem:[%s11 + $0x4d0] sm:$0xff]
    %v2920 = vld [vmem:[%s11 + $0x4d8] sm:$0xff]
    %v2921 = vld [vmem:[%s11 + $0x4e0] sm:$0xff]
    %v2922 = vld [vmem:[%s11 + $0x4e8] sm:$0xf]
    %v2923 = vld [vmem:[%s11 + $0x4ec] sm:$0xff]
    %v2924 = vld [vmem:[%s11 + $0x4f4] sm:$0xff]
    %v2925 = vld [vmem:[%s11 + $0x4fc] sm:$0xff]
    %v2926 = vld [vmem:[%s11 + $0x504] sm:$0xf]
    %v2927 = vld [vmem:[%s11 + $0x508] sm:$0xff]
    %v2928 = vld [vmem:[%s11 + $0x510] sm:$0xff]
    %v2929 = vld [vmem:[%s11 + $0x518] sm:$0xff]
    %v2930 = vld [vmem:[%s11 + $0x520] sm:$0xf]
    %v2931 = vld [vmem:[%s11 + $0x524] sm:$0xff]
    %v2932 = vld [vmem:[%s11 + $0x52c] sm:$0xff]
    %v2933 = vld [vmem:[%s11 + $0x534] sm:$0xff]
    %v2934 = vld [vmem:[%s11 + $0x53c] sm:$0xf]
    %v2935 = vld [vmem:[%s11 + $0x540] sm:$0xff]
    %v2936 = vld [vmem:[%s11 + $0x548] sm:$0xff]
    %v2937 = vld [vmem:[%s11 + $0x550] sm:$0xff]
    %v2938 = vld [vmem:[%s11 + $0x558] sm:$0xf]
    %v2939 = vld [vmem:[%s11 + $0x55c] sm:$0xff]
    %v2940 = vld [vmem:[%s11 + $0x564] sm:$0xff]
    %v2941 = vld [vmem:[%s11 + $0x56c] sm:$0xff]
    %v2942 = vld [vmem:[%s11 + $0x574] sm:$0xf]
    %v2943 = vld [vmem:[%s11 + $0x578] sm:$0xff]
    %v2944 = vld [vmem:[%s11 + $0x580] sm:$0xff]
    %v2945 = vld [vmem:[%s11 + $0x588] sm:$0xff]
    %v2946 = vld [vmem:[%s11 + $0x590] sm:$0xf]
    %v2947 = vld [vmem:[%s11 + $0x594] sm:$0xff]
    %v2948 = vld [vmem:[%s11 + $0x59c] sm:$0xff]
    %v2949 = vld [vmem:[%s11 + $0x5a4] sm:$0xff]
    %v2950 = vld [vmem:[%s11 + $0x5ac] sm:$0xf]
    %v2951 = vld [vmem:[%s11 + $0x5b0] sm:$0xff]
    %v2952 = vld [vmem:[%s11 + $0x5b8] sm:$0xff]
    %v2953 = vld [vmem:[%s11 + $0x5c0] sm:$0xff]
    %v2954 = vld [vmem:[%s11 + $0x5c8] sm:$0xf]
    %v2955 = vld [vmem:[%s11 + $0x5cc] sm:$0xff]
    %v2956 = vld [vmem:[%s11 + $0x5d4] sm:$0xff]
    %v2957 = vld [vmem:[%s11 + $0x5dc] sm:$0xff]
    %v2958 = vld [vmem:[%s11 + $0x5e4] sm:$0xf]
    %v2959 = vld [vmem:[%s11 + $0x5e8] sm:$0xff]
    %v2960 = vld [vmem:[%s11 + $0x5f0] sm:$0xff]
    %v2961 = vld [vmem:[%s11 + $0x5f8] sm:$0xff]
    %v2962 = vld [vmem:[%s11 + $0x600] sm:$0xf]
    %v2963 = vld [vmem:[%s11 + $0x604] sm:$0xff]
    %v2964 = vld [vmem:[%s11 + $0x60c] sm:$0xff]
    %v2965 = vld [vmem:[%s11 + $0x614] sm:$0xff]
    %v2966 = vld [vmem:[%s11 + $0x61c] sm:$0xf]
    %v2967 = vld [vmem:[%s11 + $0x620] sm:$0xff]
    %v2968 = vld [vmem:[%s11 + $0x628] sm:$0xff]
    %v2969 = vld [vmem:[%s11 + $0x630] sm:$0xff]
    %v2970 = vld [vmem:[%s11 + $0x638] sm:$0xf]
    %v2971 = vld [vmem:[%s11 + $0x63c] sm:$0xff]
    %v2972 = vld [vmem:[%s11 + $0x644] sm:$0xff]
    %v2973 = vld [vmem:[%s11 + $0x64c] sm:$0xff]
    %v2974 = vld [vmem:[%s11 + $0x654] sm:$0xf]
    %v2975 = vld [vmem:[%s11 + $0x658] sm:$0xff]
    %v2976 = vld [vmem:[%s11 + $0x660] sm:$0xff]
    %v2977 = vld [vmem:[%s11 + $0x668] sm:$0xff]
    %v2978 = vld [vmem:[%s11 + $0x670] sm:$0xf]
    %v2979 = vld [vmem:[%s11 + $0x674] sm:$0xff]
    %v2980 = vld [vmem:[%s11 + $0x67c] sm:$0xff]
    %v2981 = vld [vmem:[%s11 + $0x684] sm:$0xff]
    %v2982 = vld [vmem:[%s11 + $0x68c] sm:$0xf]
    %v2983 = vld [vmem:[%s11 + $0x690] sm:$0xff]
    %v2984 = vld [vmem:[%s11 + $0x698] sm:$0xff]
    %v2985 = vld [vmem:[%s11 + $0x6a0] sm:$0xff]
    %v2986 = vld [vmem:[%s11 + $0x6a8] sm:$0xf]
    %v2987 = vld [vmem:[%s11 + $0x6ac] sm:$0xff]
    %v2988 = vld [vmem:[%s11 + $0x6b4] sm:$0xff]
    %v2989 = vld [vmem:[%s11 + $0x6bc] sm:$0xff]
    %v2990 = vld [vmem:[%s11 + $0x6c4] sm:$0xf]
    %v2991 = vld [vmem:[%s11 + $0x6c8] sm:$0xff]
    %v2992 = vld [vmem:[%s11 + $0x6d0] sm:$0xff]
    %v2993 = vld [vmem:[%s11 + $0x6d8] sm:$0xff]
    %v2994 = vld [vmem:[%s11 + $0x6e0] sm:$0xf]
    %v2995 = vld [vmem:[%s11 + $0x6e4] sm:$0xff]
    %v2996 = vld [vmem:[%s11 + $0x6ec] sm:$0xff]
    %v2997 = vld [vmem:[%s11 + $0x6f4] sm:$0xff]
    %v2998 = vld [vmem:[%s11 + $0x6fc] sm:$0xf]
    %v2999 = vld [vmem:[%s12] sm:$0x7f]
    %v3001 = vperm.slane %v2999, 0
    %v3002 = vperm.slane %v2999, 1
    %v3003 = vperm.slane %v2999, 2
    %v3004 = vperm.slane %v2999, 3
    %v3005 = vperm.slane %v2999, 4
    %v3006 = vperm.slane %v2999, 5
    %v3007 = vperm.slane %v2999, 6
    %v3271 = vunpack.c.l.b16 %v2743
    %v3272 = vunpack.c.h.b16 %v2743
    %v3273 = vunpack.c.l.b16 %v2744
    %v3274 = vunpack.c.h.b16 %v2744
    %v3275 = vunpack.c.l.b16 %v2745
    %v3276 = vunpack.c.h.b16 %v2745
    %v3277 = vunpack.c.l.b16 %v2746
    %v3278 = vunpack.c.l.b16 %v2747
    %v3279 = vunpack.c.h.b16 %v2747
    %v3280 = vunpack.c.l.b16 %v2748
    %v3281 = vunpack.c.h.b16 %v2748
    %v3282 = vunpack.c.l.b16 %v2749
    %v3283 = vunpack.c.h.b16 %v2749
    %v3284 = vunpack.c.l.b16 %v2750
    %v3285 = vunpack.c.l.b16 %v2751
    %v3286 = vunpack.c.h.b16 %v2751
    %v3287 = vunpack.c.l.b16 %v2752
    %v3288 = vunpack.c.h.b16 %v2752
    %v3289 = vunpack.c.l.b16 %v2753
    %v3290 = vunpack.c.h.b16 %v2753
    %v3291 = vunpack.c.l.b16 %v2754
    %v3292 = vunpack.c.l.b16 %v2755
    %v3293 = vunpack.c.h.b16 %v2755
    %v3294 = vunpack.c.l.b16 %v2756
    %v3295 = vunpack.c.h.b16 %v2756
    %v3296 = vunpack.c.l.b16 %v2757
    %v3297 = vunpack.c.h.b16 %v2757
    %v3298 = vunpack.c.l.b16 %v2758
    %v3299 = vunpack.c.l.b16 %v2759
    %v3300 = vunpack.c.h.b16 %v2759
    %v3301 = vunpack.c.l.b16 %v2760
    %v3302 = vunpack.c.h.b16 %v2760
    %v3303 = vunpack.c.l.b16 %v2761
    %v3304 = vunpack.c.h.b16 %v2761
    %v3305 = vunpack.c.l.b16 %v2762
    %v3306 = vunpack.c.l.b16 %v2763
    %v3307 = vunpack.c.h.b16 %v2763
    %v3308 = vunpack.c.l.b16 %v2764
    %v3309 = vunpack.c.h.b16 %v2764
    %v3310 = vunpack.c.l.b16 %v2765
    %v3311 = vunpack.c.h.b16 %v2765
    %v3312 = vunpack.c.l.b16 %v2766
    %v3313 = vunpack.c.l.b16 %v2767
    %v3314 = vunpack.c.h.b16 %v2767
    %v3315 = vunpack.c.l.b16 %v2768
    %v3316 = vunpack.c.h.b16 %v2768
    %v3317 = vunpack.c.l.b16 %v2769
    %v3318 = vunpack.c.h.b16 %v2769
    %v3319 = vunpack.c.l.b16 %v2770
    %v3320 = vunpack.c.l.b16 %v2771
    %v3321 = vunpack.c.h.b16 %v2771
    %v3322 = vunpack.c.l.b16 %v2772
    %v3323 = vunpack.c.h.b16 %v2772
    %v3324 = vunpack.c.l.b16 %v2773
    %v3325 = vunpack.c.h.b16 %v2773
    %v3326 = vunpack.c.l.b16 %v2774
    %v3327 = vunpack.c.l.b16 %v2775
    %v3328 = vunpack.c.h.b16 %v2775
    %v3329 = vunpack.c.l.b16 %v2776
    %v3330 = vunpack.c.h.b16 %v2776
    %v3331 = vunpack.c.l.b16 %v2777
    %v3332 = vunpack.c.h.b16 %v2777
    %v3333 = vunpack.c.l.b16 %v2778
    %v3334 = vunpack.c.l.b16 %v2779
    %v3335 = vunpack.c.h.b16 %v2779
    %v3336 = vunpack.c.l.b16 %v2780
    %v3337 = vunpack.c.h.b16 %v2780
    %v3338 = vunpack.c.l.b16 %v2781
    %v3339 = vunpack.c.h.b16 %v2781
    %v3340 = vunpack.c.l.b16 %v2782
    %v3341 = vunpack.c.l.b16 %v2783
    %v3342 = vunpack.c.h.b16 %v2783
    %v3343 = vunpack.c.l.b16 %v2784
    %v3344 = vunpack.c.h.b16 %v2784
    %v3345 = vunpack.c.l.b16 %v2785
    %v3346 = vunpack.c.h.b16 %v2785
    %v3347 = vunpack.c.l.b16 %v2786
    %v3348 = vunpack.c.l.b16 %v2787
    %v3349 = vunpack.c.h.b16 %v2787
    %v3350 = vunpack.c.l.b16 %v2788
    %v3351 = vunpack.c.h.b16 %v2788
    %v3352 = vunpack.c.l.b16 %v2789
    %v3353 = vunpack.c.h.b16 %v2789
    %v3354 = vunpack.c.l.b16 %v2790
    %v3355 = vunpack.c.l.b16 %v2791
    %v3356 = vunpack.c.h.b16 %v2791
    %v3357 = vunpack.c.l.b16 %v2792
    %v3358 = vunpack.c.h.b16 %v2792
    %v3359 = vunpack.c.l.b16 %v2793
    %v3360 = vunpack.c.h.b16 %v2793
    %v3361 = vunpack.c.l.b16 %v2794
    %v3362 = vunpack.c.l.b16 %v2795
    %v3363 = vunpack.c.h.b16 %v2795
    %v3364 = vunpack.c.l.b16 %v2796
    %v3365 = vunpack.c.h.b16 %v2796
    %v3366 = vunpack.c.l.b16 %v2797
    %v3367 = vunpack.c.h.b16 %v2797
    %v3368 = vunpack.c.l.b16 %v2798
    %v3369 = vunpack.c.l.b16 %v2799
    %v3370 = vunpack.c.h.b16 %v2799
    %v3371 = vunpack.c.l.b16 %v2800
    %v3372 = vunpack.c.h.b16 %v2800
    %v3373 = vunpack.c.l.b16 %v2801
    %v3374 = vunpack.c.h.b16 %v2801
    %v3375 = vunpack.c.l.b16 %v2802
    %v3376 = vunpack.c.l.b16 %v2803
    %v3377 = vunpack.c.h.b16 %v2803
    %v3378 = vunpack.c.l.b16 %v2804
    %v3379 = vunpack.c.h.b16 %v2804
    %v3380 = vunpack.c.l.b16 %v2805
    %v3381 = vunpack.c.h.b16 %v2805
    %v3382 = vunpack.c.l.b16 %v2806
    %v3383 = vunpack.c.l.b16 %v2807
    %v3384 = vunpack.c.h.b16 %v2807
    %v3385 = vunpack.c.l.b16 %v2808
    %v3386 = vunpack.c.h.b16 %v2808
    %v3387 = vunpack.c.l.b16 %v2809
    %v3388 = vunpack.c.h.b16 %v2809
    %v3389 = vunpack.c.l.b16 %v2810
    %v3390 = vunpack.c.l.b16 %v2811
    %v3391 = vunpack.c.h.b16 %v2811
    %v3392 = vunpack.c.l.b16 %v2812
    %v3393 = vunpack.c.h.b16 %v2812
    %v3394 = vunpack.c.l.b16 %v2813
    %v3395 = vunpack.c.h.b16 %v2813
    %v3396 = vunpack.c.l.b16 %v2814
    %v3397 = vunpack.c.l.b16 %v2815
    %v3398 = vunpack.c.h.b16 %v2815
    %v3399 = vunpack.c.l.b16 %v2816
    %v3400 = vunpack.c.h.b16 %v2816
    %v3401 = vunpack.c.l.b16 %v2817
    %v3402 = vunpack.c.h.b16 %v2817
    %v3403 = vunpack.c.l.b16 %v2818
    %v3404 = vunpack.c.l.b16 %v2819
    %v3405 = vunpack.c.h.b16 %v2819
    %v3406 = vunpack.c.l.b16 %v2820
    %v3407 = vunpack.c.h.b16 %v2820
    %v3408 = vunpack.c.l.b16 %v2821
    %v3409 = vunpack.c.h.b16 %v2821
    %v3410 = vunpack.c.l.b16 %v2822
    %v3411 = vunpack.c.l.b16 %v2823
    %v3412 = vunpack.c.h.b16 %v2823
    %v3413 = vunpack.c.l.b16 %v2824
    %v3414 = vunpack.c.h.b16 %v2824
    %v3415 = vunpack.c.l.b16 %v2825
    %v3416 = vunpack.c.h.b16 %v2825
    %v3417 = vunpack.c.l.b16 %v2826
    %v3418 = vunpack.c.l.b16 %v2827
    %v3419 = vunpack.c.h.b16 %v2827
    %v3420 = vunpack.c.l.b16 %v2828
    %v3421 = vunpack.c.h.b16 %v2828
    %v3422 = vunpack.c.l.b16 %v2829
    %v3423 = vunpack.c.h.b16 %v2829
    %v3424 = vunpack.c.l.b16 %v2830
    %v3425 = vunpack.c.l.b16 %v2831
    %v3426 = vunpack.c.h.b16 %v2831
    %v3427 = vunpack.c.l.b16 %v2832
    %v3428 = vunpack.c.h.b16 %v2832
    %v3429 = vunpack.c.l.b16 %v2833
    %v3430 = vunpack.c.h.b16 %v2833
    %v3431 = vunpack.c.l.b16 %v2834
    %v3432 = vunpack.c.l.b16 %v2835
    %v3433 = vunpack.c.h.b16 %v2835
    %v3434 = vunpack.c.l.b16 %v2836
    %v3435 = vunpack.c.h.b16 %v2836
    %v3436 = vunpack.c.l.b16 %v2837
    %v3437 = vunpack.c.h.b16 %v2837
    %v3438 = vunpack.c.l.b16 %v2838
    %v3439 = vunpack.c.l.b16 %v2839
    %v3440 = vunpack.c.h.b16 %v2839
    %v3441 = vunpack.c.l.b16 %v2840
    %v3442 = vunpack.c.h.b16 %v2840
    %v3443 = vunpack.c.l.b16 %v2841
    %v3444 = vunpack.c.h.b16 %v2841
    %v3445 = vunpack.c.l.b16 %v2842
    %v3446 = vunpack.c.l.b16 %v2843
    %v3447 = vunpack.c.h.b16 %v2843
    %v3448 = vunpack.c.l.b16 %v2844
    %v3449 = vunpack.c.h.b16 %v2844
    %v3450 = vunpack.c.l.b16 %v2845
    %v3451 = vunpack.c.h.b16 %v2845
    %v3452 = vunpack.c.l.b16 %v2846
    %v3453 = vunpack.c.l.b16 %v2847
    %v3454 = vunpack.c.h.b16 %v2847
    %v3455 = vunpack.c.l.b16 %v2848
    %v3456 = vunpack.c.h.b16 %v2848
    %v3457 = vunpack.c.l.b16 %v2849
    %v3458 = vunpack.c.h.b16 %v2849
    %v3459 = vunpack.c.l.b16 %v2850
    %v3460 = vunpack.c.l.b16 %v2851
    %v3461 = vunpack.c.h.b16 %v2851
    %v3462 = vunpack.c.l.b16 %v2852
    %v3463 = vunpack.c.h.b16 %v2852
    %v3464 = vunpack.c.l.b16 %v2853
    %v3465 = vunpack.c.h.b16 %v2853
    %v3466 = vunpack.c.l.b16 %v2854
    %v3467 = vunpack.c.l.b16 %v2855
    %v3468 = vunpack.c.h.b16 %v2855
    %v3469 = vunpack.c.l.b16 %v2856
    %v3470 = vunpack.c.h.b16 %v2856
    %v3471 = vunpack.c.l.b16 %v2857
    %v3472 = vunpack.c.h.b16 %v2857
    %v3473 = vunpack.c.l.b16 %v2858
    %v3474 = vunpack.c.l.b16 %v2859
    %v3475 = vunpack.c.h.b16 %v2859
    %v3476 = vunpack.c.l.b16 %v2860
    %v3477 = vunpack.c.h.b16 %v2860
    %v3478 = vunpack.c.l.b16 %v2861
    %v3479 = vunpack.c.h.b16 %v2861
    %v3480 = vunpack.c.l.b16 %v2862
    %v3481 = vunpack.c.l.b16 %v2863
    %v3482 = vunpack.c.h.b16 %v2863
    %v3483 = vunpack.c.l.b16 %v2864
    %v3484 = vunpack.c.h.b16 %v2864
    %v3485 = vunpack.c.l.b16 %v2865
    %v3486 = vunpack.c.h.b16 %v2865
    %v3487 = vunpack.c.l.b16 %v2866
    %v3488 = vunpack.c.l.b16 %v2867
    %v3489 = vunpack.c.h.b16 %v2867
    %v3490 = vunpack.c.l.b16 %v2868
    %v3491 = vunpack.c.h.b16 %v2868
    %v3492 = vunpack.c.l.b16 %v2869
    %v3493 = vunpack.c.h.b16 %v2869
    %v3494 = vunpack.c.l.b16 %v2870
    %v3495 = vunpack.c.l.b16 %v2871
    %v3496 = vunpack.c.h.b16 %v2871
    %v3497 = vunpack.c.l.b16 %v2872
    %v3498 = vunpack.c.h.b16 %v2872
    %v3499 = vunpack.c.l.b16 %v2873
    %v3500 = vunpack.c.h.b16 %v2873
    %v3501 = vunpack.c.l.b16 %v2874
    %v3502 = vunpack.c.l.b16 %v2875
    %v3503 = vunpack.c.h.b16 %v2875
    %v3504 = vunpack.c.l.b16 %v2876
    %v3505 = vunpack.c.h.b16 %v2876
    %v3506 = vunpack.c.l.b16 %v2877
    %v3507 = vunpack.c.h.b16 %v2877
    %v3508 = vunpack.c.l.b16 %v2878
    %v3509 = vunpack.c.l.b16 %v2879
    %v3510 = vunpack.c.h.b16 %v2879
    %v3511 = vunpack.c.l.b16 %v2880
    %v3512 = vunpack.c.h.b16 %v2880
    %v3513 = vunpack.c.l.b16 %v2881
    %v3514 = vunpack.c.h.b16 %v2881
    %v3515 = vunpack.c.l.b16 %v2882
    %v3516 = vunpack.c.l.b16 %v2883
    %v3517 = vunpack.c.h.b16 %v2883
    %v3518 = vunpack.c.l.b16 %v2884
    %v3519 = vunpack.c.h.b16 %v2884
    %v3520 = vunpack.c.l.b16 %v2885
    %v3521 = vunpack.c.h.b16 %v2885
    %v3522 = vunpack.c.l.b16 %v2886
    %v3523 = vunpack.c.l.b16 %v2887
    %v3524 = vunpack.c.h.b16 %v2887
    %v3525 = vunpack.c.l.b16 %v2888
    %v3526 = vunpack.c.h.b16 %v2888
    %v3527 = vunpack.c.l.b16 %v2889
    %v3528 = vunpack.c.h.b16 %v2889
    %v3529 = vunpack.c.l.b16 %v2890
    %v3530 = vunpack.c.l.b16 %v2891
    %v3531 = vunpack.c.h.b16 %v2891
    %v3532 = vunpack.c.l.b16 %v2892
    %v3533 = vunpack.c.h.b16 %v2892
    %v3534 = vunpack.c.l.b16 %v2893
    %v3535 = vunpack.c.h.b16 %v2893
    %v3536 = vunpack.c.l.b16 %v2894
    %v3537 = vunpack.c.l.b16 %v2895
    %v3538 = vunpack.c.h.b16 %v2895
    %v3539 = vunpack.c.l.b16 %v2896
    %v3540 = vunpack.c.h.b16 %v2896
    %v3541 = vunpack.c.l.b16 %v2897
    %v3542 = vunpack.c.h.b16 %v2897
    %v3543 = vunpack.c.l.b16 %v2898
    %v3544 = vunpack.c.l.b16 %v2899
    %v3545 = vunpack.c.h.b16 %v2899
    %v3546 = vunpack.c.l.b16 %v2900
    %v3547 = vunpack.c.h.b16 %v2900
    %v3548 = vunpack.c.l.b16 %v2901
    %v3549 = vunpack.c.h.b16 %v2901
    %v3550 = vunpack.c.l.b16 %v2902
    %v3551 = vunpack.c.l.b16 %v2903
    %v3552 = vunpack.c.h.b16 %v2903
    %v3553 = vunpack.c.l.b16 %v2904
    %v3554 = vunpack.c.h.b16 %v2904
    %v3555 = vunpack.c.l.b16 %v2905
    %v3556 = vunpack.c.h.b16 %v2905
    %v3557 = vunpack.c.l.b16 %v2906
    %v3558 = vunpack.c.l.b16 %v2907
    %v3559 = vunpack.c.h.b16 %v2907
    %v3560 = vunpack.c.l.b16 %v2908
    %v3561 = vunpack.c.h.b16 %v2908
    %v3562 = vunpack.c.l.b16 %v2909
    %v3563 = vunpack.c.h.b16 %v2909
    %v3564 = vunpack.c.l.b16 %v2910
    %v3565 = vunpack.c.l.b16 %v2911
    %v3566 = vunpack.c.h.b16 %v2911
    %v3567 = vunpack.c.l.b16 %v2912
    %v3568 = vunpack.c.h.b16 %v2912
    %v3569 = vunpack.c.l.b16 %v2913
    %v3570 = vunpack.c.h.b16 %v2913
    %v3571 = vunpack.c.l.b16 %v2914
    %v3572 = vunpack.c.l.b16 %v2915
    %v3573 = vunpack.c.h.b16 %v2915
    %v3574 = vunpack.c.l.b16 %v2916
    %v3575 = vunpack.c.h.b16 %v2916
    %v3576 = vunpack.c.l.b16 %v2917
    %v3577 = vunpack.c.h.b16 %v2917
    %v3578 = vunpack.c.l.b16 %v2918
    %v3579 = vunpack.c.l.b16 %v2919
    %v3580 = vunpack.c.h.b16 %v2919
    %v3581 = vunpack.c.l.b16 %v2920
    %v3582 = vunpack.c.h.b16 %v2920
    %v3583 = vunpack.c.l.b16 %v2921
    %v3584 = vunpack.c.h.b16 %v2921
    %v3585 = vunpack.c.l.b16 %v2922
    %v3586 = vunpack.c.l.b16 %v2923
    %v3587 = vunpack.c.h.b16 %v2923
    %v3588 = vunpack.c.l.b16 %v2924
    %v3589 = vunpack.c.h.b16 %v2924
    %v3590 = vunpack.c.l.b16 %v2925
    %v3591 = vunpack.c.h.b16 %v2925
    %v3592 = vunpack.c.l.b16 %v2926
    %v3593 = vunpack.c.l.b16 %v2927
    %v3594 = vunpack.c.h.b16 %v2927
    %v3595 = vunpack.c.l.b16 %v2928
    %v3596 = vunpack.c.h.b16 %v2928
    %v3597 = vunpack.c.l.b16 %v2929
    %v3598 = vunpack.c.h.b16 %v2929
    %v3599 = vunpack.c.l.b16 %v2930
    %v3600 = vunpack.c.l.b16 %v2931
    %v3601 = vunpack.c.h.b16 %v2931
    %v3602 = vunpack.c.l.b16 %v2932
    %v3603 = vunpack.c.h.b16 %v2932
    %v3604 = vunpack.c.l.b16 %v2933
    %v3605 = vunpack.c.h.b16 %v2933
    %v3606 = vunpack.c.l.b16 %v2934
    %v3607 = vunpack.c.l.b16 %v2935
    %v3608 = vunpack.c.h.b16 %v2935
    %v3609 = vunpack.c.l.b16 %v2936
    %v3610 = vunpack.c.h.b16 %v2936
    %v3611 = vunpack.c.l.b16 %v2937
    %v3612 = vunpack.c.h.b16 %v2937
    %v3613 = vunpack.c.l.b16 %v2938
    %v3614 = vunpack.c.l.b16 %v2939
    %v3615 = vunpack.c.h.b16 %v2939
    %v3616 = vunpack.c.l.b16 %v2940
    %v3617 = vunpack.c.h.b16 %v2940
    %v3618 = vunpack.c.l.b16 %v2941
    %v3619 = vunpack.c.h.b16 %v2941
    %v3620 = vunpack.c.l.b16 %v2942
    %v3621 = vunpack.c.l.b16 %v2943
    %v3622 = vunpack.c.h.b16 %v2943
    %v3623 = vunpack.c.l.b16 %v2944
    %v3624 = vunpack.c.h.b16 %v2944
    %v3625 = vunpack.c.l.b16 %v2945
    %v3626 = vunpack.c.h.b16 %v2945
    %v3627 = vunpack.c.l.b16 %v2946
    %v3628 = vunpack.c.l.b16 %v2947
    %v3629 = vunpack.c.h.b16 %v2947
    %v3630 = vunpack.c.l.b16 %v2948
    %v3631 = vunpack.c.h.b16 %v2948
    %v3632 = vunpack.c.l.b16 %v2949
    %v3633 = vunpack.c.h.b16 %v2949
    %v3634 = vunpack.c.l.b16 %v2950
    %v3635 = vunpack.c.l.b16 %v2951
    %v3636 = vunpack.c.h.b16 %v2951
    %v3637 = vunpack.c.l.b16 %v2952
    %v3638 = vunpack.c.h.b16 %v2952
    %v3639 = vunpack.c.l.b16 %v2953
    %v3640 = vunpack.c.h.b16 %v2953
    %v3641 = vunpack.c.l.b16 %v2954
    %v3642 = vunpack.c.l.b16 %v2955
    %v3643 = vunpack.c.h.b16 %v2955
    %v3644 = vunpack.c.l.b16 %v2956
    %v3645 = vunpack.c.h.b16 %v2956
    %v3646 = vunpack.c.l.b16 %v2957
    %v3647 = vunpack.c.h.b16 %v2957
    %v3648 = vunpack.c.l.b16 %v2958
    %v3649 = vunpack.c.l.b16 %v2959
    %v3650 = vunpack.c.h.b16 %v2959
    %v3651 = vunpack.c.l.b16 %v2960
    %v3652 = vunpack.c.h.b16 %v2960
    %v3653 = vunpack.c.l.b16 %v2961
    %v3654 = vunpack.c.h.b16 %v2961
    %v3655 = vunpack.c.l.b16 %v2962
    %v3656 = vunpack.c.l.b16 %v2963
    %v3657 = vunpack.c.h.b16 %v2963
    %v3658 = vunpack.c.l.b16 %v2964
    %v3659 = vunpack.c.h.b16 %v2964
    %v3660 = vunpack.c.l.b16 %v2965
    %v3661 = vunpack.c.h.b16 %v2965
    %v3662 = vunpack.c.l.b16 %v2966
    %v3663 = vunpack.c.l.b16 %v2967
    %v3664 = vunpack.c.h.b16 %v2967
    %v3665 = vunpack.c.l.b16 %v2968
    %v3666 = vunpack.c.h.b16 %v2968
    %v3667 = vunpack.c.l.b16 %v2969
    %v3668 = vunpack.c.h.b16 %v2969
    %v3669 = vunpack.c.l.b16 %v2970
    %v3670 = vunpack.c.l.b16 %v2971
    %v3671 = vunpack.c.h.b16 %v2971
    %v3672 = vunpack.c.l.b16 %v2972
    %v3673 = vunpack.c.h.b16 %v2972
    %v3674 = vunpack.c.l.b16 %v2973
    %v3675 = vunpack.c.h.b16 %v2973
    %v3676 = vunpack.c.l.b16 %v2974
    %v3677 = vunpack.c.l.b16 %v2975
    %v3678 = vunpack.c.h.b16 %v2975
    %v3679 = vunpack.c.l.b16 %v2976
    %v3680 = vunpack.c.h.b16 %v2976
    %v3681 = vunpack.c.l.b16 %v2977
    %v3682 = vunpack.c.h.b16 %v2977
    %v3683 = vunpack.c.l.b16 %v2978
    %v3684 = vunpack.c.l.b16 %v2979
    %v3685 = vunpack.c.h.b16 %v2979
    %v3686 = vunpack.c.l.b16 %v2980
    %v3687 = vunpack.c.h.b16 %v2980
    %v3688 = vunpack.c.l.b16 %v2981
    %v3689 = vunpack.c.h.b16 %v2981
    %v3690 = vunpack.c.l.b16 %v2982
    %v3691 = vunpack.c.l.b16 %v2983
    %v3692 = vunpack.c.h.b16 %v2983
    %v3693 = vunpack.c.l.b16 %v2984
    %v3694 = vunpack.c.h.b16 %v2984
    %v3695 = vunpack.c.l.b16 %v2985
    %v3696 = vunpack.c.h.b16 %v2985
    %v3697 = vunpack.c.l.b16 %v2986
    %v3698 = vunpack.c.l.b16 %v2987
    %v3699 = vunpack.c.h.b16 %v2987
    %v3700 = vunpack.c.l.b16 %v2988
    %v3701 = vunpack.c.h.b16 %v2988
    %v3702 = vunpack.c.l.b16 %v2989
    %v3703 = vunpack.c.h.b16 %v2989
    %v3704 = vunpack.c.l.b16 %v2990
    %v3705 = vunpack.c.l.b16 %v2991
    %v3706 = vunpack.c.h.b16 %v2991
    %v3707 = vunpack.c.l.b16 %v2992
    %v3708 = vunpack.c.h.b16 %v2992
    %v3709 = vunpack.c.l.b16 %v2993
    %v3710 = vunpack.c.h.b16 %v2993
    %v3711 = vunpack.c.l.b16 %v2994
    %v3712 = vunpack.c.l.b16 %v2995
    %v3713 = vunpack.c.h.b16 %v2995
    %v3714 = vunpack.c.l.b16 %v2996
    %v3715 = vunpack.c.h.b16 %v2996
    %v3716 = vunpack.c.l.b16 %v2997
    %v3717 = vunpack.c.h.b16 %v2997
    %v3718 = vunpack.c.l.b16 %v2998
    %v3719 = vpack.c.b16 %v3278, %v3271
    %v3720 = vpack.c.b16 %v3279, %v3272
    %v3721 = vpack.c.b16 %v3280, %v3273
    %v3722 = vpack.c.b16 %v3281, %v3274
    %v3723 = vpack.c.b16 %v3282, %v3275
    %v3724 = vpack.c.b16 %v3283, %v3276
    %v3725 = vpack.c.b16 %v3284, %v3277
    %v3726 = vpack.c.b16 %v3292, %v3285
    %v3727 = vpack.c.b16 %v3293, %v3286
    %v3728 = vpack.c.b16 %v3294, %v3287
    %v3729 = vpack.c.b16 %v3295, %v3288
    %v3730 = vpack.c.b16 %v3296, %v3289
    %v3731 = vpack.c.b16 %v3297, %v3290
    %v3732 = vpack.c.b16 %v3298, %v3291
    %v3733 = vpack.c.b16 %v3306, %v3299
    %v3734 = vpack.c.b16 %v3307, %v3300
    %v3735 = vpack.c.b16 %v3308, %v3301
    %v3736 = vpack.c.b16 %v3309, %v3302
    %v3737 = vpack.c.b16 %v3310, %v3303
    %v3738 = vpack.c.b16 %v3311, %v3304
    %v3739 = vpack.c.b16 %v3312, %v3305
    %v3740 = vpack.c.b16 %v3320, %v3313
    %v3741 = vpack.c.b16 %v3321, %v3314
    %v3742 = vpack.c.b16 %v3322, %v3315
    %v3743 = vpack.c.b16 %v3323, %v3316
    %v3744 = vpack.c.b16 %v3324, %v3317
    %v3745 = vpack.c.b16 %v3325, %v3318
    %v3746 = vpack.c.b16 %v3326, %v3319
    %v3747 = vpack.c.b16 %v3334, %v3327
    %v3748 = vpack.c.b16 %v3335, %v3328
    %v3749 = vpack.c.b16 %v3336, %v3329
    %v3750 = vpack.c.b16 %v3337, %v3330
    %v3751 = vpack.c.b16 %v3338, %v3331
    %v3752 = vpack.c.b16 %v3339, %v3332
    %v3753 = vpack.c.b16 %v3340, %v3333
    %v3754 = vpack.c.b16 %v3348, %v3341
    %v3755 = vpack.c.b16 %v3349, %v3342
    %v3756 = vpack.c.b16 %v3350, %v3343
    %v3757 = vpack.c.b16 %v3351, %v3344
    %v3758 = vpack.c.b16 %v3352, %v3345
    %v3759 = vpack.c.b16 %v3353, %v3346
    %v3760 = vpack.c.b16 %v3354, %v3347
    %v3761 = vpack.c.b16 %v3362, %v3355
    %v3762 = vpack.c.b16 %v3363, %v3356
    %v3763 = vpack.c.b16 %v3364, %v3357
    %v3764 = vpack.c.b16 %v3365, %v3358
    %v3765 = vpack.c.b16 %v3366, %v3359
    %v3766 = vpack.c.b16 %v3367, %v3360
    %v3767 = vpack.c.b16 %v3368, %v3361
    %v3768 = vpack.c.b16 %v3376, %v3369
    %v3769 = vpack.c.b16 %v3377, %v3370
    %v3770 = vpack.c.b16 %v3378, %v3371
    %v3771 = vpack.c.b16 %v3379, %v3372
    %v3772 = vpack.c.b16 %v3380, %v3373
    %v3773 = vpack.c.b16 %v3381, %v3374
    %v3774 = vpack.c.b16 %v3382, %v3375
    %v3775 = vpack.c.b16 %v3390, %v3383
    %v3776 = vpack.c.b16 %v3391, %v3384
    %v3777 = vpack.c.b16 %v3392, %v3385
    %v3778 = vpack.c.b16 %v3393, %v3386
    %v3779 = vpack.c.b16 %v3394, %v3387
    %v3780 = vpack.c.b16 %v3395, %v3388
    %v3781 = vpack.c.b16 %v3396, %v3389
    %v3782 = vpack.c.b16 %v3404, %v3397
    %v3783 = vpack.c.b16 %v3405, %v3398
    %v3784 = vpack.c.b16 %v3406, %v3399
    %v3785 = vpack.c.b16 %v3407, %v3400
    %v3786 = vpack.c.b16 %v3408, %v3401
    %v3787 = vpack.c.b16 %v3409, %v3402
    %v3788 = vpack.c.b16 %v3410, %v3403
    %v3789 = vpack.c.b16 %v3418, %v3411
    %v3790 = vpack.c.b16 %v3419, %v3412
    %v3791 = vpack.c.b16 %v3420, %v3413
    %v3792 = vpack.c.b16 %v3421, %v3414
    %v3793 = vpack.c.b16 %v3422, %v3415
    %v3794 = vpack.c.b16 %v3423, %v3416
    %v3795 = vpack.c.b16 %v3424, %v3417
    %v3796 = vpack.c.b16 %v3432, %v3425
    %v3797 = vpack.c.b16 %v3433, %v3426
    %v3798 = vpack.c.b16 %v3434, %v3427
    %v3799 = vpack.c.b16 %v3435, %v3428
    %v3800 = vpack.c.b16 %v3436, %v3429
    %v3801 = vpack.c.b16 %v3437, %v3430
    %v3802 = vpack.c.b16 %v3438, %v3431
    %v3803 = vpack.c.b16 %v3446, %v3439
    %v3804 = vpack.c.b16 %v3447, %v3440
    %v3805 = vpack.c.b16 %v3448, %v3441
    %v3806 = vpack.c.b16 %v3449, %v3442
    %v3807 = vpack.c.b16 %v3450, %v3443
    %v3808 = vpack.c.b16 %v3451, %v3444
    %v3809 = vpack.c.b16 %v3452, %v3445
    %v3810 = vpack.c.b16 %v3460, %v3453
    %v3811 = vpack.c.b16 %v3461, %v3454
    %v3812 = vpack.c.b16 %v3462, %v3455
    %v3813 = vpack.c.b16 %v3463, %v3456
    %v3814 = vpack.c.b16 %v3464, %v3457
    %v3815 = vpack.c.b16 %v3465, %v3458
    %v3816 = vpack.c.b16 %v3466, %v3459
    %v3817 = vpack.c.b16 %v3474, %v3467
    %v3818 = vpack.c.b16 %v3475, %v3468
    %v3819 = vpack.c.b16 %v3476, %v3469
    %v3820 = vpack.c.b16 %v3477, %v3470
    %v3821 = vpack.c.b16 %v3478, %v3471
    %v3822 = vpack.c.b16 %v3479, %v3472
    %v3823 = vpack.c.b16 %v3480, %v3473
    %v3824 = vpack.c.b16 %v3488, %v3481
    %v3825 = vpack.c.b16 %v3489, %v3482
    %v3826 = vpack.c.b16 %v3490, %v3483
    %v3827 = vpack.c.b16 %v3491, %v3484
    %v3828 = vpack.c.b16 %v3492, %v3485
    %v3829 = vpack.c.b16 %v3493, %v3486
    %v3830 = vpack.c.b16 %v3494, %v3487
    %v3831 = vpack.c.b16 %v3502, %v3495
    %v3832 = vpack.c.b16 %v3503, %v3496
    %v3833 = vpack.c.b16 %v3504, %v3497
    %v3834 = vpack.c.b16 %v3505, %v3498
    %v3835 = vpack.c.b16 %v3506, %v3499
    %v3836 = vpack.c.b16 %v3507, %v3500
    %v3837 = vpack.c.b16 %v3508, %v3501
    %v3838 = vpack.c.b16 %v3516, %v3509
    %v3839 = vpack.c.b16 %v3517, %v3510
    %v3840 = vpack.c.b16 %v3518, %v3511
    %v3841 = vpack.c.b16 %v3519, %v3512
    %v3842 = vpack.c.b16 %v3520, %v3513
    %v3843 = vpack.c.b16 %v3521, %v3514
    %v3844 = vpack.c.b16 %v3522, %v3515
    %v3845 = vpack.c.b16 %v3530, %v3523
    %v3846 = vpack.c.b16 %v3531, %v3524
    %v3847 = vpack.c.b16 %v3532, %v3525
    %v3848 = vpack.c.b16 %v3533, %v3526
    %v3849 = vpack.c.b16 %v3534, %v3527
    %v3850 = vpack.c.b16 %v3535, %v3528
    %v3851 = vpack.c.b16 %v3536, %v3529
    %v3852 = vpack.c.b16 %v3544, %v3537
    %v3853 = vpack.c.b16 %v3545, %v3538
    %v3854 = vpack.c.b16 %v3546, %v3539
    %v3855 = vpack.c.b16 %v3547, %v3540
    %v3856 = vpack.c.b16 %v3548, %v3541
    %v3857 = vpack.c.b16 %v3549, %v3542
    %v3858 = vpack.c.b16 %v3550, %v3543
    %v3859 = vpack.c.b16 %v3558, %v3551
    %v3860 = vpack.c.b16 %v3559, %v3552
    %v3861 = vpack.c.b16 %v3560, %v3553
    %v3862 = vpack.c.b16 %v3561, %v3554
    %v3863 = vpack.c.b16 %v3562, %v3555
    %v3864 = vpack.c.b16 %v3563, %v3556
    %v3865 = vpack.c.b16 %v3564, %v3557
    %v3866 = vpack.c.b16 %v3572, %v3565
    %v3867 = vpack.c.b16 %v3573, %v3566
    %v3868 = vpack.c.b16 %v3574, %v3567
    %v3869 = vpack.c.b16 %v3575, %v3568
    %v3870 = vpack.c.b16 %v3576, %v3569
    %v3871 = vpack.c.b16 %v3577, %v3570
    %v3872 = vpack.c.b16 %v3578, %v3571
    %v3873 = vpack.c.b16 %v3586, %v3579
    %v3874 = vpack.c.b16 %v3587, %v3580
    %v3875 = vpack.c.b16 %v3588, %v3581
    %v3876 = vpack.c.b16 %v3589, %v3582
    %v3877 = vpack.c.b16 %v3590, %v3583
    %v3878 = vpack.c.b16 %v3591, %v3584
    %v3879 = vpack.c.b16 %v3592, %v3585
    %v3880 = vpack.c.b16 %v3600, %v3593
    %v3881 = vpack.c.b16 %v3601, %v3594
    %v3882 = vpack.c.b16 %v3602, %v3595
    %v3883 = vpack.c.b16 %v3603, %v3596
    %v3884 = vpack.c.b16 %v3604, %v3597
    %v3885 = vpack.c.b16 %v3605, %v3598
    %v3886 = vpack.c.b16 %v3606, %v3599
    %v3887 = vpack.c.b16 %v3614, %v3607
    %v3888 = vpack.c.b16 %v3615, %v3608
    %v3889 = vpack.c.b16 %v3616, %v3609
    %v3890 = vpack.c.b16 %v3617, %v3610
    %v3891 = vpack.c.b16 %v3618, %v3611
    %v3892 = vpack.c.b16 %v3619, %v3612
    %v3893 = vpack.c.b16 %v3620, %v3613
    %v3894 = vpack.c.b16 %v3628, %v3621
    %v3895 = vpack.c.b16 %v3629, %v3622
    %v3896 = vpack.c.b16 %v3630, %v3623
    %v3897 = vpack.c.b16 %v3631, %v3624
    %v3898 = vpack.c.b16 %v3632, %v3625
    %v3899 = vpack.c.b16 %v3633, %v3626
    %v3900 = vpack.c.b16 %v3634, %v3627
    %v3901 = vpack.c.b16 %v3642, %v3635
    %v3902 = vpack.c.b16 %v3643, %v3636
    %v3903 = vpack.c.b16 %v3644, %v3637
    %v3904 = vpack.c.b16 %v3645, %v3638
    %v3905 = vpack.c.b16 %v3646, %v3639
    %v3906 = vpack.c.b16 %v3647, %v3640
    %v3907 = vpack.c.b16 %v3648, %v3641
    %v3908 = vpack.c.b16 %v3656, %v3649
    %v3909 = vpack.c.b16 %v3657, %v3650
    %v3910 = vpack.c.b16 %v3658, %v3651
    %v3911 = vpack.c.b16 %v3659, %v3652
    %v3912 = vpack.c.b16 %v3660, %v3653
    %v3913 = vpack.c.b16 %v3661, %v3654
    %v3914 = vpack.c.b16 %v3662, %v3655
    %v3915 = vpack.c.b16 %v3670, %v3663
    %v3916 = vpack.c.b16 %v3671, %v3664
    %v3917 = vpack.c.b16 %v3672, %v3665
    %v3918 = vpack.c.b16 %v3673, %v3666
    %v3919 = vpack.c.b16 %v3674, %v3667
    %v3920 = vpack.c.b16 %v3675, %v3668
    %v3921 = vpack.c.b16 %v3676, %v3669
    %v3922 = vpack.c.b16 %v3684, %v3677
    %v3923 = vpack.c.b16 %v3685, %v3678
    %v3924 = vpack.c.b16 %v3686, %v3679
    %v3925 = vpack.c.b16 %v3687, %v3680
    %v3926 = vpack.c.b16 %v3688, %v3681
    %v3927 = vpack.c.b16 %v3689, %v3682
    %v3928 = vpack.c.b16 %v3690, %v3683
    %v3929 = vpack.c.b16 %v3698, %v3691
    %v3930 = vpack.c.b16 %v3699, %v3692
    %v3931 = vpack.c.b16 %v3700, %v3693
    %v3932 = vpack.c.b16 %v3701, %v3694
    %v3933 = vpack.c.b16 %v3702, %v3695
    %v3934 = vpack.c.b16 %v3703, %v3696
    %v3935 = vpack.c.b16 %v3704, %v3697
    %v3936 = vpack.c.b16 %v3712, %v3705
    %v3937 = vpack.c.b16 %v3713, %v3706
    %v3938 = vpack.c.b16 %v3714, %v3707
    %v3939 = vpack.c.b16 %v3715, %v3708
    %v3940 = vpack.c.b16 %v3716, %v3709
    %v3941 = vpack.c.b16 %v3717, %v3710
    %v3942 = vpack.c.b16 %v3718, %v3711
    %4167 = vmatpush.bf16.msra.mxu0 %v3768
    %4168 = vmatpush.bf16.msra.mxu0 %v3761
    %4169 = vmatpush.bf16.msra.mxu0 %v3754
    %4170 = vmatpush.bf16.msra.mxu0 %v3747
    %4171 = vmatpush.bf16.msra.mxu0 %v3740
    %4172 = vmatpush.bf16.msra.mxu0 %v3733
    %4173 = vmatpush.bf16.msra.mxu0 %v3726
    %4174 = vmatpush.bf16.msra.mxu0 %v3719
    %4175 = vmatmul.bf16.gmra.mxu0 %v2667
    %v4176 = vpop.f32.mrf.mxu0
    %v4177 = vadd.f32 %v3001, %v4176
    %v4178 = vpop.f32.mrf.mxu0
    %v4179 = vadd.f32 %v3001, %v4178
    %4180 = vmatmul.bf16.gmra.mxu0 %v2671
    %v4181 = vpop.f32.mrf.mxu0
    %v4182 = vadd.f32 %v3001, %v4181
    %v4183 = vpop.f32.mrf.mxu0
    %v4184 = vadd.f32 %v3001, %v4183
    %4185 = vmatmul.bf16.gmra.mxu0 %v2675
    %v4186 = vpop.f32.mrf.mxu0
    %v4187 = vadd.f32 %v3001, %v4186
    %v4188 = vpop.f32.mrf.mxu0
    %v4189 = vadd.f32 %v3001, %v4188
    %4190 = vmatmul.bf16.gmra.mxu0 %v2679
    %v4191 = vpop.f32.mrf.mxu0
    %v4192 = vadd.f32 %v3001, %v4191
    %v4193 = vpop.f32.mrf.mxu0
    %v4194 = vadd.f32 %v3001, %v4193
    %4195 = vmatmul.bf16.gmra.mxu0 %v2683
    %v4196 = vpop.f32.mrf.mxu0
    %v4197 = vadd.f32 %v3001, %v4196
    %v4198 = vpop.f32.mrf.mxu0
    %v4199 = vadd.f32 %v3001, %v4198
    %4200 = vmatmul.bf16.gmra.mxu0 %v2687
    %v4201 = vpop.f32.mrf.mxu0
    %v4202 = vadd.f32 %v3001, %v4201
    %v4203 = vpop.f32.mrf.mxu0
    %v4204 = vadd.f32 %v3001, %v4203
    %4205 = vmatmul.bf16.gmra.mxu0 %v2691
    %v4206 = vpop.f32.mrf.mxu0
    %v4207 = vadd.f32 %v3001, %v4206
    %v4208 = vpop.f32.mrf.mxu0
    %v4209 = vadd.f32 %v3001, %v4208
    %4210 = vmatmul.bf16.gmra.mxu0 %v2695
    %v4211 = vpop.f32.mrf.mxu0
    %v4212 = vadd.f32 %v3001, %v4211
    %v4213 = vpop.f32.mrf.mxu0
    %v4214 = vadd.f32 %v3001, %v4213
    %4215 = vmatmul.bf16.gmra.mxu0 %v2699
    %v4216 = vpop.f32.mrf.mxu0
    %v4217 = vadd.f32 %v3001, %v4216
    %v4218 = vpop.f32.mrf.mxu0
    %v4219 = vadd.f32 %v3001, %v4218
    %4220 = vmatmul.bf16.gmra.mxu0 %v2703
    %v4221 = vpop.f32.mrf.mxu0
    %v4222 = vadd.f32 %v3001, %v4221
    %v4223 = vpop.f32.mrf.mxu0
    %v4224 = vadd.f32 %v3001, %v4223
    %4225 = vmatmul.bf16.gmra.mxu0 %v2707
    %v4226 = vpop.f32.mrf.mxu0
    %v4227 = vadd.f32 %v3001, %v4226
    %v4228 = vpop.f32.mrf.mxu0
    %v4229 = vadd.f32 %v3001, %v4228
    %4230 = vmatmul.bf16.gmra.mxu0 %v2711
    %v4231 = vpop.f32.mrf.mxu0
    %v4232 = vadd.f32 %v3001, %v4231
    %v4233 = vpop.f32.mrf.mxu0
    %v4234 = vadd.f32 %v3001, %v4233
    %4235 = vmatmul.bf16.gmra.mxu0 %v2715
    %v4236 = vpop.f32.mrf.mxu0
    %v4237 = vadd.f32 %v3001, %v4236
    %v4238 = vpop.f32.mrf.mxu0
    %v4239 = vadd.f32 %v3001, %v4238
    %4240 = vmatmul.bf16.gmra.mxu0 %v2719
    %v4241 = vpop.f32.mrf.mxu0
    %v4242 = vadd.f32 %v3001, %v4241
    %v4243 = vpop.f32.mrf.mxu0
    %v4244 = vadd.f32 %v3001, %v4243
    %4245 = vmatmul.bf16.gmra.mxu0 %v2723
    %v4246 = vpop.f32.mrf.mxu0
    %v4247 = vadd.f32 %v3001, %v4246
    %v4248 = vpop.f32.mrf.mxu0
    %v4249 = vadd.f32 %v3001, %v4248
    %4250 = vmatmul.bf16.gmra.mxu0 %v2727
    %v4251 = vpop.f32.mrf.mxu0
    %v4252 = vadd.f32 %v3001, %v4251
    %v4253 = vpop.f32.mrf.mxu0
    %v4254 = vadd.f32 %v3001, %v4253
    %4255 = vmatmul.bf16.gmra.mxu0 %v2731
    %v4256 = vpop.f32.mrf.mxu0
    %v4257 = vadd.f32 %v3001, %v4256
    %v4258 = vpop.f32.mrf.mxu0
    %v4259 = vadd.f32 %v3001, %v4258
    %4260 = vmatmul.bf16.gmra.mxu0 %v2735
    %v4261 = vpop.f32.mrf.mxu0
    %v4262 = vadd.f32 %v3001, %v4261
    %v4263 = vpop.f32.mrf.mxu0
    %v4264 = vadd.f32 %v3001, %v4263
    %4265 = vmatmul.bf16.gmra.mxu0 %v2739
    %v4266 = vpop.f32.mrf.mxu0
    %v4267 = vadd.f32 %v3001, %v4266
    %v4268 = vpop.f32.mrf.mxu0
    %v4269 = vadd.f32 %v3001, %v4268
    %4270 = vdwg.mxu0
    %4271 = vmatpush.bf16.msra.mxu0 %v3824
    %4272 = vmatpush.bf16.msra.mxu0 %v3817
    %4273 = vmatpush.bf16.msra.mxu0 %v3810
    %4274 = vmatpush.bf16.msra.mxu0 %v3803
    %4275 = vmatpush.bf16.msra.mxu0 %v3796
    %4276 = vmatpush.bf16.msra.mxu0 %v3789
    %4277 = vmatpush.bf16.msra.mxu0 %v3782
    %4278 = vmatpush.bf16.msra.mxu0 %v3775
    %4279 = vmatmul.bf16.gmra.mxu0 %v2668
    %v4280 = vpop.f32.mrf.mxu0
    %v4281 = vadd.f32 %v4177, %v4280
    %v4282 = vpop.f32.mrf.mxu0
    %v4283 = vadd.f32 %v4179, %v4282
    %4284 = vmatmul.bf16.gmra.mxu0 %v2672
    %v4285 = vpop.f32.mrf.mxu0
    %v4286 = vadd.f32 %v4182, %v4285
    %v4287 = vpop.f32.mrf.mxu0
    %v4288 = vadd.f32 %v4184, %v4287
    %4289 = vmatmul.bf16.gmra.mxu0 %v2676
    %v4290 = vpop.f32.mrf.mxu0
    %v4291 = vadd.f32 %v4187, %v4290
    %v4292 = vpop.f32.mrf.mxu0
    %v4293 = vadd.f32 %v4189, %v4292
    %4294 = vmatmul.bf16.gmra.mxu0 %v2680
    %v4295 = vpop.f32.mrf.mxu0
    %v4296 = vadd.f32 %v4192, %v4295
    %v4297 = vpop.f32.mrf.mxu0
    %v4298 = vadd.f32 %v4194, %v4297
    %4299 = vmatmul.bf16.gmra.mxu0 %v2684
    %v4300 = vpop.f32.mrf.mxu0
    %v4301 = vadd.f32 %v4197, %v4300
    %v4302 = vpop.f32.mrf.mxu0
    %v4303 = vadd.f32 %v4199, %v4302
    %4304 = vmatmul.bf16.gmra.mxu0 %v2688
    %v4305 = vpop.f32.mrf.mxu0
    %v4306 = vadd.f32 %v4202, %v4305
    %v4307 = vpop.f32.mrf.mxu0
    %v4308 = vadd.f32 %v4204, %v4307
    %4309 = vmatmul.bf16.gmra.mxu0 %v2692
    %v4310 = vpop.f32.mrf.mxu0
    %v4311 = vadd.f32 %v4207, %v4310
    %v4312 = vpop.f32.mrf.mxu0
    %v4313 = vadd.f32 %v4209, %v4312
    %4314 = vmatmul.bf16.gmra.mxu0 %v2696
    %v4315 = vpop.f32.mrf.mxu0
    %v4316 = vadd.f32 %v4212, %v4315
    %v4317 = vpop.f32.mrf.mxu0
    %v4318 = vadd.f32 %v4214, %v4317
    %4319 = vmatmul.bf16.gmra.mxu0 %v2700
    %v4320 = vpop.f32.mrf.mxu0
    %v4321 = vadd.f32 %v4217, %v4320
    %v4322 = vpop.f32.mrf.mxu0
    %v4323 = vadd.f32 %v4219, %v4322
    %4324 = vmatmul.bf16.gmra.mxu0 %v2704
    %v4325 = vpop.f32.mrf.mxu0
    %v4326 = vadd.f32 %v4222, %v4325
    %v4327 = vpop.f32.mrf.mxu0
    %v4328 = vadd.f32 %v4224, %v4327
    %4329 = vmatmul.bf16.gmra.mxu0 %v2708
    %v4330 = vpop.f32.mrf.mxu0
    %v4331 = vadd.f32 %v4227, %v4330
    %v4332 = vpop.f32.mrf.mxu0
    %v4333 = vadd.f32 %v4229, %v4332
    %4334 = vmatmul.bf16.gmra.mxu0 %v2712
    %v4335 = vpop.f32.mrf.mxu0
    %v4336 = vadd.f32 %v4232, %v4335
    %v4337 = vpop.f32.mrf.mxu0
    %v4338 = vadd.f32 %v4234, %v4337
    %4339 = vmatmul.bf16.gmra.mxu0 %v2716
    %v4340 = vpop.f32.mrf.mxu0
    %v4341 = vadd.f32 %v4237, %v4340
    %v4342 = vpop.f32.mrf.mxu0
    %v4343 = vadd.f32 %v4239, %v4342
    %4344 = vmatmul.bf16.gmra.mxu0 %v2720
    %v4345 = vpop.f32.mrf.mxu0
    %v4346 = vadd.f32 %v4242, %v4345
    %v4347 = vpop.f32.mrf.mxu0
    %v4348 = vadd.f32 %v4244, %v4347
    %4349 = vmatmul.bf16.gmra.mxu0 %v2724
    %v4350 = vpop.f32.mrf.mxu0
    %v4351 = vadd.f32 %v4247, %v4350
    %v4352 = vpop.f32.mrf.mxu0
    %v4353 = vadd.f32 %v4249, %v4352
    %4354 = vmatmul.bf16.gmra.mxu0 %v2728
    %v4355 = vpop.f32.mrf.mxu0
    %v4356 = vadd.f32 %v4252, %v4355
    %v4357 = vpop.f32.mrf.mxu0
    %v4358 = vadd.f32 %v4254, %v4357
    %4359 = vmatmul.bf16.gmra.mxu0 %v2732
    %v4360 = vpop.f32.mrf.mxu0
    %v4361 = vadd.f32 %v4257, %v4360
    %v4362 = vpop.f32.mrf.mxu0
    %v4363 = vadd.f32 %v4259, %v4362
    %4364 = vmatmul.bf16.gmra.mxu0 %v2736
    %v4365 = vpop.f32.mrf.mxu0
    %v4366 = vadd.f32 %v4262, %v4365
    %v4367 = vpop.f32.mrf.mxu0
    %v4368 = vadd.f32 %v4264, %v4367
    %4369 = vmatmul.bf16.gmra.mxu0 %v2740
    %v4370 = vpop.f32.mrf.mxu0
    %v4371 = vadd.f32 %v4267, %v4370
    %v4372 = vpop.f32.mrf.mxu0
    %v4373 = vadd.f32 %v4269, %v4372
    %4374 = vdwg.mxu0
    %4375 = vmatpush.bf16.msra.mxu0 %v3880
    %4376 = vmatpush.bf16.msra.mxu0 %v3873
    %4377 = vmatpush.bf16.msra.mxu0 %v3866
    %4378 = vmatpush.bf16.msra.mxu0 %v3859
    %4379 = vmatpush.bf16.msra.mxu0 %v3852
    %4380 = vmatpush.bf16.msra.mxu0 %v3845
    %4381 = vmatpush.bf16.msra.mxu0 %v3838
    %4382 = vmatpush.bf16.msra.mxu0 %v3831
    %4383 = vmatmul.bf16.gmra.mxu0 %v2669
    %v4384 = vpop.f32.mrf.mxu0
    %v4385 = vadd.f32 %v4281, %v4384
    %v4386 = vpop.f32.mrf.mxu0
    %v4387 = vadd.f32 %v4283, %v4386
    %4388 = vmatmul.bf16.gmra.mxu0 %v2673
    %v4389 = vpop.f32.mrf.mxu0
    %v4390 = vadd.f32 %v4286, %v4389
    %v4391 = vpop.f32.mrf.mxu0
    %v4392 = vadd.f32 %v4288, %v4391
    %4393 = vmatmul.bf16.gmra.mxu0 %v2677
    %v4394 = vpop.f32.mrf.mxu0
    %v4395 = vadd.f32 %v4291, %v4394
    %v4396 = vpop.f32.mrf.mxu0
    %v4397 = vadd.f32 %v4293, %v4396
    %4398 = vmatmul.bf16.gmra.mxu0 %v2681
    %v4399 = vpop.f32.mrf.mxu0
    %v4400 = vadd.f32 %v4296, %v4399
    %v4401 = vpop.f32.mrf.mxu0
    %v4402 = vadd.f32 %v4298, %v4401
    %4403 = vmatmul.bf16.gmra.mxu0 %v2685
    %v4404 = vpop.f32.mrf.mxu0
    %v4405 = vadd.f32 %v4301, %v4404
    %v4406 = vpop.f32.mrf.mxu0
    %v4407 = vadd.f32 %v4303, %v4406
    %4408 = vmatmul.bf16.gmra.mxu0 %v2689
    %v4409 = vpop.f32.mrf.mxu0
    %v4410 = vadd.f32 %v4306, %v4409
    %v4411 = vpop.f32.mrf.mxu0
    %v4412 = vadd.f32 %v4308, %v4411
    %4413 = vmatmul.bf16.gmra.mxu0 %v2693
    %v4414 = vpop.f32.mrf.mxu0
    %v4415 = vadd.f32 %v4311, %v4414
    %v4416 = vpop.f32.mrf.mxu0
    %v4417 = vadd.f32 %v4313, %v4416
    %4418 = vmatmul.bf16.gmra.mxu0 %v2697
    %v4419 = vpop.f32.mrf.mxu0
    %v4420 = vadd.f32 %v4316, %v4419
    %v4421 = vpop.f32.mrf.mxu0
    %v4422 = vadd.f32 %v4318, %v4421
    %4423 = vmatmul.bf16.gmra.mxu0 %v2701
    %v4424 = vpop.f32.mrf.mxu0
    %v4425 = vadd.f32 %v4321, %v4424
    %v4426 = vpop.f32.mrf.mxu0
    %v4427 = vadd.f32 %v4323, %v4426
    %4428 = vmatmul.bf16.gmra.mxu0 %v2705
    %v4429 = vpop.f32.mrf.mxu0
    %v4430 = vadd.f32 %v4326, %v4429
    %v4431 = vpop.f32.mrf.mxu0
    %v4432 = vadd.f32 %v4328, %v4431
    %4433 = vmatmul.bf16.gmra.mxu0 %v2709
    %v4434 = vpop.f32.mrf.mxu0
    %v4435 = vadd.f32 %v4331, %v4434
    %v4436 = vpop.f32.mrf.mxu0
    %v4437 = vadd.f32 %v4333, %v4436
    %4438 = vmatmul.bf16.gmra.mxu0 %v2713
    %v4439 = vpop.f32.mrf.mxu0
    %v4440 = vadd.f32 %v4336, %v4439
    %v4441 = vpop.f32.mrf.mxu0
    %v4442 = vadd.f32 %v4338, %v4441
    %4443 = vmatmul.bf16.gmra.mxu0 %v2717
    %v4444 = vpop.f32.mrf.mxu0
    %v4445 = vadd.f32 %v4341, %v4444
    %v4446 = vpop.f32.mrf.mxu0
    %v4447 = vadd.f32 %v4343, %v4446
    %4448 = vmatmul.bf16.gmra.mxu0 %v2721
    %v4449 = vpop.f32.mrf.mxu0
    %v4450 = vadd.f32 %v4346, %v4449
    %v4451 = vpop.f32.mrf.mxu0
    %v4452 = vadd.f32 %v4348, %v4451
    %4453 = vmatmul.bf16.gmra.mxu0 %v2725
    %v4454 = vpop.f32.mrf.mxu0
    %v4455 = vadd.f32 %v4351, %v4454
    %v4456 = vpop.f32.mrf.mxu0
    %v4457 = vadd.f32 %v4353, %v4456
    %4458 = vmatmul.bf16.gmra.mxu0 %v2729
    %v4459 = vpop.f32.mrf.mxu0
    %v4460 = vadd.f32 %v4356, %v4459
    %v4461 = vpop.f32.mrf.mxu0
    %v4462 = vadd.f32 %v4358, %v4461
    %4463 = vmatmul.bf16.gmra.mxu0 %v2733
    %v4464 = vpop.f32.mrf.mxu0
    %v4465 = vadd.f32 %v4361, %v4464
    %v4466 = vpop.f32.mrf.mxu0
    %v4467 = vadd.f32 %v4363, %v4466
    %4468 = vmatmul.bf16.gmra.mxu0 %v2737
    %v4469 = vpop.f32.mrf.mxu0
    %v4470 = vadd.f32 %v4366, %v4469
    %v4471 = vpop.f32.mrf.mxu0
    %v4472 = vadd.f32 %v4368, %v4471
    %4473 = vmatmul.bf16.gmra.mxu0 %v2741
    %v4474 = vpop.f32.mrf.mxu0
    %v4475 = vadd.f32 %v4371, %v4474
    %v4476 = vpop.f32.mrf.mxu0
    %v4477 = vadd.f32 %v4373, %v4476
    %4478 = vdwg.mxu0
    %4479 = vmatpush.bf16.msra.mxu0 %v3936
    %4480 = vmatpush.bf16.msra.mxu0 %v3929
    %4481 = vmatpush.bf16.msra.mxu0 %v3922
    %4482 = vmatpush.bf16.msra.mxu0 %v3915
    %4483 = vmatpush.bf16.msra.mxu0 %v3908
    %4484 = vmatpush.bf16.msra.mxu0 %v3901
    %4485 = vmatpush.bf16.msra.mxu0 %v3894
    %4486 = vmatpush.bf16.msra.mxu0 %v3887
    %4487 = vmatmul.bf16.gmra.mxu0 %v2670
    %v4488 = vpop.f32.mrf.mxu0
    %v4489 = vadd.f32 %v4385, %v4488
    %v4490 = vpop.f32.mrf.mxu0
    %v4491 = vadd.f32 %v4387, %v4490
    %4492 = vmatmul.bf16.gmra.mxu0 %v2674
    %v4493 = vpop.f32.mrf.mxu0
    %v4494 = vadd.f32 %v4390, %v4493
    %v4495 = vpop.f32.mrf.mxu0
    %v4496 = vadd.f32 %v4392, %v4495
    %4497 = vmatmul.bf16.gmra.mxu0 %v2678
    %v4498 = vpop.f32.mrf.mxu0
    %v4499 = vadd.f32 %v4395, %v4498
    %v4500 = vpop.f32.mrf.mxu0
    %v4501 = vadd.f32 %v4397, %v4500
    %4502 = vmatmul.bf16.gmra.mxu0 %v2682
    %v4503 = vpop.f32.mrf.mxu0
    %v4504 = vadd.f32 %v4400, %v4503
    %v4505 = vpop.f32.mrf.mxu0
    %v4506 = vadd.f32 %v4402, %v4505
    %4507 = vmatmul.bf16.gmra.mxu0 %v2686
    %v4508 = vpop.f32.mrf.mxu0
    %v4509 = vadd.f32 %v4405, %v4508
    %v4510 = vpop.f32.mrf.mxu0
    %v4511 = vadd.f32 %v4407, %v4510
    %4512 = vmatmul.bf16.gmra.mxu0 %v2690
    %v4513 = vpop.f32.mrf.mxu0
    %v4514 = vadd.f32 %v4410, %v4513
    %v4515 = vpop.f32.mrf.mxu0
    %v4516 = vadd.f32 %v4412, %v4515
    %4517 = vmatmul.bf16.gmra.mxu0 %v2694
    %v4518 = vpop.f32.mrf.mxu0
    %v4519 = vadd.f32 %v4415, %v4518
    %v4520 = vpop.f32.mrf.mxu0
    %v4521 = vadd.f32 %v4417, %v4520
    %4522 = vmatmul.bf16.gmra.mxu0 %v2698
    %v4523 = vpop.f32.mrf.mxu0
    %v4524 = vadd.f32 %v4420, %v4523
    %v4525 = vpop.f32.mrf.mxu0
    %v4526 = vadd.f32 %v4422, %v4525
    %4527 = vmatmul.bf16.gmra.mxu0 %v2702
    %v4528 = vpop.f32.mrf.mxu0
    %v4529 = vadd.f32 %v4425, %v4528
    %v4530 = vpop.f32.mrf.mxu0
    %v4531 = vadd.f32 %v4427, %v4530
    %4532 = vmatmul.bf16.gmra.mxu0 %v2706
    %v4533 = vpop.f32.mrf.mxu0
    %v4534 = vadd.f32 %v4430, %v4533
    %v4535 = vpop.f32.mrf.mxu0
    %v4536 = vadd.f32 %v4432, %v4535
    %4537 = vmatmul.bf16.gmra.mxu0 %v2710
    %v4538 = vpop.f32.mrf.mxu0
    %v4539 = vadd.f32 %v4435, %v4538
    %v4540 = vpop.f32.mrf.mxu0
    %v4541 = vadd.f32 %v4437, %v4540
    %4542 = vmatmul.bf16.gmra.mxu0 %v2714
    %v4543 = vpop.f32.mrf.mxu0
    %v4544 = vadd.f32 %v4440, %v4543
    %v4545 = vpop.f32.mrf.mxu0
    %v4546 = vadd.f32 %v4442, %v4545
    %4547 = vmatmul.bf16.gmra.mxu0 %v2718
    %v4548 = vpop.f32.mrf.mxu0
    %v4549 = vadd.f32 %v4445, %v4548
    %v4550 = vpop.f32.mrf.mxu0
    %v4551 = vadd.f32 %v4447, %v4550
    %4552 = vmatmul.bf16.gmra.mxu0 %v2722
    %v4553 = vpop.f32.mrf.mxu0
    %v4554 = vadd.f32 %v4450, %v4553
    %v4555 = vpop.f32.mrf.mxu0
    %v4556 = vadd.f32 %v4452, %v4555
    %4557 = vmatmul.bf16.gmra.mxu0 %v2726
    %v4558 = vpop.f32.mrf.mxu0
    %v4559 = vadd.f32 %v4455, %v4558
    %v4560 = vpop.f32.mrf.mxu0
    %v4561 = vadd.f32 %v4457, %v4560
    %4562 = vmatmul.bf16.gmra.mxu0 %v2730
    %v4563 = vpop.f32.mrf.mxu0
    %v4564 = vadd.f32 %v4460, %v4563
    %v4565 = vpop.f32.mrf.mxu0
    %v4566 = vadd.f32 %v4462, %v4565
    %4567 = vmatmul.bf16.gmra.mxu0 %v2734
    %v4568 = vpop.f32.mrf.mxu0
    %v4569 = vadd.f32 %v4465, %v4568
    %v4570 = vpop.f32.mrf.mxu0
    %v4571 = vadd.f32 %v4467, %v4570
    %4572 = vmatmul.bf16.gmra.mxu0 %v2738
    %v4573 = vpop.f32.mrf.mxu0
    %v4574 = vadd.f32 %v4470, %v4573
    %v4575 = vpop.f32.mrf.mxu0
    %v4576 = vadd.f32 %v4472, %v4575
    %4577 = vmatmul.bf16.gmra.mxu0 %v2742
    %v4578 = vpop.f32.mrf.mxu0
    %v4579 = vadd.f32 %v4475, %v4578
    %v4580 = vpop.f32.mrf.mxu0
    %v4581 = vadd.f32 %v4477, %v4580
    %4582 = vdwg.mxu0
    %4583 = vmatpush.bf16.msra.mxu0 %v3769
    %4584 = vmatpush.bf16.msra.mxu0 %v3762
    %4585 = vmatpush.bf16.msra.mxu0 %v3755
    %4586 = vmatpush.bf16.msra.mxu0 %v3748
    %4587 = vmatpush.bf16.msra.mxu0 %v3741
    %4588 = vmatpush.bf16.msra.mxu0 %v3734
    %4589 = vmatpush.bf16.msra.mxu0 %v3727
    %4590 = vmatpush.bf16.msra.mxu0 %v3720
    %4591 = vmatmul.bf16.gmra.mxu0 %v2667
    %v4592 = vpop.f32.mrf.mxu0
    %v4593 = vadd.f32 %v3002, %v4592
    %v4594 = vpop.f32.mrf.mxu0
    %v4595 = vadd.f32 %v3002, %v4594
    %4596 = vmatmul.bf16.gmra.mxu0 %v2671
    %v4597 = vpop.f32.mrf.mxu0
    %v4598 = vadd.f32 %v3002, %v4597
    %v4599 = vpop.f32.mrf.mxu0
    %v4600 = vadd.f32 %v3002, %v4599
    %4601 = vmatmul.bf16.gmra.mxu0 %v2675
    %v4602 = vpop.f32.mrf.mxu0
    %v4603 = vadd.f32 %v3002, %v4602
    %v4604 = vpop.f32.mrf.mxu0
    %v4605 = vadd.f32 %v3002, %v4604
    %4606 = vmatmul.bf16.gmra.mxu0 %v2679
    %v4607 = vpop.f32.mrf.mxu0
    %v4608 = vadd.f32 %v3002, %v4607
    %v4609 = vpop.f32.mrf.mxu0
    %v4610 = vadd.f32 %v3002, %v4609
    %4611 = vmatmul.bf16.gmra.mxu0 %v2683
    %v4612 = vpop.f32.mrf.mxu0
    %v4613 = vadd.f32 %v3002, %v4612
    %v4614 = vpop.f32.mrf.mxu0
    %v4615 = vadd.f32 %v3002, %v4614
    %4616 = vmatmul.bf16.gmra.mxu0 %v2687
    %v4617 = vpop.f32.mrf.mxu0
    %v4618 = vadd.f32 %v3002, %v4617
    %v4619 = vpop.f32.mrf.mxu0
    %v4620 = vadd.f32 %v3002, %v4619
    %4621 = vmatmul.bf16.gmra.mxu0 %v2691
    %v4622 = vpop.f32.mrf.mxu0
    %v4623 = vadd.f32 %v3002, %v4622
    %v4624 = vpop.f32.mrf.mxu0
    %v4625 = vadd.f32 %v3002, %v4624
    %4626 = vmatmul.bf16.gmra.mxu0 %v2695
    %v4627 = vpop.f32.mrf.mxu0
    %v4628 = vadd.f32 %v3002, %v4627
    %v4629 = vpop.f32.mrf.mxu0
    %v4630 = vadd.f32 %v3002, %v4629
    %4631 = vmatmul.bf16.gmra.mxu0 %v2699
    %v4632 = vpop.f32.mrf.mxu0
    %v4633 = vadd.f32 %v3002, %v4632
    %v4634 = vpop.f32.mrf.mxu0
    %v4635 = vadd.f32 %v3002, %v4634
    %4636 = vmatmul.bf16.gmra.mxu0 %v2703
    %v4637 = vpop.f32.mrf.mxu0
    %v4638 = vadd.f32 %v3002, %v4637
    %v4639 = vpop.f32.mrf.mxu0
    %v4640 = vadd.f32 %v3002, %v4639
    %4641 = vmatmul.bf16.gmra.mxu0 %v2707
    %v4642 = vpop.f32.mrf.mxu0
    %v4643 = vadd.f32 %v3002, %v4642
    %v4644 = vpop.f32.mrf.mxu0
    %v4645 = vadd.f32 %v3002, %v4644
    %4646 = vmatmul.bf16.gmra.mxu0 %v2711
    %v4647 = vpop.f32.mrf.mxu0
    %v4648 = vadd.f32 %v3002, %v4647
    %v4649 = vpop.f32.mrf.mxu0
    %v4650 = vadd.f32 %v3002, %v4649
    %4651 = vmatmul.bf16.gmra.mxu0 %v2715
    %v4652 = vpop.f32.mrf.mxu0
    %v4653 = vadd.f32 %v3002, %v4652
    %v4654 = vpop.f32.mrf.mxu0
    %v4655 = vadd.f32 %v3002, %v4654
    %4656 = vmatmul.bf16.gmra.mxu0 %v2719
    %v4657 = vpop.f32.mrf.mxu0
    %v4658 = vadd.f32 %v3002, %v4657
    %v4659 = vpop.f32.mrf.mxu0
    %v4660 = vadd.f32 %v3002, %v4659
    %4661 = vmatmul.bf16.gmra.mxu0 %v2723
    %v4662 = vpop.f32.mrf.mxu0
    %v4663 = vadd.f32 %v3002, %v4662
    %v4664 = vpop.f32.mrf.mxu0
    %v4665 = vadd.f32 %v3002, %v4664
    %4666 = vmatmul.bf16.gmra.mxu0 %v2727
    %v4667 = vpop.f32.mrf.mxu0
    %v4668 = vadd.f32 %v3002, %v4667
    %v4669 = vpop.f32.mrf.mxu0
    %v4670 = vadd.f32 %v3002, %v4669
    %4671 = vmatmul.bf16.gmra.mxu0 %v2731
    %v4672 = vpop.f32.mrf.mxu0
    %v4673 = vadd.f32 %v3002, %v4672
    %v4674 = vpop.f32.mrf.mxu0
    %v4675 = vadd.f32 %v3002, %v4674
    %4676 = vmatmul.bf16.gmra.mxu0 %v2735
    %v4677 = vpop.f32.mrf.mxu0
    %v4678 = vadd.f32 %v3002, %v4677
    %v4679 = vpop.f32.mrf.mxu0
    %v4680 = vadd.f32 %v3002, %v4679
    %4681 = vmatmul.bf16.gmra.mxu0 %v2739
    %v4682 = vpop.f32.mrf.mxu0
    %v4683 = vadd.f32 %v3002, %v4682
    %v4684 = vpop.f32.mrf.mxu0
    %v4685 = vadd.f32 %v3002, %v4684
    %4686 = vdwg.mxu0
    %4687 = vmatpush.bf16.msra.mxu0 %v3825
    %4688 = vmatpush.bf16.msra.mxu0 %v3818
    %4689 = vmatpush.bf16.msra.mxu0 %v3811
    %4690 = vmatpush.bf16.msra.mxu0 %v3804
    %4691 = vmatpush.bf16.msra.mxu0 %v3797
    %4692 = vmatpush.bf16.msra.mxu0 %v3790
    %4693 = vmatpush.bf16.msra.mxu0 %v3783
    %4694 = vmatpush.bf16.msra.mxu0 %v3776
    %4695 = vmatmul.bf16.gmra.mxu0 %v2668
    %v4696 = vpop.f32.mrf.mxu0
    %v4697 = vadd.f32 %v4593, %v4696
    %v4698 = vpop.f32.mrf.mxu0
    %v4699 = vadd.f32 %v4595, %v4698
    %4700 = vmatmul.bf16.gmra.mxu0 %v2672
    %v4701 = vpop.f32.mrf.mxu0
    %v4702 = vadd.f32 %v4598, %v4701
    %v4703 = vpop.f32.mrf.mxu0
    %v4704 = vadd.f32 %v4600, %v4703
    %4705 = vmatmul.bf16.gmra.mxu0 %v2676
    %v4706 = vpop.f32.mrf.mxu0
    %v4707 = vadd.f32 %v4603, %v4706
    %v4708 = vpop.f32.mrf.mxu0
    %v4709 = vadd.f32 %v4605, %v4708
    %4710 = vmatmul.bf16.gmra.mxu0 %v2680
    %v4711 = vpop.f32.mrf.mxu0
    %v4712 = vadd.f32 %v4608, %v4711
    %v4713 = vpop.f32.mrf.mxu0
    %v4714 = vadd.f32 %v4610, %v4713
    %4715 = vmatmul.bf16.gmra.mxu0 %v2684
    %v4716 = vpop.f32.mrf.mxu0
    %v4717 = vadd.f32 %v4613, %v4716
    %v4718 = vpop.f32.mrf.mxu0
    %v4719 = vadd.f32 %v4615, %v4718
    %4720 = vmatmul.bf16.gmra.mxu0 %v2688
    %v4721 = vpop.f32.mrf.mxu0
    %v4722 = vadd.f32 %v4618, %v4721
    %v4723 = vpop.f32.mrf.mxu0
    %v4724 = vadd.f32 %v4620, %v4723
    %4725 = vmatmul.bf16.gmra.mxu0 %v2692
    %v4726 = vpop.f32.mrf.mxu0
    %v4727 = vadd.f32 %v4623, %v4726
    %v4728 = vpop.f32.mrf.mxu0
    %v4729 = vadd.f32 %v4625, %v4728
    %4730 = vmatmul.bf16.gmra.mxu0 %v2696
    %v4731 = vpop.f32.mrf.mxu0
    %v4732 = vadd.f32 %v4628, %v4731
    %v4733 = vpop.f32.mrf.mxu0
    %v4734 = vadd.f32 %v4630, %v4733
    %4735 = vmatmul.bf16.gmra.mxu0 %v2700
    %v4736 = vpop.f32.mrf.mxu0
    %v4737 = vadd.f32 %v4633, %v4736
    %v4738 = vpop.f32.mrf.mxu0
    %v4739 = vadd.f32 %v4635, %v4738
    %4740 = vmatmul.bf16.gmra.mxu0 %v2704
    %v4741 = vpop.f32.mrf.mxu0
    %v4742 = vadd.f32 %v4638, %v4741
    %v4743 = vpop.f32.mrf.mxu0
    %v4744 = vadd.f32 %v4640, %v4743
    %4745 = vmatmul.bf16.gmra.mxu0 %v2708
    %v4746 = vpop.f32.mrf.mxu0
    %v4747 = vadd.f32 %v4643, %v4746
    %v4748 = vpop.f32.mrf.mxu0
    %v4749 = vadd.f32 %v4645, %v4748
    %4750 = vmatmul.bf16.gmra.mxu0 %v2712
    %v4751 = vpop.f32.mrf.mxu0
    %v4752 = vadd.f32 %v4648, %v4751
    %v4753 = vpop.f32.mrf.mxu0
    %v4754 = vadd.f32 %v4650, %v4753
    %4755 = vmatmul.bf16.gmra.mxu0 %v2716
    %v4756 = vpop.f32.mrf.mxu0
    %v4757 = vadd.f32 %v4653, %v4756
    %v4758 = vpop.f32.mrf.mxu0
    %v4759 = vadd.f32 %v4655, %v4758
    %4760 = vmatmul.bf16.gmra.mxu0 %v2720
    %v4761 = vpop.f32.mrf.mxu0
    %v4762 = vadd.f32 %v4658, %v4761
    %v4763 = vpop.f32.mrf.mxu0
    %v4764 = vadd.f32 %v4660, %v4763
    %4765 = vmatmul.bf16.gmra.mxu0 %v2724
    %v4766 = vpop.f32.mrf.mxu0
    %v4767 = vadd.f32 %v4663, %v4766
    %v4768 = vpop.f32.mrf.mxu0
    %v4769 = vadd.f32 %v4665, %v4768
    %4770 = vmatmul.bf16.gmra.mxu0 %v2728
    %v4771 = vpop.f32.mrf.mxu0
    %v4772 = vadd.f32 %v4668, %v4771
    %v4773 = vpop.f32.mrf.mxu0
    %v4774 = vadd.f32 %v4670, %v4773
    %4775 = vmatmul.bf16.gmra.mxu0 %v2732
    %v4776 = vpop.f32.mrf.mxu0
    %v4777 = vadd.f32 %v4673, %v4776
    %v4778 = vpop.f32.mrf.mxu0
    %v4779 = vadd.f32 %v4675, %v4778
    %4780 = vmatmul.bf16.gmra.mxu0 %v2736
    %v4781 = vpop.f32.mrf.mxu0
    %v4782 = vadd.f32 %v4678, %v4781
    %v4783 = vpop.f32.mrf.mxu0
    %v4784 = vadd.f32 %v4680, %v4783
    %4785 = vmatmul.bf16.gmra.mxu0 %v2740
    %v4786 = vpop.f32.mrf.mxu0
    %v4787 = vadd.f32 %v4683, %v4786
    %v4788 = vpop.f32.mrf.mxu0
    %v4789 = vadd.f32 %v4685, %v4788
    %4790 = vdwg.mxu0
    %4791 = vmatpush.bf16.msra.mxu0 %v3881
    %4792 = vmatpush.bf16.msra.mxu0 %v3874
    %4793 = vmatpush.bf16.msra.mxu0 %v3867
    %4794 = vmatpush.bf16.msra.mxu0 %v3860
    %4795 = vmatpush.bf16.msra.mxu0 %v3853
    %4796 = vmatpush.bf16.msra.mxu0 %v3846
    %4797 = vmatpush.bf16.msra.mxu0 %v3839
    %4798 = vmatpush.bf16.msra.mxu0 %v3832
    %4799 = vmatmul.bf16.gmra.mxu0 %v2669
    %v4800 = vpop.f32.mrf.mxu0
    %v4801 = vadd.f32 %v4697, %v4800
    %v4802 = vpop.f32.mrf.mxu0
    %v4803 = vadd.f32 %v4699, %v4802
    %4804 = vmatmul.bf16.gmra.mxu0 %v2673
    %v4805 = vpop.f32.mrf.mxu0
    %v4806 = vadd.f32 %v4702, %v4805
    %v4807 = vpop.f32.mrf.mxu0
    %v4808 = vadd.f32 %v4704, %v4807
    %4809 = vmatmul.bf16.gmra.mxu0 %v2677
    %v4810 = vpop.f32.mrf.mxu0
    %v4811 = vadd.f32 %v4707, %v4810
    %v4812 = vpop.f32.mrf.mxu0
    %v4813 = vadd.f32 %v4709, %v4812
    %4814 = vmatmul.bf16.gmra.mxu0 %v2681
    %v4815 = vpop.f32.mrf.mxu0
    %v4816 = vadd.f32 %v4712, %v4815
    %v4817 = vpop.f32.mrf.mxu0
    %v4818 = vadd.f32 %v4714, %v4817
    %4819 = vmatmul.bf16.gmra.mxu0 %v2685
    %v4820 = vpop.f32.mrf.mxu0
    %v4821 = vadd.f32 %v4717, %v4820
    %v4822 = vpop.f32.mrf.mxu0
    %v4823 = vadd.f32 %v4719, %v4822
    %4824 = vmatmul.bf16.gmra.mxu0 %v2689
    %v4825 = vpop.f32.mrf.mxu0
    %v4826 = vadd.f32 %v4722, %v4825
    %v4827 = vpop.f32.mrf.mxu0
    %v4828 = vadd.f32 %v4724, %v4827
    %4829 = vmatmul.bf16.gmra.mxu0 %v2693
    %v4830 = vpop.f32.mrf.mxu0
    %v4831 = vadd.f32 %v4727, %v4830
    %v4832 = vpop.f32.mrf.mxu0
    %v4833 = vadd.f32 %v4729, %v4832
    %4834 = vmatmul.bf16.gmra.mxu0 %v2697
    %v4835 = vpop.f32.mrf.mxu0
    %v4836 = vadd.f32 %v4732, %v4835
    %v4837 = vpop.f32.mrf.mxu0
    %v4838 = vadd.f32 %v4734, %v4837
    %4839 = vmatmul.bf16.gmra.mxu0 %v2701
    %v4840 = vpop.f32.mrf.mxu0
    %v4841 = vadd.f32 %v4737, %v4840
    %v4842 = vpop.f32.mrf.mxu0
    %v4843 = vadd.f32 %v4739, %v4842
    %4844 = vmatmul.bf16.gmra.mxu0 %v2705
    %v4845 = vpop.f32.mrf.mxu0
    %v4846 = vadd.f32 %v4742, %v4845
    %v4847 = vpop.f32.mrf.mxu0
    %v4848 = vadd.f32 %v4744, %v4847
    %4849 = vmatmul.bf16.gmra.mxu0 %v2709
    %v4850 = vpop.f32.mrf.mxu0
    %v4851 = vadd.f32 %v4747, %v4850
    %v4852 = vpop.f32.mrf.mxu0
    %v4853 = vadd.f32 %v4749, %v4852
    %4854 = vmatmul.bf16.gmra.mxu0 %v2713
    %v4855 = vpop.f32.mrf.mxu0
    %v4856 = vadd.f32 %v4752, %v4855
    %v4857 = vpop.f32.mrf.mxu0
    %v4858 = vadd.f32 %v4754, %v4857
    %4859 = vmatmul.bf16.gmra.mxu0 %v2717
    %v4860 = vpop.f32.mrf.mxu0
    %v4861 = vadd.f32 %v4757, %v4860
    %v4862 = vpop.f32.mrf.mxu0
    %v4863 = vadd.f32 %v4759, %v4862
    %4864 = vmatmul.bf16.gmra.mxu0 %v2721
    %v4865 = vpop.f32.mrf.mxu0
    %v4866 = vadd.f32 %v4762, %v4865
    %v4867 = vpop.f32.mrf.mxu0
    %v4868 = vadd.f32 %v4764, %v4867
    %4869 = vmatmul.bf16.gmra.mxu0 %v2725
    %v4870 = vpop.f32.mrf.mxu0
    %v4871 = vadd.f32 %v4767, %v4870
    %v4872 = vpop.f32.mrf.mxu0
    %v4873 = vadd.f32 %v4769, %v4872
    %4874 = vmatmul.bf16.gmra.mxu0 %v2729
    %v4875 = vpop.f32.mrf.mxu0
    %v4876 = vadd.f32 %v4772, %v4875
    %v4877 = vpop.f32.mrf.mxu0
    %v4878 = vadd.f32 %v4774, %v4877
    %4879 = vmatmul.bf16.gmra.mxu0 %v2733
    %v4880 = vpop.f32.mrf.mxu0
    %v4881 = vadd.f32 %v4777, %v4880
    %v4882 = vpop.f32.mrf.mxu0
    %v4883 = vadd.f32 %v4779, %v4882
    %4884 = vmatmul.bf16.gmra.mxu0 %v2737
    %v4885 = vpop.f32.mrf.mxu0
    %v4886 = vadd.f32 %v4782, %v4885
    %v4887 = vpop.f32.mrf.mxu0
    %v4888 = vadd.f32 %v4784, %v4887
    %4889 = vmatmul.bf16.gmra.mxu0 %v2741
    %v4890 = vpop.f32.mrf.mxu0
    %v4891 = vadd.f32 %v4787, %v4890
    %v4892 = vpop.f32.mrf.mxu0
    %v4893 = vadd.f32 %v4789, %v4892
    %4894 = vdwg.mxu0
    %4895 = vmatpush.bf16.msra.mxu0 %v3937
    %4896 = vmatpush.bf16.msra.mxu0 %v3930
    %4897 = vmatpush.bf16.msra.mxu0 %v3923
    %4898 = vmatpush.bf16.msra.mxu0 %v3916
    %4899 = vmatpush.bf16.msra.mxu0 %v3909
    %4900 = vmatpush.bf16.msra.mxu0 %v3902
    %4901 = vmatpush.bf16.msra.mxu0 %v3895
    %4902 = vmatpush.bf16.msra.mxu0 %v3888
    %4903 = vmatmul.bf16.gmra.mxu0 %v2670
    %v4904 = vpop.f32.mrf.mxu0
    %v4905 = vadd.f32 %v4801, %v4904
    %v4906 = vpop.f32.mrf.mxu0
    %v4907 = vadd.f32 %v4803, %v4906
    %4908 = vmatmul.bf16.gmra.mxu0 %v2674
    %v4909 = vpop.f32.mrf.mxu0
    %v4910 = vadd.f32 %v4806, %v4909
    %v4911 = vpop.f32.mrf.mxu0
    %v4912 = vadd.f32 %v4808, %v4911
    %4913 = vmatmul.bf16.gmra.mxu0 %v2678
    %v4914 = vpop.f32.mrf.mxu0
    %v4915 = vadd.f32 %v4811, %v4914
    %v4916 = vpop.f32.mrf.mxu0
    %v4917 = vadd.f32 %v4813, %v4916
    %4918 = vmatmul.bf16.gmra.mxu0 %v2682
    %v4919 = vpop.f32.mrf.mxu0
    %v4920 = vadd.f32 %v4816, %v4919
    %v4921 = vpop.f32.mrf.mxu0
    %v4922 = vadd.f32 %v4818, %v4921
    %4923 = vmatmul.bf16.gmra.mxu0 %v2686
    %v4924 = vpop.f32.mrf.mxu0
    %v4925 = vadd.f32 %v4821, %v4924
    %v4926 = vpop.f32.mrf.mxu0
    %v4927 = vadd.f32 %v4823, %v4926
    %4928 = vmatmul.bf16.gmra.mxu0 %v2690
    %v4929 = vpop.f32.mrf.mxu0
    %v4930 = vadd.f32 %v4826, %v4929
    %v4931 = vpop.f32.mrf.mxu0
    %v4932 = vadd.f32 %v4828, %v4931
    %4933 = vmatmul.bf16.gmra.mxu0 %v2694
    %v4934 = vpop.f32.mrf.mxu0
    %v4935 = vadd.f32 %v4831, %v4934
    %v4936 = vpop.f32.mrf.mxu0
    %v4937 = vadd.f32 %v4833, %v4936
    %4938 = vmatmul.bf16.gmra.mxu0 %v2698
    %v4939 = vpop.f32.mrf.mxu0
    %v4940 = vadd.f32 %v4836, %v4939
    %v4941 = vpop.f32.mrf.mxu0
    %v4942 = vadd.f32 %v4838, %v4941
    %4943 = vmatmul.bf16.gmra.mxu0 %v2702
    %v4944 = vpop.f32.mrf.mxu0
    %v4945 = vadd.f32 %v4841, %v4944
    %v4946 = vpop.f32.mrf.mxu0
    %v4947 = vadd.f32 %v4843, %v4946
    %4948 = vmatmul.bf16.gmra.mxu0 %v2706
    %v4949 = vpop.f32.mrf.mxu0
    %v4950 = vadd.f32 %v4846, %v4949
    %v4951 = vpop.f32.mrf.mxu0
    %v4952 = vadd.f32 %v4848, %v4951
    %4953 = vmatmul.bf16.gmra.mxu0 %v2710
    %v4954 = vpop.f32.mrf.mxu0
    %v4955 = vadd.f32 %v4851, %v4954
    %v4956 = vpop.f32.mrf.mxu0
    %v4957 = vadd.f32 %v4853, %v4956
    %4958 = vmatmul.bf16.gmra.mxu0 %v2714
    %v4959 = vpop.f32.mrf.mxu0
    %v4960 = vadd.f32 %v4856, %v4959
    %v4961 = vpop.f32.mrf.mxu0
    %v4962 = vadd.f32 %v4858, %v4961
    %4963 = vmatmul.bf16.gmra.mxu0 %v2718
    %v4964 = vpop.f32.mrf.mxu0
    %v4965 = vadd.f32 %v4861, %v4964
    %v4966 = vpop.f32.mrf.mxu0
    %v4967 = vadd.f32 %v4863, %v4966
    %4968 = vmatmul.bf16.gmra.mxu0 %v2722
    %v4969 = vpop.f32.mrf.mxu0
    %v4970 = vadd.f32 %v4866, %v4969
    %v4971 = vpop.f32.mrf.mxu0
    %v4972 = vadd.f32 %v4868, %v4971
    %4973 = vmatmul.bf16.gmra.mxu0 %v2726
    %v4974 = vpop.f32.mrf.mxu0
    %v4975 = vadd.f32 %v4871, %v4974
    %v4976 = vpop.f32.mrf.mxu0
    %v4977 = vadd.f32 %v4873, %v4976
    %4978 = vmatmul.bf16.gmra.mxu0 %v2730
    %v4979 = vpop.f32.mrf.mxu0
    %v4980 = vadd.f32 %v4876, %v4979
    %v4981 = vpop.f32.mrf.mxu0
    %v4982 = vadd.f32 %v4878, %v4981
    %4983 = vmatmul.bf16.gmra.mxu0 %v2734
    %v4984 = vpop.f32.mrf.mxu0
    %v4985 = vadd.f32 %v4881, %v4984
    %v4986 = vpop.f32.mrf.mxu0
    %v4987 = vadd.f32 %v4883, %v4986
    %4988 = vmatmul.bf16.gmra.mxu0 %v2738
    %v4989 = vpop.f32.mrf.mxu0
    %v4990 = vadd.f32 %v4886, %v4989
    %v4991 = vpop.f32.mrf.mxu0
    %v4992 = vadd.f32 %v4888, %v4991
    %4993 = vmatmul.bf16.gmra.mxu0 %v2742
    %v4994 = vpop.f32.mrf.mxu0
    %v4995 = vadd.f32 %v4891, %v4994
    %v4996 = vpop.f32.mrf.mxu0
    %v4997 = vadd.f32 %v4893, %v4996
    %4998 = vdwg.mxu0
    %4999 = vmatpush.bf16.msra.mxu0 %v3770
    %5000 = vmatpush.bf16.msra.mxu0 %v3763
    %5001 = vmatpush.bf16.msra.mxu0 %v3756
    %5002 = vmatpush.bf16.msra.mxu0 %v3749
    %5003 = vmatpush.bf16.msra.mxu0 %v3742
    %5004 = vmatpush.bf16.msra.mxu0 %v3735
    %5005 = vmatpush.bf16.msra.mxu0 %v3728
    %5006 = vmatpush.bf16.msra.mxu0 %v3721
    %5007 = vmatmul.bf16.gmra.mxu0 %v2667
    %v5008 = vpop.f32.mrf.mxu0
    %v5009 = vadd.f32 %v3003, %v5008
    %v5010 = vpop.f32.mrf.mxu0
    %v5011 = vadd.f32 %v3003, %v5010
    %5012 = vmatmul.bf16.gmra.mxu0 %v2671
    %v5013 = vpop.f32.mrf.mxu0
    %v5014 = vadd.f32 %v3003, %v5013
    %v5015 = vpop.f32.mrf.mxu0
    %v5016 = vadd.f32 %v3003, %v5015
    %5017 = vmatmul.bf16.gmra.mxu0 %v2675
    %v5018 = vpop.f32.mrf.mxu0
    %v5019 = vadd.f32 %v3003, %v5018
    %v5020 = vpop.f32.mrf.mxu0
    %v5021 = vadd.f32 %v3003, %v5020
    %5022 = vmatmul.bf16.gmra.mxu0 %v2679
    %v5023 = vpop.f32.mrf.mxu0
    %v5024 = vadd.f32 %v3003, %v5023
    %v5025 = vpop.f32.mrf.mxu0
    %v5026 = vadd.f32 %v3003, %v5025
    %5027 = vmatmul.bf16.gmra.mxu0 %v2683
    %v5028 = vpop.f32.mrf.mxu0
    %v5029 = vadd.f32 %v3003, %v5028
    %v5030 = vpop.f32.mrf.mxu0
    %v5031 = vadd.f32 %v3003, %v5030
    %5032 = vmatmul.bf16.gmra.mxu0 %v2687
    %v5033 = vpop.f32.mrf.mxu0
    %v5034 = vadd.f32 %v3003, %v5033
    %v5035 = vpop.f32.mrf.mxu0
    %v5036 = vadd.f32 %v3003, %v5035
    %5037 = vmatmul.bf16.gmra.mxu0 %v2691
    %v5038 = vpop.f32.mrf.mxu0
    %v5039 = vadd.f32 %v3003, %v5038
    %v5040 = vpop.f32.mrf.mxu0
    %v5041 = vadd.f32 %v3003, %v5040
    %5042 = vmatmul.bf16.gmra.mxu0 %v2695
    %v5043 = vpop.f32.mrf.mxu0
    %v5044 = vadd.f32 %v3003, %v5043
    %v5045 = vpop.f32.mrf.mxu0
    %v5046 = vadd.f32 %v3003, %v5045
    %5047 = vmatmul.bf16.gmra.mxu0 %v2699
    %v5048 = vpop.f32.mrf.mxu0
    %v5049 = vadd.f32 %v3003, %v5048
    %v5050 = vpop.f32.mrf.mxu0
    %v5051 = vadd.f32 %v3003, %v5050
    %5052 = vmatmul.bf16.gmra.mxu0 %v2703
    %v5053 = vpop.f32.mrf.mxu0
    %v5054 = vadd.f32 %v3003, %v5053
    %v5055 = vpop.f32.mrf.mxu0
    %v5056 = vadd.f32 %v3003, %v5055
    %5057 = vmatmul.bf16.gmra.mxu0 %v2707
    %v5058 = vpop.f32.mrf.mxu0
    %v5059 = vadd.f32 %v3003, %v5058
    %v5060 = vpop.f32.mrf.mxu0
    %v5061 = vadd.f32 %v3003, %v5060
    %5062 = vmatmul.bf16.gmra.mxu0 %v2711
    %v5063 = vpop.f32.mrf.mxu0
    %v5064 = vadd.f32 %v3003, %v5063
    %v5065 = vpop.f32.mrf.mxu0
    %v5066 = vadd.f32 %v3003, %v5065
    %5067 = vmatmul.bf16.gmra.mxu0 %v2715
    %v5068 = vpop.f32.mrf.mxu0
    %v5069 = vadd.f32 %v3003, %v5068
    %v5070 = vpop.f32.mrf.mxu0
    %v5071 = vadd.f32 %v3003, %v5070
    %5072 = vmatmul.bf16.gmra.mxu0 %v2719
    %v5073 = vpop.f32.mrf.mxu0
    %v5074 = vadd.f32 %v3003, %v5073
    %v5075 = vpop.f32.mrf.mxu0
    %v5076 = vadd.f32 %v3003, %v5075
    %5077 = vmatmul.bf16.gmra.mxu0 %v2723
    %v5078 = vpop.f32.mrf.mxu0
    %v5079 = vadd.f32 %v3003, %v5078
    %v5080 = vpop.f32.mrf.mxu0
    %v5081 = vadd.f32 %v3003, %v5080
    %5082 = vmatmul.bf16.gmra.mxu0 %v2727
    %v5083 = vpop.f32.mrf.mxu0
    %v5084 = vadd.f32 %v3003, %v5083
    %v5085 = vpop.f32.mrf.mxu0
    %v5086 = vadd.f32 %v3003, %v5085
    %5087 = vmatmul.bf16.gmra.mxu0 %v2731
    %v5088 = vpop.f32.mrf.mxu0
    %v5089 = vadd.f32 %v3003, %v5088
    %v5090 = vpop.f32.mrf.mxu0
    %v5091 = vadd.f32 %v3003, %v5090
    %5092 = vmatmul.bf16.gmra.mxu0 %v2735
    %v5093 = vpop.f32.mrf.mxu0
    %v5094 = vadd.f32 %v3003, %v5093
    %v5095 = vpop.f32.mrf.mxu0
    %v5096 = vadd.f32 %v3003, %v5095
    %5097 = vmatmul.bf16.gmra.mxu0 %v2739
    %v5098 = vpop.f32.mrf.mxu0
    %v5099 = vadd.f32 %v3003, %v5098
    %v5100 = vpop.f32.mrf.mxu0
    %v5101 = vadd.f32 %v3003, %v5100
    %5102 = vdwg.mxu0
    %5103 = vmatpush.bf16.msra.mxu0 %v3826
    %5104 = vmatpush.bf16.msra.mxu0 %v3819
    %5105 = vmatpush.bf16.msra.mxu0 %v3812
    %5106 = vmatpush.bf16.msra.mxu0 %v3805
    %5107 = vmatpush.bf16.msra.mxu0 %v3798
    %5108 = vmatpush.bf16.msra.mxu0 %v3791
    %5109 = vmatpush.bf16.msra.mxu0 %v3784
    %5110 = vmatpush.bf16.msra.mxu0 %v3777
    %5111 = vmatmul.bf16.gmra.mxu0 %v2668
    %v5112 = vpop.f32.mrf.mxu0
    %v5113 = vadd.f32 %v5009, %v5112
    %v5114 = vpop.f32.mrf.mxu0
    %v5115 = vadd.f32 %v5011, %v5114
    %5116 = vmatmul.bf16.gmra.mxu0 %v2672
    %v5117 = vpop.f32.mrf.mxu0
    %v5118 = vadd.f32 %v5014, %v5117
    %v5119 = vpop.f32.mrf.mxu0
    %v5120 = vadd.f32 %v5016, %v5119
    %5121 = vmatmul.bf16.gmra.mxu0 %v2676
    %v5122 = vpop.f32.mrf.mxu0
    %v5123 = vadd.f32 %v5019, %v5122
    %v5124 = vpop.f32.mrf.mxu0
    %v5125 = vadd.f32 %v5021, %v5124
    %5126 = vmatmul.bf16.gmra.mxu0 %v2680
    %v5127 = vpop.f32.mrf.mxu0
    %v5128 = vadd.f32 %v5024, %v5127
    %v5129 = vpop.f32.mrf.mxu0
    %v5130 = vadd.f32 %v5026, %v5129
    %5131 = vmatmul.bf16.gmra.mxu0 %v2684
    %v5132 = vpop.f32.mrf.mxu0
    %v5133 = vadd.f32 %v5029, %v5132
    %v5134 = vpop.f32.mrf.mxu0
    %v5135 = vadd.f32 %v5031, %v5134
    %5136 = vmatmul.bf16.gmra.mxu0 %v2688
    %v5137 = vpop.f32.mrf.mxu0
    %v5138 = vadd.f32 %v5034, %v5137
    %v5139 = vpop.f32.mrf.mxu0
    %v5140 = vadd.f32 %v5036, %v5139
    %5141 = vmatmul.bf16.gmra.mxu0 %v2692
    %v5142 = vpop.f32.mrf.mxu0
    %v5143 = vadd.f32 %v5039, %v5142
    %v5144 = vpop.f32.mrf.mxu0
    %v5145 = vadd.f32 %v5041, %v5144
    %5146 = vmatmul.bf16.gmra.mxu0 %v2696
    %v5147 = vpop.f32.mrf.mxu0
    %v5148 = vadd.f32 %v5044, %v5147
    %v5149 = vpop.f32.mrf.mxu0
    %v5150 = vadd.f32 %v5046, %v5149
    %5151 = vmatmul.bf16.gmra.mxu0 %v2700
    %v5152 = vpop.f32.mrf.mxu0
    %v5153 = vadd.f32 %v5049, %v5152
    %v5154 = vpop.f32.mrf.mxu0
    %v5155 = vadd.f32 %v5051, %v5154
    %5156 = vmatmul.bf16.gmra.mxu0 %v2704
    %v5157 = vpop.f32.mrf.mxu0
    %v5158 = vadd.f32 %v5054, %v5157
    %v5159 = vpop.f32.mrf.mxu0
    %v5160 = vadd.f32 %v5056, %v5159
    %5161 = vmatmul.bf16.gmra.mxu0 %v2708
    %v5162 = vpop.f32.mrf.mxu0
    %v5163 = vadd.f32 %v5059, %v5162
    %v5164 = vpop.f32.mrf.mxu0
    %v5165 = vadd.f32 %v5061, %v5164
    %5166 = vmatmul.bf16.gmra.mxu0 %v2712
    %v5167 = vpop.f32.mrf.mxu0
    %v5168 = vadd.f32 %v5064, %v5167
    %v5169 = vpop.f32.mrf.mxu0
    %v5170 = vadd.f32 %v5066, %v5169
    %5171 = vmatmul.bf16.gmra.mxu0 %v2716
    %v5172 = vpop.f32.mrf.mxu0
    %v5173 = vadd.f32 %v5069, %v5172
    %v5174 = vpop.f32.mrf.mxu0
    %v5175 = vadd.f32 %v5071, %v5174
    %5176 = vmatmul.bf16.gmra.mxu0 %v2720
    %v5177 = vpop.f32.mrf.mxu0
    %v5178 = vadd.f32 %v5074, %v5177
    %v5179 = vpop.f32.mrf.mxu0
    %v5180 = vadd.f32 %v5076, %v5179
    %5181 = vmatmul.bf16.gmra.mxu0 %v2724
    %v5182 = vpop.f32.mrf.mxu0
    %v5183 = vadd.f32 %v5079, %v5182
    %v5184 = vpop.f32.mrf.mxu0
    %v5185 = vadd.f32 %v5081, %v5184
    %5186 = vmatmul.bf16.gmra.mxu0 %v2728
    %v5187 = vpop.f32.mrf.mxu0
    %v5188 = vadd.f32 %v5084, %v5187
    %v5189 = vpop.f32.mrf.mxu0
    %v5190 = vadd.f32 %v5086, %v5189
    %5191 = vmatmul.bf16.gmra.mxu0 %v2732
    %v5192 = vpop.f32.mrf.mxu0
    %v5193 = vadd.f32 %v5089, %v5192
    %v5194 = vpop.f32.mrf.mxu0
    %v5195 = vadd.f32 %v5091, %v5194
    %5196 = vmatmul.bf16.gmra.mxu0 %v2736
    %v5197 = vpop.f32.mrf.mxu0
    %v5198 = vadd.f32 %v5094, %v5197
    %v5199 = vpop.f32.mrf.mxu0
    %v5200 = vadd.f32 %v5096, %v5199
    %5201 = vmatmul.bf16.gmra.mxu0 %v2740
    %v5202 = vpop.f32.mrf.mxu0
    %v5203 = vadd.f32 %v5099, %v5202
    %v5204 = vpop.f32.mrf.mxu0
    %v5205 = vadd.f32 %v5101, %v5204
    %5206 = vdwg.mxu0
    %5207 = vmatpush.bf16.msra.mxu0 %v3882
    %5208 = vmatpush.bf16.msra.mxu0 %v3875
    %5209 = vmatpush.bf16.msra.mxu0 %v3868
    %5210 = vmatpush.bf16.msra.mxu0 %v3861
    %5211 = vmatpush.bf16.msra.mxu0 %v3854
    %5212 = vmatpush.bf16.msra.mxu0 %v3847
    %5213 = vmatpush.bf16.msra.mxu0 %v3840
    %5214 = vmatpush.bf16.msra.mxu0 %v3833
    %5215 = vmatmul.bf16.gmra.mxu0 %v2669
    %v5216 = vpop.f32.mrf.mxu0
    %v5217 = vadd.f32 %v5113, %v5216
    %v5218 = vpop.f32.mrf.mxu0
    %v5219 = vadd.f32 %v5115, %v5218
    %5220 = vmatmul.bf16.gmra.mxu0 %v2673
    %v5221 = vpop.f32.mrf.mxu0
    %v5222 = vadd.f32 %v5118, %v5221
    %v5223 = vpop.f32.mrf.mxu0
    %v5224 = vadd.f32 %v5120, %v5223
    %5225 = vmatmul.bf16.gmra.mxu0 %v2677
    %v5226 = vpop.f32.mrf.mxu0
    %v5227 = vadd.f32 %v5123, %v5226
    %v5228 = vpop.f32.mrf.mxu0
    %v5229 = vadd.f32 %v5125, %v5228
    %5230 = vmatmul.bf16.gmra.mxu0 %v2681
    %v5231 = vpop.f32.mrf.mxu0
    %v5232 = vadd.f32 %v5128, %v5231
    %v5233 = vpop.f32.mrf.mxu0
    %v5234 = vadd.f32 %v5130, %v5233
    %5235 = vmatmul.bf16.gmra.mxu0 %v2685
    %v5236 = vpop.f32.mrf.mxu0
    %v5237 = vadd.f32 %v5133, %v5236
    %v5238 = vpop.f32.mrf.mxu0
    %v5239 = vadd.f32 %v5135, %v5238
    %5240 = vmatmul.bf16.gmra.mxu0 %v2689
    %v5241 = vpop.f32.mrf.mxu0
    %v5242 = vadd.f32 %v5138, %v5241
    %v5243 = vpop.f32.mrf.mxu0
    %v5244 = vadd.f32 %v5140, %v5243
    %5245 = vmatmul.bf16.gmra.mxu0 %v2693
    %v5246 = vpop.f32.mrf.mxu0
    %v5247 = vadd.f32 %v5143, %v5246
    %v5248 = vpop.f32.mrf.mxu0
    %v5249 = vadd.f32 %v5145, %v5248
    %5250 = vmatmul.bf16.gmra.mxu0 %v2697
    %v5251 = vpop.f32.mrf.mxu0
    %v5252 = vadd.f32 %v5148, %v5251
    %v5253 = vpop.f32.mrf.mxu0
    %v5254 = vadd.f32 %v5150, %v5253
    %5255 = vmatmul.bf16.gmra.mxu0 %v2701
    %v5256 = vpop.f32.mrf.mxu0
    %v5257 = vadd.f32 %v5153, %v5256
    %v5258 = vpop.f32.mrf.mxu0
    %v5259 = vadd.f32 %v5155, %v5258
    %5260 = vmatmul.bf16.gmra.mxu0 %v2705
    %v5261 = vpop.f32.mrf.mxu0
    %v5262 = vadd.f32 %v5158, %v5261
    %v5263 = vpop.f32.mrf.mxu0
    %v5264 = vadd.f32 %v5160, %v5263
    %5265 = vmatmul.bf16.gmra.mxu0 %v2709
    %v5266 = vpop.f32.mrf.mxu0
    %v5267 = vadd.f32 %v5163, %v5266
    %v5268 = vpop.f32.mrf.mxu0
    %v5269 = vadd.f32 %v5165, %v5268
    %5270 = vmatmul.bf16.gmra.mxu0 %v2713
    %v5271 = vpop.f32.mrf.mxu0
    %v5272 = vadd.f32 %v5168, %v5271
    %v5273 = vpop.f32.mrf.mxu0
    %v5274 = vadd.f32 %v5170, %v5273
    %5275 = vmatmul.bf16.gmra.mxu0 %v2717
    %v5276 = vpop.f32.mrf.mxu0
    %v5277 = vadd.f32 %v5173, %v5276
    %v5278 = vpop.f32.mrf.mxu0
    %v5279 = vadd.f32 %v5175, %v5278
    %5280 = vmatmul.bf16.gmra.mxu0 %v2721
    %v5281 = vpop.f32.mrf.mxu0
    %v5282 = vadd.f32 %v5178, %v5281
    %v5283 = vpop.f32.mrf.mxu0
    %v5284 = vadd.f32 %v5180, %v5283
    %5285 = vmatmul.bf16.gmra.mxu0 %v2725
    %v5286 = vpop.f32.mrf.mxu0
    %v5287 = vadd.f32 %v5183, %v5286
    %v5288 = vpop.f32.mrf.mxu0
    %v5289 = vadd.f32 %v5185, %v5288
    %5290 = vmatmul.bf16.gmra.mxu0 %v2729
    %v5291 = vpop.f32.mrf.mxu0
    %v5292 = vadd.f32 %v5188, %v5291
    %v5293 = vpop.f32.mrf.mxu0
    %v5294 = vadd.f32 %v5190, %v5293
    %5295 = vmatmul.bf16.gmra.mxu0 %v2733
    %v5296 = vpop.f32.mrf.mxu0
    %v5297 = vadd.f32 %v5193, %v5296
    %v5298 = vpop.f32.mrf.mxu0
    %v5299 = vadd.f32 %v5195, %v5298
    %5300 = vmatmul.bf16.gmra.mxu0 %v2737
    %v5301 = vpop.f32.mrf.mxu0
    %v5302 = vadd.f32 %v5198, %v5301
    %v5303 = vpop.f32.mrf.mxu0
    %v5304 = vadd.f32 %v5200, %v5303
    %5305 = vmatmul.bf16.gmra.mxu0 %v2741
    %v5306 = vpop.f32.mrf.mxu0
    %v5307 = vadd.f32 %v5203, %v5306
    %v5308 = vpop.f32.mrf.mxu0
    %v5309 = vadd.f32 %v5205, %v5308
    %5310 = vdwg.mxu0
    %5311 = vmatpush.bf16.msra.mxu0 %v3938
    %5312 = vmatpush.bf16.msra.mxu0 %v3931
    %5313 = vmatpush.bf16.msra.mxu0 %v3924
    %5314 = vmatpush.bf16.msra.mxu0 %v3917
    %5315 = vmatpush.bf16.msra.mxu0 %v3910
    %5316 = vmatpush.bf16.msra.mxu0 %v3903
    %5317 = vmatpush.bf16.msra.mxu0 %v3896
    %5318 = vmatpush.bf16.msra.mxu0 %v3889
    %5319 = vmatmul.bf16.gmra.mxu0 %v2670
    %v5320 = vpop.f32.mrf.mxu0
    %v5321 = vadd.f32 %v5217, %v5320
    %v5322 = vpop.f32.mrf.mxu0
    %v5323 = vadd.f32 %v5219, %v5322
    %5324 = vmatmul.bf16.gmra.mxu0 %v2674
    %v5325 = vpop.f32.mrf.mxu0
    %v5326 = vadd.f32 %v5222, %v5325
    %v5327 = vpop.f32.mrf.mxu0
    %v5328 = vadd.f32 %v5224, %v5327
    %5329 = vmatmul.bf16.gmra.mxu0 %v2678
    %v5330 = vpop.f32.mrf.mxu0
    %v5331 = vadd.f32 %v5227, %v5330
    %v5332 = vpop.f32.mrf.mxu0
    %v5333 = vadd.f32 %v5229, %v5332
    %5334 = vmatmul.bf16.gmra.mxu0 %v2682
    %v5335 = vpop.f32.mrf.mxu0
    %v5336 = vadd.f32 %v5232, %v5335
    %v5337 = vpop.f32.mrf.mxu0
    %v5338 = vadd.f32 %v5234, %v5337
    %5339 = vmatmul.bf16.gmra.mxu0 %v2686
    %v5340 = vpop.f32.mrf.mxu0
    %v5341 = vadd.f32 %v5237, %v5340
    %v5342 = vpop.f32.mrf.mxu0
    %v5343 = vadd.f32 %v5239, %v5342
    %5344 = vmatmul.bf16.gmra.mxu0 %v2690
    %v5345 = vpop.f32.mrf.mxu0
    %v5346 = vadd.f32 %v5242, %v5345
    %v5347 = vpop.f32.mrf.mxu0
    %v5348 = vadd.f32 %v5244, %v5347
    %5349 = vmatmul.bf16.gmra.mxu0 %v2694
    %v5350 = vpop.f32.mrf.mxu0
    %v5351 = vadd.f32 %v5247, %v5350
    %v5352 = vpop.f32.mrf.mxu0
    %v5353 = vadd.f32 %v5249, %v5352
    %5354 = vmatmul.bf16.gmra.mxu0 %v2698
    %v5355 = vpop.f32.mrf.mxu0
    %v5356 = vadd.f32 %v5252, %v5355
    %v5357 = vpop.f32.mrf.mxu0
    %v5358 = vadd.f32 %v5254, %v5357
    %5359 = vmatmul.bf16.gmra.mxu0 %v2702
    %v5360 = vpop.f32.mrf.mxu0
    %v5361 = vadd.f32 %v5257, %v5360
    %v5362 = vpop.f32.mrf.mxu0
    %v5363 = vadd.f32 %v5259, %v5362
    %5364 = vmatmul.bf16.gmra.mxu0 %v2706
    %v5365 = vpop.f32.mrf.mxu0
    %v5366 = vadd.f32 %v5262, %v5365
    %v5367 = vpop.f32.mrf.mxu0
    %v5368 = vadd.f32 %v5264, %v5367
    %5369 = vmatmul.bf16.gmra.mxu0 %v2710
    %v5370 = vpop.f32.mrf.mxu0
    %v5371 = vadd.f32 %v5267, %v5370
    %v5372 = vpop.f32.mrf.mxu0
    %v5373 = vadd.f32 %v5269, %v5372
    %5374 = vmatmul.bf16.gmra.mxu0 %v2714
    %v5375 = vpop.f32.mrf.mxu0
    %v5376 = vadd.f32 %v5272, %v5375
    %v5377 = vpop.f32.mrf.mxu0
    %v5378 = vadd.f32 %v5274, %v5377
    %5379 = vmatmul.bf16.gmra.mxu0 %v2718
    %v5380 = vpop.f32.mrf.mxu0
    %v5381 = vadd.f32 %v5277, %v5380
    %v5382 = vpop.f32.mrf.mxu0
    %v5383 = vadd.f32 %v5279, %v5382
    %5384 = vmatmul.bf16.gmra.mxu0 %v2722
    %v5385 = vpop.f32.mrf.mxu0
    %v5386 = vadd.f32 %v5282, %v5385
    %v5387 = vpop.f32.mrf.mxu0
    %v5388 = vadd.f32 %v5284, %v5387
    %5389 = vmatmul.bf16.gmra.mxu0 %v2726
    %v5390 = vpop.f32.mrf.mxu0
    %v5391 = vadd.f32 %v5287, %v5390
    %v5392 = vpop.f32.mrf.mxu0
    %v5393 = vadd.f32 %v5289, %v5392
    %5394 = vmatmul.bf16.gmra.mxu0 %v2730
    %v5395 = vpop.f32.mrf.mxu0
    %v5396 = vadd.f32 %v5292, %v5395
    %v5397 = vpop.f32.mrf.mxu0
    %v5398 = vadd.f32 %v5294, %v5397
    %5399 = vmatmul.bf16.gmra.mxu0 %v2734
    %v5400 = vpop.f32.mrf.mxu0
    %v5401 = vadd.f32 %v5297, %v5400
    %v5402 = vpop.f32.mrf.mxu0
    %v5403 = vadd.f32 %v5299, %v5402
    %5404 = vmatmul.bf16.gmra.mxu0 %v2738
    %v5405 = vpop.f32.mrf.mxu0
    %v5406 = vadd.f32 %v5302, %v5405
    %v5407 = vpop.f32.mrf.mxu0
    %v5408 = vadd.f32 %v5304, %v5407
    %5409 = vmatmul.bf16.gmra.mxu0 %v2742
    %v5410 = vpop.f32.mrf.mxu0
    %v5411 = vadd.f32 %v5307, %v5410
    %v5412 = vpop.f32.mrf.mxu0
    %v5413 = vadd.f32 %v5309, %v5412
    %5414 = vdwg.mxu0
    %5415 = vmatpush.bf16.msra.mxu0 %v3771
    %5416 = vmatpush.bf16.msra.mxu0 %v3764
    %5417 = vmatpush.bf16.msra.mxu0 %v3757
    %5418 = vmatpush.bf16.msra.mxu0 %v3750
    %5419 = vmatpush.bf16.msra.mxu0 %v3743
    %5420 = vmatpush.bf16.msra.mxu0 %v3736
    %5421 = vmatpush.bf16.msra.mxu0 %v3729
    %5422 = vmatpush.bf16.msra.mxu0 %v3722
    %5423 = vmatmul.bf16.gmra.mxu0 %v2667
    %v5424 = vpop.f32.mrf.mxu0
    %v5425 = vadd.f32 %v3004, %v5424
    %v5426 = vpop.f32.mrf.mxu0
    %v5427 = vadd.f32 %v3004, %v5426
    %5428 = vmatmul.bf16.gmra.mxu0 %v2671
    %v5429 = vpop.f32.mrf.mxu0
    %v5430 = vadd.f32 %v3004, %v5429
    %v5431 = vpop.f32.mrf.mxu0
    %v5432 = vadd.f32 %v3004, %v5431
    %5433 = vmatmul.bf16.gmra.mxu0 %v2675
    %v5434 = vpop.f32.mrf.mxu0
    %v5435 = vadd.f32 %v3004, %v5434
    %v5436 = vpop.f32.mrf.mxu0
    %v5437 = vadd.f32 %v3004, %v5436
    %5438 = vmatmul.bf16.gmra.mxu0 %v2679
    %v5439 = vpop.f32.mrf.mxu0
    %v5440 = vadd.f32 %v3004, %v5439
    %v5441 = vpop.f32.mrf.mxu0
    %v5442 = vadd.f32 %v3004, %v5441
    %5443 = vmatmul.bf16.gmra.mxu0 %v2683
    %v5444 = vpop.f32.mrf.mxu0
    %v5445 = vadd.f32 %v3004, %v5444
    %v5446 = vpop.f32.mrf.mxu0
    %v5447 = vadd.f32 %v3004, %v5446
    %5448 = vmatmul.bf16.gmra.mxu0 %v2687
    %v5449 = vpop.f32.mrf.mxu0
    %v5450 = vadd.f32 %v3004, %v5449
    %v5451 = vpop.f32.mrf.mxu0
    %v5452 = vadd.f32 %v3004, %v5451
    %5453 = vmatmul.bf16.gmra.mxu0 %v2691
    %v5454 = vpop.f32.mrf.mxu0
    %v5455 = vadd.f32 %v3004, %v5454
    %v5456 = vpop.f32.mrf.mxu0
    %v5457 = vadd.f32 %v3004, %v5456
    %5458 = vmatmul.bf16.gmra.mxu0 %v2695
    %v5459 = vpop.f32.mrf.mxu0
    %v5460 = vadd.f32 %v3004, %v5459
    %v5461 = vpop.f32.mrf.mxu0
    %v5462 = vadd.f32 %v3004, %v5461
    %5463 = vmatmul.bf16.gmra.mxu0 %v2699
    %v5464 = vpop.f32.mrf.mxu0
    %v5465 = vadd.f32 %v3004, %v5464
    %v5466 = vpop.f32.mrf.mxu0
    %v5467 = vadd.f32 %v3004, %v5466
    %5468 = vmatmul.bf16.gmra.mxu0 %v2703
    %v5469 = vpop.f32.mrf.mxu0
    %v5470 = vadd.f32 %v3004, %v5469
    %v5471 = vpop.f32.mrf.mxu0
    %v5472 = vadd.f32 %v3004, %v5471
    %5473 = vmatmul.bf16.gmra.mxu0 %v2707
    %v5474 = vpop.f32.mrf.mxu0
    %v5475 = vadd.f32 %v3004, %v5474
    %v5476 = vpop.f32.mrf.mxu0
    %v5477 = vadd.f32 %v3004, %v5476
    %5478 = vmatmul.bf16.gmra.mxu0 %v2711
    %v5479 = vpop.f32.mrf.mxu0
    %v5480 = vadd.f32 %v3004, %v5479
    %v5481 = vpop.f32.mrf.mxu0
    %v5482 = vadd.f32 %v3004, %v5481
    %5483 = vmatmul.bf16.gmra.mxu0 %v2715
    %v5484 = vpop.f32.mrf.mxu0
    %v5485 = vadd.f32 %v3004, %v5484
    %v5486 = vpop.f32.mrf.mxu0
    %v5487 = vadd.f32 %v3004, %v5486
    %5488 = vmatmul.bf16.gmra.mxu0 %v2719
    %v5489 = vpop.f32.mrf.mxu0
    %v5490 = vadd.f32 %v3004, %v5489
    %v5491 = vpop.f32.mrf.mxu0
    %v5492 = vadd.f32 %v3004, %v5491
    %5493 = vmatmul.bf16.gmra.mxu0 %v2723
    %v5494 = vpop.f32.mrf.mxu0
    %v5495 = vadd.f32 %v3004, %v5494
    %v5496 = vpop.f32.mrf.mxu0
    %v5497 = vadd.f32 %v3004, %v5496
    %5498 = vmatmul.bf16.gmra.mxu0 %v2727
    %v5499 = vpop.f32.mrf.mxu0
    %v5500 = vadd.f32 %v3004, %v5499
    %v5501 = vpop.f32.mrf.mxu0
    %v5502 = vadd.f32 %v3004, %v5501
    %5503 = vmatmul.bf16.gmra.mxu0 %v2731
    %v5504 = vpop.f32.mrf.mxu0
    %v5505 = vadd.f32 %v3004, %v5504
    %v5506 = vpop.f32.mrf.mxu0
    %v5507 = vadd.f32 %v3004, %v5506
    %5508 = vmatmul.bf16.gmra.mxu0 %v2735
    %v5509 = vpop.f32.mrf.mxu0
    %v5510 = vadd.f32 %v3004, %v5509
    %v5511 = vpop.f32.mrf.mxu0
    %v5512 = vadd.f32 %v3004, %v5511
    %5513 = vmatmul.bf16.gmra.mxu0 %v2739
    %v5514 = vpop.f32.mrf.mxu0
    %v5515 = vadd.f32 %v3004, %v5514
    %v5516 = vpop.f32.mrf.mxu0
    %v5517 = vadd.f32 %v3004, %v5516
    %5518 = vdwg.mxu0
    %5519 = vmatpush.bf16.msra.mxu0 %v3827
    %5520 = vmatpush.bf16.msra.mxu0 %v3820
    %5521 = vmatpush.bf16.msra.mxu0 %v3813
    %5522 = vmatpush.bf16.msra.mxu0 %v3806
    %5523 = vmatpush.bf16.msra.mxu0 %v3799
    %5524 = vmatpush.bf16.msra.mxu0 %v3792
    %5525 = vmatpush.bf16.msra.mxu0 %v3785
    %5526 = vmatpush.bf16.msra.mxu0 %v3778
    %5527 = vmatmul.bf16.gmra.mxu0 %v2668
    %v5528 = vpop.f32.mrf.mxu0
    %v5529 = vadd.f32 %v5425, %v5528
    %v5530 = vpop.f32.mrf.mxu0
    %v5531 = vadd.f32 %v5427, %v5530
    %5532 = vmatmul.bf16.gmra.mxu0 %v2672
    %v5533 = vpop.f32.mrf.mxu0
    %v5534 = vadd.f32 %v5430, %v5533
    %v5535 = vpop.f32.mrf.mxu0
    %v5536 = vadd.f32 %v5432, %v5535
    %5537 = vmatmul.bf16.gmra.mxu0 %v2676
    %v5538 = vpop.f32.mrf.mxu0
    %v5539 = vadd.f32 %v5435, %v5538
    %v5540 = vpop.f32.mrf.mxu0
    %v5541 = vadd.f32 %v5437, %v5540
    %5542 = vmatmul.bf16.gmra.mxu0 %v2680
    %v5543 = vpop.f32.mrf.mxu0
    %v5544 = vadd.f32 %v5440, %v5543
    %v5545 = vpop.f32.mrf.mxu0
    %v5546 = vadd.f32 %v5442, %v5545
    %5547 = vmatmul.bf16.gmra.mxu0 %v2684
    %v5548 = vpop.f32.mrf.mxu0
    %v5549 = vadd.f32 %v5445, %v5548
    %v5550 = vpop.f32.mrf.mxu0
    %v5551 = vadd.f32 %v5447, %v5550
    %5552 = vmatmul.bf16.gmra.mxu0 %v2688
    %v5553 = vpop.f32.mrf.mxu0
    %v5554 = vadd.f32 %v5450, %v5553
    %v5555 = vpop.f32.mrf.mxu0
    %v5556 = vadd.f32 %v5452, %v5555
    %5557 = vmatmul.bf16.gmra.mxu0 %v2692
    %v5558 = vpop.f32.mrf.mxu0
    %v5559 = vadd.f32 %v5455, %v5558
    %v5560 = vpop.f32.mrf.mxu0
    %v5561 = vadd.f32 %v5457, %v5560
    %5562 = vmatmul.bf16.gmra.mxu0 %v2696
    %v5563 = vpop.f32.mrf.mxu0
    %v5564 = vadd.f32 %v5460, %v5563
    %v5565 = vpop.f32.mrf.mxu0
    %v5566 = vadd.f32 %v5462, %v5565
    %5567 = vmatmul.bf16.gmra.mxu0 %v2700
    %v5568 = vpop.f32.mrf.mxu0
    %v5569 = vadd.f32 %v5465, %v5568
    %v5570 = vpop.f32.mrf.mxu0
    %v5571 = vadd.f32 %v5467, %v5570
    %5572 = vmatmul.bf16.gmra.mxu0 %v2704
    %v5573 = vpop.f32.mrf.mxu0
    %v5574 = vadd.f32 %v5470, %v5573
    %v5575 = vpop.f32.mrf.mxu0
    %v5576 = vadd.f32 %v5472, %v5575
    %5577 = vmatmul.bf16.gmra.mxu0 %v2708
    %v5578 = vpop.f32.mrf.mxu0
    %v5579 = vadd.f32 %v5475, %v5578
    %v5580 = vpop.f32.mrf.mxu0
    %v5581 = vadd.f32 %v5477, %v5580
    %5582 = vmatmul.bf16.gmra.mxu0 %v2712
    %v5583 = vpop.f32.mrf.mxu0
    %v5584 = vadd.f32 %v5480, %v5583
    %v5585 = vpop.f32.mrf.mxu0
    %v5586 = vadd.f32 %v5482, %v5585
    %5587 = vmatmul.bf16.gmra.mxu0 %v2716
    %v5588 = vpop.f32.mrf.mxu0
    %v5589 = vadd.f32 %v5485, %v5588
    %v5590 = vpop.f32.mrf.mxu0
    %v5591 = vadd.f32 %v5487, %v5590
    %5592 = vmatmul.bf16.gmra.mxu0 %v2720
    %v5593 = vpop.f32.mrf.mxu0
    %v5594 = vadd.f32 %v5490, %v5593
    %v5595 = vpop.f32.mrf.mxu0
    %v5596 = vadd.f32 %v5492, %v5595
    %5597 = vmatmul.bf16.gmra.mxu0 %v2724
    %v5598 = vpop.f32.mrf.mxu0
    %v5599 = vadd.f32 %v5495, %v5598
    %v5600 = vpop.f32.mrf.mxu0
    %v5601 = vadd.f32 %v5497, %v5600
    %5602 = vmatmul.bf16.gmra.mxu0 %v2728
    %v5603 = vpop.f32.mrf.mxu0
    %v5604 = vadd.f32 %v5500, %v5603
    %v5605 = vpop.f32.mrf.mxu0
    %v5606 = vadd.f32 %v5502, %v5605
    %5607 = vmatmul.bf16.gmra.mxu0 %v2732
    %v5608 = vpop.f32.mrf.mxu0
    %v5609 = vadd.f32 %v5505, %v5608
    %v5610 = vpop.f32.mrf.mxu0
    %v5611 = vadd.f32 %v5507, %v5610
    %5612 = vmatmul.bf16.gmra.mxu0 %v2736
    %v5613 = vpop.f32.mrf.mxu0
    %v5614 = vadd.f32 %v5510, %v5613
    %v5615 = vpop.f32.mrf.mxu0
    %v5616 = vadd.f32 %v5512, %v5615
    %5617 = vmatmul.bf16.gmra.mxu0 %v2740
    %v5618 = vpop.f32.mrf.mxu0
    %v5619 = vadd.f32 %v5515, %v5618
    %v5620 = vpop.f32.mrf.mxu0
    %v5621 = vadd.f32 %v5517, %v5620
    %5622 = vdwg.mxu0
    %5623 = vmatpush.bf16.msra.mxu0 %v3883
    %5624 = vmatpush.bf16.msra.mxu0 %v3876
    %5625 = vmatpush.bf16.msra.mxu0 %v3869
    %5626 = vmatpush.bf16.msra.mxu0 %v3862
    %5627 = vmatpush.bf16.msra.mxu0 %v3855
    %5628 = vmatpush.bf16.msra.mxu0 %v3848
    %5629 = vmatpush.bf16.msra.mxu0 %v3841
    %5630 = vmatpush.bf16.msra.mxu0 %v3834
    %5631 = vmatmul.bf16.gmra.mxu0 %v2669
    %v5632 = vpop.f32.mrf.mxu0
    %v5633 = vadd.f32 %v5529, %v5632
    %v5634 = vpop.f32.mrf.mxu0
    %v5635 = vadd.f32 %v5531, %v5634
    %5636 = vmatmul.bf16.gmra.mxu0 %v2673
    %v5637 = vpop.f32.mrf.mxu0
    %v5638 = vadd.f32 %v5534, %v5637
    %v5639 = vpop.f32.mrf.mxu0
    %v5640 = vadd.f32 %v5536, %v5639
    %5641 = vmatmul.bf16.gmra.mxu0 %v2677
    %v5642 = vpop.f32.mrf.mxu0
    %v5643 = vadd.f32 %v5539, %v5642
    %v5644 = vpop.f32.mrf.mxu0
    %v5645 = vadd.f32 %v5541, %v5644
    %5646 = vmatmul.bf16.gmra.mxu0 %v2681
    %v5647 = vpop.f32.mrf.mxu0
    %v5648 = vadd.f32 %v5544, %v5647
    %v5649 = vpop.f32.mrf.mxu0
    %v5650 = vadd.f32 %v5546, %v5649
    %5651 = vmatmul.bf16.gmra.mxu0 %v2685
    %v5652 = vpop.f32.mrf.mxu0
    %v5653 = vadd.f32 %v5549, %v5652
    %v5654 = vpop.f32.mrf.mxu0
    %v5655 = vadd.f32 %v5551, %v5654
    %5656 = vmatmul.bf16.gmra.mxu0 %v2689
    %v5657 = vpop.f32.mrf.mxu0
    %v5658 = vadd.f32 %v5554, %v5657
    %v5659 = vpop.f32.mrf.mxu0
    %v5660 = vadd.f32 %v5556, %v5659
    %5661 = vmatmul.bf16.gmra.mxu0 %v2693
    %v5662 = vpop.f32.mrf.mxu0
    %v5663 = vadd.f32 %v5559, %v5662
    %v5664 = vpop.f32.mrf.mxu0
    %v5665 = vadd.f32 %v5561, %v5664
    %5666 = vmatmul.bf16.gmra.mxu0 %v2697
    %v5667 = vpop.f32.mrf.mxu0
    %v5668 = vadd.f32 %v5564, %v5667
    %v5669 = vpop.f32.mrf.mxu0
    %v5670 = vadd.f32 %v5566, %v5669
    %5671 = vmatmul.bf16.gmra.mxu0 %v2701
    %v5672 = vpop.f32.mrf.mxu0
    %v5673 = vadd.f32 %v5569, %v5672
    %v5674 = vpop.f32.mrf.mxu0
    %v5675 = vadd.f32 %v5571, %v5674
    %5676 = vmatmul.bf16.gmra.mxu0 %v2705
    %v5677 = vpop.f32.mrf.mxu0
    %v5678 = vadd.f32 %v5574, %v5677
    %v5679 = vpop.f32.mrf.mxu0
    %v5680 = vadd.f32 %v5576, %v5679
    %5681 = vmatmul.bf16.gmra.mxu0 %v2709
    %v5682 = vpop.f32.mrf.mxu0
    %v5683 = vadd.f32 %v5579, %v5682
    %v5684 = vpop.f32.mrf.mxu0
    %v5685 = vadd.f32 %v5581, %v5684
    %5686 = vmatmul.bf16.gmra.mxu0 %v2713
    %v5687 = vpop.f32.mrf.mxu0
    %v5688 = vadd.f32 %v5584, %v5687
    %v5689 = vpop.f32.mrf.mxu0
    %v5690 = vadd.f32 %v5586, %v5689
    %5691 = vmatmul.bf16.gmra.mxu0 %v2717
    %v5692 = vpop.f32.mrf.mxu0
    %v5693 = vadd.f32 %v5589, %v5692
    %v5694 = vpop.f32.mrf.mxu0
    %v5695 = vadd.f32 %v5591, %v5694
    %5696 = vmatmul.bf16.gmra.mxu0 %v2721
    %v5697 = vpop.f32.mrf.mxu0
    %v5698 = vadd.f32 %v5594, %v5697
    %v5699 = vpop.f32.mrf.mxu0
    %v5700 = vadd.f32 %v5596, %v5699
    %5701 = vmatmul.bf16.gmra.mxu0 %v2725
    %v5702 = vpop.f32.mrf.mxu0
    %v5703 = vadd.f32 %v5599, %v5702
    %v5704 = vpop.f32.mrf.mxu0
    %v5705 = vadd.f32 %v5601, %v5704
    %5706 = vmatmul.bf16.gmra.mxu0 %v2729
    %v5707 = vpop.f32.mrf.mxu0
    %v5708 = vadd.f32 %v5604, %v5707
    %v5709 = vpop.f32.mrf.mxu0
    %v5710 = vadd.f32 %v5606, %v5709
    %5711 = vmatmul.bf16.gmra.mxu0 %v2733
    %v5712 = vpop.f32.mrf.mxu0
    %v5713 = vadd.f32 %v5609, %v5712
    %v5714 = vpop.f32.mrf.mxu0
    %v5715 = vadd.f32 %v5611, %v5714
    %5716 = vmatmul.bf16.gmra.mxu0 %v2737
    %v5717 = vpop.f32.mrf.mxu0
    %v5718 = vadd.f32 %v5614, %v5717
    %v5719 = vpop.f32.mrf.mxu0
    %v5720 = vadd.f32 %v5616, %v5719
    %5721 = vmatmul.bf16.gmra.mxu0 %v2741
    %v5722 = vpop.f32.mrf.mxu0
    %v5723 = vadd.f32 %v5619, %v5722
    %v5724 = vpop.f32.mrf.mxu0
    %v5725 = vadd.f32 %v5621, %v5724
    %5726 = vdwg.mxu0
    %5727 = vmatpush.bf16.msra.mxu0 %v3939
    %5728 = vmatpush.bf16.msra.mxu0 %v3932
    %5729 = vmatpush.bf16.msra.mxu0 %v3925
    %5730 = vmatpush.bf16.msra.mxu0 %v3918
    %5731 = vmatpush.bf16.msra.mxu0 %v3911
    %5732 = vmatpush.bf16.msra.mxu0 %v3904
    %5733 = vmatpush.bf16.msra.mxu0 %v3897
    %5734 = vmatpush.bf16.msra.mxu0 %v3890
    %5735 = vmatmul.bf16.gmra.mxu0 %v2670
    %v5736 = vpop.f32.mrf.mxu0
    %v5737 = vadd.f32 %v5633, %v5736
    %v5738 = vpop.f32.mrf.mxu0
    %v5739 = vadd.f32 %v5635, %v5738
    %5740 = vmatmul.bf16.gmra.mxu0 %v2674
    %v5741 = vpop.f32.mrf.mxu0
    %v5742 = vadd.f32 %v5638, %v5741
    %v5743 = vpop.f32.mrf.mxu0
    %v5744 = vadd.f32 %v5640, %v5743
    %5745 = vmatmul.bf16.gmra.mxu0 %v2678
    %v5746 = vpop.f32.mrf.mxu0
    %v5747 = vadd.f32 %v5643, %v5746
    %v5748 = vpop.f32.mrf.mxu0
    %v5749 = vadd.f32 %v5645, %v5748
    %5750 = vmatmul.bf16.gmra.mxu0 %v2682
    %v5751 = vpop.f32.mrf.mxu0
    %v5752 = vadd.f32 %v5648, %v5751
    %v5753 = vpop.f32.mrf.mxu0
    %v5754 = vadd.f32 %v5650, %v5753
    %5755 = vmatmul.bf16.gmra.mxu0 %v2686
    %v5756 = vpop.f32.mrf.mxu0
    %v5757 = vadd.f32 %v5653, %v5756
    %v5758 = vpop.f32.mrf.mxu0
    %v5759 = vadd.f32 %v5655, %v5758
    %5760 = vmatmul.bf16.gmra.mxu0 %v2690
    %v5761 = vpop.f32.mrf.mxu0
    %v5762 = vadd.f32 %v5658, %v5761
    %v5763 = vpop.f32.mrf.mxu0
    %v5764 = vadd.f32 %v5660, %v5763
    %5765 = vmatmul.bf16.gmra.mxu0 %v2694
    %v5766 = vpop.f32.mrf.mxu0
    %v5767 = vadd.f32 %v5663, %v5766
    %v5768 = vpop.f32.mrf.mxu0
    %v5769 = vadd.f32 %v5665, %v5768
    %5770 = vmatmul.bf16.gmra.mxu0 %v2698
    %v5771 = vpop.f32.mrf.mxu0
    %v5772 = vadd.f32 %v5668, %v5771
    %v5773 = vpop.f32.mrf.mxu0
    %v5774 = vadd.f32 %v5670, %v5773
    %5775 = vmatmul.bf16.gmra.mxu0 %v2702
    %v5776 = vpop.f32.mrf.mxu0
    %v5777 = vadd.f32 %v5673, %v5776
    %v5778 = vpop.f32.mrf.mxu0
    %v5779 = vadd.f32 %v5675, %v5778
    %5780 = vmatmul.bf16.gmra.mxu0 %v2706
    %v5781 = vpop.f32.mrf.mxu0
    %v5782 = vadd.f32 %v5678, %v5781
    %v5783 = vpop.f32.mrf.mxu0
    %v5784 = vadd.f32 %v5680, %v5783
    %5785 = vmatmul.bf16.gmra.mxu0 %v2710
    %v5786 = vpop.f32.mrf.mxu0
    %v5787 = vadd.f32 %v5683, %v5786
    %v5788 = vpop.f32.mrf.mxu0
    %v5789 = vadd.f32 %v5685, %v5788
    %5790 = vmatmul.bf16.gmra.mxu0 %v2714
    %v5791 = vpop.f32.mrf.mxu0
    %v5792 = vadd.f32 %v5688, %v5791
    %v5793 = vpop.f32.mrf.mxu0
    %v5794 = vadd.f32 %v5690, %v5793
    %5795 = vmatmul.bf16.gmra.mxu0 %v2718
    %v5796 = vpop.f32.mrf.mxu0
    %v5797 = vadd.f32 %v5693, %v5796
    %v5798 = vpop.f32.mrf.mxu0
    %v5799 = vadd.f32 %v5695, %v5798
    %5800 = vmatmul.bf16.gmra.mxu0 %v2722
    %v5801 = vpop.f32.mrf.mxu0
    %v5802 = vadd.f32 %v5698, %v5801
    %v5803 = vpop.f32.mrf.mxu0
    %v5804 = vadd.f32 %v5700, %v5803
    %5805 = vmatmul.bf16.gmra.mxu0 %v2726
    %v5806 = vpop.f32.mrf.mxu0
    %v5807 = vadd.f32 %v5703, %v5806
    %v5808 = vpop.f32.mrf.mxu0
    %v5809 = vadd.f32 %v5705, %v5808
    %5810 = vmatmul.bf16.gmra.mxu0 %v2730
    %v5811 = vpop.f32.mrf.mxu0
    %v5812 = vadd.f32 %v5708, %v5811
    %v5813 = vpop.f32.mrf.mxu0
    %v5814 = vadd.f32 %v5710, %v5813
    %5815 = vmatmul.bf16.gmra.mxu0 %v2734
    %v5816 = vpop.f32.mrf.mxu0
    %v5817 = vadd.f32 %v5713, %v5816
    %v5818 = vpop.f32.mrf.mxu0
    %v5819 = vadd.f32 %v5715, %v5818
    %5820 = vmatmul.bf16.gmra.mxu0 %v2738
    %v5821 = vpop.f32.mrf.mxu0
    %v5822 = vadd.f32 %v5718, %v5821
    %v5823 = vpop.f32.mrf.mxu0
    %v5824 = vadd.f32 %v5720, %v5823
    %5825 = vmatmul.bf16.gmra.mxu0 %v2742
    %v5826 = vpop.f32.mrf.mxu0
    %v5827 = vadd.f32 %v5723, %v5826
    %v5828 = vpop.f32.mrf.mxu0
    %v5829 = vadd.f32 %v5725, %v5828
    %5830 = vdwg.mxu0
    %5831 = vmatpush.bf16.msra.mxu0 %v3772
    %5832 = vmatpush.bf16.msra.mxu0 %v3765
    %5833 = vmatpush.bf16.msra.mxu0 %v3758
    %5834 = vmatpush.bf16.msra.mxu0 %v3751
    %5835 = vmatpush.bf16.msra.mxu0 %v3744
    %5836 = vmatpush.bf16.msra.mxu0 %v3737
    %5837 = vmatpush.bf16.msra.mxu0 %v3730
    %5838 = vmatpush.bf16.msra.mxu0 %v3723
    %5839 = vmatmul.bf16.gmra.mxu0 %v2667
    %v5840 = vpop.f32.mrf.mxu0
    %v5841 = vadd.f32 %v3005, %v5840
    %v5842 = vpop.f32.mrf.mxu0
    %v5843 = vadd.f32 %v3005, %v5842
    %5844 = vmatmul.bf16.gmra.mxu0 %v2671
    %v5845 = vpop.f32.mrf.mxu0
    %v5846 = vadd.f32 %v3005, %v5845
    %v5847 = vpop.f32.mrf.mxu0
    %v5848 = vadd.f32 %v3005, %v5847
    %5849 = vmatmul.bf16.gmra.mxu0 %v2675
    %v5850 = vpop.f32.mrf.mxu0
    %v5851 = vadd.f32 %v3005, %v5850
    %v5852 = vpop.f32.mrf.mxu0
    %v5853 = vadd.f32 %v3005, %v5852
    %5854 = vmatmul.bf16.gmra.mxu0 %v2679
    %v5855 = vpop.f32.mrf.mxu0
    %v5856 = vadd.f32 %v3005, %v5855
    %v5857 = vpop.f32.mrf.mxu0
    %v5858 = vadd.f32 %v3005, %v5857
    %5859 = vmatmul.bf16.gmra.mxu0 %v2683
    %v5860 = vpop.f32.mrf.mxu0
    %v5861 = vadd.f32 %v3005, %v5860
    %v5862 = vpop.f32.mrf.mxu0
    %v5863 = vadd.f32 %v3005, %v5862
    %5864 = vmatmul.bf16.gmra.mxu0 %v2687
    %v5865 = vpop.f32.mrf.mxu0
    %v5866 = vadd.f32 %v3005, %v5865
    %v5867 = vpop.f32.mrf.mxu0
    %v5868 = vadd.f32 %v3005, %v5867
    %5869 = vmatmul.bf16.gmra.mxu0 %v2691
    %v5870 = vpop.f32.mrf.mxu0
    %v5871 = vadd.f32 %v3005, %v5870
    %v5872 = vpop.f32.mrf.mxu0
    %v5873 = vadd.f32 %v3005, %v5872
    %5874 = vmatmul.bf16.gmra.mxu0 %v2695
    %v5875 = vpop.f32.mrf.mxu0
    %v5876 = vadd.f32 %v3005, %v5875
    %v5877 = vpop.f32.mrf.mxu0
    %v5878 = vadd.f32 %v3005, %v5877
    %5879 = vmatmul.bf16.gmra.mxu0 %v2699
    %v5880 = vpop.f32.mrf.mxu0
    %v5881 = vadd.f32 %v3005, %v5880
    %v5882 = vpop.f32.mrf.mxu0
    %v5883 = vadd.f32 %v3005, %v5882
    %5884 = vmatmul.bf16.gmra.mxu0 %v2703
    %v5885 = vpop.f32.mrf.mxu0
    %v5886 = vadd.f32 %v3005, %v5885
    %v5887 = vpop.f32.mrf.mxu0
    %v5888 = vadd.f32 %v3005, %v5887
    %5889 = vmatmul.bf16.gmra.mxu0 %v2707
    %v5890 = vpop.f32.mrf.mxu0
    %v5891 = vadd.f32 %v3005, %v5890
    %v5892 = vpop.f32.mrf.mxu0
    %v5893 = vadd.f32 %v3005, %v5892
    %5894 = vmatmul.bf16.gmra.mxu0 %v2711
    %v5895 = vpop.f32.mrf.mxu0
    %v5896 = vadd.f32 %v3005, %v5895
    %v5897 = vpop.f32.mrf.mxu0
    %v5898 = vadd.f32 %v3005, %v5897
    %5899 = vmatmul.bf16.gmra.mxu0 %v2715
    %v5900 = vpop.f32.mrf.mxu0
    %v5901 = vadd.f32 %v3005, %v5900
    %v5902 = vpop.f32.mrf.mxu0
    %v5903 = vadd.f32 %v3005, %v5902
    %5904 = vmatmul.bf16.gmra.mxu0 %v2719
    %v5905 = vpop.f32.mrf.mxu0
    %v5906 = vadd.f32 %v3005, %v5905
    %v5907 = vpop.f32.mrf.mxu0
    %v5908 = vadd.f32 %v3005, %v5907
    %5909 = vmatmul.bf16.gmra.mxu0 %v2723
    %v5910 = vpop.f32.mrf.mxu0
    %v5911 = vadd.f32 %v3005, %v5910
    %v5912 = vpop.f32.mrf.mxu0
    %v5913 = vadd.f32 %v3005, %v5912
    %5914 = vmatmul.bf16.gmra.mxu0 %v2727
    %v5915 = vpop.f32.mrf.mxu0
    %v5916 = vadd.f32 %v3005, %v5915
    %v5917 = vpop.f32.mrf.mxu0
    %v5918 = vadd.f32 %v3005, %v5917
    %5919 = vmatmul.bf16.gmra.mxu0 %v2731
    %v5920 = vpop.f32.mrf.mxu0
    %v5921 = vadd.f32 %v3005, %v5920
    %v5922 = vpop.f32.mrf.mxu0
    %v5923 = vadd.f32 %v3005, %v5922
    %5924 = vmatmul.bf16.gmra.mxu0 %v2735
    %v5925 = vpop.f32.mrf.mxu0
    %v5926 = vadd.f32 %v3005, %v5925
    %v5927 = vpop.f32.mrf.mxu0
    %v5928 = vadd.f32 %v3005, %v5927
    %5929 = vmatmul.bf16.gmra.mxu0 %v2739
    %v5930 = vpop.f32.mrf.mxu0
    %v5931 = vadd.f32 %v3005, %v5930
    %v5932 = vpop.f32.mrf.mxu0
    %v5933 = vadd.f32 %v3005, %v5932
    %5934 = vdwg.mxu0
    %5935 = vmatpush.bf16.msra.mxu0 %v3828
    %5936 = vmatpush.bf16.msra.mxu0 %v3821
    %5937 = vmatpush.bf16.msra.mxu0 %v3814
    %5938 = vmatpush.bf16.msra.mxu0 %v3807
    %5939 = vmatpush.bf16.msra.mxu0 %v3800
    %5940 = vmatpush.bf16.msra.mxu0 %v3793
    %5941 = vmatpush.bf16.msra.mxu0 %v3786
    %5942 = vmatpush.bf16.msra.mxu0 %v3779
    %5943 = vmatmul.bf16.gmra.mxu0 %v2668
    %v5944 = vpop.f32.mrf.mxu0
    %v5945 = vadd.f32 %v5841, %v5944
    %v5946 = vpop.f32.mrf.mxu0
    %v5947 = vadd.f32 %v5843, %v5946
    %5948 = vmatmul.bf16.gmra.mxu0 %v2672
    %v5949 = vpop.f32.mrf.mxu0
    %v5950 = vadd.f32 %v5846, %v5949
    %v5951 = vpop.f32.mrf.mxu0
    %v5952 = vadd.f32 %v5848, %v5951
    %5953 = vmatmul.bf16.gmra.mxu0 %v2676
    %v5954 = vpop.f32.mrf.mxu0
    %v5955 = vadd.f32 %v5851, %v5954
    %v5956 = vpop.f32.mrf.mxu0
    %v5957 = vadd.f32 %v5853, %v5956
    %5958 = vmatmul.bf16.gmra.mxu0 %v2680
    %v5959 = vpop.f32.mrf.mxu0
    %v5960 = vadd.f32 %v5856, %v5959
    %v5961 = vpop.f32.mrf.mxu0
    %v5962 = vadd.f32 %v5858, %v5961
    %5963 = vmatmul.bf16.gmra.mxu0 %v2684
    %v5964 = vpop.f32.mrf.mxu0
    %v5965 = vadd.f32 %v5861, %v5964
    %v5966 = vpop.f32.mrf.mxu0
    %v5967 = vadd.f32 %v5863, %v5966
    %5968 = vmatmul.bf16.gmra.mxu0 %v2688
    %v5969 = vpop.f32.mrf.mxu0
    %v5970 = vadd.f32 %v5866, %v5969
    %v5971 = vpop.f32.mrf.mxu0
    %v5972 = vadd.f32 %v5868, %v5971
    %5973 = vmatmul.bf16.gmra.mxu0 %v2692
    %v5974 = vpop.f32.mrf.mxu0
    %v5975 = vadd.f32 %v5871, %v5974
    %v5976 = vpop.f32.mrf.mxu0
    %v5977 = vadd.f32 %v5873, %v5976
    %5978 = vmatmul.bf16.gmra.mxu0 %v2696
    %v5979 = vpop.f32.mrf.mxu0
    %v5980 = vadd.f32 %v5876, %v5979
    %v5981 = vpop.f32.mrf.mxu0
    %v5982 = vadd.f32 %v5878, %v5981
    %5983 = vmatmul.bf16.gmra.mxu0 %v2700
    %v5984 = vpop.f32.mrf.mxu0
    %v5985 = vadd.f32 %v5881, %v5984
    %v5986 = vpop.f32.mrf.mxu0
    %v5987 = vadd.f32 %v5883, %v5986
    %5988 = vmatmul.bf16.gmra.mxu0 %v2704
    %v5989 = vpop.f32.mrf.mxu0
    %v5990 = vadd.f32 %v5886, %v5989
    %v5991 = vpop.f32.mrf.mxu0
    %v5992 = vadd.f32 %v5888, %v5991
    %5993 = vmatmul.bf16.gmra.mxu0 %v2708
    %v5994 = vpop.f32.mrf.mxu0
    %v5995 = vadd.f32 %v5891, %v5994
    %v5996 = vpop.f32.mrf.mxu0
    %v5997 = vadd.f32 %v5893, %v5996
    %5998 = vmatmul.bf16.gmra.mxu0 %v2712
    %v5999 = vpop.f32.mrf.mxu0
    %v6000 = vadd.f32 %v5896, %v5999
    %v6001 = vpop.f32.mrf.mxu0
    %v6002 = vadd.f32 %v5898, %v6001
    %6003 = vmatmul.bf16.gmra.mxu0 %v2716
    %v6004 = vpop.f32.mrf.mxu0
    %v6005 = vadd.f32 %v5901, %v6004
    %v6006 = vpop.f32.mrf.mxu0
    %v6007 = vadd.f32 %v5903, %v6006
    %6008 = vmatmul.bf16.gmra.mxu0 %v2720
    %v6009 = vpop.f32.mrf.mxu0
    %v6010 = vadd.f32 %v5906, %v6009
    %v6011 = vpop.f32.mrf.mxu0
    %v6012 = vadd.f32 %v5908, %v6011
    %6013 = vmatmul.bf16.gmra.mxu0 %v2724
    %v6014 = vpop.f32.mrf.mxu0
    %v6015 = vadd.f32 %v5911, %v6014
    %v6016 = vpop.f32.mrf.mxu0
    %v6017 = vadd.f32 %v5913, %v6016
    %6018 = vmatmul.bf16.gmra.mxu0 %v2728
    %v6019 = vpop.f32.mrf.mxu0
    %v6020 = vadd.f32 %v5916, %v6019
    %v6021 = vpop.f32.mrf.mxu0
    %v6022 = vadd.f32 %v5918, %v6021
    %6023 = vmatmul.bf16.gmra.mxu0 %v2732
    %v6024 = vpop.f32.mrf.mxu0
    %v6025 = vadd.f32 %v5921, %v6024
    %v6026 = vpop.f32.mrf.mxu0
    %v6027 = vadd.f32 %v5923, %v6026
    %6028 = vmatmul.bf16.gmra.mxu0 %v2736
    %v6029 = vpop.f32.mrf.mxu0
    %v6030 = vadd.f32 %v5926, %v6029
    %v6031 = vpop.f32.mrf.mxu0
    %v6032 = vadd.f32 %v5928, %v6031
    %6033 = vmatmul.bf16.gmra.mxu0 %v2740
    %v6034 = vpop.f32.mrf.mxu0
    %v6035 = vadd.f32 %v5931, %v6034
    %v6036 = vpop.f32.mrf.mxu0
    %v6037 = vadd.f32 %v5933, %v6036
    %6038 = vdwg.mxu0
    %6039 = vmatpush.bf16.msra.mxu0 %v3884
    %6040 = vmatpush.bf16.msra.mxu0 %v3877
    %6041 = vmatpush.bf16.msra.mxu0 %v3870
    %6042 = vmatpush.bf16.msra.mxu0 %v3863
    %6043 = vmatpush.bf16.msra.mxu0 %v3856
    %6044 = vmatpush.bf16.msra.mxu0 %v3849
    %6045 = vmatpush.bf16.msra.mxu0 %v3842
    %6046 = vmatpush.bf16.msra.mxu0 %v3835
    %6047 = vmatmul.bf16.gmra.mxu0 %v2669
    %v6048 = vpop.f32.mrf.mxu0
    %v6049 = vadd.f32 %v5945, %v6048
    %v6050 = vpop.f32.mrf.mxu0
    %v6051 = vadd.f32 %v5947, %v6050
    %6052 = vmatmul.bf16.gmra.mxu0 %v2673
    %v6053 = vpop.f32.mrf.mxu0
    %v6054 = vadd.f32 %v5950, %v6053
    %v6055 = vpop.f32.mrf.mxu0
    %v6056 = vadd.f32 %v5952, %v6055
    %6057 = vmatmul.bf16.gmra.mxu0 %v2677
    %v6058 = vpop.f32.mrf.mxu0
    %v6059 = vadd.f32 %v5955, %v6058
    %v6060 = vpop.f32.mrf.mxu0
    %v6061 = vadd.f32 %v5957, %v6060
    %6062 = vmatmul.bf16.gmra.mxu0 %v2681
    %v6063 = vpop.f32.mrf.mxu0
    %v6064 = vadd.f32 %v5960, %v6063
    %v6065 = vpop.f32.mrf.mxu0
    %v6066 = vadd.f32 %v5962, %v6065
    %6067 = vmatmul.bf16.gmra.mxu0 %v2685
    %v6068 = vpop.f32.mrf.mxu0
    %v6069 = vadd.f32 %v5965, %v6068
    %v6070 = vpop.f32.mrf.mxu0
    %v6071 = vadd.f32 %v5967, %v6070
    %6072 = vmatmul.bf16.gmra.mxu0 %v2689
    %v6073 = vpop.f32.mrf.mxu0
    %v6074 = vadd.f32 %v5970, %v6073
    %v6075 = vpop.f32.mrf.mxu0
    %v6076 = vadd.f32 %v5972, %v6075
    %6077 = vmatmul.bf16.gmra.mxu0 %v2693
    %v6078 = vpop.f32.mrf.mxu0
    %v6079 = vadd.f32 %v5975, %v6078
    %v6080 = vpop.f32.mrf.mxu0
    %v6081 = vadd.f32 %v5977, %v6080
    %6082 = vmatmul.bf16.gmra.mxu0 %v2697
    %v6083 = vpop.f32.mrf.mxu0
    %v6084 = vadd.f32 %v5980, %v6083
    %v6085 = vpop.f32.mrf.mxu0
    %v6086 = vadd.f32 %v5982, %v6085
    %6087 = vmatmul.bf16.gmra.mxu0 %v2701
    %v6088 = vpop.f32.mrf.mxu0
    %v6089 = vadd.f32 %v5985, %v6088
    %v6090 = vpop.f32.mrf.mxu0
    %v6091 = vadd.f32 %v5987, %v6090
    %6092 = vmatmul.bf16.gmra.mxu0 %v2705
    %v6093 = vpop.f32.mrf.mxu0
    %v6094 = vadd.f32 %v5990, %v6093
    %v6095 = vpop.f32.mrf.mxu0
    %v6096 = vadd.f32 %v5992, %v6095
    %6097 = vmatmul.bf16.gmra.mxu0 %v2709
    %v6098 = vpop.f32.mrf.mxu0
    %v6099 = vadd.f32 %v5995, %v6098
    %v6100 = vpop.f32.mrf.mxu0
    %v6101 = vadd.f32 %v5997, %v6100
    %6102 = vmatmul.bf16.gmra.mxu0 %v2713
    %v6103 = vpop.f32.mrf.mxu0
    %v6104 = vadd.f32 %v6000, %v6103
    %v6105 = vpop.f32.mrf.mxu0
    %v6106 = vadd.f32 %v6002, %v6105
    %6107 = vmatmul.bf16.gmra.mxu0 %v2717
    %v6108 = vpop.f32.mrf.mxu0
    %v6109 = vadd.f32 %v6005, %v6108
    %v6110 = vpop.f32.mrf.mxu0
    %v6111 = vadd.f32 %v6007, %v6110
    %6112 = vmatmul.bf16.gmra.mxu0 %v2721
    %v6113 = vpop.f32.mrf.mxu0
    %v6114 = vadd.f32 %v6010, %v6113
    %v6115 = vpop.f32.mrf.mxu0
    %v6116 = vadd.f32 %v6012, %v6115
    %6117 = vmatmul.bf16.gmra.mxu0 %v2725
    %v6118 = vpop.f32.mrf.mxu0
    %v6119 = vadd.f32 %v6015, %v6118
    %v6120 = vpop.f32.mrf.mxu0
    %v6121 = vadd.f32 %v6017, %v6120
    %6122 = vmatmul.bf16.gmra.mxu0 %v2729
    %v6123 = vpop.f32.mrf.mxu0
    %v6124 = vadd.f32 %v6020, %v6123
    %v6125 = vpop.f32.mrf.mxu0
    %v6126 = vadd.f32 %v6022, %v6125
    %6127 = vmatmul.bf16.gmra.mxu0 %v2733
    %v6128 = vpop.f32.mrf.mxu0
    %v6129 = vadd.f32 %v6025, %v6128
    %v6130 = vpop.f32.mrf.mxu0
    %v6131 = vadd.f32 %v6027, %v6130
    %6132 = vmatmul.bf16.gmra.mxu0 %v2737
    %v6133 = vpop.f32.mrf.mxu0
    %v6134 = vadd.f32 %v6030, %v6133
    %v6135 = vpop.f32.mrf.mxu0
    %v6136 = vadd.f32 %v6032, %v6135
    %6137 = vmatmul.bf16.gmra.mxu0 %v2741
    %v6138 = vpop.f32.mrf.mxu0
    %v6139 = vadd.f32 %v6035, %v6138
    %v6140 = vpop.f32.mrf.mxu0
    %v6141 = vadd.f32 %v6037, %v6140
    %6142 = vdwg.mxu0
    %6143 = vmatpush.bf16.msra.mxu0 %v3940
    %6144 = vmatpush.bf16.msra.mxu0 %v3933
    %6145 = vmatpush.bf16.msra.mxu0 %v3926
    %6146 = vmatpush.bf16.msra.mxu0 %v3919
    %6147 = vmatpush.bf16.msra.mxu0 %v3912
    %6148 = vmatpush.bf16.msra.mxu0 %v3905
    %6149 = vmatpush.bf16.msra.mxu0 %v3898
    %6150 = vmatpush.bf16.msra.mxu0 %v3891
    %6151 = vmatmul.bf16.gmra.mxu0 %v2670
    %v6152 = vpop.f32.mrf.mxu0
    %v6153 = vadd.f32 %v6049, %v6152
    %v6154 = vpop.f32.mrf.mxu0
    %v6155 = vadd.f32 %v6051, %v6154
    %6156 = vmatmul.bf16.gmra.mxu0 %v2674
    %v6157 = vpop.f32.mrf.mxu0
    %v6158 = vadd.f32 %v6054, %v6157
    %v6159 = vpop.f32.mrf.mxu0
    %v6160 = vadd.f32 %v6056, %v6159
    %6161 = vmatmul.bf16.gmra.mxu0 %v2678
    %v6162 = vpop.f32.mrf.mxu0
    %v6163 = vadd.f32 %v6059, %v6162
    %v6164 = vpop.f32.mrf.mxu0
    %v6165 = vadd.f32 %v6061, %v6164
    %6166 = vmatmul.bf16.gmra.mxu0 %v2682
    %v6167 = vpop.f32.mrf.mxu0
    %v6168 = vadd.f32 %v6064, %v6167
    %v6169 = vpop.f32.mrf.mxu0
    %v6170 = vadd.f32 %v6066, %v6169
    %6171 = vmatmul.bf16.gmra.mxu0 %v2686
    %v6172 = vpop.f32.mrf.mxu0
    %v6173 = vadd.f32 %v6069, %v6172
    %v6174 = vpop.f32.mrf.mxu0
    %v6175 = vadd.f32 %v6071, %v6174
    %6176 = vmatmul.bf16.gmra.mxu0 %v2690
    %v6177 = vpop.f32.mrf.mxu0
    %v6178 = vadd.f32 %v6074, %v6177
    %v6179 = vpop.f32.mrf.mxu0
    %v6180 = vadd.f32 %v6076, %v6179
    %6181 = vmatmul.bf16.gmra.mxu0 %v2694
    %v6182 = vpop.f32.mrf.mxu0
    %v6183 = vadd.f32 %v6079, %v6182
    %v6184 = vpop.f32.mrf.mxu0
    %v6185 = vadd.f32 %v6081, %v6184
    %6186 = vmatmul.bf16.gmra.mxu0 %v2698
    %v6187 = vpop.f32.mrf.mxu0
    %v6188 = vadd.f32 %v6084, %v6187
    %v6189 = vpop.f32.mrf.mxu0
    %v6190 = vadd.f32 %v6086, %v6189
    %6191 = vmatmul.bf16.gmra.mxu0 %v2702
    %v6192 = vpop.f32.mrf.mxu0
    %v6193 = vadd.f32 %v6089, %v6192
    %v6194 = vpop.f32.mrf.mxu0
    %v6195 = vadd.f32 %v6091, %v6194
    %6196 = vmatmul.bf16.gmra.mxu0 %v2706
    %v6197 = vpop.f32.mrf.mxu0
    %v6198 = vadd.f32 %v6094, %v6197
    %v6199 = vpop.f32.mrf.mxu0
    %v6200 = vadd.f32 %v6096, %v6199
    %6201 = vmatmul.bf16.gmra.mxu0 %v2710
    %v6202 = vpop.f32.mrf.mxu0
    %v6203 = vadd.f32 %v6099, %v6202
    %v6204 = vpop.f32.mrf.mxu0
    %v6205 = vadd.f32 %v6101, %v6204
    %6206 = vmatmul.bf16.gmra.mxu0 %v2714
    %v6207 = vpop.f32.mrf.mxu0
    %v6208 = vadd.f32 %v6104, %v6207
    %v6209 = vpop.f32.mrf.mxu0
    %v6210 = vadd.f32 %v6106, %v6209
    %6211 = vmatmul.bf16.gmra.mxu0 %v2718
    %v6212 = vpop.f32.mrf.mxu0
    %v6213 = vadd.f32 %v6109, %v6212
    %v6214 = vpop.f32.mrf.mxu0
    %v6215 = vadd.f32 %v6111, %v6214
    %6216 = vmatmul.bf16.gmra.mxu0 %v2722
    %v6217 = vpop.f32.mrf.mxu0
    %v6218 = vadd.f32 %v6114, %v6217
    %v6219 = vpop.f32.mrf.mxu0
    %v6220 = vadd.f32 %v6116, %v6219
    %6221 = vmatmul.bf16.gmra.mxu0 %v2726
    %v6222 = vpop.f32.mrf.mxu0
    %v6223 = vadd.f32 %v6119, %v6222
    %v6224 = vpop.f32.mrf.mxu0
    %v6225 = vadd.f32 %v6121, %v6224
    %6226 = vmatmul.bf16.gmra.mxu0 %v2730
    %v6227 = vpop.f32.mrf.mxu0
    %v6228 = vadd.f32 %v6124, %v6227
    %v6229 = vpop.f32.mrf.mxu0
    %v6230 = vadd.f32 %v6126, %v6229
    %6231 = vmatmul.bf16.gmra.mxu0 %v2734
    %v6232 = vpop.f32.mrf.mxu0
    %v6233 = vadd.f32 %v6129, %v6232
    %v6234 = vpop.f32.mrf.mxu0
    %v6235 = vadd.f32 %v6131, %v6234
    %6236 = vmatmul.bf16.gmra.mxu0 %v2738
    %v6237 = vpop.f32.mrf.mxu0
    %v6238 = vadd.f32 %v6134, %v6237
    %v6239 = vpop.f32.mrf.mxu0
    %v6240 = vadd.f32 %v6136, %v6239
    %6241 = vmatmul.bf16.gmra.mxu0 %v2742
    %v6242 = vpop.f32.mrf.mxu0
    %v6243 = vadd.f32 %v6139, %v6242
    %v6244 = vpop.f32.mrf.mxu0
    %v6245 = vadd.f32 %v6141, %v6244
    %6246 = vdwg.mxu0
    %6247 = vmatpush.bf16.msra.mxu0 %v3773
    %6248 = vmatpush.bf16.msra.mxu0 %v3766
    %6249 = vmatpush.bf16.msra.mxu0 %v3759
    %6250 = vmatpush.bf16.msra.mxu0 %v3752
    %6251 = vmatpush.bf16.msra.mxu0 %v3745
    %6252 = vmatpush.bf16.msra.mxu0 %v3738
    %6253 = vmatpush.bf16.msra.mxu0 %v3731
    %6254 = vmatpush.bf16.msra.mxu0 %v3724
    %6255 = vmatmul.bf16.gmra.mxu0 %v2667
    %v6256 = vpop.f32.mrf.mxu0
    %v6257 = vadd.f32 %v3006, %v6256
    %v6258 = vpop.f32.mrf.mxu0
    %v6259 = vadd.f32 %v3006, %v6258
    %6260 = vmatmul.bf16.gmra.mxu0 %v2671
    %v6261 = vpop.f32.mrf.mxu0
    %v6262 = vadd.f32 %v3006, %v6261
    %v6263 = vpop.f32.mrf.mxu0
    %v6264 = vadd.f32 %v3006, %v6263
    %6265 = vmatmul.bf16.gmra.mxu0 %v2675
    %v6266 = vpop.f32.mrf.mxu0
    %v6267 = vadd.f32 %v3006, %v6266
    %v6268 = vpop.f32.mrf.mxu0
    %v6269 = vadd.f32 %v3006, %v6268
    %6270 = vmatmul.bf16.gmra.mxu0 %v2679
    %v6271 = vpop.f32.mrf.mxu0
    %v6272 = vadd.f32 %v3006, %v6271
    %v6273 = vpop.f32.mrf.mxu0
    %v6274 = vadd.f32 %v3006, %v6273
    %6275 = vmatmul.bf16.gmra.mxu0 %v2683
    %v6276 = vpop.f32.mrf.mxu0
    %v6277 = vadd.f32 %v3006, %v6276
    %v6278 = vpop.f32.mrf.mxu0
    %v6279 = vadd.f32 %v3006, %v6278
    %6280 = vmatmul.bf16.gmra.mxu0 %v2687
    %v6281 = vpop.f32.mrf.mxu0
    %v6282 = vadd.f32 %v3006, %v6281
    %v6283 = vpop.f32.mrf.mxu0
    %v6284 = vadd.f32 %v3006, %v6283
    %6285 = vmatmul.bf16.gmra.mxu0 %v2691
    %v6286 = vpop.f32.mrf.mxu0
    %v6287 = vadd.f32 %v3006, %v6286
    %v6288 = vpop.f32.mrf.mxu0
    %v6289 = vadd.f32 %v3006, %v6288
    %6290 = vmatmul.bf16.gmra.mxu0 %v2695
    %v6291 = vpop.f32.mrf.mxu0
    %v6292 = vadd.f32 %v3006, %v6291
    %v6293 = vpop.f32.mrf.mxu0
    %v6294 = vadd.f32 %v3006, %v6293
    %6295 = vmatmul.bf16.gmra.mxu0 %v2699
    %v6296 = vpop.f32.mrf.mxu0
    %v6297 = vadd.f32 %v3006, %v6296
    %v6298 = vpop.f32.mrf.mxu0
    %v6299 = vadd.f32 %v3006, %v6298
    %6300 = vmatmul.bf16.gmra.mxu0 %v2703
    %v6301 = vpop.f32.mrf.mxu0
    %v6302 = vadd.f32 %v3006, %v6301
    %v6303 = vpop.f32.mrf.mxu0
    %v6304 = vadd.f32 %v3006, %v6303
    %6305 = vmatmul.bf16.gmra.mxu0 %v2707
    %v6306 = vpop.f32.mrf.mxu0
    %v6307 = vadd.f32 %v3006, %v6306
    %v6308 = vpop.f32.mrf.mxu0
    %v6309 = vadd.f32 %v3006, %v6308
    %6310 = vmatmul.bf16.gmra.mxu0 %v2711
    %v6311 = vpop.f32.mrf.mxu0
    %v6312 = vadd.f32 %v3006, %v6311
    %v6313 = vpop.f32.mrf.mxu0
    %v6314 = vadd.f32 %v3006, %v6313
    %6315 = vmatmul.bf16.gmra.mxu0 %v2715
    %v6316 = vpop.f32.mrf.mxu0
    %v6317 = vadd.f32 %v3006, %v6316
    %v6318 = vpop.f32.mrf.mxu0
    %v6319 = vadd.f32 %v3006, %v6318
    %6320 = vmatmul.bf16.gmra.mxu0 %v2719
    %v6321 = vpop.f32.mrf.mxu0
    %v6322 = vadd.f32 %v3006, %v6321
    %v6323 = vpop.f32.mrf.mxu0
    %v6324 = vadd.f32 %v3006, %v6323
    %6325 = vmatmul.bf16.gmra.mxu0 %v2723
    %v6326 = vpop.f32.mrf.mxu0
    %v6327 = vadd.f32 %v3006, %v6326
    %v6328 = vpop.f32.mrf.mxu0
    %v6329 = vadd.f32 %v3006, %v6328
    %6330 = vmatmul.bf16.gmra.mxu0 %v2727
    %v6331 = vpop.f32.mrf.mxu0
    %v6332 = vadd.f32 %v3006, %v6331
    %v6333 = vpop.f32.mrf.mxu0
    %v6334 = vadd.f32 %v3006, %v6333
    %6335 = vmatmul.bf16.gmra.mxu0 %v2731
    %v6336 = vpop.f32.mrf.mxu0
    %v6337 = vadd.f32 %v3006, %v6336
    %v6338 = vpop.f32.mrf.mxu0
    %v6339 = vadd.f32 %v3006, %v6338
    %6340 = vmatmul.bf16.gmra.mxu0 %v2735
    %v6341 = vpop.f32.mrf.mxu0
    %v6342 = vadd.f32 %v3006, %v6341
    %v6343 = vpop.f32.mrf.mxu0
    %v6344 = vadd.f32 %v3006, %v6343
    %6345 = vmatmul.bf16.gmra.mxu0 %v2739
    %v6346 = vpop.f32.mrf.mxu0
    %v6347 = vadd.f32 %v3006, %v6346
    %v6348 = vpop.f32.mrf.mxu0
    %v6349 = vadd.f32 %v3006, %v6348
    %6350 = vdwg.mxu0
    %6351 = vmatpush.bf16.msra.mxu0 %v3829
    %6352 = vmatpush.bf16.msra.mxu0 %v3822
    %6353 = vmatpush.bf16.msra.mxu0 %v3815
    %6354 = vmatpush.bf16.msra.mxu0 %v3808
    %6355 = vmatpush.bf16.msra.mxu0 %v3801
    %6356 = vmatpush.bf16.msra.mxu0 %v3794
    %6357 = vmatpush.bf16.msra.mxu0 %v3787
    %6358 = vmatpush.bf16.msra.mxu0 %v3780
    %6359 = vmatmul.bf16.gmra.mxu0 %v2668
    %v6360 = vpop.f32.mrf.mxu0
    %v6361 = vadd.f32 %v6257, %v6360
    %v6362 = vpop.f32.mrf.mxu0
    %v6363 = vadd.f32 %v6259, %v6362
    %6364 = vmatmul.bf16.gmra.mxu0 %v2672
    %v6365 = vpop.f32.mrf.mxu0
    %v6366 = vadd.f32 %v6262, %v6365
    %v6367 = vpop.f32.mrf.mxu0
    %v6368 = vadd.f32 %v6264, %v6367
    %6369 = vmatmul.bf16.gmra.mxu0 %v2676
    %v6370 = vpop.f32.mrf.mxu0
    %v6371 = vadd.f32 %v6267, %v6370
    %v6372 = vpop.f32.mrf.mxu0
    %v6373 = vadd.f32 %v6269, %v6372
    %6374 = vmatmul.bf16.gmra.mxu0 %v2680
    %v6375 = vpop.f32.mrf.mxu0
    %v6376 = vadd.f32 %v6272, %v6375
    %v6377 = vpop.f32.mrf.mxu0
    %v6378 = vadd.f32 %v6274, %v6377
    %6379 = vmatmul.bf16.gmra.mxu0 %v2684
    %v6380 = vpop.f32.mrf.mxu0
    %v6381 = vadd.f32 %v6277, %v6380
    %v6382 = vpop.f32.mrf.mxu0
    %v6383 = vadd.f32 %v6279, %v6382
    %6384 = vmatmul.bf16.gmra.mxu0 %v2688
    %v6385 = vpop.f32.mrf.mxu0
    %v6386 = vadd.f32 %v6282, %v6385
    %v6387 = vpop.f32.mrf.mxu0
    %v6388 = vadd.f32 %v6284, %v6387
    %6389 = vmatmul.bf16.gmra.mxu0 %v2692
    %v6390 = vpop.f32.mrf.mxu0
    %v6391 = vadd.f32 %v6287, %v6390
    %v6392 = vpop.f32.mrf.mxu0
    %v6393 = vadd.f32 %v6289, %v6392
    %6394 = vmatmul.bf16.gmra.mxu0 %v2696
    %v6395 = vpop.f32.mrf.mxu0
    %v6396 = vadd.f32 %v6292, %v6395
    %v6397 = vpop.f32.mrf.mxu0
    %v6398 = vadd.f32 %v6294, %v6397
    %6399 = vmatmul.bf16.gmra.mxu0 %v2700
    %v6400 = vpop.f32.mrf.mxu0
    %v6401 = vadd.f32 %v6297, %v6400
    %v6402 = vpop.f32.mrf.mxu0
    %v6403 = vadd.f32 %v6299, %v6402
    %6404 = vmatmul.bf16.gmra.mxu0 %v2704
    %v6405 = vpop.f32.mrf.mxu0
    %v6406 = vadd.f32 %v6302, %v6405
    %v6407 = vpop.f32.mrf.mxu0
    %v6408 = vadd.f32 %v6304, %v6407
    %6409 = vmatmul.bf16.gmra.mxu0 %v2708
    %v6410 = vpop.f32.mrf.mxu0
    %v6411 = vadd.f32 %v6307, %v6410
    %v6412 = vpop.f32.mrf.mxu0
    %v6413 = vadd.f32 %v6309, %v6412
    %6414 = vmatmul.bf16.gmra.mxu0 %v2712
    %v6415 = vpop.f32.mrf.mxu0
    %v6416 = vadd.f32 %v6312, %v6415
    %v6417 = vpop.f32.mrf.mxu0
    %v6418 = vadd.f32 %v6314, %v6417
    %6419 = vmatmul.bf16.gmra.mxu0 %v2716
    %v6420 = vpop.f32.mrf.mxu0
    %v6421 = vadd.f32 %v6317, %v6420
    %v6422 = vpop.f32.mrf.mxu0
    %v6423 = vadd.f32 %v6319, %v6422
    %6424 = vmatmul.bf16.gmra.mxu0 %v2720
    %v6425 = vpop.f32.mrf.mxu0
    %v6426 = vadd.f32 %v6322, %v6425
    %v6427 = vpop.f32.mrf.mxu0
    %v6428 = vadd.f32 %v6324, %v6427
    %6429 = vmatmul.bf16.gmra.mxu0 %v2724
    %v6430 = vpop.f32.mrf.mxu0
    %v6431 = vadd.f32 %v6327, %v6430
    %v6432 = vpop.f32.mrf.mxu0
    %v6433 = vadd.f32 %v6329, %v6432
    %6434 = vmatmul.bf16.gmra.mxu0 %v2728
    %v6435 = vpop.f32.mrf.mxu0
    %v6436 = vadd.f32 %v6332, %v6435
    %v6437 = vpop.f32.mrf.mxu0
    %v6438 = vadd.f32 %v6334, %v6437
    %6439 = vmatmul.bf16.gmra.mxu0 %v2732
    %v6440 = vpop.f32.mrf.mxu0
    %v6441 = vadd.f32 %v6337, %v6440
    %v6442 = vpop.f32.mrf.mxu0
    %v6443 = vadd.f32 %v6339, %v6442
    %6444 = vmatmul.bf16.gmra.mxu0 %v2736
    %v6445 = vpop.f32.mrf.mxu0
    %v6446 = vadd.f32 %v6342, %v6445
    %v6447 = vpop.f32.mrf.mxu0
    %v6448 = vadd.f32 %v6344, %v6447
    %6449 = vmatmul.bf16.gmra.mxu0 %v2740
    %v6450 = vpop.f32.mrf.mxu0
    %v6451 = vadd.f32 %v6347, %v6450
    %v6452 = vpop.f32.mrf.mxu0
    %v6453 = vadd.f32 %v6349, %v6452
    %6454 = vdwg.mxu0
    %6455 = vmatpush.bf16.msra.mxu0 %v3885
    %6456 = vmatpush.bf16.msra.mxu0 %v3878
    %6457 = vmatpush.bf16.msra.mxu0 %v3871
    %6458 = vmatpush.bf16.msra.mxu0 %v3864
    %6459 = vmatpush.bf16.msra.mxu0 %v3857
    %6460 = vmatpush.bf16.msra.mxu0 %v3850
    %6461 = vmatpush.bf16.msra.mxu0 %v3843
    %6462 = vmatpush.bf16.msra.mxu0 %v3836
    %6463 = vmatmul.bf16.gmra.mxu0 %v2669
    %v6464 = vpop.f32.mrf.mxu0
    %v6465 = vadd.f32 %v6361, %v6464
    %v6466 = vpop.f32.mrf.mxu0
    %v6467 = vadd.f32 %v6363, %v6466
    %6468 = vmatmul.bf16.gmra.mxu0 %v2673
    %v6469 = vpop.f32.mrf.mxu0
    %v6470 = vadd.f32 %v6366, %v6469
    %v6471 = vpop.f32.mrf.mxu0
    %v6472 = vadd.f32 %v6368, %v6471
    %6473 = vmatmul.bf16.gmra.mxu0 %v2677
    %v6474 = vpop.f32.mrf.mxu0
    %v6475 = vadd.f32 %v6371, %v6474
    %v6476 = vpop.f32.mrf.mxu0
    %v6477 = vadd.f32 %v6373, %v6476
    %6478 = vmatmul.bf16.gmra.mxu0 %v2681
    %v6479 = vpop.f32.mrf.mxu0
    %v6480 = vadd.f32 %v6376, %v6479
    %v6481 = vpop.f32.mrf.mxu0
    %v6482 = vadd.f32 %v6378, %v6481
    %6483 = vmatmul.bf16.gmra.mxu0 %v2685
    %v6484 = vpop.f32.mrf.mxu0
    %v6485 = vadd.f32 %v6381, %v6484
    %v6486 = vpop.f32.mrf.mxu0
    %v6487 = vadd.f32 %v6383, %v6486
    %6488 = vmatmul.bf16.gmra.mxu0 %v2689
    %v6489 = vpop.f32.mrf.mxu0
    %v6490 = vadd.f32 %v6386, %v6489
    %v6491 = vpop.f32.mrf.mxu0
    %v6492 = vadd.f32 %v6388, %v6491
    %6493 = vmatmul.bf16.gmra.mxu0 %v2693
    %v6494 = vpop.f32.mrf.mxu0
    %v6495 = vadd.f32 %v6391, %v6494
    %v6496 = vpop.f32.mrf.mxu0
    %v6497 = vadd.f32 %v6393, %v6496
    %6498 = vmatmul.bf16.gmra.mxu0 %v2697
    %v6499 = vpop.f32.mrf.mxu0
    %v6500 = vadd.f32 %v6396, %v6499
    %v6501 = vpop.f32.mrf.mxu0
    %v6502 = vadd.f32 %v6398, %v6501
    %6503 = vmatmul.bf16.gmra.mxu0 %v2701
    %v6504 = vpop.f32.mrf.mxu0
    %v6505 = vadd.f32 %v6401, %v6504
    %v6506 = vpop.f32.mrf.mxu0
    %v6507 = vadd.f32 %v6403, %v6506
    %6508 = vmatmul.bf16.gmra.mxu0 %v2705
    %v6509 = vpop.f32.mrf.mxu0
    %v6510 = vadd.f32 %v6406, %v6509
    %v6511 = vpop.f32.mrf.mxu0
    %v6512 = vadd.f32 %v6408, %v6511
    %6513 = vmatmul.bf16.gmra.mxu0 %v2709
    %v6514 = vpop.f32.mrf.mxu0
    %v6515 = vadd.f32 %v6411, %v6514
    %v6516 = vpop.f32.mrf.mxu0
    %v6517 = vadd.f32 %v6413, %v6516
    %6518 = vmatmul.bf16.gmra.mxu0 %v2713
    %v6519 = vpop.f32.mrf.mxu0
    %v6520 = vadd.f32 %v6416, %v6519
    %v6521 = vpop.f32.mrf.mxu0
    %v6522 = vadd.f32 %v6418, %v6521
    %6523 = vmatmul.bf16.gmra.mxu0 %v2717
    %v6524 = vpop.f32.mrf.mxu0
    %v6525 = vadd.f32 %v6421, %v6524
    %v6526 = vpop.f32.mrf.mxu0
    %v6527 = vadd.f32 %v6423, %v6526
    %6528 = vmatmul.bf16.gmra.mxu0 %v2721
    %v6529 = vpop.f32.mrf.mxu0
    %v6530 = vadd.f32 %v6426, %v6529
    %v6531 = vpop.f32.mrf.mxu0
    %v6532 = vadd.f32 %v6428, %v6531
    %6533 = vmatmul.bf16.gmra.mxu0 %v2725
    %v6534 = vpop.f32.mrf.mxu0
    %v6535 = vadd.f32 %v6431, %v6534
    %v6536 = vpop.f32.mrf.mxu0
    %v6537 = vadd.f32 %v6433, %v6536
    %6538 = vmatmul.bf16.gmra.mxu0 %v2729
    %v6539 = vpop.f32.mrf.mxu0
    %v6540 = vadd.f32 %v6436, %v6539
    %v6541 = vpop.f32.mrf.mxu0
    %v6542 = vadd.f32 %v6438, %v6541
    %6543 = vmatmul.bf16.gmra.mxu0 %v2733
    %v6544 = vpop.f32.mrf.mxu0
    %v6545 = vadd.f32 %v6441, %v6544
    %v6546 = vpop.f32.mrf.mxu0
    %v6547 = vadd.f32 %v6443, %v6546
    %6548 = vmatmul.bf16.gmra.mxu0 %v2737
    %v6549 = vpop.f32.mrf.mxu0
    %v6550 = vadd.f32 %v6446, %v6549
    %v6551 = vpop.f32.mrf.mxu0
    %v6552 = vadd.f32 %v6448, %v6551
    %6553 = vmatmul.bf16.gmra.mxu0 %v2741
    %v6554 = vpop.f32.mrf.mxu0
    %v6555 = vadd.f32 %v6451, %v6554
    %v6556 = vpop.f32.mrf.mxu0
    %v6557 = vadd.f32 %v6453, %v6556
    %6558 = vdwg.mxu0
    %6559 = vmatpush.bf16.msra.mxu0 %v3941
    %6560 = vmatpush.bf16.msra.mxu0 %v3934
    %6561 = vmatpush.bf16.msra.mxu0 %v3927
    %6562 = vmatpush.bf16.msra.mxu0 %v3920
    %6563 = vmatpush.bf16.msra.mxu0 %v3913
    %6564 = vmatpush.bf16.msra.mxu0 %v3906
    %6565 = vmatpush.bf16.msra.mxu0 %v3899
    %6566 = vmatpush.bf16.msra.mxu0 %v3892
    %6567 = vmatmul.bf16.gmra.mxu0 %v2670
    %v6568 = vpop.f32.mrf.mxu0
    %v6569 = vadd.f32 %v6465, %v6568
    %v6570 = vpop.f32.mrf.mxu0
    %v6571 = vadd.f32 %v6467, %v6570
    %6572 = vmatmul.bf16.gmra.mxu0 %v2674
    %v6573 = vpop.f32.mrf.mxu0
    %v6574 = vadd.f32 %v6470, %v6573
    %v6575 = vpop.f32.mrf.mxu0
    %v6576 = vadd.f32 %v6472, %v6575
    %6577 = vmatmul.bf16.gmra.mxu0 %v2678
    %v6578 = vpop.f32.mrf.mxu0
    %v6579 = vadd.f32 %v6475, %v6578
    %v6580 = vpop.f32.mrf.mxu0
    %v6581 = vadd.f32 %v6477, %v6580
    %6582 = vmatmul.bf16.gmra.mxu0 %v2682
    %v6583 = vpop.f32.mrf.mxu0
    %v6584 = vadd.f32 %v6480, %v6583
    %v6585 = vpop.f32.mrf.mxu0
    %v6586 = vadd.f32 %v6482, %v6585
    %6587 = vmatmul.bf16.gmra.mxu0 %v2686
    %v6588 = vpop.f32.mrf.mxu0
    %v6589 = vadd.f32 %v6485, %v6588
    %v6590 = vpop.f32.mrf.mxu0
    %v6591 = vadd.f32 %v6487, %v6590
    %6592 = vmatmul.bf16.gmra.mxu0 %v2690
    %v6593 = vpop.f32.mrf.mxu0
    %v6594 = vadd.f32 %v6490, %v6593
    %v6595 = vpop.f32.mrf.mxu0
    %v6596 = vadd.f32 %v6492, %v6595
    %6597 = vmatmul.bf16.gmra.mxu0 %v2694
    %v6598 = vpop.f32.mrf.mxu0
    %v6599 = vadd.f32 %v6495, %v6598
    %v6600 = vpop.f32.mrf.mxu0
    %v6601 = vadd.f32 %v6497, %v6600
    %6602 = vmatmul.bf16.gmra.mxu0 %v2698
    %v6603 = vpop.f32.mrf.mxu0
    %v6604 = vadd.f32 %v6500, %v6603
    %v6605 = vpop.f32.mrf.mxu0
    %v6606 = vadd.f32 %v6502, %v6605
    %6607 = vmatmul.bf16.gmra.mxu0 %v2702
    %v6608 = vpop.f32.mrf.mxu0
    %v6609 = vadd.f32 %v6505, %v6608
    %v6610 = vpop.f32.mrf.mxu0
    %v6611 = vadd.f32 %v6507, %v6610
    %6612 = vmatmul.bf16.gmra.mxu0 %v2706
    %v6613 = vpop.f32.mrf.mxu0
    %v6614 = vadd.f32 %v6510, %v6613
    %v6615 = vpop.f32.mrf.mxu0
    %v6616 = vadd.f32 %v6512, %v6615
    %6617 = vmatmul.bf16.gmra.mxu0 %v2710
    %v6618 = vpop.f32.mrf.mxu0
    %v6619 = vadd.f32 %v6515, %v6618
    %v6620 = vpop.f32.mrf.mxu0
    %v6621 = vadd.f32 %v6517, %v6620
    %6622 = vmatmul.bf16.gmra.mxu0 %v2714
    %v6623 = vpop.f32.mrf.mxu0
    %v6624 = vadd.f32 %v6520, %v6623
    %v6625 = vpop.f32.mrf.mxu0
    %v6626 = vadd.f32 %v6522, %v6625
    %6627 = vmatmul.bf16.gmra.mxu0 %v2718
    %v6628 = vpop.f32.mrf.mxu0
    %v6629 = vadd.f32 %v6525, %v6628
    %v6630 = vpop.f32.mrf.mxu0
    %v6631 = vadd.f32 %v6527, %v6630
    %6632 = vmatmul.bf16.gmra.mxu0 %v2722
    %v6633 = vpop.f32.mrf.mxu0
    %v6634 = vadd.f32 %v6530, %v6633
    %v6635 = vpop.f32.mrf.mxu0
    %v6636 = vadd.f32 %v6532, %v6635
    %6637 = vmatmul.bf16.gmra.mxu0 %v2726
    %v6638 = vpop.f32.mrf.mxu0
    %v6639 = vadd.f32 %v6535, %v6638
    %v6640 = vpop.f32.mrf.mxu0
    %v6641 = vadd.f32 %v6537, %v6640
    %6642 = vmatmul.bf16.gmra.mxu0 %v2730
    %v6643 = vpop.f32.mrf.mxu0
    %v6644 = vadd.f32 %v6540, %v6643
    %v6645 = vpop.f32.mrf.mxu0
    %v6646 = vadd.f32 %v6542, %v6645
    %6647 = vmatmul.bf16.gmra.mxu0 %v2734
    %v6648 = vpop.f32.mrf.mxu0
    %v6649 = vadd.f32 %v6545, %v6648
    %v6650 = vpop.f32.mrf.mxu0
    %v6651 = vadd.f32 %v6547, %v6650
    %6652 = vmatmul.bf16.gmra.mxu0 %v2738
    %v6653 = vpop.f32.mrf.mxu0
    %v6654 = vadd.f32 %v6550, %v6653
    %v6655 = vpop.f32.mrf.mxu0
    %v6656 = vadd.f32 %v6552, %v6655
    %6657 = vmatmul.bf16.gmra.mxu0 %v2742
    %v6658 = vpop.f32.mrf.mxu0
    %v6659 = vadd.f32 %v6555, %v6658
    %v6660 = vpop.f32.mrf.mxu0
    %v6661 = vadd.f32 %v6557, %v6660
    %6662 = vdwg.mxu0
    %6663 = vmatpush.bf16.msra.mxu0 %v3774
    %6664 = vmatpush.bf16.msra.mxu0 %v3767
    %6665 = vmatpush.bf16.msra.mxu0 %v3760
    %6666 = vmatpush.bf16.msra.mxu0 %v3753
    %6667 = vmatpush.bf16.msra.mxu0 %v3746
    %6668 = vmatpush.bf16.msra.mxu0 %v3739
    %6669 = vmatpush.bf16.msra.mxu0 %v3732
    %6670 = vmatpush.bf16.msra.mxu0 %v3725
    %6671 = vmatmul.bf16.gmra.mxu0 %v2667
    %v6672 = vpop.f32.mrf.mxu0
    %v6673 = vadd.f32 %v3007, %v6672
    %v6674 = vpop.f32.mrf.mxu0
    %v6675 = vadd.f32 %v3007, %v6674
    %6676 = vmatmul.bf16.gmra.mxu0 %v2671
    %v6677 = vpop.f32.mrf.mxu0
    %v6678 = vadd.f32 %v3007, %v6677
    %v6679 = vpop.f32.mrf.mxu0
    %v6680 = vadd.f32 %v3007, %v6679
    %6681 = vmatmul.bf16.gmra.mxu0 %v2675
    %v6682 = vpop.f32.mrf.mxu0
    %v6683 = vadd.f32 %v3007, %v6682
    %v6684 = vpop.f32.mrf.mxu0
    %v6685 = vadd.f32 %v3007, %v6684
    %6686 = vmatmul.bf16.gmra.mxu0 %v2679
    %v6687 = vpop.f32.mrf.mxu0
    %v6688 = vadd.f32 %v3007, %v6687
    %v6689 = vpop.f32.mrf.mxu0
    %v6690 = vadd.f32 %v3007, %v6689
    %6691 = vmatmul.bf16.gmra.mxu0 %v2683
    %v6692 = vpop.f32.mrf.mxu0
    %v6693 = vadd.f32 %v3007, %v6692
    %v6694 = vpop.f32.mrf.mxu0
    %v6695 = vadd.f32 %v3007, %v6694
    %6696 = vmatmul.bf16.gmra.mxu0 %v2687
    %v6697 = vpop.f32.mrf.mxu0
    %v6698 = vadd.f32 %v3007, %v6697
    %v6699 = vpop.f32.mrf.mxu0
    %v6700 = vadd.f32 %v3007, %v6699
    %6701 = vmatmul.bf16.gmra.mxu0 %v2691
    %v6702 = vpop.f32.mrf.mxu0
    %v6703 = vadd.f32 %v3007, %v6702
    %v6704 = vpop.f32.mrf.mxu0
    %v6705 = vadd.f32 %v3007, %v6704
    %6706 = vmatmul.bf16.gmra.mxu0 %v2695
    %v6707 = vpop.f32.mrf.mxu0
    %v6708 = vadd.f32 %v3007, %v6707
    %v6709 = vpop.f32.mrf.mxu0
    %v6710 = vadd.f32 %v3007, %v6709
    %6711 = vmatmul.bf16.gmra.mxu0 %v2699
    %v6712 = vpop.f32.mrf.mxu0
    %v6713 = vadd.f32 %v3007, %v6712
    %v6714 = vpop.f32.mrf.mxu0
    %v6715 = vadd.f32 %v3007, %v6714
    %6716 = vmatmul.bf16.gmra.mxu0 %v2703
    %v6717 = vpop.f32.mrf.mxu0
    %v6718 = vadd.f32 %v3007, %v6717
    %v6719 = vpop.f32.mrf.mxu0
    %v6720 = vadd.f32 %v3007, %v6719
    %6721 = vmatmul.bf16.gmra.mxu0 %v2707
    %v6722 = vpop.f32.mrf.mxu0
    %v6723 = vadd.f32 %v3007, %v6722
    %v6724 = vpop.f32.mrf.mxu0
    %v6725 = vadd.f32 %v3007, %v6724
    %6726 = vmatmul.bf16.gmra.mxu0 %v2711
    %v6727 = vpop.f32.mrf.mxu0
    %v6728 = vadd.f32 %v3007, %v6727
    %v6729 = vpop.f32.mrf.mxu0
    %v6730 = vadd.f32 %v3007, %v6729
    %6731 = vmatmul.bf16.gmra.mxu0 %v2715
    %v6732 = vpop.f32.mrf.mxu0
    %v6733 = vadd.f32 %v3007, %v6732
    %v6734 = vpop.f32.mrf.mxu0
    %v6735 = vadd.f32 %v3007, %v6734
    %6736 = vmatmul.bf16.gmra.mxu0 %v2719
    %v6737 = vpop.f32.mrf.mxu0
    %v6738 = vadd.f32 %v3007, %v6737
    %v6739 = vpop.f32.mrf.mxu0
    %v6740 = vadd.f32 %v3007, %v6739
    %6741 = vmatmul.bf16.gmra.mxu0 %v2723
    %v6742 = vpop.f32.mrf.mxu0
    %v6743 = vadd.f32 %v3007, %v6742
    %v6744 = vpop.f32.mrf.mxu0
    %v6745 = vadd.f32 %v3007, %v6744
    %6746 = vmatmul.bf16.gmra.mxu0 %v2727
    %v6747 = vpop.f32.mrf.mxu0
    %v6748 = vadd.f32 %v3007, %v6747
    %v6749 = vpop.f32.mrf.mxu0
    %v6750 = vadd.f32 %v3007, %v6749
    %6751 = vmatmul.bf16.gmra.mxu0 %v2731
    %v6752 = vpop.f32.mrf.mxu0
    %v6753 = vadd.f32 %v3007, %v6752
    %v6754 = vpop.f32.mrf.mxu0
    %v6755 = vadd.f32 %v3007, %v6754
    %6756 = vmatmul.bf16.gmra.mxu0 %v2735
    %v6757 = vpop.f32.mrf.mxu0
    %v6758 = vadd.f32 %v3007, %v6757
    %v6759 = vpop.f32.mrf.mxu0
    %v6760 = vadd.f32 %v3007, %v6759
    %6761 = vmatmul.bf16.gmra.mxu0 %v2739
    %v6762 = vpop.f32.mrf.mxu0
    %v6763 = vadd.f32 %v3007, %v6762
    %v6764 = vpop.f32.mrf.mxu0
    %v6765 = vadd.f32 %v3007, %v6764
    %6766 = vdwg.mxu0
    %6767 = vmatpush.bf16.msra.mxu0 %v3830
    %6768 = vmatpush.bf16.msra.mxu0 %v3823
    %6769 = vmatpush.bf16.msra.mxu0 %v3816
    %6770 = vmatpush.bf16.msra.mxu0 %v3809
    %6771 = vmatpush.bf16.msra.mxu0 %v3802
    %6772 = vmatpush.bf16.msra.mxu0 %v3795
    %6773 = vmatpush.bf16.msra.mxu0 %v3788
    %6774 = vmatpush.bf16.msra.mxu0 %v3781
    %6775 = vmatmul.bf16.gmra.mxu0 %v2668
    %v6776 = vpop.f32.mrf.mxu0
    %v6777 = vadd.f32 %v6673, %v6776
    %v6778 = vpop.f32.mrf.mxu0
    %v6779 = vadd.f32 %v6675, %v6778
    %6780 = vmatmul.bf16.gmra.mxu0 %v2672
    %v6781 = vpop.f32.mrf.mxu0
    %v6782 = vadd.f32 %v6678, %v6781
    %v6783 = vpop.f32.mrf.mxu0
    %v6784 = vadd.f32 %v6680, %v6783
    %6785 = vmatmul.bf16.gmra.mxu0 %v2676
    %v6786 = vpop.f32.mrf.mxu0
    %v6787 = vadd.f32 %v6683, %v6786
    %v6788 = vpop.f32.mrf.mxu0
    %v6789 = vadd.f32 %v6685, %v6788
    %6790 = vmatmul.bf16.gmra.mxu0 %v2680
    %v6791 = vpop.f32.mrf.mxu0
    %v6792 = vadd.f32 %v6688, %v6791
    %v6793 = vpop.f32.mrf.mxu0
    %v6794 = vadd.f32 %v6690, %v6793
    %6795 = vmatmul.bf16.gmra.mxu0 %v2684
    %v6796 = vpop.f32.mrf.mxu0
    %v6797 = vadd.f32 %v6693, %v6796
    %v6798 = vpop.f32.mrf.mxu0
    %v6799 = vadd.f32 %v6695, %v6798
    %6800 = vmatmul.bf16.gmra.mxu0 %v2688
    %v6801 = vpop.f32.mrf.mxu0
    %v6802 = vadd.f32 %v6698, %v6801
    %v6803 = vpop.f32.mrf.mxu0
    %v6804 = vadd.f32 %v6700, %v6803
    %6805 = vmatmul.bf16.gmra.mxu0 %v2692
    %v6806 = vpop.f32.mrf.mxu0
    %v6807 = vadd.f32 %v6703, %v6806
    %v6808 = vpop.f32.mrf.mxu0
    %v6809 = vadd.f32 %v6705, %v6808
    %6810 = vmatmul.bf16.gmra.mxu0 %v2696
    %v6811 = vpop.f32.mrf.mxu0
    %v6812 = vadd.f32 %v6708, %v6811
    %v6813 = vpop.f32.mrf.mxu0
    %v6814 = vadd.f32 %v6710, %v6813
    %6815 = vmatmul.bf16.gmra.mxu0 %v2700
    %v6816 = vpop.f32.mrf.mxu0
    %v6817 = vadd.f32 %v6713, %v6816
    %v6818 = vpop.f32.mrf.mxu0
    %v6819 = vadd.f32 %v6715, %v6818
    %6820 = vmatmul.bf16.gmra.mxu0 %v2704
    %v6821 = vpop.f32.mrf.mxu0
    %v6822 = vadd.f32 %v6718, %v6821
    %v6823 = vpop.f32.mrf.mxu0
    %v6824 = vadd.f32 %v6720, %v6823
    %6825 = vmatmul.bf16.gmra.mxu0 %v2708
    %v6826 = vpop.f32.mrf.mxu0
    %v6827 = vadd.f32 %v6723, %v6826
    %v6828 = vpop.f32.mrf.mxu0
    %v6829 = vadd.f32 %v6725, %v6828
    %6830 = vmatmul.bf16.gmra.mxu0 %v2712
    %v6831 = vpop.f32.mrf.mxu0
    %v6832 = vadd.f32 %v6728, %v6831
    %v6833 = vpop.f32.mrf.mxu0
    %v6834 = vadd.f32 %v6730, %v6833
    %6835 = vmatmul.bf16.gmra.mxu0 %v2716
    %v6836 = vpop.f32.mrf.mxu0
    %v6837 = vadd.f32 %v6733, %v6836
    %v6838 = vpop.f32.mrf.mxu0
    %v6839 = vadd.f32 %v6735, %v6838
    %6840 = vmatmul.bf16.gmra.mxu0 %v2720
    %v6841 = vpop.f32.mrf.mxu0
    %v6842 = vadd.f32 %v6738, %v6841
    %v6843 = vpop.f32.mrf.mxu0
    %v6844 = vadd.f32 %v6740, %v6843
    %6845 = vmatmul.bf16.gmra.mxu0 %v2724
    %v6846 = vpop.f32.mrf.mxu0
    %v6847 = vadd.f32 %v6743, %v6846
    %v6848 = vpop.f32.mrf.mxu0
    %v6849 = vadd.f32 %v6745, %v6848
    %6850 = vmatmul.bf16.gmra.mxu0 %v2728
    %v6851 = vpop.f32.mrf.mxu0
    %v6852 = vadd.f32 %v6748, %v6851
    %v6853 = vpop.f32.mrf.mxu0
    %v6854 = vadd.f32 %v6750, %v6853
    %6855 = vmatmul.bf16.gmra.mxu0 %v2732
    %v6856 = vpop.f32.mrf.mxu0
    %v6857 = vadd.f32 %v6753, %v6856
    %v6858 = vpop.f32.mrf.mxu0
    %v6859 = vadd.f32 %v6755, %v6858
    %6860 = vmatmul.bf16.gmra.mxu0 %v2736
    %v6861 = vpop.f32.mrf.mxu0
    %v6862 = vadd.f32 %v6758, %v6861
    %v6863 = vpop.f32.mrf.mxu0
    %v6864 = vadd.f32 %v6760, %v6863
    %6865 = vmatmul.bf16.gmra.mxu0 %v2740
    %v6866 = vpop.f32.mrf.mxu0
    %v6867 = vadd.f32 %v6763, %v6866
    %v6868 = vpop.f32.mrf.mxu0
    %v6869 = vadd.f32 %v6765, %v6868
    %6870 = vdwg.mxu0
    %6871 = vmatpush.bf16.msra.mxu0 %v3886
    %6872 = vmatpush.bf16.msra.mxu0 %v3879
    %6873 = vmatpush.bf16.msra.mxu0 %v3872
    %6874 = vmatpush.bf16.msra.mxu0 %v3865
    %6875 = vmatpush.bf16.msra.mxu0 %v3858
    %6876 = vmatpush.bf16.msra.mxu0 %v3851
    %6877 = vmatpush.bf16.msra.mxu0 %v3844
    %6878 = vmatpush.bf16.msra.mxu0 %v3837
    %6879 = vmatmul.bf16.gmra.mxu0 %v2669
    %v6880 = vpop.f32.mrf.mxu0
    %v6881 = vadd.f32 %v6777, %v6880
    %v6882 = vpop.f32.mrf.mxu0
    %v6883 = vadd.f32 %v6779, %v6882
    %6884 = vmatmul.bf16.gmra.mxu0 %v2673
    %v6885 = vpop.f32.mrf.mxu0
    %v6886 = vadd.f32 %v6782, %v6885
    %v6887 = vpop.f32.mrf.mxu0
    %v6888 = vadd.f32 %v6784, %v6887
    %6889 = vmatmul.bf16.gmra.mxu0 %v2677
    %v6890 = vpop.f32.mrf.mxu0
    %v6891 = vadd.f32 %v6787, %v6890
    %v6892 = vpop.f32.mrf.mxu0
    %v6893 = vadd.f32 %v6789, %v6892
    %6894 = vmatmul.bf16.gmra.mxu0 %v2681
    %v6895 = vpop.f32.mrf.mxu0
    %v6896 = vadd.f32 %v6792, %v6895
    %v6897 = vpop.f32.mrf.mxu0
    %v6898 = vadd.f32 %v6794, %v6897
    %6899 = vmatmul.bf16.gmra.mxu0 %v2685
    %v6900 = vpop.f32.mrf.mxu0
    %v6901 = vadd.f32 %v6797, %v6900
    %v6902 = vpop.f32.mrf.mxu0
    %v6903 = vadd.f32 %v6799, %v6902
    %6904 = vmatmul.bf16.gmra.mxu0 %v2689
    %v6905 = vpop.f32.mrf.mxu0
    %v6906 = vadd.f32 %v6802, %v6905
    %v6907 = vpop.f32.mrf.mxu0
    %v6908 = vadd.f32 %v6804, %v6907
    %6909 = vmatmul.bf16.gmra.mxu0 %v2693
    %v6910 = vpop.f32.mrf.mxu0
    %v6911 = vadd.f32 %v6807, %v6910
    %v6912 = vpop.f32.mrf.mxu0
    %v6913 = vadd.f32 %v6809, %v6912
    %6914 = vmatmul.bf16.gmra.mxu0 %v2697
    %v6915 = vpop.f32.mrf.mxu0
    %v6916 = vadd.f32 %v6812, %v6915
    %v6917 = vpop.f32.mrf.mxu0
    %v6918 = vadd.f32 %v6814, %v6917
    %6919 = vmatmul.bf16.gmra.mxu0 %v2701
    %v6920 = vpop.f32.mrf.mxu0
    %v6921 = vadd.f32 %v6817, %v6920
    %v6922 = vpop.f32.mrf.mxu0
    %v6923 = vadd.f32 %v6819, %v6922
    %6924 = vmatmul.bf16.gmra.mxu0 %v2705
    %v6925 = vpop.f32.mrf.mxu0
    %v6926 = vadd.f32 %v6822, %v6925
    %v6927 = vpop.f32.mrf.mxu0
    %v6928 = vadd.f32 %v6824, %v6927
    %6929 = vmatmul.bf16.gmra.mxu0 %v2709
    %v6930 = vpop.f32.mrf.mxu0
    %v6931 = vadd.f32 %v6827, %v6930
    %v6932 = vpop.f32.mrf.mxu0
    %v6933 = vadd.f32 %v6829, %v6932
    %6934 = vmatmul.bf16.gmra.mxu0 %v2713
    %v6935 = vpop.f32.mrf.mxu0
    %v6936 = vadd.f32 %v6832, %v6935
    %v6937 = vpop.f32.mrf.mxu0
    %v6938 = vadd.f32 %v6834, %v6937
    %6939 = vmatmul.bf16.gmra.mxu0 %v2717
    %v6940 = vpop.f32.mrf.mxu0
    %v6941 = vadd.f32 %v6837, %v6940
    %v6942 = vpop.f32.mrf.mxu0
    %v6943 = vadd.f32 %v6839, %v6942
    %6944 = vmatmul.bf16.gmra.mxu0 %v2721
    %v6945 = vpop.f32.mrf.mxu0
    %v6946 = vadd.f32 %v6842, %v6945
    %v6947 = vpop.f32.mrf.mxu0
    %v6948 = vadd.f32 %v6844, %v6947
    %6949 = vmatmul.bf16.gmra.mxu0 %v2725
    %v6950 = vpop.f32.mrf.mxu0
    %v6951 = vadd.f32 %v6847, %v6950
    %v6952 = vpop.f32.mrf.mxu0
    %v6953 = vadd.f32 %v6849, %v6952
    %6954 = vmatmul.bf16.gmra.mxu0 %v2729
    %v6955 = vpop.f32.mrf.mxu0
    %v6956 = vadd.f32 %v6852, %v6955
    %v6957 = vpop.f32.mrf.mxu0
    %v6958 = vadd.f32 %v6854, %v6957
    %6959 = vmatmul.bf16.gmra.mxu0 %v2733
    %v6960 = vpop.f32.mrf.mxu0
    %v6961 = vadd.f32 %v6857, %v6960
    %v6962 = vpop.f32.mrf.mxu0
    %v6963 = vadd.f32 %v6859, %v6962
    %6964 = vmatmul.bf16.gmra.mxu0 %v2737
    %v6965 = vpop.f32.mrf.mxu0
    %v6966 = vadd.f32 %v6862, %v6965
    %v6967 = vpop.f32.mrf.mxu0
    %v6968 = vadd.f32 %v6864, %v6967
    %6969 = vmatmul.bf16.gmra.mxu0 %v2741
    %v6970 = vpop.f32.mrf.mxu0
    %v6971 = vadd.f32 %v6867, %v6970
    %v6972 = vpop.f32.mrf.mxu0
    %v6973 = vadd.f32 %v6869, %v6972
    %6974 = vdwg.mxu0
    %6975 = vmatpush.bf16.msra.mxu0 %v3942
    %6976 = vmatpush.bf16.msra.mxu0 %v3935
    %6977 = vmatpush.bf16.msra.mxu0 %v3928
    %6978 = vmatpush.bf16.msra.mxu0 %v3921
    %6979 = vmatpush.bf16.msra.mxu0 %v3914
    %6980 = vmatpush.bf16.msra.mxu0 %v3907
    %6981 = vmatpush.bf16.msra.mxu0 %v3900
    %6982 = vmatpush.bf16.msra.mxu0 %v3893
    %6983 = vmatmul.bf16.gmra.mxu0 %v2670
    %v6984 = vpop.f32.mrf.mxu0
    %v6985 = vadd.f32 %v6881, %v6984
    %v6986 = vpop.f32.mrf.mxu0
    %v6987 = vadd.f32 %v6883, %v6986
    %6988 = vmatmul.bf16.gmra.mxu0 %v2674
    %v6989 = vpop.f32.mrf.mxu0
    %v6990 = vadd.f32 %v6886, %v6989
    %v6991 = vpop.f32.mrf.mxu0
    %v6992 = vadd.f32 %v6888, %v6991
    %6993 = vmatmul.bf16.gmra.mxu0 %v2678
    %v6994 = vpop.f32.mrf.mxu0
    %v6995 = vadd.f32 %v6891, %v6994
    %v6996 = vpop.f32.mrf.mxu0
    %v6997 = vadd.f32 %v6893, %v6996
    %6998 = vmatmul.bf16.gmra.mxu0 %v2682
    %v6999 = vpop.f32.mrf.mxu0
    %v7000 = vadd.f32 %v6896, %v6999
    %v7001 = vpop.f32.mrf.mxu0
    %v7002 = vadd.f32 %v6898, %v7001
    %7003 = vmatmul.bf16.gmra.mxu0 %v2686
    %v7004 = vpop.f32.mrf.mxu0
    %v7005 = vadd.f32 %v6901, %v7004
    %v7006 = vpop.f32.mrf.mxu0
    %v7007 = vadd.f32 %v6903, %v7006
    %7008 = vmatmul.bf16.gmra.mxu0 %v2690
    %v7009 = vpop.f32.mrf.mxu0
    %v7010 = vadd.f32 %v6906, %v7009
    %v7011 = vpop.f32.mrf.mxu0
    %v7012 = vadd.f32 %v6908, %v7011
    %7013 = vmatmul.bf16.gmra.mxu0 %v2694
    %v7014 = vpop.f32.mrf.mxu0
    %v7015 = vadd.f32 %v6911, %v7014
    %v7016 = vpop.f32.mrf.mxu0
    %v7017 = vadd.f32 %v6913, %v7016
    %7018 = vmatmul.bf16.gmra.mxu0 %v2698
    %v7019 = vpop.f32.mrf.mxu0
    %v7020 = vadd.f32 %v6916, %v7019
    %v7021 = vpop.f32.mrf.mxu0
    %v7022 = vadd.f32 %v6918, %v7021
    %7023 = vmatmul.bf16.gmra.mxu0 %v2702
    %v7024 = vpop.f32.mrf.mxu0
    %v7025 = vadd.f32 %v6921, %v7024
    %v7026 = vpop.f32.mrf.mxu0
    %v7027 = vadd.f32 %v6923, %v7026
    %7028 = vmatmul.bf16.gmra.mxu0 %v2706
    %v7029 = vpop.f32.mrf.mxu0
    %v7030 = vadd.f32 %v6926, %v7029
    %v7031 = vpop.f32.mrf.mxu0
    %v7032 = vadd.f32 %v6928, %v7031
    %7033 = vmatmul.bf16.gmra.mxu0 %v2710
    %v7034 = vpop.f32.mrf.mxu0
    %v7035 = vadd.f32 %v6931, %v7034
    %v7036 = vpop.f32.mrf.mxu0
    %v7037 = vadd.f32 %v6933, %v7036
    %7038 = vmatmul.bf16.gmra.mxu0 %v2714
    %v7039 = vpop.f32.mrf.mxu0
    %v7040 = vadd.f32 %v6936, %v7039
    %v7041 = vpop.f32.mrf.mxu0
    %v7042 = vadd.f32 %v6938, %v7041
    %7043 = vmatmul.bf16.gmra.mxu0 %v2718
    %v7044 = vpop.f32.mrf.mxu0
    %v7045 = vadd.f32 %v6941, %v7044
    %v7046 = vpop.f32.mrf.mxu0
    %v7047 = vadd.f32 %v6943, %v7046
    %7048 = vmatmul.bf16.gmra.mxu0 %v2722
    %v7049 = vpop.f32.mrf.mxu0
    %v7050 = vadd.f32 %v6946, %v7049
    %v7051 = vpop.f32.mrf.mxu0
    %v7052 = vadd.f32 %v6948, %v7051
    %7053 = vmatmul.bf16.gmra.mxu0 %v2726
    %v7054 = vpop.f32.mrf.mxu0
    %v7055 = vadd.f32 %v6951, %v7054
    %v7056 = vpop.f32.mrf.mxu0
    %v7057 = vadd.f32 %v6953, %v7056
    %7058 = vmatmul.bf16.gmra.mxu0 %v2730
    %v7059 = vpop.f32.mrf.mxu0
    %v7060 = vadd.f32 %v6956, %v7059
    %v7061 = vpop.f32.mrf.mxu0
    %v7062 = vadd.f32 %v6958, %v7061
    %7063 = vmatmul.bf16.gmra.mxu0 %v2734
    %v7064 = vpop.f32.mrf.mxu0
    %v7065 = vadd.f32 %v6961, %v7064
    %v7066 = vpop.f32.mrf.mxu0
    %v7067 = vadd.f32 %v6963, %v7066
    %7068 = vmatmul.bf16.gmra.mxu0 %v2738
    %v7069 = vpop.f32.mrf.mxu0
    %v7070 = vadd.f32 %v6966, %v7069
    %v7071 = vpop.f32.mrf.mxu0
    %v7072 = vadd.f32 %v6968, %v7071
    %7073 = vmatmul.bf16.gmra.mxu0 %v2742
    %v7074 = vpop.f32.mrf.mxu0
    %v7075 = vadd.f32 %v6971, %v7074
    %v7076 = vpop.f32.mrf.mxu0
    %v7077 = vadd.f32 %v6973, %v7076
    %7078 = vdwg.mxu0
    %v7079 = vsub.f32 0.0, %v4489
    %v7080 = vsub.f32 0.0, %v4905
    %v7081 = vsub.f32 0.0, %v5321
    %v7082 = vsub.f32 0.0, %v5737
    %v7083 = vsub.f32 0.0, %v6153
    %v7084 = vsub.f32 0.0, %v6569
    %v7085 = vsub.f32 0.0, %v6985
    %v7086 = vsub.f32 0.0, %v4491
    %v7087 = vsub.f32 0.0, %v4907
    %v7088 = vsub.f32 0.0, %v5323
    %v7089 = vsub.f32 0.0, %v5739
    %v7090 = vsub.f32 0.0, %v6155
    %v7091 = vsub.f32 0.0, %v6571
    %v7092 = vsub.f32 0.0, %v6987
    %v7093 = vsub.f32 0.0, %v4494
    %v7094 = vsub.f32 0.0, %v4910
    %v7095 = vsub.f32 0.0, %v5326
    %v7096 = vsub.f32 0.0, %v5742
    %v7097 = vsub.f32 0.0, %v6158
    %v7098 = vsub.f32 0.0, %v6574
    %v7099 = vsub.f32 0.0, %v6990
    %v7100 = vsub.f32 0.0, %v4496
    %v7101 = vsub.f32 0.0, %v4912
    %v7102 = vsub.f32 0.0, %v5328
    %v7103 = vsub.f32 0.0, %v5744
    %v7104 = vsub.f32 0.0, %v6160
    %v7105 = vsub.f32 0.0, %v6576
    %v7106 = vsub.f32 0.0, %v6992
    %v7107 = vsub.f32 0.0, %v4499
    %v7108 = vsub.f32 0.0, %v4915
    %v7109 = vsub.f32 0.0, %v5331
    %v7110 = vsub.f32 0.0, %v5747
    %v7111 = vsub.f32 0.0, %v6163
    %v7112 = vsub.f32 0.0, %v6579
    %v7113 = vsub.f32 0.0, %v6995
    %v7114 = vsub.f32 0.0, %v4501
    %v7115 = vsub.f32 0.0, %v4917
    %v7116 = vsub.f32 0.0, %v5333
    %v7117 = vsub.f32 0.0, %v5749
    %v7118 = vsub.f32 0.0, %v6165
    %v7119 = vsub.f32 0.0, %v6581
    %v7120 = vsub.f32 0.0, %v6997
    %v7121 = vsub.f32 0.0, %v4504
    %v7122 = vsub.f32 0.0, %v4920
    %v7123 = vsub.f32 0.0, %v5336
    %v7124 = vsub.f32 0.0, %v5752
    %v7125 = vsub.f32 0.0, %v6168
    %v7126 = vsub.f32 0.0, %v6584
    %v7127 = vsub.f32 0.0, %v7000
    %v7128 = vsub.f32 0.0, %v4506
    %v7129 = vsub.f32 0.0, %v4922
    %v7130 = vsub.f32 0.0, %v5338
    %v7131 = vsub.f32 0.0, %v5754
    %v7132 = vsub.f32 0.0, %v6170
    %v7133 = vsub.f32 0.0, %v6586
    %v7134 = vsub.f32 0.0, %v7002
    %v7135 = vsub.f32 0.0, %v4509
    %v7136 = vsub.f32 0.0, %v4925
    %v7137 = vsub.f32 0.0, %v5341
    %v7138 = vsub.f32 0.0, %v5757
    %v7139 = vsub.f32 0.0, %v6173
    %v7140 = vsub.f32 0.0, %v6589
    %v7141 = vsub.f32 0.0, %v7005
    %v7142 = vsub.f32 0.0, %v4511
    %v7143 = vsub.f32 0.0, %v4927
    %v7144 = vsub.f32 0.0, %v5343
    %v7145 = vsub.f32 0.0, %v5759
    %v7146 = vsub.f32 0.0, %v6175
    %v7147 = vsub.f32 0.0, %v6591
    %v7148 = vsub.f32 0.0, %v7007
    %v7149 = vsub.f32 0.0, %v4514
    %v7150 = vsub.f32 0.0, %v4930
    %v7151 = vsub.f32 0.0, %v5346
    %v7152 = vsub.f32 0.0, %v5762
    %v7153 = vsub.f32 0.0, %v6178
    %v7154 = vsub.f32 0.0, %v6594
    %v7155 = vsub.f32 0.0, %v7010
    %v7156 = vsub.f32 0.0, %v4516
    %v7157 = vsub.f32 0.0, %v4932
    %v7158 = vsub.f32 0.0, %v5348
    %v7159 = vsub.f32 0.0, %v5764
    %v7160 = vsub.f32 0.0, %v6180
    %v7161 = vsub.f32 0.0, %v6596
    %v7162 = vsub.f32 0.0, %v7012
    %v7163 = vsub.f32 0.0, %v4519
    %v7164 = vsub.f32 0.0, %v4935
    %v7165 = vsub.f32 0.0, %v5351
    %v7166 = vsub.f32 0.0, %v5767
    %v7167 = vsub.f32 0.0, %v6183
    %v7168 = vsub.f32 0.0, %v6599
    %v7169 = vsub.f32 0.0, %v7015
    %v7170 = vsub.f32 0.0, %v4521
    %v7171 = vsub.f32 0.0, %v4937
    %v7172 = vsub.f32 0.0, %v5353
    %v7173 = vsub.f32 0.0, %v5769
    %v7174 = vsub.f32 0.0, %v6185
    %v7175 = vsub.f32 0.0, %v6601
    %v7176 = vsub.f32 0.0, %v7017
    %v7177 = vsub.f32 0.0, %v4524
    %v7178 = vsub.f32 0.0, %v4940
    %v7179 = vsub.f32 0.0, %v5356
    %v7180 = vsub.f32 0.0, %v5772
    %v7181 = vsub.f32 0.0, %v6188
    %v7182 = vsub.f32 0.0, %v6604
    %v7183 = vsub.f32 0.0, %v7020
    %v7184 = vsub.f32 0.0, %v4526
    %v7185 = vsub.f32 0.0, %v4942
    %v7186 = vsub.f32 0.0, %v5358
    %v7187 = vsub.f32 0.0, %v5774
    %v7188 = vsub.f32 0.0, %v6190
    %v7189 = vsub.f32 0.0, %v6606
    %v7190 = vsub.f32 0.0, %v7022
    %v7191 = vsub.f32 0.0, %v4529
    %v7192 = vsub.f32 0.0, %v4945
    %v7193 = vsub.f32 0.0, %v5361
    %v7194 = vsub.f32 0.0, %v5777
    %v7195 = vsub.f32 0.0, %v6193
    %v7196 = vsub.f32 0.0, %v6609
    %v7197 = vsub.f32 0.0, %v7025
    %v7198 = vsub.f32 0.0, %v4531
    %v7199 = vsub.f32 0.0, %v4947
    %v7200 = vsub.f32 0.0, %v5363
    %v7201 = vsub.f32 0.0, %v5779
    %v7202 = vsub.f32 0.0, %v6195
    %v7203 = vsub.f32 0.0, %v6611
    %v7204 = vsub.f32 0.0, %v7027
    %v7205 = vsub.f32 0.0, %v4534
    %v7206 = vsub.f32 0.0, %v4950
    %v7207 = vsub.f32 0.0, %v5366
    %v7208 = vsub.f32 0.0, %v5782
    %v7209 = vsub.f32 0.0, %v6198
    %v7210 = vsub.f32 0.0, %v6614
    %v7211 = vsub.f32 0.0, %v7030
    %v7212 = vsub.f32 0.0, %v4536
    %v7213 = vsub.f32 0.0, %v4952
    %v7214 = vsub.f32 0.0, %v5368
    %v7215 = vsub.f32 0.0, %v5784
    %v7216 = vsub.f32 0.0, %v6200
    %v7217 = vsub.f32 0.0, %v6616
    %v7218 = vsub.f32 0.0, %v7032
    %v7219 = vsub.f32 0.0, %v4539
    %v7220 = vsub.f32 0.0, %v4955
    %v7221 = vsub.f32 0.0, %v5371
    %v7222 = vsub.f32 0.0, %v5787
    %v7223 = vsub.f32 0.0, %v6203
    %v7224 = vsub.f32 0.0, %v6619
    %v7225 = vsub.f32 0.0, %v7035
    %v7226 = vsub.f32 0.0, %v4541
    %v7227 = vsub.f32 0.0, %v4957
    %v7228 = vsub.f32 0.0, %v5373
    %v7229 = vsub.f32 0.0, %v5789
    %v7230 = vsub.f32 0.0, %v6205
    %v7231 = vsub.f32 0.0, %v6621
    %v7232 = vsub.f32 0.0, %v7037
    %v7233 = vsub.f32 0.0, %v4544
    %v7234 = vsub.f32 0.0, %v4960
    %v7235 = vsub.f32 0.0, %v5376
    %v7236 = vsub.f32 0.0, %v5792
    %v7237 = vsub.f32 0.0, %v6208
    %v7238 = vsub.f32 0.0, %v6624
    %v7239 = vsub.f32 0.0, %v7040
    %v7240 = vsub.f32 0.0, %v4546
    %v7241 = vsub.f32 0.0, %v4962
    %v7242 = vsub.f32 0.0, %v5378
    %v7243 = vsub.f32 0.0, %v5794
    %v7244 = vsub.f32 0.0, %v6210
    %v7245 = vsub.f32 0.0, %v6626
    %v7246 = vsub.f32 0.0, %v7042
    %v7247 = vsub.f32 0.0, %v4549
    %v7248 = vsub.f32 0.0, %v4965
    %v7249 = vsub.f32 0.0, %v5381
    %v7250 = vsub.f32 0.0, %v5797
    %v7251 = vsub.f32 0.0, %v6213
    %v7252 = vsub.f32 0.0, %v6629
    %v7253 = vsub.f32 0.0, %v7045
    %v7254 = vsub.f32 0.0, %v4551
    %v7255 = vsub.f32 0.0, %v4967
    %v7256 = vsub.f32 0.0, %v5383
    %v7257 = vsub.f32 0.0, %v5799
    %v7258 = vsub.f32 0.0, %v6215
    %v7259 = vsub.f32 0.0, %v6631
    %v7260 = vsub.f32 0.0, %v7047
    %v7261 = vsub.f32 0.0, %v4554
    %v7262 = vsub.f32 0.0, %v4970
    %v7263 = vsub.f32 0.0, %v5386
    %v7264 = vsub.f32 0.0, %v5802
    %v7265 = vsub.f32 0.0, %v6218
    %v7266 = vsub.f32 0.0, %v6634
    %v7267 = vsub.f32 0.0, %v7050
    %v7268 = vsub.f32 0.0, %v4556
    %v7269 = vsub.f32 0.0, %v4972
    %v7270 = vsub.f32 0.0, %v5388
    %v7271 = vsub.f32 0.0, %v5804
    %v7272 = vsub.f32 0.0, %v6220
    %v7273 = vsub.f32 0.0, %v6636
    %v7274 = vsub.f32 0.0, %v7052
    %v7275 = vsub.f32 0.0, %v4559
    %v7276 = vsub.f32 0.0, %v4975
    %v7277 = vsub.f32 0.0, %v5391
    %v7278 = vsub.f32 0.0, %v5807
    %v7279 = vsub.f32 0.0, %v6223
    %v7280 = vsub.f32 0.0, %v6639
    %v7281 = vsub.f32 0.0, %v7055
    %v7282 = vsub.f32 0.0, %v4561
    %v7283 = vsub.f32 0.0, %v4977
    %v7284 = vsub.f32 0.0, %v5393
    %v7285 = vsub.f32 0.0, %v5809
    %v7286 = vsub.f32 0.0, %v6225
    %v7287 = vsub.f32 0.0, %v6641
    %v7288 = vsub.f32 0.0, %v7057
    %v7289 = vsub.f32 0.0, %v4564
    %v7290 = vsub.f32 0.0, %v4980
    %v7291 = vsub.f32 0.0, %v5396
    %v7292 = vsub.f32 0.0, %v5812
    %v7293 = vsub.f32 0.0, %v6228
    %v7294 = vsub.f32 0.0, %v6644
    %v7295 = vsub.f32 0.0, %v7060
    %v7296 = vsub.f32 0.0, %v4566
    %v7297 = vsub.f32 0.0, %v4982
    %v7298 = vsub.f32 0.0, %v5398
    %v7299 = vsub.f32 0.0, %v5814
    %v7300 = vsub.f32 0.0, %v6230
    %v7301 = vsub.f32 0.0, %v6646
    %v7302 = vsub.f32 0.0, %v7062
    %v7303 = vsub.f32 0.0, %v4569
    %v7304 = vsub.f32 0.0, %v4985
    %v7305 = vsub.f32 0.0, %v5401
    %v7306 = vsub.f32 0.0, %v5817
    %v7307 = vsub.f32 0.0, %v6233
    %v7308 = vsub.f32 0.0, %v6649
    %v7309 = vsub.f32 0.0, %v7065
    %v7310 = vsub.f32 0.0, %v4571
    %v7311 = vsub.f32 0.0, %v4987
    %v7312 = vsub.f32 0.0, %v5403
    %v7313 = vsub.f32 0.0, %v5819
    %v7314 = vsub.f32 0.0, %v6235
    %v7315 = vsub.f32 0.0, %v6651
    %v7316 = vsub.f32 0.0, %v7067
    %v7317 = vsub.f32 0.0, %v4574
    %v7318 = vsub.f32 0.0, %v4990
    %v7319 = vsub.f32 0.0, %v5406
    %v7320 = vsub.f32 0.0, %v5822
    %v7321 = vsub.f32 0.0, %v6238
    %v7322 = vsub.f32 0.0, %v6654
    %v7323 = vsub.f32 0.0, %v7070
    %v7324 = vsub.f32 0.0, %v4576
    %v7325 = vsub.f32 0.0, %v4992
    %v7326 = vsub.f32 0.0, %v5408
    %v7327 = vsub.f32 0.0, %v5824
    %v7328 = vsub.f32 0.0, %v6240
    %v7329 = vsub.f32 0.0, %v6656
    %v7330 = vsub.f32 0.0, %v7072
    %v7331 = vsub.f32 0.0, %v4579
    %v7332 = vsub.f32 0.0, %v4995
    %v7333 = vsub.f32 0.0, %v5411
    %v7334 = vsub.f32 0.0, %v5827
    %v7335 = vsub.f32 0.0, %v6243
    %v7336 = vsub.f32 0.0, %v6659
    %v7337 = vsub.f32 0.0, %v7075
    %v7338 = vsub.f32 0.0, %v4581
    %v7339 = vsub.f32 0.0, %v4997
    %v7340 = vsub.f32 0.0, %v5413
    %v7341 = vsub.f32 0.0, %v5829
    %v7342 = vsub.f32 0.0, %v6245
    %v7343 = vsub.f32 0.0, %v6661
    %v7344 = vsub.f32 0.0, %v7077
    %v7345 = vmul.f32 %v7079, 1.442695
    %v7346 = vpow.pop %v7345
    %v7347 = vmul.f32 %v7080, 1.442695
    %v7348 = vpow.pop %v7347
    %v7349 = vmul.f32 %v7081, 1.442695
    %v7350 = vpow.pop %v7349
    %v7351 = vmul.f32 %v7082, 1.442695
    %v7352 = vpow.pop %v7351
    %v7353 = vmul.f32 %v7083, 1.442695
    %v7354 = vpow.pop %v7353
    %v7355 = vmul.f32 %v7084, 1.442695
    %v7356 = vpow.pop %v7355
    %v7357 = vmul.f32 %v7085, 1.442695
    %v7358 = vpow.pop %v7357
    %v7359 = vmul.f32 %v7086, 1.442695
    %v7360 = vpow.pop %v7359
    %v7361 = vmul.f32 %v7087, 1.442695
    %v7362 = vpow.pop %v7361
    %v7363 = vmul.f32 %v7088, 1.442695
    %v7364 = vpow.pop %v7363
    %v7365 = vmul.f32 %v7089, 1.442695
    %v7366 = vpow.pop %v7365
    %v7367 = vmul.f32 %v7090, 1.442695
    %v7368 = vpow.pop %v7367
    %v7369 = vmul.f32 %v7091, 1.442695
    %v7370 = vpow.pop %v7369
    %v7371 = vmul.f32 %v7092, 1.442695
    %v7372 = vpow.pop %v7371
    %v7373 = vmul.f32 %v7093, 1.442695
    %v7374 = vpow.pop %v7373
    %v7375 = vmul.f32 %v7094, 1.442695
    %v7376 = vpow.pop %v7375
    %v7377 = vmul.f32 %v7095, 1.442695
    %v7378 = vpow.pop %v7377
    %v7379 = vmul.f32 %v7096, 1.442695
    %v7380 = vpow.pop %v7379
    %v7381 = vmul.f32 %v7097, 1.442695
    %v7382 = vpow.pop %v7381
    %v7383 = vmul.f32 %v7098, 1.442695
    %v7384 = vpow.pop %v7383
    %v7385 = vmul.f32 %v7099, 1.442695
    %v7386 = vpow.pop %v7385
    %v7387 = vmul.f32 %v7100, 1.442695
    %v7388 = vpow.pop %v7387
    %v7389 = vmul.f32 %v7101, 1.442695
    %v7390 = vpow.pop %v7389
    %v7391 = vmul.f32 %v7102, 1.442695
    %v7392 = vpow.pop %v7391
    %v7393 = vmul.f32 %v7103, 1.442695
    %v7394 = vpow.pop %v7393
    %v7395 = vmul.f32 %v7104, 1.442695
    %v7396 = vpow.pop %v7395
    %v7397 = vmul.f32 %v7105, 1.442695
    %v7398 = vpow.pop %v7397
    %v7399 = vmul.f32 %v7106, 1.442695
    %v7400 = vpow.pop %v7399
    %v7401 = vmul.f32 %v7107, 1.442695
    %v7402 = vpow.pop %v7401
    %v7403 = vmul.f32 %v7108, 1.442695
    %v7404 = vpow.pop %v7403
    %v7405 = vmul.f32 %v7109, 1.442695
    %v7406 = vpow.pop %v7405
    %v7407 = vmul.f32 %v7110, 1.442695
    %v7408 = vpow.pop %v7407
    %v7409 = vmul.f32 %v7111, 1.442695
    %v7410 = vpow.pop %v7409
    %v7411 = vmul.f32 %v7112, 1.442695
    %v7412 = vpow.pop %v7411
    %v7413 = vmul.f32 %v7113, 1.442695
    %v7414 = vpow.pop %v7413
    %v7415 = vmul.f32 %v7114, 1.442695
    %v7416 = vpow.pop %v7415
    %v7417 = vmul.f32 %v7115, 1.442695
    %v7418 = vpow.pop %v7417
    %v7419 = vmul.f32 %v7116, 1.442695
    %v7420 = vpow.pop %v7419
    %v7421 = vmul.f32 %v7117, 1.442695
    %v7422 = vpow.pop %v7421
    %v7423 = vmul.f32 %v7118, 1.442695
    %v7424 = vpow.pop %v7423
    %v7425 = vmul.f32 %v7119, 1.442695
    %v7426 = vpow.pop %v7425
    %v7427 = vmul.f32 %v7120, 1.442695
    %v7428 = vpow.pop %v7427
    %v7429 = vmul.f32 %v7121, 1.442695
    %v7430 = vpow.pop %v7429
    %v7431 = vmul.f32 %v7122, 1.442695
    %v7432 = vpow.pop %v7431
    %v7433 = vmul.f32 %v7123, 1.442695
    %v7434 = vpow.pop %v7433
    %v7435 = vmul.f32 %v7124, 1.442695
    %v7436 = vpow.pop %v7435
    %v7437 = vmul.f32 %v7125, 1.442695
    %v7438 = vpow.pop %v7437
    %v7439 = vmul.f32 %v7126, 1.442695
    %v7440 = vpow.pop %v7439
    %v7441 = vmul.f32 %v7127, 1.442695
    %v7442 = vpow.pop %v7441
    %v7443 = vmul.f32 %v7128, 1.442695
    %v7444 = vpow.pop %v7443
    %v7445 = vmul.f32 %v7129, 1.442695
    %v7446 = vpow.pop %v7445
    %v7447 = vmul.f32 %v7130, 1.442695
    %v7448 = vpow.pop %v7447
    %v7449 = vmul.f32 %v7131, 1.442695
    %v7450 = vpow.pop %v7449
    %v7451 = vmul.f32 %v7132, 1.442695
    %v7452 = vpow.pop %v7451
    %v7453 = vmul.f32 %v7133, 1.442695
    %v7454 = vpow.pop %v7453
    %v7455 = vmul.f32 %v7134, 1.442695
    %v7456 = vpow.pop %v7455
    %v7457 = vmul.f32 %v7135, 1.442695
    %v7458 = vpow.pop %v7457
    %v7459 = vmul.f32 %v7136, 1.442695
    %v7460 = vpow.pop %v7459
    %v7461 = vmul.f32 %v7137, 1.442695
    %v7462 = vpow.pop %v7461
    %v7463 = vmul.f32 %v7138, 1.442695
    %v7464 = vpow.pop %v7463
    %v7465 = vmul.f32 %v7139, 1.442695
    %v7466 = vpow.pop %v7465
    %v7467 = vmul.f32 %v7140, 1.442695
    %v7468 = vpow.pop %v7467
    %v7469 = vmul.f32 %v7141, 1.442695
    %v7470 = vpow.pop %v7469
    %v7471 = vmul.f32 %v7142, 1.442695
    %v7472 = vpow.pop %v7471
    %v7473 = vmul.f32 %v7143, 1.442695
    %v7474 = vpow.pop %v7473
    %v7475 = vmul.f32 %v7144, 1.442695
    %v7476 = vpow.pop %v7475
    %v7477 = vmul.f32 %v7145, 1.442695
    %v7478 = vpow.pop %v7477
    %v7479 = vmul.f32 %v7146, 1.442695
    %v7480 = vpow.pop %v7479
    %v7481 = vmul.f32 %v7147, 1.442695
    %v7482 = vpow.pop %v7481
    %v7483 = vmul.f32 %v7148, 1.442695
    %v7484 = vpow.pop %v7483
    %v7485 = vmul.f32 %v7149, 1.442695
    %v7486 = vpow.pop %v7485
    %v7487 = vmul.f32 %v7150, 1.442695
    %v7488 = vpow.pop %v7487
    %v7489 = vmul.f32 %v7151, 1.442695
    %v7490 = vpow.pop %v7489
    %v7491 = vmul.f32 %v7152, 1.442695
    %v7492 = vpow.pop %v7491
    %v7493 = vmul.f32 %v7153, 1.442695
    %v7494 = vpow.pop %v7493
    %v7495 = vmul.f32 %v7154, 1.442695
    %v7496 = vpow.pop %v7495
    %v7497 = vmul.f32 %v7155, 1.442695
    %v7498 = vpow.pop %v7497
    %v7499 = vmul.f32 %v7156, 1.442695
    %v7500 = vpow.pop %v7499
    %v7501 = vmul.f32 %v7157, 1.442695
    %v7502 = vpow.pop %v7501
    %v7503 = vmul.f32 %v7158, 1.442695
    %v7504 = vpow.pop %v7503
    %v7505 = vmul.f32 %v7159, 1.442695
    %v7506 = vpow.pop %v7505
    %v7507 = vmul.f32 %v7160, 1.442695
    %v7508 = vpow.pop %v7507
    %v7509 = vmul.f32 %v7161, 1.442695
    %v7510 = vpow.pop %v7509
    %v7511 = vmul.f32 %v7162, 1.442695
    %v7512 = vpow.pop %v7511
    %v7513 = vmul.f32 %v7163, 1.442695
    %v7514 = vpow.pop %v7513
    %v7515 = vmul.f32 %v7164, 1.442695
    %v7516 = vpow.pop %v7515
    %v7517 = vmul.f32 %v7165, 1.442695
    %v7518 = vpow.pop %v7517
    %v7519 = vmul.f32 %v7166, 1.442695
    %v7520 = vpow.pop %v7519
    %v7521 = vmul.f32 %v7167, 1.442695
    %v7522 = vpow.pop %v7521
    %v7523 = vmul.f32 %v7168, 1.442695
    %v7524 = vpow.pop %v7523
    %v7525 = vmul.f32 %v7169, 1.442695
    %v7526 = vpow.pop %v7525
    %v7527 = vmul.f32 %v7170, 1.442695
    %v7528 = vpow.pop %v7527
    %v7529 = vmul.f32 %v7171, 1.442695
    %v7530 = vpow.pop %v7529
    %v7531 = vmul.f32 %v7172, 1.442695
    %v7532 = vpow.pop %v7531
    %v7533 = vmul.f32 %v7173, 1.442695
    %v7534 = vpow.pop %v7533
    %v7535 = vmul.f32 %v7174, 1.442695
    %v7536 = vpow.pop %v7535
    %v7537 = vmul.f32 %v7175, 1.442695
    %v7538 = vpow.pop %v7537
    %v7539 = vmul.f32 %v7176, 1.442695
    %v7540 = vpow.pop %v7539
    %v7541 = vmul.f32 %v7177, 1.442695
    %v7542 = vpow.pop %v7541
    %v7543 = vmul.f32 %v7178, 1.442695
    %v7544 = vpow.pop %v7543
    %v7545 = vmul.f32 %v7179, 1.442695
    %v7546 = vpow.pop %v7545
    %v7547 = vmul.f32 %v7180, 1.442695
    %v7548 = vpow.pop %v7547
    %v7549 = vmul.f32 %v7181, 1.442695
    %v7550 = vpow.pop %v7549
    %v7551 = vmul.f32 %v7182, 1.442695
    %v7552 = vpow.pop %v7551
    %v7553 = vmul.f32 %v7183, 1.442695
    %v7554 = vpow.pop %v7553
    %v7555 = vmul.f32 %v7184, 1.442695
    %v7556 = vpow.pop %v7555
    %v7557 = vmul.f32 %v7185, 1.442695
    %v7558 = vpow.pop %v7557
    %v7559 = vmul.f32 %v7186, 1.442695
    %v7560 = vpow.pop %v7559
    %v7561 = vmul.f32 %v7187, 1.442695
    %v7562 = vpow.pop %v7561
    %v7563 = vmul.f32 %v7188, 1.442695
    %v7564 = vpow.pop %v7563
    %v7565 = vmul.f32 %v7189, 1.442695
    %v7566 = vpow.pop %v7565
    %v7567 = vmul.f32 %v7190, 1.442695
    %v7568 = vpow.pop %v7567
    %v7569 = vmul.f32 %v7191, 1.442695
    %v7570 = vpow.pop %v7569
    %v7571 = vmul.f32 %v7192, 1.442695
    %v7572 = vpow.pop %v7571
    %v7573 = vmul.f32 %v7193, 1.442695
    %v7574 = vpow.pop %v7573
    %v7575 = vmul.f32 %v7194, 1.442695
    %v7576 = vpow.pop %v7575
    %v7577 = vmul.f32 %v7195, 1.442695
    %v7578 = vpow.pop %v7577
    %v7579 = vmul.f32 %v7196, 1.442695
    %v7580 = vpow.pop %v7579
    %v7581 = vmul.f32 %v7197, 1.442695
    %v7582 = vpow.pop %v7581
    %v7583 = vmul.f32 %v7198, 1.442695
    %v7584 = vpow.pop %v7583
    %v7585 = vmul.f32 %v7199, 1.442695
    %v7586 = vpow.pop %v7585
    %v7587 = vmul.f32 %v7200, 1.442695
    %v7588 = vpow.pop %v7587
    %v7589 = vmul.f32 %v7201, 1.442695
    %v7590 = vpow.pop %v7589
    %v7591 = vmul.f32 %v7202, 1.442695
    %v7592 = vpow.pop %v7591
    %v7593 = vmul.f32 %v7203, 1.442695
    %v7594 = vpow.pop %v7593
    %v7595 = vmul.f32 %v7204, 1.442695
    %v7596 = vpow.pop %v7595
    %v7597 = vmul.f32 %v7205, 1.442695
    %v7598 = vpow.pop %v7597
    %v7599 = vmul.f32 %v7206, 1.442695
    %v7600 = vpow.pop %v7599
    %v7601 = vmul.f32 %v7207, 1.442695
    %v7602 = vpow.pop %v7601
    %v7603 = vmul.f32 %v7208, 1.442695
    %v7604 = vpow.pop %v7603
    %v7605 = vmul.f32 %v7209, 1.442695
    %v7606 = vpow.pop %v7605
    %v7607 = vmul.f32 %v7210, 1.442695
    %v7608 = vpow.pop %v7607
    %v7609 = vmul.f32 %v7211, 1.442695
    %v7610 = vpow.pop %v7609
    %v7611 = vmul.f32 %v7212, 1.442695
    %v7612 = vpow.pop %v7611
    %v7613 = vmul.f32 %v7213, 1.442695
    %v7614 = vpow.pop %v7613
    %v7615 = vmul.f32 %v7214, 1.442695
    %v7616 = vpow.pop %v7615
    %v7617 = vmul.f32 %v7215, 1.442695
    %v7618 = vpow.pop %v7617
    %v7619 = vmul.f32 %v7216, 1.442695
    %v7620 = vpow.pop %v7619
    %v7621 = vmul.f32 %v7217, 1.442695
    %v7622 = vpow.pop %v7621
    %v7623 = vmul.f32 %v7218, 1.442695
    %v7624 = vpow.pop %v7623
    %v7625 = vmul.f32 %v7219, 1.442695
    %v7626 = vpow.pop %v7625
    %v7627 = vmul.f32 %v7220, 1.442695
    %v7628 = vpow.pop %v7627
    %v7629 = vmul.f32 %v7221, 1.442695
    %v7630 = vpow.pop %v7629
    %v7631 = vmul.f32 %v7222, 1.442695
    %v7632 = vpow.pop %v7631
    %v7633 = vmul.f32 %v7223, 1.442695
    %v7634 = vpow.pop %v7633
    %v7635 = vmul.f32 %v7224, 1.442695
    %v7636 = vpow.pop %v7635
    %v7637 = vmul.f32 %v7225, 1.442695
    %v7638 = vpow.pop %v7637
    %v7639 = vmul.f32 %v7226, 1.442695
    %v7640 = vpow.pop %v7639
    %v7641 = vmul.f32 %v7227, 1.442695
    %v7642 = vpow.pop %v7641
    %v7643 = vmul.f32 %v7228, 1.442695
    %v7644 = vpow.pop %v7643
    %v7645 = vmul.f32 %v7229, 1.442695
    %v7646 = vpow.pop %v7645
    %v7647 = vmul.f32 %v7230, 1.442695
    %v7648 = vpow.pop %v7647
    %v7649 = vmul.f32 %v7231, 1.442695
    %v7650 = vpow.pop %v7649
    %v7651 = vmul.f32 %v7232, 1.442695
    %v7652 = vpow.pop %v7651
    %v7653 = vmul.f32 %v7233, 1.442695
    %v7654 = vpow.pop %v7653
    %v7655 = vmul.f32 %v7234, 1.442695
    %v7656 = vpow.pop %v7655
    %v7657 = vmul.f32 %v7235, 1.442695
    %v7658 = vpow.pop %v7657
    %v7659 = vmul.f32 %v7236, 1.442695
    %v7660 = vpow.pop %v7659
    %v7661 = vmul.f32 %v7237, 1.442695
    %v7662 = vpow.pop %v7661
    %v7663 = vmul.f32 %v7238, 1.442695
    %v7664 = vpow.pop %v7663
    %v7665 = vmul.f32 %v7239, 1.442695
    %v7666 = vpow.pop %v7665
    %v7667 = vmul.f32 %v7240, 1.442695
    %v7668 = vpow.pop %v7667
    %v7669 = vmul.f32 %v7241, 1.442695
    %v7670 = vpow.pop %v7669
    %v7671 = vmul.f32 %v7242, 1.442695
    %v7672 = vpow.pop %v7671
    %v7673 = vmul.f32 %v7243, 1.442695
    %v7674 = vpow.pop %v7673
    %v7675 = vmul.f32 %v7244, 1.442695
    %v7676 = vpow.pop %v7675
    %v7677 = vmul.f32 %v7245, 1.442695
    %v7678 = vpow.pop %v7677
    %v7679 = vmul.f32 %v7246, 1.442695
    %v7680 = vpow.pop %v7679
    %v7681 = vmul.f32 %v7247, 1.442695
    %v7682 = vpow.pop %v7681
    %v7683 = vmul.f32 %v7248, 1.442695
    %v7684 = vpow.pop %v7683
    %v7685 = vmul.f32 %v7249, 1.442695
    %v7686 = vpow.pop %v7685
    %v7687 = vmul.f32 %v7250, 1.442695
    %v7688 = vpow.pop %v7687
    %v7689 = vmul.f32 %v7251, 1.442695
    %v7690 = vpow.pop %v7689
    %v7691 = vmul.f32 %v7252, 1.442695
    %v7692 = vpow.pop %v7691
    %v7693 = vmul.f32 %v7253, 1.442695
    %v7694 = vpow.pop %v7693
    %v7695 = vmul.f32 %v7254, 1.442695
    %v7696 = vpow.pop %v7695
    %v7697 = vmul.f32 %v7255, 1.442695
    %v7698 = vpow.pop %v7697
    %v7699 = vmul.f32 %v7256, 1.442695
    %v7700 = vpow.pop %v7699
    %v7701 = vmul.f32 %v7257, 1.442695
    %v7702 = vpow.pop %v7701
    %v7703 = vmul.f32 %v7258, 1.442695
    %v7704 = vpow.pop %v7703
    %v7705 = vmul.f32 %v7259, 1.442695
    %v7706 = vpow.pop %v7705
    %v7707 = vmul.f32 %v7260, 1.442695
    %v7708 = vpow.pop %v7707
    %v7709 = vmul.f32 %v7261, 1.442695
    %v7710 = vpow.pop %v7709
    %v7711 = vmul.f32 %v7262, 1.442695
    %v7712 = vpow.pop %v7711
    %v7713 = vmul.f32 %v7263, 1.442695
    %v7714 = vpow.pop %v7713
    %v7715 = vmul.f32 %v7264, 1.442695
    %v7716 = vpow.pop %v7715
    %v7717 = vmul.f32 %v7265, 1.442695
    %v7718 = vpow.pop %v7717
    %v7719 = vmul.f32 %v7266, 1.442695
    %v7720 = vpow.pop %v7719
    %v7721 = vmul.f32 %v7267, 1.442695
    %v7722 = vpow.pop %v7721
    %v7723 = vmul.f32 %v7268, 1.442695
    %v7724 = vpow.pop %v7723
    %v7725 = vmul.f32 %v7269, 1.442695
    %v7726 = vpow.pop %v7725
    %v7727 = vmul.f32 %v7270, 1.442695
    %v7728 = vpow.pop %v7727
    %v7729 = vmul.f32 %v7271, 1.442695
    %v7730 = vpow.pop %v7729
    %v7731 = vmul.f32 %v7272, 1.442695
    %v7732 = vpow.pop %v7731
    %v7733 = vmul.f32 %v7273, 1.442695
    %v7734 = vpow.pop %v7733
    %v7735 = vmul.f32 %v7274, 1.442695
    %v7736 = vpow.pop %v7735
    %v7737 = vmul.f32 %v7275, 1.442695
    %v7738 = vpow.pop %v7737
    %v7739 = vmul.f32 %v7276, 1.442695
    %v7740 = vpow.pop %v7739
    %v7741 = vmul.f32 %v7277, 1.442695
    %v7742 = vpow.pop %v7741
    %v7743 = vmul.f32 %v7278, 1.442695
    %v7744 = vpow.pop %v7743
    %v7745 = vmul.f32 %v7279, 1.442695
    %v7746 = vpow.pop %v7745
    %v7747 = vmul.f32 %v7280, 1.442695
    %v7748 = vpow.pop %v7747
    %v7749 = vmul.f32 %v7281, 1.442695
    %v7750 = vpow.pop %v7749
    %v7751 = vmul.f32 %v7282, 1.442695
    %v7752 = vpow.pop %v7751
    %v7753 = vmul.f32 %v7283, 1.442695
    %v7754 = vpow.pop %v7753
    %v7755 = vmul.f32 %v7284, 1.442695
    %v7756 = vpow.pop %v7755
    %v7757 = vmul.f32 %v7285, 1.442695
    %v7758 = vpow.pop %v7757
    %v7759 = vmul.f32 %v7286, 1.442695
    %v7760 = vpow.pop %v7759
    %v7761 = vmul.f32 %v7287, 1.442695
    %v7762 = vpow.pop %v7761
    %v7763 = vmul.f32 %v7288, 1.442695
    %v7764 = vpow.pop %v7763
    %v7765 = vmul.f32 %v7289, 1.442695
    %v7766 = vpow.pop %v7765
    %v7767 = vmul.f32 %v7290, 1.442695
    %v7768 = vpow.pop %v7767
    %v7769 = vmul.f32 %v7291, 1.442695
    %v7770 = vpow.pop %v7769
    %v7771 = vmul.f32 %v7292, 1.442695
    %v7772 = vpow.pop %v7771
    %v7773 = vmul.f32 %v7293, 1.442695
    %v7774 = vpow.pop %v7773
    %v7775 = vmul.f32 %v7294, 1.442695
    %v7776 = vpow.pop %v7775
    %v7777 = vmul.f32 %v7295, 1.442695
    %v7778 = vpow.pop %v7777
    %v7779 = vmul.f32 %v7296, 1.442695
    %v7780 = vpow.pop %v7779
    %v7781 = vmul.f32 %v7297, 1.442695
    %v7782 = vpow.pop %v7781
    %v7783 = vmul.f32 %v7298, 1.442695
    %v7784 = vpow.pop %v7783
    %v7785 = vmul.f32 %v7299, 1.442695
    %v7786 = vpow.pop %v7785
    %v7787 = vmul.f32 %v7300, 1.442695
    %v7788 = vpow.pop %v7787
    %v7789 = vmul.f32 %v7301, 1.442695
    %v7790 = vpow.pop %v7789
    %v7791 = vmul.f32 %v7302, 1.442695
    %v7792 = vpow.pop %v7791
    %v7793 = vmul.f32 %v7303, 1.442695
    %v7794 = vpow.pop %v7793
    %v7795 = vmul.f32 %v7304, 1.442695
    %v7796 = vpow.pop %v7795
    %v7797 = vmul.f32 %v7305, 1.442695
    %v7798 = vpow.pop %v7797
    %v7799 = vmul.f32 %v7306, 1.442695
    %v7800 = vpow.pop %v7799
    %v7801 = vmul.f32 %v7307, 1.442695
    %v7802 = vpow.pop %v7801
    %v7803 = vmul.f32 %v7308, 1.442695
    %v7804 = vpow.pop %v7803
    %v7805 = vmul.f32 %v7309, 1.442695
    %v7806 = vpow.pop %v7805
    %v7807 = vmul.f32 %v7310, 1.442695
    %v7808 = vpow.pop %v7807
    %v7809 = vmul.f32 %v7311, 1.442695
    %v7810 = vpow.pop %v7809
    %v7811 = vmul.f32 %v7312, 1.442695
    %v7812 = vpow.pop %v7811
    %v7813 = vmul.f32 %v7313, 1.442695
    %v7814 = vpow.pop %v7813
    %v7815 = vmul.f32 %v7314, 1.442695
    %v7816 = vpow.pop %v7815
    %v7817 = vmul.f32 %v7315, 1.442695
    %v7818 = vpow.pop %v7817
    %v7819 = vmul.f32 %v7316, 1.442695
    %v7820 = vpow.pop %v7819
    %v7821 = vmul.f32 %v7317, 1.442695
    %v7822 = vpow.pop %v7821
    %v7823 = vmul.f32 %v7318, 1.442695
    %v7824 = vpow.pop %v7823
    %v7825 = vmul.f32 %v7319, 1.442695
    %v7826 = vpow.pop %v7825
    %v7827 = vmul.f32 %v7320, 1.442695
    %v7828 = vpow.pop %v7827
    %v7829 = vmul.f32 %v7321, 1.442695
    %v7830 = vpow.pop %v7829
    %v7831 = vmul.f32 %v7322, 1.442695
    %v7832 = vpow.pop %v7831
    %v7833 = vmul.f32 %v7323, 1.442695
    %v7834 = vpow.pop %v7833
    %v7835 = vmul.f32 %v7324, 1.442695
    %v7836 = vpow.pop %v7835
    %v7837 = vmul.f32 %v7325, 1.442695
    %v7838 = vpow.pop %v7837
    %v7839 = vmul.f32 %v7326, 1.442695
    %v7840 = vpow.pop %v7839
    %v7841 = vmul.f32 %v7327, 1.442695
    %v7842 = vpow.pop %v7841
    %v7843 = vmul.f32 %v7328, 1.442695
    %v7844 = vpow.pop %v7843
    %v7845 = vmul.f32 %v7329, 1.442695
    %v7846 = vpow.pop %v7845
    %v7847 = vmul.f32 %v7330, 1.442695
    %v7848 = vpow.pop %v7847
    %v7849 = vmul.f32 %v7331, 1.442695
    %v7850 = vpow.pop %v7849
    %v7851 = vmul.f32 %v7332, 1.442695
    %v7852 = vpow.pop %v7851
    %v7853 = vmul.f32 %v7333, 1.442695
    %v7854 = vpow.pop %v7853
    %v7855 = vmul.f32 %v7334, 1.442695
    %v7856 = vpow.pop %v7855
    %v7857 = vmul.f32 %v7335, 1.442695
    %v7858 = vpow.pop %v7857
    %v7859 = vmul.f32 %v7336, 1.442695
    %v7860 = vpow.pop %v7859
    %v7861 = vmul.f32 %v7337, 1.442695
    %v7862 = vpow.pop %v7861
    %v7863 = vmul.f32 %v7338, 1.442695
    %v7864 = vpow.pop %v7863
    %v7865 = vmul.f32 %v7339, 1.442695
    %v7866 = vpow.pop %v7865
    %v7867 = vmul.f32 %v7340, 1.442695
    %v7868 = vpow.pop %v7867
    %v7869 = vmul.f32 %v7341, 1.442695
    %v7870 = vpow.pop %v7869
    %v7871 = vmul.f32 %v7342, 1.442695
    %v7872 = vpow.pop %v7871
    %v7873 = vmul.f32 %v7343, 1.442695
    %v7874 = vpow.pop %v7873
    %v7875 = vmul.f32 %v7344, 1.442695
    %v7876 = vpow.pop %v7875
    %v7877 = vadd.f32 %v7346, 1.0
    %v7878 = vadd.f32 %v7348, 1.0
    %v7879 = vadd.f32 %v7350, 1.0
    %v7880 = vadd.f32 %v7352, 1.0
    %v7881 = vadd.f32 %v7354, 1.0
    %v7882 = vadd.f32 %v7356, 1.0
    %v7883 = vadd.f32 %v7358, 1.0
    %v7884 = vadd.f32 %v7360, 1.0
    %v7885 = vadd.f32 %v7362, 1.0
    %v7886 = vadd.f32 %v7364, 1.0
    %v7887 = vadd.f32 %v7366, 1.0
    %v7888 = vadd.f32 %v7368, 1.0
    %v7889 = vadd.f32 %v7370, 1.0
    %v7890 = vadd.f32 %v7372, 1.0
    %v7891 = vadd.f32 %v7374, 1.0
    %v7892 = vadd.f32 %v7376, 1.0
    %v7893 = vadd.f32 %v7378, 1.0
    %v7894 = vadd.f32 %v7380, 1.0
    %v7895 = vadd.f32 %v7382, 1.0
    %v7896 = vadd.f32 %v7384, 1.0
    %v7897 = vadd.f32 %v7386, 1.0
    %v7898 = vadd.f32 %v7388, 1.0
    %v7899 = vadd.f32 %v7390, 1.0
    %v7900 = vadd.f32 %v7392, 1.0
    %v7901 = vadd.f32 %v7394, 1.0
    %v7902 = vadd.f32 %v7396, 1.0
    %v7903 = vadd.f32 %v7398, 1.0
    %v7904 = vadd.f32 %v7400, 1.0
    %v7905 = vadd.f32 %v7402, 1.0
    %v7906 = vadd.f32 %v7404, 1.0
    %v7907 = vadd.f32 %v7406, 1.0
    %v7908 = vadd.f32 %v7408, 1.0
    %v7909 = vadd.f32 %v7410, 1.0
    %v7910 = vadd.f32 %v7412, 1.0
    %v7911 = vadd.f32 %v7414, 1.0
    %v7912 = vadd.f32 %v7416, 1.0
    %v7913 = vadd.f32 %v7418, 1.0
    %v7914 = vadd.f32 %v7420, 1.0
    %v7915 = vadd.f32 %v7422, 1.0
    %v7916 = vadd.f32 %v7424, 1.0
    %v7917 = vadd.f32 %v7426, 1.0
    %v7918 = vadd.f32 %v7428, 1.0
    %v7919 = vadd.f32 %v7430, 1.0
    %v7920 = vadd.f32 %v7432, 1.0
    %v7921 = vadd.f32 %v7434, 1.0
    %v7922 = vadd.f32 %v7436, 1.0
    %v7923 = vadd.f32 %v7438, 1.0
    %v7924 = vadd.f32 %v7440, 1.0
    %v7925 = vadd.f32 %v7442, 1.0
    %v7926 = vadd.f32 %v7444, 1.0
    %v7927 = vadd.f32 %v7446, 1.0
    %v7928 = vadd.f32 %v7448, 1.0
    %v7929 = vadd.f32 %v7450, 1.0
    %v7930 = vadd.f32 %v7452, 1.0
    %v7931 = vadd.f32 %v7454, 1.0
    %v7932 = vadd.f32 %v7456, 1.0
    %v7933 = vadd.f32 %v7458, 1.0
    %v7934 = vadd.f32 %v7460, 1.0
    %v7935 = vadd.f32 %v7462, 1.0
    %v7936 = vadd.f32 %v7464, 1.0
    %v7937 = vadd.f32 %v7466, 1.0
    %v7938 = vadd.f32 %v7468, 1.0
    %v7939 = vadd.f32 %v7470, 1.0
    %v7940 = vadd.f32 %v7472, 1.0
    %v7941 = vadd.f32 %v7474, 1.0
    %v7942 = vadd.f32 %v7476, 1.0
    %v7943 = vadd.f32 %v7478, 1.0
    %v7944 = vadd.f32 %v7480, 1.0
    %v7945 = vadd.f32 %v7482, 1.0
    %v7946 = vadd.f32 %v7484, 1.0
    %v7947 = vadd.f32 %v7486, 1.0
    %v7948 = vadd.f32 %v7488, 1.0
    %v7949 = vadd.f32 %v7490, 1.0
    %v7950 = vadd.f32 %v7492, 1.0
    %v7951 = vadd.f32 %v7494, 1.0
    %v7952 = vadd.f32 %v7496, 1.0
    %v7953 = vadd.f32 %v7498, 1.0
    %v7954 = vadd.f32 %v7500, 1.0
    %v7955 = vadd.f32 %v7502, 1.0
    %v7956 = vadd.f32 %v7504, 1.0
    %v7957 = vadd.f32 %v7506, 1.0
    %v7958 = vadd.f32 %v7508, 1.0
    %v7959 = vadd.f32 %v7510, 1.0
    %v7960 = vadd.f32 %v7512, 1.0
    %v7961 = vadd.f32 %v7514, 1.0
    %v7962 = vadd.f32 %v7516, 1.0
    %v7963 = vadd.f32 %v7518, 1.0
    %v7964 = vadd.f32 %v7520, 1.0
    %v7965 = vadd.f32 %v7522, 1.0
    %v7966 = vadd.f32 %v7524, 1.0
    %v7967 = vadd.f32 %v7526, 1.0
    %v7968 = vadd.f32 %v7528, 1.0
    %v7969 = vadd.f32 %v7530, 1.0
    %v7970 = vadd.f32 %v7532, 1.0
    %v7971 = vadd.f32 %v7534, 1.0
    %v7972 = vadd.f32 %v7536, 1.0
    %v7973 = vadd.f32 %v7538, 1.0
    %v7974 = vadd.f32 %v7540, 1.0
    %v7975 = vadd.f32 %v7542, 1.0
    %v7976 = vadd.f32 %v7544, 1.0
    %v7977 = vadd.f32 %v7546, 1.0
    %v7978 = vadd.f32 %v7548, 1.0
    %v7979 = vadd.f32 %v7550, 1.0
    %v7980 = vadd.f32 %v7552, 1.0
    %v7981 = vadd.f32 %v7554, 1.0
    %v7982 = vadd.f32 %v7556, 1.0
    %v7983 = vadd.f32 %v7558, 1.0
    %v7984 = vadd.f32 %v7560, 1.0
    %v7985 = vadd.f32 %v7562, 1.0
    %v7986 = vadd.f32 %v7564, 1.0
    %v7987 = vadd.f32 %v7566, 1.0
    %v7988 = vadd.f32 %v7568, 1.0
    %v7989 = vadd.f32 %v7570, 1.0
    %v7990 = vadd.f32 %v7572, 1.0
    %v7991 = vadd.f32 %v7574, 1.0
    %v7992 = vadd.f32 %v7576, 1.0
    %v7993 = vadd.f32 %v7578, 1.0
    %v7994 = vadd.f32 %v7580, 1.0
    %v7995 = vadd.f32 %v7582, 1.0
    %v7996 = vadd.f32 %v7584, 1.0
    %v7997 = vadd.f32 %v7586, 1.0
    %v7998 = vadd.f32 %v7588, 1.0
    %v7999 = vadd.f32 %v7590, 1.0
    %v8000 = vadd.f32 %v7592, 1.0
    %v8001 = vadd.f32 %v7594, 1.0
    %v8002 = vadd.f32 %v7596, 1.0
    %v8003 = vadd.f32 %v7598, 1.0
    %v8004 = vadd.f32 %v7600, 1.0
    %v8005 = vadd.f32 %v7602, 1.0
    %v8006 = vadd.f32 %v7604, 1.0
    %v8007 = vadd.f32 %v7606, 1.0
    %v8008 = vadd.f32 %v7608, 1.0
    %v8009 = vadd.f32 %v7610, 1.0
    %v8010 = vadd.f32 %v7612, 1.0
    %v8011 = vadd.f32 %v7614, 1.0
    %v8012 = vadd.f32 %v7616, 1.0
    %v8013 = vadd.f32 %v7618, 1.0
    %v8014 = vadd.f32 %v7620, 1.0
    %v8015 = vadd.f32 %v7622, 1.0
    %v8016 = vadd.f32 %v7624, 1.0
    %v8017 = vadd.f32 %v7626, 1.0
    %v8018 = vadd.f32 %v7628, 1.0
    %v8019 = vadd.f32 %v7630, 1.0
    %v8020 = vadd.f32 %v7632, 1.0
    %v8021 = vadd.f32 %v7634, 1.0
    %v8022 = vadd.f32 %v7636, 1.0
    %v8023 = vadd.f32 %v7638, 1.0
    %v8024 = vadd.f32 %v7640, 1.0
    %v8025 = vadd.f32 %v7642, 1.0
    %v8026 = vadd.f32 %v7644, 1.0
    %v8027 = vadd.f32 %v7646, 1.0
    %v8028 = vadd.f32 %v7648, 1.0
    %v8029 = vadd.f32 %v7650, 1.0
    %v8030 = vadd.f32 %v7652, 1.0
    %v8031 = vadd.f32 %v7654, 1.0
    %v8032 = vadd.f32 %v7656, 1.0
    %v8033 = vadd.f32 %v7658, 1.0
    %v8034 = vadd.f32 %v7660, 1.0
    %v8035 = vadd.f32 %v7662, 1.0
    %v8036 = vadd.f32 %v7664, 1.0
    %v8037 = vadd.f32 %v7666, 1.0
    %v8038 = vadd.f32 %v7668, 1.0
    %v8039 = vadd.f32 %v7670, 1.0
    %v8040 = vadd.f32 %v7672, 1.0
    %v8041 = vadd.f32 %v7674, 1.0
    %v8042 = vadd.f32 %v7676, 1.0
    %v8043 = vadd.f32 %v7678, 1.0
    %v8044 = vadd.f32 %v7680, 1.0
    %v8045 = vadd.f32 %v7682, 1.0
    %v8046 = vadd.f32 %v7684, 1.0
    %v8047 = vadd.f32 %v7686, 1.0
    %v8048 = vadd.f32 %v7688, 1.0
    %v8049 = vadd.f32 %v7690, 1.0
    %v8050 = vadd.f32 %v7692, 1.0
    %v8051 = vadd.f32 %v7694, 1.0
    %v8052 = vadd.f32 %v7696, 1.0
    %v8053 = vadd.f32 %v7698, 1.0
    %v8054 = vadd.f32 %v7700, 1.0
    %v8055 = vadd.f32 %v7702, 1.0
    %v8056 = vadd.f32 %v7704, 1.0
    %v8057 = vadd.f32 %v7706, 1.0
    %v8058 = vadd.f32 %v7708, 1.0
    %v8059 = vadd.f32 %v7710, 1.0
    %v8060 = vadd.f32 %v7712, 1.0
    %v8061 = vadd.f32 %v7714, 1.0
    %v8062 = vadd.f32 %v7716, 1.0
    %v8063 = vadd.f32 %v7718, 1.0
    %v8064 = vadd.f32 %v7720, 1.0
    %v8065 = vadd.f32 %v7722, 1.0
    %v8066 = vadd.f32 %v7724, 1.0
    %v8067 = vadd.f32 %v7726, 1.0
    %v8068 = vadd.f32 %v7728, 1.0
    %v8069 = vadd.f32 %v7730, 1.0
    %v8070 = vadd.f32 %v7732, 1.0
    %v8071 = vadd.f32 %v7734, 1.0
    %v8072 = vadd.f32 %v7736, 1.0
    %v8073 = vadd.f32 %v7738, 1.0
    %v8074 = vadd.f32 %v7740, 1.0
    %v8075 = vadd.f32 %v7742, 1.0
    %v8076 = vadd.f32 %v7744, 1.0
    %v8077 = vadd.f32 %v7746, 1.0
    %v8078 = vadd.f32 %v7748, 1.0
    %v8079 = vadd.f32 %v7750, 1.0
    %v8080 = vadd.f32 %v7752, 1.0
    %v8081 = vadd.f32 %v7754, 1.0
    %v8082 = vadd.f32 %v7756, 1.0
    %v8083 = vadd.f32 %v7758, 1.0
    %v8084 = vadd.f32 %v7760, 1.0
    %v8085 = vadd.f32 %v7762, 1.0
    %v8086 = vadd.f32 %v7764, 1.0
    %v8087 = vadd.f32 %v7766, 1.0
    %v8088 = vadd.f32 %v7768, 1.0
    %v8089 = vadd.f32 %v7770, 1.0
    %v8090 = vadd.f32 %v7772, 1.0
    %v8091 = vadd.f32 %v7774, 1.0
    %v8092 = vadd.f32 %v7776, 1.0
    %v8093 = vadd.f32 %v7778, 1.0
    %v8094 = vadd.f32 %v7780, 1.0
    %v8095 = vadd.f32 %v7782, 1.0
    %v8096 = vadd.f32 %v7784, 1.0
    %v8097 = vadd.f32 %v7786, 1.0
    %v8098 = vadd.f32 %v7788, 1.0
    %v8099 = vadd.f32 %v7790, 1.0
    %v8100 = vadd.f32 %v7792, 1.0
    %v8101 = vadd.f32 %v7794, 1.0
    %v8102 = vadd.f32 %v7796, 1.0
    %v8103 = vadd.f32 %v7798, 1.0
    %v8104 = vadd.f32 %v7800, 1.0
    %v8105 = vadd.f32 %v7802, 1.0
    %v8106 = vadd.f32 %v7804, 1.0
    %v8107 = vadd.f32 %v7806, 1.0
    %v8108 = vadd.f32 %v7808, 1.0
    %v8109 = vadd.f32 %v7810, 1.0
    %v8110 = vadd.f32 %v7812, 1.0
    %v8111 = vadd.f32 %v7814, 1.0
    %v8112 = vadd.f32 %v7816, 1.0
    %v8113 = vadd.f32 %v7818, 1.0
    %v8114 = vadd.f32 %v7820, 1.0
    %v8115 = vadd.f32 %v7822, 1.0
    %v8116 = vadd.f32 %v7824, 1.0
    %v8117 = vadd.f32 %v7826, 1.0
    %v8118 = vadd.f32 %v7828, 1.0
    %v8119 = vadd.f32 %v7830, 1.0
    %v8120 = vadd.f32 %v7832, 1.0
    %v8121 = vadd.f32 %v7834, 1.0
    %v8122 = vadd.f32 %v7836, 1.0
    %v8123 = vadd.f32 %v7838, 1.0
    %v8124 = vadd.f32 %v7840, 1.0
    %v8125 = vadd.f32 %v7842, 1.0
    %v8126 = vadd.f32 %v7844, 1.0
    %v8127 = vadd.f32 %v7846, 1.0
    %v8128 = vadd.f32 %v7848, 1.0
    %v8129 = vadd.f32 %v7850, 1.0
    %v8130 = vadd.f32 %v7852, 1.0
    %v8131 = vadd.f32 %v7854, 1.0
    %v8132 = vadd.f32 %v7856, 1.0
    %v8133 = vadd.f32 %v7858, 1.0
    %v8134 = vadd.f32 %v7860, 1.0
    %v8135 = vadd.f32 %v7862, 1.0
    %v8136 = vadd.f32 %v7864, 1.0
    %v8137 = vadd.f32 %v7866, 1.0
    %v8138 = vadd.f32 %v7868, 1.0
    %v8139 = vadd.f32 %v7870, 1.0
    %v8140 = vadd.f32 %v7872, 1.0
    %v8141 = vadd.f32 %v7874, 1.0
    %v8142 = vadd.f32 %v7876, 1.0
    %v8143 = vrcp.pop %v7877
    %v8144 = vrcp.pop %v7878
    %v8145 = vrcp.pop %v7879
    %v8146 = vrcp.pop %v7880
    %v8147 = vrcp.pop %v7881
    %v8148 = vrcp.pop %v7882
    %v8149 = vrcp.pop %v7883
    %v8150 = vrcp.pop %v7884
    %v8151 = vrcp.pop %v7885
    %v8152 = vrcp.pop %v7886
    %v8153 = vrcp.pop %v7887
    %v8154 = vrcp.pop %v7888
    %v8155 = vrcp.pop %v7889
    %v8156 = vrcp.pop %v7890
    %v8157 = vrcp.pop %v7891
    %v8158 = vrcp.pop %v7892
    %v8159 = vrcp.pop %v7893
    %v8160 = vrcp.pop %v7894
    %v8161 = vrcp.pop %v7895
    %v8162 = vrcp.pop %v7896
    %v8163 = vrcp.pop %v7897
    %v8164 = vrcp.pop %v7898
    %v8165 = vrcp.pop %v7899
    %v8166 = vrcp.pop %v7900
    %v8167 = vrcp.pop %v7901
    %v8168 = vrcp.pop %v7902
    %v8169 = vrcp.pop %v7903
    %v8170 = vrcp.pop %v7904
    %v8171 = vrcp.pop %v7905
    %v8172 = vrcp.pop %v7906
    %v8173 = vrcp.pop %v7907
    %v8174 = vrcp.pop %v7908
    %v8175 = vrcp.pop %v7909
    %v8176 = vrcp.pop %v7910
    %v8177 = vrcp.pop %v7911
    %v8178 = vrcp.pop %v7912
    %v8179 = vrcp.pop %v7913
    %v8180 = vrcp.pop %v7914
    %v8181 = vrcp.pop %v7915
    %v8182 = vrcp.pop %v7916
    %v8183 = vrcp.pop %v7917
    %v8184 = vrcp.pop %v7918
    %v8185 = vrcp.pop %v7919
    %v8186 = vrcp.pop %v7920
    %v8187 = vrcp.pop %v7921
    %v8188 = vrcp.pop %v7922
    %v8189 = vrcp.pop %v7923
    %v8190 = vrcp.pop %v7924
    %v8191 = vrcp.pop %v7925
    %v8192 = vrcp.pop %v7926
    %v8193 = vrcp.pop %v7927
    %v8194 = vrcp.pop %v7928
    %v8195 = vrcp.pop %v7929
    %v8196 = vrcp.pop %v7930
    %v8197 = vrcp.pop %v7931
    %v8198 = vrcp.pop %v7932
    %v8199 = vrcp.pop %v7933
    %v8200 = vrcp.pop %v7934
    %v8201 = vrcp.pop %v7935
    %v8202 = vrcp.pop %v7936
    %v8203 = vrcp.pop %v7937
    %v8204 = vrcp.pop %v7938
    %v8205 = vrcp.pop %v7939
    %v8206 = vrcp.pop %v7940
    %v8207 = vrcp.pop %v7941
    %v8208 = vrcp.pop %v7942
    %v8209 = vrcp.pop %v7943
    %v8210 = vrcp.pop %v7944
    %v8211 = vrcp.pop %v7945
    %v8212 = vrcp.pop %v7946
    %v8213 = vrcp.pop %v7947
    %v8214 = vrcp.pop %v7948
    %v8215 = vrcp.pop %v7949
    %v8216 = vrcp.pop %v7950
    %v8217 = vrcp.pop %v7951
    %v8218 = vrcp.pop %v7952
    %v8219 = vrcp.pop %v7953
    %v8220 = vrcp.pop %v7954
    %v8221 = vrcp.pop %v7955
    %v8222 = vrcp.pop %v7956
    %v8223 = vrcp.pop %v7957
    %v8224 = vrcp.pop %v7958
    %v8225 = vrcp.pop %v7959
    %v8226 = vrcp.pop %v7960
    %v8227 = vrcp.pop %v7961
    %v8228 = vrcp.pop %v7962
    %v8229 = vrcp.pop %v7963
    %v8230 = vrcp.pop %v7964
    %v8231 = vrcp.pop %v7965
    %v8232 = vrcp.pop %v7966
    %v8233 = vrcp.pop %v7967
    %v8234 = vrcp.pop %v7968
    %v8235 = vrcp.pop %v7969
    %v8236 = vrcp.pop %v7970
    %v8237 = vrcp.pop %v7971
    %v8238 = vrcp.pop %v7972
    %v8239 = vrcp.pop %v7973
    %v8240 = vrcp.pop %v7974
    %v8241 = vrcp.pop %v7975
    %v8242 = vrcp.pop %v7976
    %v8243 = vrcp.pop %v7977
    %v8244 = vrcp.pop %v7978
    %v8245 = vrcp.pop %v7979
    %v8246 = vrcp.pop %v7980
    %v8247 = vrcp.pop %v7981
    %v8248 = vrcp.pop %v7982
    %v8249 = vrcp.pop %v7983
    %v8250 = vrcp.pop %v7984
    %v8251 = vrcp.pop %v7985
    %v8252 = vrcp.pop %v7986
    %v8253 = vrcp.pop %v7987
    %v8254 = vrcp.pop %v7988
    %v8255 = vrcp.pop %v7989
    %v8256 = vrcp.pop %v7990
    %v8257 = vrcp.pop %v7991
    %v8258 = vrcp.pop %v7992
    %v8259 = vrcp.pop %v7993
    %v8260 = vrcp.pop %v7994
    %v8261 = vrcp.pop %v7995
    %v8262 = vrcp.pop %v7996
    %v8263 = vrcp.pop %v7997
    %v8264 = vrcp.pop %v7998
    %v8265 = vrcp.pop %v7999
    %v8266 = vrcp.pop %v8000
    %v8267 = vrcp.pop %v8001
    %v8268 = vrcp.pop %v8002
    %v8269 = vrcp.pop %v8003
    %v8270 = vrcp.pop %v8004
    %v8271 = vrcp.pop %v8005
    %v8272 = vrcp.pop %v8006
    %v8273 = vrcp.pop %v8007
    %v8274 = vrcp.pop %v8008
    %v8275 = vrcp.pop %v8009
    %v8276 = vrcp.pop %v8010
    %v8277 = vrcp.pop %v8011
    %v8278 = vrcp.pop %v8012
    %v8279 = vrcp.pop %v8013
    %v8280 = vrcp.pop %v8014
    %v8281 = vrcp.pop %v8015
    %v8282 = vrcp.pop %v8016
    %v8283 = vrcp.pop %v8017
    %v8284 = vrcp.pop %v8018
    %v8285 = vrcp.pop %v8019
    %v8286 = vrcp.pop %v8020
    %v8287 = vrcp.pop %v8021
    %v8288 = vrcp.pop %v8022
    %v8289 = vrcp.pop %v8023
    %v8290 = vrcp.pop %v8024
    %v8291 = vrcp.pop %v8025
    %v8292 = vrcp.pop %v8026
    %v8293 = vrcp.pop %v8027
    %v8294 = vrcp.pop %v8028
    %v8295 = vrcp.pop %v8029
    %v8296 = vrcp.pop %v8030
    %v8297 = vrcp.pop %v8031
    %v8298 = vrcp.pop %v8032
    %v8299 = vrcp.pop %v8033
    %v8300 = vrcp.pop %v8034
    %v8301 = vrcp.pop %v8035
    %v8302 = vrcp.pop %v8036
    %v8303 = vrcp.pop %v8037
    %v8304 = vrcp.pop %v8038
    %v8305 = vrcp.pop %v8039
    %v8306 = vrcp.pop %v8040
    %v8307 = vrcp.pop %v8041
    %v8308 = vrcp.pop %v8042
    %v8309 = vrcp.pop %v8043
    %v8310 = vrcp.pop %v8044
    %v8311 = vrcp.pop %v8045
    %v8312 = vrcp.pop %v8046
    %v8313 = vrcp.pop %v8047
    %v8314 = vrcp.pop %v8048
    %v8315 = vrcp.pop %v8049
    %v8316 = vrcp.pop %v8050
    %v8317 = vrcp.pop %v8051
    %v8318 = vrcp.pop %v8052
    %v8319 = vrcp.pop %v8053
    %v8320 = vrcp.pop %v8054
    %v8321 = vrcp.pop %v8055
    %v8322 = vrcp.pop %v8056
    %v8323 = vrcp.pop %v8057
    %v8324 = vrcp.pop %v8058
    %v8325 = vrcp.pop %v8059
    %v8326 = vrcp.pop %v8060
    %v8327 = vrcp.pop %v8061
    %v8328 = vrcp.pop %v8062
    %v8329 = vrcp.pop %v8063
    %v8330 = vrcp.pop %v8064
    %v8331 = vrcp.pop %v8065
    %v8332 = vrcp.pop %v8066
    %v8333 = vrcp.pop %v8067
    %v8334 = vrcp.pop %v8068
    %v8335 = vrcp.pop %v8069
    %v8336 = vrcp.pop %v8070
    %v8337 = vrcp.pop %v8071
    %v8338 = vrcp.pop %v8072
    %v8339 = vrcp.pop %v8073
    %v8340 = vrcp.pop %v8074
    %v8341 = vrcp.pop %v8075
    %v8342 = vrcp.pop %v8076
    %v8343 = vrcp.pop %v8077
    %v8344 = vrcp.pop %v8078
    %v8345 = vrcp.pop %v8079
    %v8346 = vrcp.pop %v8080
    %v8347 = vrcp.pop %v8081
    %v8348 = vrcp.pop %v8082
    %v8349 = vrcp.pop %v8083
    %v8350 = vrcp.pop %v8084
    %v8351 = vrcp.pop %v8085
    %v8352 = vrcp.pop %v8086
    %v8353 = vrcp.pop %v8087
    %v8354 = vrcp.pop %v8088
    %v8355 = vrcp.pop %v8089
    %v8356 = vrcp.pop %v8090
    %v8357 = vrcp.pop %v8091
    %v8358 = vrcp.pop %v8092
    %v8359 = vrcp.pop %v8093
    %v8360 = vrcp.pop %v8094
    %v8361 = vrcp.pop %v8095
    %v8362 = vrcp.pop %v8096
    %v8363 = vrcp.pop %v8097
    %v8364 = vrcp.pop %v8098
    %v8365 = vrcp.pop %v8099
    %v8366 = vrcp.pop %v8100
    %v8367 = vrcp.pop %v8101
    %v8368 = vrcp.pop %v8102
    %v8369 = vrcp.pop %v8103
    %v8370 = vrcp.pop %v8104
    %v8371 = vrcp.pop %v8105
    %v8372 = vrcp.pop %v8106
    %v8373 = vrcp.pop %v8107
    %v8374 = vrcp.pop %v8108
    %v8375 = vrcp.pop %v8109
    %v8376 = vrcp.pop %v8110
    %v8377 = vrcp.pop %v8111
    %v8378 = vrcp.pop %v8112
    %v8379 = vrcp.pop %v8113
    %v8380 = vrcp.pop %v8114
    %v8381 = vrcp.pop %v8115
    %v8382 = vrcp.pop %v8116
    %v8383 = vrcp.pop %v8117
    %v8384 = vrcp.pop %v8118
    %v8385 = vrcp.pop %v8119
    %v8386 = vrcp.pop %v8120
    %v8387 = vrcp.pop %v8121
    %v8388 = vrcp.pop %v8122
    %v8389 = vrcp.pop %v8123
    %v8390 = vrcp.pop %v8124
    %v8391 = vrcp.pop %v8125
    %v8392 = vrcp.pop %v8126
    %v8393 = vrcp.pop %v8127
    %v8394 = vrcp.pop %v8128
    %v8395 = vrcp.pop %v8129
    %v8396 = vrcp.pop %v8130
    %v8397 = vrcp.pop %v8131
    %v8398 = vrcp.pop %v8132
    %v8399 = vrcp.pop %v8133
    %v8400 = vrcp.pop %v8134
    %v8401 = vrcp.pop %v8135
    %v8402 = vrcp.pop %v8136
    %v8403 = vrcp.pop %v8137
    %v8404 = vrcp.pop %v8138
    %v8405 = vrcp.pop %v8139
    %v8406 = vrcp.pop %v8140
    %v8407 = vrcp.pop %v8141
    %v8408 = vrcp.pop %v8142
    %8409 = vst [vmem:[#allocation2] sm:$0xff] %v8143
    %8410 = vst [vmem:[#allocation2 + $0x8] sm:$0xff] %v8144
    %8411 = vst [vmem:[#allocation2 + $0x10] sm:$0xff] %v8145
    %8412 = vst [vmem:[#allocation2 + $0x18] sm:$0xff] %v8146
    %8413 = vst [vmem:[#allocation2 + $0x20] sm:$0xff] %v8147
    %8414 = vst [vmem:[#allocation2 + $0x28] sm:$0xff] %v8148
    %vm8415 = vcmask 130048
    %8416 = vst.msk [vmem:[#allocation2 + $0x30] sm:$0xff] %vm8415, %v8149
    %8417 = vst [vmem:[#allocation2 + $0x38] sm:$0xff] %v8150
    %8418 = vst [vmem:[#allocation2 + $0x40] sm:$0xff] %v8151
    %8419 = vst [vmem:[#allocation2 + $0x48] sm:$0xff] %v8152
    %8420 = vst [vmem:[#allocation2 + $0x50] sm:$0xff] %v8153
    %8421 = vst [vmem:[#allocation2 + $0x58] sm:$0xff] %v8154
    %8422 = vst [vmem:[#allocation2 + $0x60] sm:$0xff] %v8155
    %8423 = vst.msk [vmem:[#allocation2 + $0x68] sm:$0xff] %vm8415, %v8156
    %8424 = vst [vmem:[#allocation2 + $0x70] sm:$0xff] %v8157
    %8425 = vst [vmem:[#allocation2 + $0x78] sm:$0xff] %v8158
    %8426 = vst [vmem:[#allocation2 + $0x80] sm:$0xff] %v8159
    %8427 = vst [vmem:[#allocation2 + $0x88] sm:$0xff] %v8160
    %8428 = vst [vmem:[#allocation2 + $0x90] sm:$0xff] %v8161
    %8429 = vst [vmem:[#allocation2 + $0x98] sm:$0xff] %v8162
    %8430 = vst.msk [vmem:[#allocation2 + $0xa0] sm:$0xff] %vm8415, %v8163
    %8431 = vst [vmem:[#allocation2 + $0xa8] sm:$0xff] %v8164
    %8432 = vst [vmem:[#allocation2 + $0xb0] sm:$0xff] %v8165
    %8433 = vst [vmem:[#allocation2 + $0xb8] sm:$0xff] %v8166
    %8434 = vst [vmem:[#allocation2 + $0xc0] sm:$0xff] %v8167
    %8435 = vst [vmem:[#allocation2 + $0xc8] sm:$0xff] %v8168
    %8436 = vst [vmem:[#allocation2 + $0xd0] sm:$0xff] %v8169
    %8437 = vst.msk [vmem:[#allocation2 + $0xd8] sm:$0xff] %vm8415, %v8170
    %8438 = vst [vmem:[#allocation2 + $0xe0] sm:$0xff] %v8171
    %8439 = vst [vmem:[#allocation2 + $0xe8] sm:$0xff] %v8172
    %8440 = vst [vmem:[#allocation2 + $0xf0] sm:$0xff] %v8173
    %8441 = vst [vmem:[#allocation2 + $0xf8] sm:$0xff] %v8174
    %8442 = vst [vmem:[#allocation2 + $0x100] sm:$0xff] %v8175
    %8443 = vst [vmem:[#allocation2 + $0x108] sm:$0xff] %v8176
    %8444 = vst.msk [vmem:[#allocation2 + $0x110] sm:$0xff] %vm8415, %v8177
    %8445 = vst [vmem:[#allocation2 + $0x118] sm:$0xff] %v8178
    %8446 = vst [vmem:[#allocation2 + $0x120] sm:$0xff] %v8179
    %8447 = vst [vmem:[#allocation2 + $0x128] sm:$0xff] %v8180
    %8448 = vst [vmem:[#allocation2 + $0x130] sm:$0xff] %v8181
    %8449 = vst [vmem:[#allocation2 + $0x138] sm:$0xff] %v8182
    %8450 = vst [vmem:[#allocation2 + $0x140] sm:$0xff] %v8183
    %8451 = vst.msk [vmem:[#allocation2 + $0x148] sm:$0xff] %vm8415, %v8184
    %8452 = vst [vmem:[#allocation2 + $0x150] sm:$0xff] %v8185
    %8453 = vst [vmem:[#allocation2 + $0x158] sm:$0xff] %v8186
    %8454 = vst [vmem:[#allocation2 + $0x160] sm:$0xff] %v8187
    %8455 = vst [vmem:[#allocation2 + $0x168] sm:$0xff] %v8188
    %8456 = vst [vmem:[#allocation2 + $0x170] sm:$0xff] %v8189
    %8457 = vst [vmem:[#allocation2 + $0x178] sm:$0xff] %v8190
    %8458 = vst.msk [vmem:[#allocation2 + $0x180] sm:$0xff] %vm8415, %v8191
    %8459 = vst [vmem:[#allocation2 + $0x188] sm:$0xff] %v8192
    %8460 = vst [vmem:[#allocation2 + $0x190] sm:$0xff] %v8193
    %8461 = vst [vmem:[#allocation2 + $0x198] sm:$0xff] %v8194
    %8462 = vst [vmem:[#allocation2 + $0x1a0] sm:$0xff] %v8195
    %8463 = vst [vmem:[#allocation2 + $0x1a8] sm:$0xff] %v8196
    %8464 = vst [vmem:[#allocation2 + $0x1b0] sm:$0xff] %v8197
    %8465 = vst.msk [vmem:[#allocation2 + $0x1b8] sm:$0xff] %vm8415, %v8198
    %8466 = vst [vmem:[#allocation2 + $0x1c0] sm:$0xff] %v8199
    %8467 = vst [vmem:[#allocation2 + $0x1c8] sm:$0xff] %v8200
    %8468 = vst [vmem:[#allocation2 + $0x1d0] sm:$0xff] %v8201
    %8469 = vst [vmem:[#allocation2 + $0x1d8] sm:$0xff] %v8202
    %8470 = vst [vmem:[#allocation2 + $0x1e0] sm:$0xff] %v8203
    %8471 = vst [vmem:[#allocation2 + $0x1e8] sm:$0xff] %v8204
    %8472 = vst.msk [vmem:[#allocation2 + $0x1f0] sm:$0xff] %vm8415, %v8205
    %8473 = vst [vmem:[#allocation2 + $0x1f8] sm:$0xff] %v8206
    %8474 = vst [vmem:[#allocation2 + $0x200] sm:$0xff] %v8207
    %8475 = vst [vmem:[#allocation2 + $0x208] sm:$0xff] %v8208
    %8476 = vst [vmem:[#allocation2 + $0x210] sm:$0xff] %v8209
    %8477 = vst [vmem:[#allocation2 + $0x218] sm:$0xff] %v8210
    %8478 = vst [vmem:[#allocation2 + $0x220] sm:$0xff] %v8211
    %8479 = vst.msk [vmem:[#allocation2 + $0x228] sm:$0xff] %vm8415, %v8212
    %8480 = vst [vmem:[#allocation2 + $0x230] sm:$0xff] %v8213
    %8481 = vst [vmem:[#allocation2 + $0x238] sm:$0xff] %v8214
    %8482 = vst [vmem:[#allocation2 + $0x240] sm:$0xff] %v8215
    %8483 = vst [vmem:[#allocation2 + $0x248] sm:$0xff] %v8216
    %8484 = vst [vmem:[#allocation2 + $0x250] sm:$0xff] %v8217
    %8485 = vst [vmem:[#allocation2 + $0x258] sm:$0xff] %v8218
    %8486 = vst.msk [vmem:[#allocation2 + $0x260] sm:$0xff] %vm8415, %v8219
    %8487 = vst [vmem:[#allocation2 + $0x268] sm:$0xff] %v8220
    %8488 = vst [vmem:[#allocation2 + $0x270] sm:$0xff] %v8221
    %8489 = vst [vmem:[#allocation2 + $0x278] sm:$0xff] %v8222
    %8490 = vst [vmem:[#allocation2 + $0x280] sm:$0xff] %v8223
    %8491 = vst [vmem:[#allocation2 + $0x288] sm:$0xff] %v8224
    %8492 = vst [vmem:[#allocation2 + $0x290] sm:$0xff] %v8225
    %8493 = vst.msk [vmem:[#allocation2 + $0x298] sm:$0xff] %vm8415, %v8226
    %8494 = vst [vmem:[#allocation2 + $0x2a0] sm:$0xff] %v8227
    %8495 = vst [vmem:[#allocation2 + $0x2a8] sm:$0xff] %v8228
    %8496 = vst [vmem:[#allocation2 + $0x2b0] sm:$0xff] %v8229
    %8497 = vst [vmem:[#allocation2 + $0x2b8] sm:$0xff] %v8230
    %8498 = vst [vmem:[#allocation2 + $0x2c0] sm:$0xff] %v8231
    %8499 = vst [vmem:[#allocation2 + $0x2c8] sm:$0xff] %v8232
    %8500 = vst.msk [vmem:[#allocation2 + $0x2d0] sm:$0xff] %vm8415, %v8233
    %8501 = vst [vmem:[#allocation2 + $0x2d8] sm:$0xff] %v8234
    %8502 = vst [vmem:[#allocation2 + $0x2e0] sm:$0xff] %v8235
    %8503 = vst [vmem:[#allocation2 + $0x2e8] sm:$0xff] %v8236
    %8504 = vst [vmem:[#allocation2 + $0x2f0] sm:$0xff] %v8237
    %8505 = vst [vmem:[#allocation2 + $0x2f8] sm:$0xff] %v8238
    %8506 = vst [vmem:[#allocation2 + $0x300] sm:$0xff] %v8239
    %8507 = vst.msk [vmem:[#allocation2 + $0x308] sm:$0xff] %vm8415, %v8240
    %8508 = vst [vmem:[#allocation2 + $0x310] sm:$0xff] %v8241
    %8509 = vst [vmem:[#allocation2 + $0x318] sm:$0xff] %v8242
    %8510 = vst [vmem:[#allocation2 + $0x320] sm:$0xff] %v8243
    %8511 = vst [vmem:[#allocation2 + $0x328] sm:$0xff] %v8244
    %8512 = vst [vmem:[#allocation2 + $0x330] sm:$0xff] %v8245
    %8513 = vst [vmem:[#allocation2 + $0x338] sm:$0xff] %v8246
    %8514 = vst.msk [vmem:[#allocation2 + $0x340] sm:$0xff] %vm8415, %v8247
    %8515 = vst [vmem:[#allocation2 + $0x348] sm:$0xff] %v8248
    %8516 = vst [vmem:[#allocation2 + $0x350] sm:$0xff] %v8249
    %8517 = vst [vmem:[#allocation2 + $0x358] sm:$0xff] %v8250
    %8518 = vst [vmem:[#allocation2 + $0x360] sm:$0xff] %v8251
    %8519 = vst [vmem:[#allocation2 + $0x368] sm:$0xff] %v8252
    %8520 = vst [vmem:[#allocation2 + $0x370] sm:$0xff] %v8253
    %8521 = vst.msk [vmem:[#allocation2 + $0x378] sm:$0xff] %vm8415, %v8254
    %8522 = vst [vmem:[#allocation2 + $0x380] sm:$0xff] %v8255
    %8523 = vst [vmem:[#allocation2 + $0x388] sm:$0xff] %v8256
    %8524 = vst [vmem:[#allocation2 + $0x390] sm:$0xff] %v8257
    %8525 = vst [vmem:[#allocation2 + $0x398] sm:$0xff] %v8258
    %8526 = vst [vmem:[#allocation2 + $0x3a0] sm:$0xff] %v8259
    %8527 = vst [vmem:[#allocation2 + $0x3a8] sm:$0xff] %v8260
    %8528 = vst.msk [vmem:[#allocation2 + $0x3b0] sm:$0xff] %vm8415, %v8261
    %8529 = vst [vmem:[#allocation2 + $0x3b8] sm:$0xff] %v8262
    %8530 = vst [vmem:[#allocation2 + $0x3c0] sm:$0xff] %v8263
    %8531 = vst [vmem:[#allocation2 + $0x3c8] sm:$0xff] %v8264
    %8532 = vst [vmem:[#allocation2 + $0x3d0] sm:$0xff] %v8265
    %8533 = vst [vmem:[#allocation2 + $0x3d8] sm:$0xff] %v8266
    %8534 = vst [vmem:[#allocation2 + $0x3e0] sm:$0xff] %v8267
    %8535 = vst.msk [vmem:[#allocation2 + $0x3e8] sm:$0xff] %vm8415, %v8268
    %8536 = vst [vmem:[#allocation2 + $0x3f0] sm:$0xff] %v8269
    %8537 = vst [vmem:[#allocation2 + $0x3f8] sm:$0xff] %v8270
    %8538 = vst [vmem:[#allocation2 + $0x400] sm:$0xff] %v8271
    %8539 = vst [vmem:[#allocation2 + $0x408] sm:$0xff] %v8272
    %8540 = vst [vmem:[#allocation2 + $0x410] sm:$0xff] %v8273
    %8541 = vst [vmem:[#allocation2 + $0x418] sm:$0xff] %v8274
    %8542 = vst.msk [vmem:[#allocation2 + $0x420] sm:$0xff] %vm8415, %v8275
    %8543 = vst [vmem:[#allocation2 + $0x428] sm:$0xff] %v8276
    %8544 = vst [vmem:[#allocation2 + $0x430] sm:$0xff] %v8277
    %8545 = vst [vmem:[#allocation2 + $0x438] sm:$0xff] %v8278
    %8546 = vst [vmem:[#allocation2 + $0x440] sm:$0xff] %v8279
    %8547 = vst [vmem:[#allocation2 + $0x448] sm:$0xff] %v8280
    %8548 = vst [vmem:[#allocation2 + $0x450] sm:$0xff] %v8281
    %8549 = vst.msk [vmem:[#allocation2 + $0x458] sm:$0xff] %vm8415, %v8282
    %8550 = vst [vmem:[#allocation2 + $0x460] sm:$0xff] %v8283
    %8551 = vst [vmem:[#allocation2 + $0x468] sm:$0xff] %v8284
    %8552 = vst [vmem:[#allocation2 + $0x470] sm:$0xff] %v8285
    %8553 = vst [vmem:[#allocation2 + $0x478] sm:$0xff] %v8286
    %8554 = vst [vmem:[#allocation2 + $0x480] sm:$0xff] %v8287
    %8555 = vst [vmem:[#allocation2 + $0x488] sm:$0xff] %v8288
    %8556 = vst.msk [vmem:[#allocation2 + $0x490] sm:$0xff] %vm8415, %v8289
    %8557 = vst [vmem:[#allocation2 + $0x498] sm:$0xff] %v8290
    %8558 = vst [vmem:[#allocation2 + $0x4a0] sm:$0xff] %v8291
    %8559 = vst [vmem:[#allocation2 + $0x4a8] sm:$0xff] %v8292
    %8560 = vst [vmem:[#allocation2 + $0x4b0] sm:$0xff] %v8293
    %8561 = vst [vmem:[#allocation2 + $0x4b8] sm:$0xff] %v8294
    %8562 = vst [vmem:[#allocation2 + $0x4c0] sm:$0xff] %v8295
    %8563 = vst.msk [vmem:[#allocation2 + $0x4c8] sm:$0xff] %vm8415, %v8296
    %8564 = vst [vmem:[#allocation2 + $0x4d0] sm:$0xff] %v8297
    %8565 = vst [vmem:[#allocation2 + $0x4d8] sm:$0xff] %v8298
    %8566 = vst [vmem:[#allocation2 + $0x4e0] sm:$0xff] %v8299
    %8567 = vst [vmem:[#allocation2 + $0x4e8] sm:$0xff] %v8300
    %8568 = vst [vmem:[#allocation2 + $0x4f0] sm:$0xff] %v8301
    %8569 = vst [vmem:[#allocation2 + $0x4f8] sm:$0xff] %v8302
    %8570 = vst.msk [vmem:[#allocation2 + $0x500] sm:$0xff] %vm8415, %v8303
    %8571 = vst [vmem:[#allocation2 + $0x508] sm:$0xff] %v8304
    %8572 = vst [vmem:[#allocation2 + $0x510] sm:$0xff] %v8305
    %8573 = vst [vmem:[#allocation2 + $0x518] sm:$0xff] %v8306
    %8574 = vst [vmem:[#allocation2 + $0x520] sm:$0xff] %v8307
    %8575 = vst [vmem:[#allocation2 + $0x528] sm:$0xff] %v8308
    %8576 = vst [vmem:[#allocation2 + $0x530] sm:$0xff] %v8309
    %8577 = vst.msk [vmem:[#allocation2 + $0x538] sm:$0xff] %vm8415, %v8310
    %8578 = vst [vmem:[#allocation2 + $0x540] sm:$0xff] %v8311
    %8579 = vst [vmem:[#allocation2 + $0x548] sm:$0xff] %v8312
    %8580 = vst [vmem:[#allocation2 + $0x550] sm:$0xff] %v8313
    %8581 = vst [vmem:[#allocation2 + $0x558] sm:$0xff] %v8314
    %8582 = vst [vmem:[#allocation2 + $0x560] sm:$0xff] %v8315
    %8583 = vst [vmem:[#allocation2 + $0x568] sm:$0xff] %v8316
    %8584 = vst.msk [vmem:[#allocation2 + $0x570] sm:$0xff] %vm8415, %v8317
    %8585 = vst [vmem:[#allocation2 + $0x578] sm:$0xff] %v8318
    %8586 = vst [vmem:[#allocation2 + $0x580] sm:$0xff] %v8319
    %8587 = vst [vmem:[#allocation2 + $0x588] sm:$0xff] %v8320
    %8588 = vst [vmem:[#allocation2 + $0x590] sm:$0xff] %v8321
    %8589 = vst [vmem:[#allocation2 + $0x598] sm:$0xff] %v8322
    %8590 = vst [vmem:[#allocation2 + $0x5a0] sm:$0xff] %v8323
    %8591 = vst.msk [vmem:[#allocation2 + $0x5a8] sm:$0xff] %vm8415, %v8324
    %8592 = vst [vmem:[#allocation2 + $0x5b0] sm:$0xff] %v8325
    %8593 = vst [vmem:[#allocation2 + $0x5b8] sm:$0xff] %v8326
    %8594 = vst [vmem:[#allocation2 + $0x5c0] sm:$0xff] %v8327
    %8595 = vst [vmem:[#allocation2 + $0x5c8] sm:$0xff] %v8328
    %8596 = vst [vmem:[#allocation2 + $0x5d0] sm:$0xff] %v8329
    %8597 = vst [vmem:[#allocation2 + $0x5d8] sm:$0xff] %v8330
    %8598 = vst.msk [vmem:[#allocation2 + $0x5e0] sm:$0xff] %vm8415, %v8331
    %8599 = vst [vmem:[#allocation2 + $0x5e8] sm:$0xff] %v8332
    %8600 = vst [vmem:[#allocation2 + $0x5f0] sm:$0xff] %v8333
    %8601 = vst [vmem:[#allocation2 + $0x5f8] sm:$0xff] %v8334
    %8602 = vst [vmem:[#allocation2 + $0x600] sm:$0xff] %v8335
    %8603 = vst [vmem:[#allocation2 + $0x608] sm:$0xff] %v8336
    %8604 = vst [vmem:[#allocation2 + $0x610] sm:$0xff] %v8337
    %8605 = vst.msk [vmem:[#allocation2 + $0x618] sm:$0xff] %vm8415, %v8338
    %8606 = vst [vmem:[#allocation2 + $0x620] sm:$0xff] %v8339
    %8607 = vst [vmem:[#allocation2 + $0x628] sm:$0xff] %v8340
    %8608 = vst [vmem:[#allocation2 + $0x630] sm:$0xff] %v8341
    %8609 = vst [vmem:[#allocation2 + $0x638] sm:$0xff] %v8342
    %8610 = vst [vmem:[#allocation2 + $0x640] sm:$0xff] %v8343
    %8611 = vst [vmem:[#allocation2 + $0x648] sm:$0xff] %v8344
    %8612 = vst.msk [vmem:[#allocation2 + $0x650] sm:$0xff] %vm8415, %v8345
    %8613 = vst [vmem:[#allocation2 + $0x658] sm:$0xff] %v8346
    %8614 = vst [vmem:[#allocation2 + $0x660] sm:$0xff] %v8347
    %8615 = vst [vmem:[#allocation2 + $0x668] sm:$0xff] %v8348
    %8616 = vst [vmem:[#allocation2 + $0x670] sm:$0xff] %v8349
    %8617 = vst [vmem:[#allocation2 + $0x678] sm:$0xff] %v8350
    %8618 = vst [vmem:[#allocation2 + $0x680] sm:$0xff] %v8351
    %8619 = vst.msk [vmem:[#allocation2 + $0x688] sm:$0xff] %vm8415, %v8352
    %8620 = vst [vmem:[#allocation2 + $0x690] sm:$0xff] %v8353
    %8621 = vst [vmem:[#allocation2 + $0x698] sm:$0xff] %v8354
    %8622 = vst [vmem:[#allocation2 + $0x6a0] sm:$0xff] %v8355
    %8623 = vst [vmem:[#allocation2 + $0x6a8] sm:$0xff] %v8356
    %8624 = vst [vmem:[#allocation2 + $0x6b0] sm:$0xff] %v8357
    %8625 = vst [vmem:[#allocation2 + $0x6b8] sm:$0xff] %v8358
    %8626 = vst.msk [vmem:[#allocation2 + $0x6c0] sm:$0xff] %vm8415, %v8359
    %8627 = vst [vmem:[#allocation2 + $0x6c8] sm:$0xff] %v8360
    %8628 = vst [vmem:[#allocation2 + $0x6d0] sm:$0xff] %v8361
    %8629 = vst [vmem:[#allocation2 + $0x6d8] sm:$0xff] %v8362
    %8630 = vst [vmem:[#allocation2 + $0x6e0] sm:$0xff] %v8363
    %8631 = vst [vmem:[#allocation2 + $0x6e8] sm:$0xff] %v8364
    %8632 = vst [vmem:[#allocation2 + $0x6f0] sm:$0xff] %v8365
    %8633 = vst.msk [vmem:[#allocation2 + $0x6f8] sm:$0xff] %vm8415, %v8366
    %8634 = vst [vmem:[#allocation2 + $0x700] sm:$0xff] %v8367
    %8635 = vst [vmem:[#allocation2 + $0x708] sm:$0xff] %v8368
    %8636 = vst [vmem:[#allocation2 + $0x710] sm:$0xff] %v8369
    %8637 = vst [vmem:[#allocation2 + $0x718] sm:$0xff] %v8370
    %8638 = vst [vmem:[#allocation2 + $0x720] sm:$0xff] %v8371
    %8639 = vst [vmem:[#allocation2 + $0x728] sm:$0xff] %v8372
    %8640 = vst.msk [vmem:[#allocation2 + $0x730] sm:$0xff] %vm8415, %v8373
    %8641 = vst [vmem:[#allocation2 + $0x738] sm:$0xff] %v8374
    %8642 = vst [vmem:[#allocation2 + $0x740] sm:$0xff] %v8375
    %8643 = vst [vmem:[#allocation2 + $0x748] sm:$0xff] %v8376
    %8644 = vst [vmem:[#allocation2 + $0x750] sm:$0xff] %v8377
    %8645 = vst [vmem:[#allocation2 + $0x758] sm:$0xff] %v8378
    %8646 = vst [vmem:[#allocation2 + $0x760] sm:$0xff] %v8379
    %8647 = vst.msk [vmem:[#allocation2 + $0x768] sm:$0xff] %vm8415, %v8380
    %8648 = vst [vmem:[#allocation2 + $0x770] sm:$0xff] %v8381
    %8649 = vst [vmem:[#allocation2 + $0x778] sm:$0xff] %v8382
    %8650 = vst [vmem:[#allocation2 + $0x780] sm:$0xff] %v8383
    %8651 = vst [vmem:[#allocation2 + $0x788] sm:$0xff] %v8384
    %8652 = vst [vmem:[#allocation2 + $0x790] sm:$0xff] %v8385
    %8653 = vst [vmem:[#allocation2 + $0x798] sm:$0xff] %v8386
    %8654 = vst.msk [vmem:[#allocation2 + $0x7a0] sm:$0xff] %vm8415, %v8387
    %8655 = vst [vmem:[#allocation2 + $0x7a8] sm:$0xff] %v8388
    %8656 = vst [vmem:[#allocation2 + $0x7b0] sm:$0xff] %v8389
    %8657 = vst [vmem:[#allocation2 + $0x7b8] sm:$0xff] %v8390
    %8658 = vst [vmem:[#allocation2 + $0x7c0] sm:$0xff] %v8391
    %8659 = vst [vmem:[#allocation2 + $0x7c8] sm:$0xff] %v8392
    %8660 = vst [vmem:[#allocation2 + $0x7d0] sm:$0xff] %v8393
    %8661 = vst.msk [vmem:[#allocation2 + $0x7d8] sm:$0xff] %vm8415, %v8394
    %8662 = vst [vmem:[#allocation2 + $0x7e0] sm:$0xff] %v8395
    %8663 = vst [vmem:[#allocation2 + $0x7e8] sm:$0xff] %v8396
    %8664 = vst [vmem:[#allocation2 + $0x7f0] sm:$0xff] %v8397
    %8665 = vst [vmem:[#allocation2 + $0x7f8] sm:$0xff] %v8398
    %8666 = vst [vmem:[#allocation2 + $0x800] sm:$0xff] %v8399
    %8667 = vst [vmem:[#allocation2 + $0x808] sm:$0xff] %v8400
    %8668 = vst.msk [vmem:[#allocation2 + $0x810] sm:$0xff] %vm8415, %v8401
    %8669 = vst [vmem:[#allocation2 + $0x818] sm:$0xff] %v8402
    %8670 = vst [vmem:[#allocation2 + $0x820] sm:$0xff] %v8403
    %8671 = vst [vmem:[#allocation2 + $0x828] sm:$0xff] %v8404
    %8672 = vst [vmem:[#allocation2 + $0x830] sm:$0xff] %v8405
    %8673 = vst [vmem:[#allocation2 + $0x838] sm:$0xff] %v8406
    %8674 = vst [vmem:[#allocation2 + $0x840] sm:$0xff] %v8407
    %8675 = vst.msk [vmem:[#allocation2 + $0x848] sm:$0xff] %vm8415, %v8408
    // Predicated region
    $region54: #{tpu_custom_call.1} parent=1 // pred_check
      _
    $region55: #{tpu_custom_call.1} parent=1 // pred_check_branch
      %8677 = sbr.rel (0) target = $region57
    $region56: #{tpu_custom_call.1} parent=1 // pred_region
      %8679 = vsyncadd [#allocation3], 0
      %s8680 = sshll.u32 [#allocation2], 4
      %s8681 = int_to_ptr.vmem [resolvable:$true] %s8680
      %s8682 = sshll.u32 %s13, 4
      %s8683 = int_to_ptr.hbm [resolvable:$true] %s8682
      %8688 = dma.vmem_to_hbm [thread:$0]  %s8681, 34048, %s8683, [#allocation3], 896, 896, 56
    $region57: #{tpu_custom_call.1} parent=1 // pred_fallthru
      _
    // Predicated region
    $region58: #{tpu_custom_call.1} parent=1 // pred_check
      _
    $region59: #{tpu_custom_call.1} parent=1 // pred_check_branch
      %8690 = sbr.rel (0) target = $region61
    $region60: #{tpu_custom_call.1} parent=1 // pred_region
      %8692 = dma.done [#allocation3], 34048
    $region61: #{tpu_custom_call.1} parent=1 // pred_fallthru
      _
    %8693 = vsyncpa [#allocation3], 1

</llo_original>
